<compile_context>
chip_gen: v7x
topology: tpu7x:2x2x1
jax: 0.10.0
libtpu: 0.0.40
codegen_flags: <defaults>
</compile_context>

<pallas_src>
import functools
import math

import jax
import jax.numpy as jnp
from jax.experimental import pallas as pl
from jax.experimental.pallas import tpu as pltpu

# ----------------------- config (small shapes) ------------------------------
B = 2          # batch (number of graphs)
S_SRC = 8      # max 'identifier' nodes per graph
T_FULL = 9     # target length incl. <s> ... </s>
D = 32         # embedding_dim / encoder_dim
HFF = 64       # hidden_size (FFN)
NHEAD = 4
N_ENC = 2      # nlayers[0]
N_DEC = 2      # nlayers[1]
V_SRC = 50
V_TGT = 60
MAX_POS = 64
NEG_INF = -1e9


# --------------------------- in-kernel helpers -------------------------------

def _layer_norm(h, g, b):
    # f32 VPU math (v5e has no bf16 elementwise path).
    mu = jnp.mean(h, axis=-1, keepdims=True)
    var = jnp.mean((h - mu) ** 2, axis=-1, keepdims=True)
    return (h - mu) * jax.lax.rsqrt(var + 1e-5) * g + b


def _mha(qt, kt, vt, bias, nhead):
    """Head-batched multi-head attention on head-major operands.

    qt: (D, Tq) f32, kt/vt: (D, Tk) f32, bias broadcastable to (Tq, Tk) f32.
    The head split is a free sublane-tile reshape (D is the leading axis);
    both contractions are single batched MXU dot_generals (bf16 in, f32 acc),
    softmax stays f32.  Returns (Tq, D) f32.
    """
    Dm, Tq = qt.shape
    Dh = Dm // nhead
    scale = 1.0 / math.sqrt(Dh)
    qh = qt.reshape(nhead, Dh, Tq).astype(jnp.bfloat16)
    kh = kt.reshape(nhead, Dh, -1).astype(jnp.bfloat16)
    vh = vt.reshape(nhead, Dh, -1).astype(jnp.bfloat16)
    # s[h, q, k] = sum_d qh[h, d, q] * kh[h, d, k]
    s = jax.lax.dot_general(qh, kh, (((1,), (1,)), ((0,), (0,))),
                            preferred_element_type=jnp.float32) * scale
    s = s + bias                                     # (h, Tq, Tk), bias bcasts
    s = s - jnp.max(s, axis=-1, keepdims=True)
    p = jnp.exp(s)
    p = p / jnp.sum(p, axis=-1, keepdims=True)
    # o[h, d, q] = sum_k vh[h, d, k] * p[h, q, k]
    o = jax.lax.dot_general(vh, p.astype(jnp.bfloat16),
                            (((2,), (2,)), ((0,), (0,))),
                            preferred_element_type=jnp.float32)
    return o.reshape(Dm, Tq).T                       # (Tq, D)


# ------------------------------ fused kernel ---------------------------------

def _fused_forward_kernel(
        x0_ref, adj_ref, padrow_ref, padcol_ref, tgt_ref, gold_ref, cmask_ref,
        gmask_ref,
        ewqkv_ref, ewo_ref, ewa_ref, evec_ref,
        dswqkv_ref, dswo_ref, dcwq_ref, dcwkv_ref, dcwo_ref, dw1_ref, dw2_ref,
        dvec_ref,
        rw_ref, cw_ref, sw_ref, hvec_ref,
        o_ref, *, nhead):
    S = x0_ref.shape[1]
    Dm = x0_ref.shape[2]
    T = tgt_ref.shape[1]
    Vt = rw_ref.shape[-1]
    Hf = dw1_ref.shape[-1]
    n_enc = ewqkv_ref.shape[0]
    n_dec = dswqkv_ref.shape[0]

    # ------------------------------ encoder ----------------------------------
    x = x0_ref[0]                                    # (S, D) f32 residual
    adj_bias = adj_ref[0]                            # (S, S) f32
    for l in range(n_enc):
        vec = evec_ref[l]                            # (8, 3D) packed f32
        bqkv = vec[0:1, :]
        bo = vec[1:2, :Dm]
        ba = vec[2:3, :Dm]
        lng = vec[3:4, :Dm]
        lnb = vec[4:5, :Dm]
        skip = vec[5:6, 0:1]                         # (1, 1)

        qkv = jnp.dot(x.astype(jnp.bfloat16), ewqkv_ref[l],
                      preferred_element_type=jnp.float32) + bqkv   # (S, 3D)
        qkv_t = qkv.T                                              # (3D, S)
        attn = _mha(qkv_t[:Dm], qkv_t[Dm:2 * Dm], qkv_t[2 * Dm:],
                    adj_bias, nhead)
        attn = jnp.dot(attn.astype(jnp.bfloat16), ewo_ref[l],
                       preferred_element_type=jnp.float32) + bo

        # A-linear + gelu, sigmoid-skip blend, LayerNorm
        a = jnp.dot(attn.astype(jnp.bfloat16), ewa_ref[l],
                    preferred_element_type=jnp.float32) + ba
        a = jax.nn.gelu(a)
        alpha = jax.nn.sigmoid(skip)
        h = alpha * a + (1.0 - alpha) * x
        x = _layer_norm(h, lng, lnb)

    # zero padded identifier rows (batch_different_length_tensor semantics)
    enc = x * (1.0 - padcol_ref[0])                  # (S, D) f32
    enc_bf = enc.astype(jnp.bfloat16)
    cross_bias = padrow_ref[0] * NEG_INF             # (1, S) f32

    # ------------------------------ decoder ----------------------------------
    rows = jax.lax.broadcasted_iota(jnp.int32, (T, T), 0)
    cols = jax.lax.broadcasted_iota(jnp.int32, (T, T), 1)
    causal_bias = (cols > rows).astype(jnp.float32) * NEG_INF      # (T, T)

    y = tgt_ref[0]                                   # (T, D) f32 residual
    for l in range(n_dec):
        vec = dvec_ref[l]                            # (16, 3D) packed f32
        sbqkv = vec[0:1, :]
        sbo = vec[1:2, :Dm]
        cbq = vec[2:3, :Dm]
        cbkv = vec[3:4, :2 * Dm]
        cbo = vec[4:5, :Dm]
        b1 = vec[5:6, :Hf]
        b2 = vec[6:7, :Dm]
        ln1g, ln1b = vec[7:8, :Dm], vec[8:9, :Dm]
        ln2g, ln2b = vec[9:10, :Dm], vec[10:11, :Dm]
        ln3g, ln3b = vec[11:12, :Dm], vec[12:13, :Dm]

        # causal self-attention (fused QKV)
        qkv = jnp.dot(y.astype(jnp.bfloat16), dswqkv_ref[l],
                      preferred_element_type=jnp.float32) + sbqkv
        qkv_t = qkv.T                                # (3D, T)
        sa = _mha(qkv_t[:Dm], qkv_t[Dm:2 * Dm], qkv_t[2 * Dm:],
                  causal_bias, nhead)
        sa = jnp.dot(sa.astype(jnp.bfloat16), dswo_ref[l],
                     preferred_element_type=jnp.float32) + sbo
        y = _layer_norm(y + sa, ln1g, ln1b)

        # cross-attention over encoder output (fused KV)
        q = jnp.dot(y.astype(jnp.bfloat16), dcwq_ref[l],
                    preferred_element_type=jnp.float32) + cbq      # (T, D)
        kv = jnp.dot(enc_bf, dcwkv_ref[l],
                     preferred_element_type=jnp.float32) + cbkv    # (S, 2D)
        kv_t = kv.T                                  # (2D, S)
        ca = _mha(q.T, kv_t[:Dm], kv_t[Dm:], cross_bias, nhead)
        ca = jnp.dot(ca.astype(jnp.bfloat16), dcwo_ref[l],
                     preferred_element_type=jnp.float32) + cbo
        y = _layer_norm(y + ca, ln2g, ln2b)

        # feed-forward
        ff = jnp.dot(y.astype(jnp.bfloat16), dw1_ref[l],
                     preferred_element_type=jnp.float32) + b1
        ff = jnp.maximum(ff, 0.0)
        ff = jnp.dot(ff.astype(jnp.bfloat16), dw2_ref[l],
                     preferred_element_type=jnp.float32) + b2
        y = _layer_norm(y + ff, ln3g, ln3b)

    # --------------------------- copy/generate head ---------------------------
    hvec = hvec_ref[...]
    rb = hvec[0:1, :Vt]
    cb = hvec[1:2, :Dm]
    sb = hvec[2:3, :2]
    yb = y.astype(jnp.bfloat16)

    # generation distribution + gold-token gather via iota compare
    gl = jnp.dot(yb, rw_ref[...], preferred_element_type=jnp.float32) + rb
    gl = gl - jnp.max(gl, axis=-1, keepdims=True)
    ge = jnp.exp(gl)
    gen_prob = ge / jnp.sum(ge, axis=-1, keepdims=True)             # (T, Vt)
    gold = gold_ref[0]                                              # (T, 1) i32
    vt_iota = jax.lax.broadcasted_iota(jnp.int32, (T, Vt), 1)
    gold_onehot = (vt_iota == gold).astype(jnp.float32)
    gen_gold = jnp.sum(gen_prob * gold_onehot, axis=-1, keepdims=True)

    # copy attention: projection, QK^T, bias and softmax fused
    hq = jnp.dot(yb, cw_ref[...], preferred_element_type=jnp.float32) + cb
    cs = jax.lax.dot_general(hq.astype(jnp.bfloat16), enc_bf,
                             (((1,), (1,)), ((), ())),
                             preferred_element_type=jnp.float32)    # (T, S)
    cs = cs + cross_bias
    cs = cs - jnp.max(cs, axis=-1, keepdims=True)
    ce = jnp.exp(cs)
    copy_att = ce / jnp.sum(ce, axis=-1, keepdims=True)
    copy_p = jnp.sum(copy_att * cmask_ref[0], axis=-1, keepdims=True)

    # generate/copy switch (2-way softmax)
    sl = jnp.dot(yb, sw_ref[...], preferred_element_type=jnp.float32) + sb
    sl = sl - jnp.max(sl, axis=-1, keepdims=True)
    se = jnp.exp(sl)
    sw = se / jnp.sum(se, axis=-1, keepdims=True)                   # (T, 2)

    prob = sw[:, 0:1] * gen_gold * gmask_ref[0] + sw[:, 1:2] * copy_p
    pad = (gold != 0).astype(jnp.float32)                           # (T, 1)
    logp = jnp.log(prob + 1e-10) * pad
    score = jnp.sum(logp, axis=0, keepdims=True)                    # (1, 1)
    o_ref[0] = jnp.broadcast_to(score, (1, 128))                    # lane-dense


# ------------------------------- full forward ---------------------------------

def hgt_copy_transformer_forward(params, node_ids, adj_bias, src_pad_mask,
                                 tgt_inputs, copy_idx_mask, gen_mask):
    # embedding gathers / positional encoding stay in XLA
    x0 = params["src_emb"][node_ids]                        # [B, S, D]
    tgt_in = tgt_inputs[:, :-1]
    gold = tgt_inputs[:, 1:]
    Bn, T = tgt_in.shape
    S = x0.shape[1]
    Dm = params["tgt_emb"].shape[1]
    Vt = params["readout_w"].shape[1]
    Hf = params["dec_w1"].shape[-1]

    tgt_x = params["tgt_emb"][tgt_in] * math.sqrt(Dm) + params["pos_enc"][:T][None]
    pad_row = src_pad_mask[:, None, :]                      # [B, 1, S]
    pad_col = src_pad_mask[:, :, None]                      # [B, S, 1]
    gold3 = gold[:, :, None].astype(jnp.int32)              # [B, T, 1]
    gmask3 = gen_mask[:, :, None]                           # [B, T, 1]

    bidx = lambda b: (b, 0, 0)        # per-example blocks
    w3 = lambda b: (0, 0, 0)          # weights: constant index -> DMA'd once
    w2 = lambda b: (0, 0)

    out = pl.pallas_call(
        functools.partial(_fused_forward_kernel, nhead=NHEAD),
        out_shape=jax.ShapeDtypeStruct((Bn, 1, 128), jnp.float32),
        grid=(Bn,),
        in_specs=[
            pl.BlockSpec((1, S, Dm), bidx),           # node embeddings
            pl.BlockSpec((1, S, S), bidx),            # adjacency bias
            pl.BlockSpec((1, 1, S), bidx),            # src pad mask (row form)
            pl.BlockSpec((1, S, 1), bidx),            # src pad mask (col form)
            pl.BlockSpec((1, T, Dm), bidx),           # embedded targets
            pl.BlockSpec((1, T, 1), bidx),            # gold token ids (int32)
            pl.BlockSpec((1, T, S), bidx),            # copy-index mask
            pl.BlockSpec((1, T, 1), bidx),            # gen mask
            pl.BlockSpec((N_ENC, Dm, 3 * Dm), w3),    # enc fused wqkv
            pl.BlockSpec((N_ENC, Dm, Dm), w3),        # enc wo
            pl.BlockSpec((N_ENC, Dm, Dm), w3),        # enc wa
            pl.BlockSpec((N_ENC, 8, 3 * Dm), w3),     # enc packed vectors
            pl.BlockSpec((N_DEC, Dm, 3 * Dm), w3),    # dec self wqkv
            pl.BlockSpec((N_DEC, Dm, Dm), w3),        # dec self wo
            pl.BlockSpec((N_DEC, Dm, Dm), w3),        # dec cross wq
            pl.BlockSpec((N_DEC, Dm, 2 * Dm), w3),    # dec cross wkv
            pl.BlockSpec((N_DEC, Dm, Dm), w3),        # dec cross wo
            pl.BlockSpec((N_DEC, Dm, Hf), w3),        # dec ffn w1
            pl.BlockSpec((N_DEC, Hf, Dm), w3),        # dec ffn w2
            pl.BlockSpec((N_DEC, 16, 3 * Dm), w3),    # dec packed vectors
            pl.BlockSpec((Dm, Vt), w2),               # readout_w
            pl.BlockSpec((Dm, Dm), w2),               # copy_w
            pl.BlockSpec((Dm, 2), w2),                # switch_w
            pl.BlockSpec((8, 64), w2),                # head packed vectors
        ],
        out_specs=pl.BlockSpec((1, 1, 128), bidx),
        compiler_params=pltpu.CompilerParams(
            dimension_semantics=("parallel",)),
    )(x0, adj_bias, pad_row, pad_col, tgt_x, gold3, copy_idx_mask, gmask3,
      params["enc_wqkv"], params["enc_wo"], params["enc_wa"], params["enc_vec"],
      params["dec_swqkv"], params["dec_swo"], params["dec_cwq"],
      params["dec_cwkv"], params["dec_cwo"], params["dec_w1"], params["dec_w2"],
      params["dec_vec"],
      params["readout_w"], params["copy_w"], params["switch_w"],
      params["head_vec"])
    return out[:, 0, 0]                               # per-example log-prob score


forward = jax.jit(hgt_copy_transformer_forward)


# ------------------------------ parameter init --------------------------------

def init_params(key):
    keys = iter(jax.random.split(key, 64))
    bf = jnp.bfloat16

    def nrm(shape):
        return jax.random.normal(next(keys), shape, jnp.float32) * 0.02

    def zeros(shape):
        return jnp.zeros(shape, jnp.float32)

    def ones(shape):
        return jnp.ones(shape, jnp.float32)

    pos = jnp.arange(MAX_POS, dtype=jnp.float32)[:, None]
    div = jnp.exp(jnp.arange(0, D, 2, dtype=jnp.float32) * (-math.log(10000.0) / D))
    pe = jnp.zeros((MAX_POS, D), jnp.float32)
    pe = pe.at[:, 0::2].set(jnp.sin(pos * div)).at[:, 1::2].set(jnp.cos(pos * div))

    def pack_rows(rows, width, n_rows):
        """rows: list of (L, w_i) f32 arrays -> (L, n_rows, width) packed slab."""
        L = rows[0].shape[0]
        out = jnp.zeros((L, n_rows, width), jnp.float32)
        for r, row in enumerate(rows):
            out = out.at[:, r, :row.shape[-1]].set(row)
        return out

    # encoder small vectors packed: bqkv | bo | ba | ln_g | ln_b | skip
    enc_vec = pack_rows(
        [zeros((N_ENC, 3 * D)),
         zeros((N_ENC, D)),
         zeros((N_ENC, D)),
         ones((N_ENC, D)),
         zeros((N_ENC, D)),
         ones((N_ENC, 1))],
        3 * D, 8)

    # decoder small vectors packed:
    # sbqkv | sbo | cbq | cbkv | cbo | b1 | b2 | ln1g | ln1b | ln2g | ln2b | ln3g | ln3b
    dec_vec = pack_rows(
        [zeros((N_DEC, 3 * D)),
         zeros((N_DEC, D)),
         zeros((N_DEC, D)),
         zeros((N_DEC, 2 * D)),
         zeros((N_DEC, D)),
         zeros((N_DEC, HFF)),
         zeros((N_DEC, D)),
         ones((N_DEC, D)), zeros((N_DEC, D)),
         ones((N_DEC, D)), zeros((N_DEC, D)),
         ones((N_DEC, D)), zeros((N_DEC, D))],
        3 * D, 16)

    # head small vectors packed: readout_b | copy_b | switch_b
    head_vec = pack_rows(
        [zeros((1, V_TGT)), zeros((1, D)), zeros((1, 2))], 64, 8)[0]

    return dict(
        src_emb=nrm((V_SRC, D)).at[0].set(0.0),   # padding_idx=0 zeroed
        tgt_emb=nrm((V_TGT, D)).at[0].set(0.0),
        pos_enc=pe,
        # encoder layers stacked over layer axis; matmul weights pre-cast bf16
        enc_wqkv=nrm((N_ENC, D, 3 * D)).astype(bf),
        enc_wo=nrm((N_ENC, D, D)).astype(bf),
        enc_wa=nrm((N_ENC, D, D)).astype(bf),
        enc_vec=enc_vec,
        # decoder layers stacked
        dec_swqkv=nrm((N_DEC, D, 3 * D)).astype(bf),
        dec_swo=nrm((N_DEC, D, D)).astype(bf),
        dec_cwq=nrm((N_DEC, D, D)).astype(bf),
        dec_cwkv=nrm((N_DEC, D, 2 * D)).astype(bf),
        dec_cwo=nrm((N_DEC, D, D)).astype(bf),
        dec_w1=nrm((N_DEC, D, HFF)).astype(bf),
        dec_w2=nrm((N_DEC, HFF, D)).astype(bf),
        dec_vec=dec_vec,
        # copy/generate head
        readout_w=nrm((D, V_TGT)).astype(bf),
        copy_w=nrm((D, D)).astype(bf),
        switch_w=nrm((D, 2)).astype(bf),
        head_vec=head_vec,
    )


# ----------------------------------- main --------------------------------------

if __name__ == "__main__":
    key = jax.random.PRNGKey(0)
    kp, kn, kt = jax.random.split(key, 3)
    params = init_params(kp)

    # 'identifier' nodes of the batched graph, with per-graph counts [8, 6]
    lengths = jnp.array([8, 6], dtype=jnp.int32)
    pos = jnp.arange(S_SRC)
    src_pad_mask = (pos[None, :] >= lengths[:, None]).astype(jnp.float32)
    node_ids = jax.random.randint(kn, (B, S_SRC), 1, V_SRC).astype(jnp.int32)
    node_ids = node_ids * (1 - src_pad_mask).astype(jnp.int32)

    # dense stand-in for the DGL graph structure: chain + self loops
    ii, jj = pos[:, None], pos[None, :]
    adj = jnp.broadcast_to((jnp.abs(ii - jj) <= 1).astype(jnp.float32)[None],
                           (B, S_SRC, S_SRC))
    adj = adj * (1.0 - src_pad_mask)[:, None, :] * (1.0 - src_pad_mask)[:, :, None]
    adj_bias = (1.0 - adj) * NEG_INF

    # target sentences with boundary symbols: <s>=1, </s>=2, pad=0
    tgt_body = jax.random.randint(kt, (B, T_FULL - 2), 3, V_TGT).astype(jnp.int32)
    tgt_inputs = jnp.concatenate(
        [jnp.full((B, 1), 1, jnp.int32), tgt_body, jnp.full((B, 1), 2, jnp.int32)],
        axis=1)
    gold = tgt_inputs[:, 1:]
    T = T_FULL - 1

    # synthetic deterministic generate/copy meta tensors
    copy_idx_mask = ((node_ids[:, None, :] % 7) == (gold[:, :, None] % 7)
                     ).astype(jnp.float32) * (1.0 - src_pad_mask)[:, None, :]
    gen_mask = jnp.ones((B, T), jnp.float32)

    scores = forward(params, node_ids, adj_bias, src_pad_mask, tgt_inputs,
                     copy_idx_mask, gen_mask)
    jax.block_until_ready(scores)
    assert scores.shape == (B,) and bool(jnp.all(jnp.isfinite(scores)))
    print("KERNEL_OK")
</pallas_src>

<mosaic_0001>
module attributes {stable_mosaic.version = 11 : i64} {
  func.func @_fused_forward_kernel(%arg0: i32, %arg1: memref<1x8x32xf32, #tpu.memory_space<vmem>>, %arg2: memref<1x8x8xf32, #tpu.memory_space<vmem>>, %arg3: memref<1x1x8xf32, #tpu.memory_space<vmem>>, %arg4: memref<1x8x1xf32, #tpu.memory_space<vmem>>, %arg5: memref<1x8x32xf32, #tpu.memory_space<vmem>>, %arg6: memref<1x8x1xi32, #tpu.memory_space<vmem>>, %arg7: memref<1x8x8xf32, #tpu.memory_space<vmem>>, %arg8: memref<1x8x1xf32, #tpu.memory_space<vmem>>, %arg9: memref<2x32x96xbf16, #tpu.memory_space<vmem>>, %arg10: memref<2x32x32xbf16, #tpu.memory_space<vmem>>, %arg11: memref<2x32x32xbf16, #tpu.memory_space<vmem>>, %arg12: memref<2x8x96xf32, #tpu.memory_space<vmem>>, %arg13: memref<2x32x96xbf16, #tpu.memory_space<vmem>>, %arg14: memref<2x32x32xbf16, #tpu.memory_space<vmem>>, %arg15: memref<2x32x32xbf16, #tpu.memory_space<vmem>>, %arg16: memref<2x32x64xbf16, #tpu.memory_space<vmem>>, %arg17: memref<2x32x32xbf16, #tpu.memory_space<vmem>>, %arg18: memref<2x32x64xbf16, #tpu.memory_space<vmem>>, %arg19: memref<2x64x32xbf16, #tpu.memory_space<vmem>>, %arg20: memref<2x16x96xf32, #tpu.memory_space<vmem>>, %arg21: memref<32x60xbf16, #tpu.memory_space<vmem>>, %arg22: memref<32x32xbf16, #tpu.memory_space<vmem>>, %arg23: memref<32x2xbf16, #tpu.memory_space<vmem>>, %arg24: memref<8x64xf32, #tpu.memory_space<vmem>>, %arg25: memref<1x1x128xf32, #tpu.memory_space<vmem>>) attributes {dimension_semantics = [#tpu.dimension_semantics<parallel>], iteration_bounds = array<i64: 2>, scalar_prefetch = 0 : i64, scratch_operands = 0 : i64, tpu.core_type = #tpu.core_type<tc>, window_params = [{transform_indices = @transform_0, window_bounds = array<i64: 1, 8, 32>}, {transform_indices = @transform_1, window_bounds = array<i64: 1, 8, 8>}, {transform_indices = @transform_2, window_bounds = array<i64: 1, 1, 8>}, {transform_indices = @transform_3, window_bounds = array<i64: 1, 8, 1>}, {transform_indices = @transform_4, window_bounds = array<i64: 1, 8, 32>}, {transform_indices = @transform_5, window_bounds = array<i64: 1, 8, 1>}, {transform_indices = @transform_6, window_bounds = array<i64: 1, 8, 8>}, {transform_indices = @transform_7, window_bounds = array<i64: 1, 8, 1>}, {pipeline_mode = #tpu.pipeline_mode<synchronous>, transform_indices = @transform_8, window_bounds = array<i64: 2, 32, 96>}, {pipeline_mode = #tpu.pipeline_mode<synchronous>, transform_indices = @transform_9, window_bounds = array<i64: 2, 32, 32>}, {pipeline_mode = #tpu.pipeline_mode<synchronous>, transform_indices = @transform_10, window_bounds = array<i64: 2, 32, 32>}, {pipeline_mode = #tpu.pipeline_mode<synchronous>, transform_indices = @transform_11, window_bounds = array<i64: 2, 8, 96>}, {pipeline_mode = #tpu.pipeline_mode<synchronous>, transform_indices = @transform_12, window_bounds = array<i64: 2, 32, 96>}, {pipeline_mode = #tpu.pipeline_mode<synchronous>, transform_indices = @transform_13, window_bounds = array<i64: 2, 32, 32>}, {pipeline_mode = #tpu.pipeline_mode<synchronous>, transform_indices = @transform_14, window_bounds = array<i64: 2, 32, 32>}, {pipeline_mode = #tpu.pipeline_mode<synchronous>, transform_indices = @transform_15, window_bounds = array<i64: 2, 32, 64>}, {pipeline_mode = #tpu.pipeline_mode<synchronous>, transform_indices = @transform_16, window_bounds = array<i64: 2, 32, 32>}, {pipeline_mode = #tpu.pipeline_mode<synchronous>, transform_indices = @transform_17, window_bounds = array<i64: 2, 32, 64>}, {pipeline_mode = #tpu.pipeline_mode<synchronous>, transform_indices = @transform_18, window_bounds = array<i64: 2, 64, 32>}, {pipeline_mode = #tpu.pipeline_mode<synchronous>, transform_indices = @transform_19, window_bounds = array<i64: 2, 16, 96>}, {pipeline_mode = #tpu.pipeline_mode<synchronous>, transform_indices = @transform_20, window_bounds = array<i64: 32, 60>}, {pipeline_mode = #tpu.pipeline_mode<synchronous>, transform_indices = @transform_21, window_bounds = array<i64: 32, 32>}, {pipeline_mode = #tpu.pipeline_mode<synchronous>, transform_indices = @transform_22, window_bounds = array<i64: 32, 2>}, {pipeline_mode = #tpu.pipeline_mode<synchronous>, transform_indices = @transform_23, window_bounds = array<i64: 8, 64>}, {transform_indices = @transform_24, window_bounds = array<i64: 1, 1, 128>}]} {
    %c0 = arith.constant 0 : index
    %c0_0 = arith.constant 0 : index
    %c0_1 = arith.constant 0 : index
    %0 = vector.load %arg1[%c0, %c0_0, %c0_1] : memref<1x8x32xf32, #tpu.memory_space<vmem>>, vector<1x8x32xf32>
    %1 = vector.shape_cast %0 : vector<1x8x32xf32> to vector<8x32xf32>
    %c0_2 = arith.constant 0 : index
    %c0_3 = arith.constant 0 : index
    %c0_4 = arith.constant 0 : index
    %2 = vector.load %arg2[%c0_2, %c0_3, %c0_4] : memref<1x8x8xf32, #tpu.memory_space<vmem>>, vector<1x8x8xf32>
    %3 = vector.shape_cast %2 : vector<1x8x8xf32> to vector<8x8xf32>
    %c0_5 = arith.constant 0 : index
    %c0_6 = arith.constant 0 : index
    %c0_7 = arith.constant 0 : index
    %4 = vector.load %arg12[%c0_5, %c0_6, %c0_7] : memref<2x8x96xf32, #tpu.memory_space<vmem>>, vector<1x8x96xf32>
    %5 = vector.shape_cast %4 : vector<1x8x96xf32> to vector<8x96xf32>
    %6 = vector.extract_strided_slice %5 {offsets = [0, 0], sizes = [1, 96], strides = [1, 1]} : vector<8x96xf32> to vector<1x96xf32>
    %7 = vector.extract_strided_slice %5 {offsets = [1, 0], sizes = [1, 32], strides = [1, 1]} : vector<8x96xf32> to vector<1x32xf32>
    %8 = vector.extract_strided_slice %5 {offsets = [2, 0], sizes = [1, 32], strides = [1, 1]} : vector<8x96xf32> to vector<1x32xf32>
    %9 = vector.extract_strided_slice %5 {offsets = [3, 0], sizes = [1, 32], strides = [1, 1]} : vector<8x96xf32> to vector<1x32xf32>
    %10 = vector.extract_strided_slice %5 {offsets = [4, 0], sizes = [1, 32], strides = [1, 1]} : vector<8x96xf32> to vector<1x32xf32>
    %11 = vector.extract_strided_slice %5 {offsets = [5, 0], sizes = [1, 1], strides = [1, 1]} : vector<8x96xf32> to vector<1x1xf32>
    %12 = arith.truncf %1 : vector<8x32xf32> to vector<8x32xbf16>
    %c0_8 = arith.constant 0 : index
    %c0_9 = arith.constant 0 : index
    %c0_10 = arith.constant 0 : index
    %13 = vector.load %arg9[%c0_8, %c0_9, %c0_10] : memref<2x32x96xbf16, #tpu.memory_space<vmem>>, vector<1x32x96xbf16>
    %14 = vector.shape_cast %13 : vector<1x32x96xbf16> to vector<32x96xbf16>
    %cst = arith.constant dense<0.000000e+00> : vector<8x96xf32>
    %15 = tpu.matmul %12, %14, %cst {dimension_numbers = #tpu.dot_dimension_numbers<[1], [0], [0], [1], [0, 0, 1, 1], [], []>} : vector<8x32xbf16>, vector<32x96xbf16>, vector<8x96xf32> -> vector<8x96xf32>
    %16 = vector.broadcast %6 : vector<1x96xf32> to vector<8x96xf32>
    %17 = arith.addf %15, %16 : vector<8x96xf32>
    %18 = tpu.transpose %17, [1, 0] : vector<8x96xf32> -> vector<96x8xf32>
    %19 = vector.extract_strided_slice %18 {offsets = [0, 0], sizes = [32, 8], strides = [1, 1]} : vector<96x8xf32> to vector<32x8xf32>
    %20 = vector.extract_strided_slice %18 {offsets = [32, 0], sizes = [32, 8], strides = [1, 1]} : vector<96x8xf32> to vector<32x8xf32>
    %21 = vector.extract_strided_slice %18 {offsets = [64, 0], sizes = [32, 8], strides = [1, 1]} : vector<96x8xf32> to vector<32x8xf32>
    %22 = vector.shape_cast %19 : vector<32x8xf32> to vector<4x8x8xf32>
    %23 = arith.truncf %22 : vector<4x8x8xf32> to vector<4x8x8xbf16>
    %24 = vector.shape_cast %20 : vector<32x8xf32> to vector<4x8x8xf32>
    %25 = arith.truncf %24 : vector<4x8x8xf32> to vector<4x8x8xbf16>
    %26 = vector.shape_cast %21 : vector<32x8xf32> to vector<4x8x8xf32>
    %27 = arith.truncf %26 : vector<4x8x8xf32> to vector<4x8x8xbf16>
    %cst_11 = arith.constant dense<0.000000e+00> : vector<4x8x8xf32>
    %28 = tpu.matmul %23, %25, %cst_11 {dimension_numbers = #tpu.dot_dimension_numbers<[1], [1], [2], [2], [0, 0, 0, 2, 1, 2], [0], [0]>} : vector<4x8x8xbf16>, vector<4x8x8xbf16>, vector<4x8x8xf32> -> vector<4x8x8xf32>
    %cst_12 = arith.constant 0.353553385 : f32
    %29 = vector.broadcast %cst_12 : f32 to vector<4x8x8xf32>
    %30 = arith.mulf %28, %29 : vector<4x8x8xf32>
    %31 = vector.shape_cast %3 : vector<8x8xf32> to vector<1x8x8xf32>
    %32 = vector.broadcast %31 : vector<1x8x8xf32> to vector<4x8x8xf32>
    %33 = arith.addf %30, %32 : vector<4x8x8xf32>
    %cst_13 = arith.constant dense<0xFF800000> : vector<4x8xf32>
    %34 = vector.multi_reduction <maximumf>, %33, %cst_13 [2] : vector<4x8x8xf32> to vector<4x8xf32>
    %35 = vector.shape_cast %34 : vector<4x8xf32> to vector<4x8x1xf32>
    %36 = vector.broadcast %35 : vector<4x8x1xf32> to vector<4x8x8xf32>
    %37 = arith.subf %33, %36 : vector<4x8x8xf32>
    %38 = math.exp %37 : vector<4x8x8xf32>
    %cst_14 = arith.constant dense<0.000000e+00> : vector<4x8xf32>
    %39 = vector.multi_reduction <add>, %38, %cst_14 [2] : vector<4x8x8xf32> to vector<4x8xf32>
    %40 = vector.shape_cast %39 : vector<4x8xf32> to vector<4x8x1xf32>
    %41 = vector.broadcast %40 : vector<4x8x1xf32> to vector<4x8x8xf32>
    %42 = arith.divf %38, %41 : vector<4x8x8xf32>
    %43 = arith.truncf %42 : vector<4x8x8xf32> to vector<4x8x8xbf16>
    %cst_15 = arith.constant dense<0.000000e+00> : vector<4x8x8xf32>
    %44 = tpu.matmul %27, %43, %cst_15 {dimension_numbers = #tpu.dot_dimension_numbers<[2], [2], [1], [1], [0, 0, 0, 1, 1, 1], [0], [0]>} : vector<4x8x8xbf16>, vector<4x8x8xbf16>, vector<4x8x8xf32> -> vector<4x8x8xf32>
    %45 = vector.shape_cast %44 : vector<4x8x8xf32> to vector<32x8xf32>
    %46 = tpu.transpose %45, [1, 0] : vector<32x8xf32> -> vector<8x32xf32>
    %47 = arith.truncf %46 : vector<8x32xf32> to vector<8x32xbf16>
    %c0_16 = arith.constant 0 : index
    %c0_17 = arith.constant 0 : index
    %c0_18 = arith.constant 0 : index
    %48 = vector.load %arg10[%c0_16, %c0_17, %c0_18] : memref<2x32x32xbf16, #tpu.memory_space<vmem>>, vector<1x32x32xbf16>
    %49 = vector.shape_cast %48 : vector<1x32x32xbf16> to vector<32x32xbf16>
    %cst_19 = arith.constant dense<0.000000e+00> : vector<8x32xf32>
    %50 = tpu.matmul %47, %49, %cst_19 {dimension_numbers = #tpu.dot_dimension_numbers<[1], [0], [0], [1], [0, 0, 1, 1], [], []>} : vector<8x32xbf16>, vector<32x32xbf16>, vector<8x32xf32> -> vector<8x32xf32>
    %51 = vector.broadcast %7 : vector<1x32xf32> to vector<8x32xf32>
    %52 = arith.addf %50, %51 : vector<8x32xf32>
    %53 = arith.truncf %52 : vector<8x32xf32> to vector<8x32xbf16>
    %c0_20 = arith.constant 0 : index
    %c0_21 = arith.constant 0 : index
    %c0_22 = arith.constant 0 : index
    %54 = vector.load %arg11[%c0_20, %c0_21, %c0_22] : memref<2x32x32xbf16, #tpu.memory_space<vmem>>, vector<1x32x32xbf16>
    %55 = vector.shape_cast %54 : vector<1x32x32xbf16> to vector<32x32xbf16>
    %cst_23 = arith.constant dense<0.000000e+00> : vector<8x32xf32>
    %56 = tpu.matmul %53, %55, %cst_23 {dimension_numbers = #tpu.dot_dimension_numbers<[1], [0], [0], [1], [0, 0, 1, 1], [], []>} : vector<8x32xbf16>, vector<32x32xbf16>, vector<8x32xf32> -> vector<8x32xf32>
    %57 = vector.broadcast %8 : vector<1x32xf32> to vector<8x32xf32>
    %58 = arith.addf %56, %57 : vector<8x32xf32>
    %59 = arith.mulf %58, %58 : vector<8x32xf32>
    %60 = arith.mulf %58, %59 : vector<8x32xf32>
    %cst_24 = arith.constant 4.471500e-02 : f32
    %61 = vector.broadcast %cst_24 : f32 to vector<8x32xf32>
    %62 = arith.mulf %61, %60 : vector<8x32xf32>
    %63 = arith.addf %58, %62 : vector<8x32xf32>
    %cst_25 = arith.constant 0.797884583 : f32
    %64 = vector.broadcast %cst_25 : f32 to vector<8x32xf32>
    %65 = arith.mulf %64, %63 : vector<8x32xf32>
    %66 = math.tanh %65 : vector<8x32xf32>
    %cst_26 = arith.constant 1.000000e+00 : f32
    %67 = vector.broadcast %cst_26 : f32 to vector<8x32xf32>
    %68 = arith.addf %67, %66 : vector<8x32xf32>
    %cst_27 = arith.constant 5.000000e-01 : f32
    %69 = vector.broadcast %cst_27 : f32 to vector<8x32xf32>
    %70 = arith.mulf %69, %68 : vector<8x32xf32>
    %71 = arith.mulf %58, %70 : vector<8x32xf32>
    %72 = arith.negf %11 : vector<1x1xf32>
    %73 = math.exp %72 : vector<1x1xf32>
    %cst_28 = arith.constant 1.000000e+00 : f32
    %74 = vector.broadcast %cst_28 : f32 to vector<1x1xf32>
    %75 = arith.addf %74, %73 : vector<1x1xf32>
    %76 = arith.divf %74, %75 : vector<1x1xf32>
    %77 = vector.broadcast %76 : vector<1x1xf32> to vector<8x32xf32>
    %78 = arith.mulf %77, %71 : vector<8x32xf32>
    %cst_29 = arith.constant 1.000000e+00 : f32
    %79 = vector.broadcast %cst_29 : f32 to vector<1x1xf32>
    %80 = arith.subf %79, %76 : vector<1x1xf32>
    %81 = vector.broadcast %80 : vector<1x1xf32> to vector<8x32xf32>
    %82 = arith.mulf %81, %1 : vector<8x32xf32>
    %83 = arith.addf %78, %82 : vector<8x32xf32>
    %cst_30 = arith.constant dense<0.000000e+00> : vector<8xf32>
    %84 = vector.multi_reduction <add>, %83, %cst_30 [1] : vector<8x32xf32> to vector<8xf32>
    %85 = vector.shape_cast %84 : vector<8xf32> to vector<8x1xf32>
    %cst_31 = arith.constant 3.200000e+01 : f32
    %86 = vector.broadcast %cst_31 : f32 to vector<8x1xf32>
    %87 = arith.divf %85, %86 : vector<8x1xf32>
    %88 = vector.broadcast %87 : vector<8x1xf32> to vector<8x32xf32>
    %89 = arith.subf %83, %88 : vector<8x32xf32>
    %90 = arith.mulf %89, %89 : vector<8x32xf32>
    %cst_32 = arith.constant dense<0.000000e+00> : vector<8xf32>
    %91 = vector.multi_reduction <add>, %90, %cst_32 [1] : vector<8x32xf32> to vector<8xf32>
    %92 = vector.shape_cast %91 : vector<8xf32> to vector<8x1xf32>
    %cst_33 = arith.constant 3.200000e+01 : f32
    %93 = vector.broadcast %cst_33 : f32 to vector<8x1xf32>
    %94 = arith.divf %92, %93 : vector<8x1xf32>
    %95 = vector.broadcast %87 : vector<8x1xf32> to vector<8x32xf32>
    %96 = arith.subf %83, %95 : vector<8x32xf32>
    %cst_34 = arith.constant 9.99999974E-6 : f32
    %97 = vector.broadcast %cst_34 : f32 to vector<8x1xf32>
    %98 = arith.addf %94, %97 : vector<8x1xf32>
    %99 = math.rsqrt %98 : vector<8x1xf32>
    %100 = vector.broadcast %99 : vector<8x1xf32> to vector<8x32xf32>
    %101 = arith.mulf %96, %100 : vector<8x32xf32>
    %102 = vector.broadcast %9 : vector<1x32xf32> to vector<8x32xf32>
    %103 = arith.mulf %101, %102 : vector<8x32xf32>
    %104 = vector.broadcast %10 : vector<1x32xf32> to vector<8x32xf32>
    %105 = arith.addf %103, %104 : vector<8x32xf32>
    %c1 = arith.constant 1 : index
    %c0_35 = arith.constant 0 : index
    %c0_36 = arith.constant 0 : index
    %106 = vector.load %arg12[%c1, %c0_35, %c0_36] : memref<2x8x96xf32, #tpu.memory_space<vmem>>, vector<1x8x96xf32>
    %107 = vector.shape_cast %106 : vector<1x8x96xf32> to vector<8x96xf32>
    %108 = vector.extract_strided_slice %107 {offsets = [0, 0], sizes = [1, 96], strides = [1, 1]} : vector<8x96xf32> to vector<1x96xf32>
    %109 = vector.extract_strided_slice %107 {offsets = [1, 0], sizes = [1, 32], strides = [1, 1]} : vector<8x96xf32> to vector<1x32xf32>
    %110 = vector.extract_strided_slice %107 {offsets = [2, 0], sizes = [1, 32], strides = [1, 1]} : vector<8x96xf32> to vector<1x32xf32>
    %111 = vector.extract_strided_slice %107 {offsets = [3, 0], sizes = [1, 32], strides = [1, 1]} : vector<8x96xf32> to vector<1x32xf32>
    %112 = vector.extract_strided_slice %107 {offsets = [4, 0], sizes = [1, 32], strides = [1, 1]} : vector<8x96xf32> to vector<1x32xf32>
    %113 = vector.extract_strided_slice %107 {offsets = [5, 0], sizes = [1, 1], strides = [1, 1]} : vector<8x96xf32> to vector<1x1xf32>
    %114 = arith.truncf %105 : vector<8x32xf32> to vector<8x32xbf16>
    %c1_37 = arith.constant 1 : index
    %c0_38 = arith.constant 0 : index
    %c0_39 = arith.constant 0 : index
    %115 = vector.load %arg9[%c1_37, %c0_38, %c0_39] : memref<2x32x96xbf16, #tpu.memory_space<vmem>>, vector<1x32x96xbf16>
    %116 = vector.shape_cast %115 : vector<1x32x96xbf16> to vector<32x96xbf16>
    %cst_40 = arith.constant dense<0.000000e+00> : vector<8x96xf32>
    %117 = tpu.matmul %114, %116, %cst_40 {dimension_numbers = #tpu.dot_dimension_numbers<[1], [0], [0], [1], [0, 0, 1, 1], [], []>} : vector<8x32xbf16>, vector<32x96xbf16>, vector<8x96xf32> -> vector<8x96xf32>
    %118 = vector.broadcast %108 : vector<1x96xf32> to vector<8x96xf32>
    %119 = arith.addf %117, %118 : vector<8x96xf32>
    %120 = tpu.transpose %119, [1, 0] : vector<8x96xf32> -> vector<96x8xf32>
    %121 = vector.extract_strided_slice %120 {offsets = [0, 0], sizes = [32, 8], strides = [1, 1]} : vector<96x8xf32> to vector<32x8xf32>
    %122 = vector.extract_strided_slice %120 {offsets = [32, 0], sizes = [32, 8], strides = [1, 1]} : vector<96x8xf32> to vector<32x8xf32>
    %123 = vector.extract_strided_slice %120 {offsets = [64, 0], sizes = [32, 8], strides = [1, 1]} : vector<96x8xf32> to vector<32x8xf32>
    %124 = vector.shape_cast %121 : vector<32x8xf32> to vector<4x8x8xf32>
    %125 = arith.truncf %124 : vector<4x8x8xf32> to vector<4x8x8xbf16>
    %126 = vector.shape_cast %122 : vector<32x8xf32> to vector<4x8x8xf32>
    %127 = arith.truncf %126 : vector<4x8x8xf32> to vector<4x8x8xbf16>
    %128 = vector.shape_cast %123 : vector<32x8xf32> to vector<4x8x8xf32>
    %129 = arith.truncf %128 : vector<4x8x8xf32> to vector<4x8x8xbf16>
    %cst_41 = arith.constant dense<0.000000e+00> : vector<4x8x8xf32>
    %130 = tpu.matmul %125, %127, %cst_41 {dimension_numbers = #tpu.dot_dimension_numbers<[1], [1], [2], [2], [0, 0, 0, 2, 1, 2], [0], [0]>} : vector<4x8x8xbf16>, vector<4x8x8xbf16>, vector<4x8x8xf32> -> vector<4x8x8xf32>
    %cst_42 = arith.constant 0.353553385 : f32
    %131 = vector.broadcast %cst_42 : f32 to vector<4x8x8xf32>
    %132 = arith.mulf %130, %131 : vector<4x8x8xf32>
    %133 = vector.shape_cast %3 : vector<8x8xf32> to vector<1x8x8xf32>
    %134 = vector.broadcast %133 : vector<1x8x8xf32> to vector<4x8x8xf32>
    %135 = arith.addf %132, %134 : vector<4x8x8xf32>
    %cst_43 = arith.constant dense<0xFF800000> : vector<4x8xf32>
    %136 = vector.multi_reduction <maximumf>, %135, %cst_43 [2] : vector<4x8x8xf32> to vector<4x8xf32>
    %137 = vector.shape_cast %136 : vector<4x8xf32> to vector<4x8x1xf32>
    %138 = vector.broadcast %137 : vector<4x8x1xf32> to vector<4x8x8xf32>
    %139 = arith.subf %135, %138 : vector<4x8x8xf32>
    %140 = math.exp %139 : vector<4x8x8xf32>
    %cst_44 = arith.constant dense<0.000000e+00> : vector<4x8xf32>
    %141 = vector.multi_reduction <add>, %140, %cst_44 [2] : vector<4x8x8xf32> to vector<4x8xf32>
    %142 = vector.shape_cast %141 : vector<4x8xf32> to vector<4x8x1xf32>
    %143 = vector.broadcast %142 : vector<4x8x1xf32> to vector<4x8x8xf32>
    %144 = arith.divf %140, %143 : vector<4x8x8xf32>
    %145 = arith.truncf %144 : vector<4x8x8xf32> to vector<4x8x8xbf16>
    %cst_45 = arith.constant dense<0.000000e+00> : vector<4x8x8xf32>
    %146 = tpu.matmul %129, %145, %cst_45 {dimension_numbers = #tpu.dot_dimension_numbers<[2], [2], [1], [1], [0, 0, 0, 1, 1, 1], [0], [0]>} : vector<4x8x8xbf16>, vector<4x8x8xbf16>, vector<4x8x8xf32> -> vector<4x8x8xf32>
    %147 = vector.shape_cast %146 : vector<4x8x8xf32> to vector<32x8xf32>
    %148 = tpu.transpose %147, [1, 0] : vector<32x8xf32> -> vector<8x32xf32>
    %149 = arith.truncf %148 : vector<8x32xf32> to vector<8x32xbf16>
    %c1_46 = arith.constant 1 : index
    %c0_47 = arith.constant 0 : index
    %c0_48 = arith.constant 0 : index
    %150 = vector.load %arg10[%c1_46, %c0_47, %c0_48] : memref<2x32x32xbf16, #tpu.memory_space<vmem>>, vector<1x32x32xbf16>
    %151 = vector.shape_cast %150 : vector<1x32x32xbf16> to vector<32x32xbf16>
    %cst_49 = arith.constant dense<0.000000e+00> : vector<8x32xf32>
    %152 = tpu.matmul %149, %151, %cst_49 {dimension_numbers = #tpu.dot_dimension_numbers<[1], [0], [0], [1], [0, 0, 1, 1], [], []>} : vector<8x32xbf16>, vector<32x32xbf16>, vector<8x32xf32> -> vector<8x32xf32>
    %153 = vector.broadcast %109 : vector<1x32xf32> to vector<8x32xf32>
    %154 = arith.addf %152, %153 : vector<8x32xf32>
    %155 = arith.truncf %154 : vector<8x32xf32> to vector<8x32xbf16>
    %c1_50 = arith.constant 1 : index
    %c0_51 = arith.constant 0 : index
    %c0_52 = arith.constant 0 : index
    %156 = vector.load %arg11[%c1_50, %c0_51, %c0_52] : memref<2x32x32xbf16, #tpu.memory_space<vmem>>, vector<1x32x32xbf16>
    %157 = vector.shape_cast %156 : vector<1x32x32xbf16> to vector<32x32xbf16>
    %cst_53 = arith.constant dense<0.000000e+00> : vector<8x32xf32>
    %158 = tpu.matmul %155, %157, %cst_53 {dimension_numbers = #tpu.dot_dimension_numbers<[1], [0], [0], [1], [0, 0, 1, 1], [], []>} : vector<8x32xbf16>, vector<32x32xbf16>, vector<8x32xf32> -> vector<8x32xf32>
    %159 = vector.broadcast %110 : vector<1x32xf32> to vector<8x32xf32>
    %160 = arith.addf %158, %159 : vector<8x32xf32>
    %161 = arith.mulf %160, %160 : vector<8x32xf32>
    %162 = arith.mulf %160, %161 : vector<8x32xf32>
    %cst_54 = arith.constant 4.471500e-02 : f32
    %163 = vector.broadcast %cst_54 : f32 to vector<8x32xf32>
    %164 = arith.mulf %163, %162 : vector<8x32xf32>
    %165 = arith.addf %160, %164 : vector<8x32xf32>
    %cst_55 = arith.constant 0.797884583 : f32
    %166 = vector.broadcast %cst_55 : f32 to vector<8x32xf32>
    %167 = arith.mulf %166, %165 : vector<8x32xf32>
    %168 = math.tanh %167 : vector<8x32xf32>
    %cst_56 = arith.constant 1.000000e+00 : f32
    %169 = vector.broadcast %cst_56 : f32 to vector<8x32xf32>
    %170 = arith.addf %169, %168 : vector<8x32xf32>
    %cst_57 = arith.constant 5.000000e-01 : f32
    %171 = vector.broadcast %cst_57 : f32 to vector<8x32xf32>
    %172 = arith.mulf %171, %170 : vector<8x32xf32>
    %173 = arith.mulf %160, %172 : vector<8x32xf32>
    %174 = arith.negf %113 : vector<1x1xf32>
    %175 = math.exp %174 : vector<1x1xf32>
    %cst_58 = arith.constant 1.000000e+00 : f32
    %176 = vector.broadcast %cst_58 : f32 to vector<1x1xf32>
    %177 = arith.addf %176, %175 : vector<1x1xf32>
    %178 = arith.divf %176, %177 : vector<1x1xf32>
    %179 = vector.broadcast %178 : vector<1x1xf32> to vector<8x32xf32>
    %180 = arith.mulf %179, %173 : vector<8x32xf32>
    %cst_59 = arith.constant 1.000000e+00 : f32
    %181 = vector.broadcast %cst_59 : f32 to vector<1x1xf32>
    %182 = arith.subf %181, %178 : vector<1x1xf32>
    %183 = vector.broadcast %182 : vector<1x1xf32> to vector<8x32xf32>
    %184 = arith.mulf %183, %105 : vector<8x32xf32>
    %185 = arith.addf %180, %184 : vector<8x32xf32>
    %cst_60 = arith.constant dense<0.000000e+00> : vector<8xf32>
    %186 = vector.multi_reduction <add>, %185, %cst_60 [1] : vector<8x32xf32> to vector<8xf32>
    %187 = vector.shape_cast %186 : vector<8xf32> to vector<8x1xf32>
    %cst_61 = arith.constant 3.200000e+01 : f32
    %188 = vector.broadcast %cst_61 : f32 to vector<8x1xf32>
    %189 = arith.divf %187, %188 : vector<8x1xf32>
    %190 = vector.broadcast %189 : vector<8x1xf32> to vector<8x32xf32>
    %191 = arith.subf %185, %190 : vector<8x32xf32>
    %192 = arith.mulf %191, %191 : vector<8x32xf32>
    %cst_62 = arith.constant dense<0.000000e+00> : vector<8xf32>
    %193 = vector.multi_reduction <add>, %192, %cst_62 [1] : vector<8x32xf32> to vector<8xf32>
    %194 = vector.shape_cast %193 : vector<8xf32> to vector<8x1xf32>
    %cst_63 = arith.constant 3.200000e+01 : f32
    %195 = vector.broadcast %cst_63 : f32 to vector<8x1xf32>
    %196 = arith.divf %194, %195 : vector<8x1xf32>
    %197 = vector.broadcast %189 : vector<8x1xf32> to vector<8x32xf32>
    %198 = arith.subf %185, %197 : vector<8x32xf32>
    %cst_64 = arith.constant 9.99999974E-6 : f32
    %199 = vector.broadcast %cst_64 : f32 to vector<8x1xf32>
    %200 = arith.addf %196, %199 : vector<8x1xf32>
    %201 = math.rsqrt %200 : vector<8x1xf32>
    %202 = vector.broadcast %201 : vector<8x1xf32> to vector<8x32xf32>
    %203 = arith.mulf %198, %202 : vector<8x32xf32>
    %204 = vector.broadcast %111 : vector<1x32xf32> to vector<8x32xf32>
    %205 = arith.mulf %203, %204 : vector<8x32xf32>
    %206 = vector.broadcast %112 : vector<1x32xf32> to vector<8x32xf32>
    %207 = arith.addf %205, %206 : vector<8x32xf32>
    %c0_65 = arith.constant 0 : index
    %c0_66 = arith.constant 0 : index
    %c0_67 = arith.constant 0 : index
    %208 = vector.load %arg4[%c0_65, %c0_66, %c0_67] : memref<1x8x1xf32, #tpu.memory_space<vmem>>, vector<1x8x1xf32>
    %209 = vector.shape_cast %208 : vector<1x8x1xf32> to vector<8x1xf32>
    %cst_68 = arith.constant 1.000000e+00 : f32
    %210 = vector.broadcast %cst_68 : f32 to vector<8x1xf32>
    %211 = arith.subf %210, %209 : vector<8x1xf32>
    %212 = vector.broadcast %211 : vector<8x1xf32> to vector<8x32xf32>
    %213 = arith.mulf %207, %212 : vector<8x32xf32>
    %214 = arith.truncf %213 : vector<8x32xf32> to vector<8x32xbf16>
    %c0_69 = arith.constant 0 : index
    %c0_70 = arith.constant 0 : index
    %c0_71 = arith.constant 0 : index
    %215 = vector.load %arg3[%c0_69, %c0_70, %c0_71] : memref<1x1x8xf32, #tpu.memory_space<vmem>>, vector<1x1x8xf32>
    %216 = vector.shape_cast %215 : vector<1x1x8xf32> to vector<1x8xf32>
    %cst_72 = arith.constant -1.000000e+09 : f32
    %217 = vector.broadcast %cst_72 : f32 to vector<1x8xf32>
    %218 = arith.mulf %216, %217 : vector<1x8xf32>
    %219 = tpu.iota {dimensions = array<i32: 0>} : vector<8x8xi32>
    %220 = tpu.iota {dimensions = array<i32: 1>} : vector<8x8xi32>
    %221 = arith.cmpi sgt, %220, %219 : vector<8x8xi32>
    %222 = arith.extui %221 : vector<8x8xi1> to vector<8x8xi32>
    %223 = arith.sitofp %222 : vector<8x8xi32> to vector<8x8xf32>
    %cst_73 = arith.constant -1.000000e+09 : f32
    %224 = vector.broadcast %cst_73 : f32 to vector<8x8xf32>
    %225 = arith.mulf %223, %224 : vector<8x8xf32>
    %c0_74 = arith.constant 0 : index
    %c0_75 = arith.constant 0 : index
    %c0_76 = arith.constant 0 : index
    %226 = vector.load %arg5[%c0_74, %c0_75, %c0_76] : memref<1x8x32xf32, #tpu.memory_space<vmem>>, vector<1x8x32xf32>
    %227 = vector.shape_cast %226 : vector<1x8x32xf32> to vector<8x32xf32>
    %c0_77 = arith.constant 0 : index
    %c0_78 = arith.constant 0 : index
    %c0_79 = arith.constant 0 : index
    %228 = vector.load %arg20[%c0_77, %c0_78, %c0_79] : memref<2x16x96xf32, #tpu.memory_space<vmem>>, vector<1x16x96xf32>
    %229 = vector.shape_cast %228 : vector<1x16x96xf32> to vector<16x96xf32>
    %230 = vector.extract_strided_slice %229 {offsets = [0, 0], sizes = [1, 96], strides = [1, 1]} : vector<16x96xf32> to vector<1x96xf32>
    %231 = vector.extract_strided_slice %229 {offsets = [1, 0], sizes = [1, 32], strides = [1, 1]} : vector<16x96xf32> to vector<1x32xf32>
    %232 = vector.extract_strided_slice %229 {offsets = [2, 0], sizes = [1, 32], strides = [1, 1]} : vector<16x96xf32> to vector<1x32xf32>
    %233 = vector.extract_strided_slice %229 {offsets = [3, 0], sizes = [1, 64], strides = [1, 1]} : vector<16x96xf32> to vector<1x64xf32>
    %234 = vector.extract_strided_slice %229 {offsets = [4, 0], sizes = [1, 32], strides = [1, 1]} : vector<16x96xf32> to vector<1x32xf32>
    %235 = vector.extract_strided_slice %229 {offsets = [5, 0], sizes = [1, 64], strides = [1, 1]} : vector<16x96xf32> to vector<1x64xf32>
    %236 = vector.extract_strided_slice %229 {offsets = [6, 0], sizes = [1, 32], strides = [1, 1]} : vector<16x96xf32> to vector<1x32xf32>
    %237 = vector.extract_strided_slice %229 {offsets = [7, 0], sizes = [1, 32], strides = [1, 1]} : vector<16x96xf32> to vector<1x32xf32>
    %238 = vector.extract_strided_slice %229 {offsets = [8, 0], sizes = [1, 32], strides = [1, 1]} : vector<16x96xf32> to vector<1x32xf32>
    %239 = vector.extract_strided_slice %229 {offsets = [9, 0], sizes = [1, 32], strides = [1, 1]} : vector<16x96xf32> to vector<1x32xf32>
    %240 = vector.extract_strided_slice %229 {offsets = [10, 0], sizes = [1, 32], strides = [1, 1]} : vector<16x96xf32> to vector<1x32xf32>
    %241 = vector.extract_strided_slice %229 {offsets = [11, 0], sizes = [1, 32], strides = [1, 1]} : vector<16x96xf32> to vector<1x32xf32>
    %242 = vector.extract_strided_slice %229 {offsets = [12, 0], sizes = [1, 32], strides = [1, 1]} : vector<16x96xf32> to vector<1x32xf32>
    %243 = arith.truncf %227 : vector<8x32xf32> to vector<8x32xbf16>
    %c0_80 = arith.constant 0 : index
    %c0_81 = arith.constant 0 : index
    %c0_82 = arith.constant 0 : index
    %244 = vector.load %arg13[%c0_80, %c0_81, %c0_82] : memref<2x32x96xbf16, #tpu.memory_space<vmem>>, vector<1x32x96xbf16>
    %245 = vector.shape_cast %244 : vector<1x32x96xbf16> to vector<32x96xbf16>
    %cst_83 = arith.constant dense<0.000000e+00> : vector<8x96xf32>
    %246 = tpu.matmul %243, %245, %cst_83 {dimension_numbers = #tpu.dot_dimension_numbers<[1], [0], [0], [1], [0, 0, 1, 1], [], []>} : vector<8x32xbf16>, vector<32x96xbf16>, vector<8x96xf32> -> vector<8x96xf32>
    %247 = vector.broadcast %230 : vector<1x96xf32> to vector<8x96xf32>
    %248 = arith.addf %246, %247 : vector<8x96xf32>
    %249 = tpu.transpose %248, [1, 0] : vector<8x96xf32> -> vector<96x8xf32>
    %250 = vector.extract_strided_slice %249 {offsets = [0, 0], sizes = [32, 8], strides = [1, 1]} : vector<96x8xf32> to vector<32x8xf32>
    %251 = vector.extract_strided_slice %249 {offsets = [32, 0], sizes = [32, 8], strides = [1, 1]} : vector<96x8xf32> to vector<32x8xf32>
    %252 = vector.extract_strided_slice %249 {offsets = [64, 0], sizes = [32, 8], strides = [1, 1]} : vector<96x8xf32> to vector<32x8xf32>
    %253 = vector.shape_cast %250 : vector<32x8xf32> to vector<4x8x8xf32>
    %254 = arith.truncf %253 : vector<4x8x8xf32> to vector<4x8x8xbf16>
    %255 = vector.shape_cast %251 : vector<32x8xf32> to vector<4x8x8xf32>
    %256 = arith.truncf %255 : vector<4x8x8xf32> to vector<4x8x8xbf16>
    %257 = vector.shape_cast %252 : vector<32x8xf32> to vector<4x8x8xf32>
    %258 = arith.truncf %257 : vector<4x8x8xf32> to vector<4x8x8xbf16>
    %cst_84 = arith.constant dense<0.000000e+00> : vector<4x8x8xf32>
    %259 = tpu.matmul %254, %256, %cst_84 {dimension_numbers = #tpu.dot_dimension_numbers<[1], [1], [2], [2], [0, 0, 0, 2, 1, 2], [0], [0]>} : vector<4x8x8xbf16>, vector<4x8x8xbf16>, vector<4x8x8xf32> -> vector<4x8x8xf32>
    %cst_85 = arith.constant 0.353553385 : f32
    %260 = vector.broadcast %cst_85 : f32 to vector<4x8x8xf32>
    %261 = arith.mulf %259, %260 : vector<4x8x8xf32>
    %262 = vector.shape_cast %225 : vector<8x8xf32> to vector<1x8x8xf32>
    %263 = vector.broadcast %262 : vector<1x8x8xf32> to vector<4x8x8xf32>
    %264 = arith.addf %261, %263 : vector<4x8x8xf32>
    %cst_86 = arith.constant dense<0xFF800000> : vector<4x8xf32>
    %265 = vector.multi_reduction <maximumf>, %264, %cst_86 [2] : vector<4x8x8xf32> to vector<4x8xf32>
    %266 = vector.shape_cast %265 : vector<4x8xf32> to vector<4x8x1xf32>
    %267 = vector.broadcast %266 : vector<4x8x1xf32> to vector<4x8x8xf32>
    %268 = arith.subf %264, %267 : vector<4x8x8xf32>
    %269 = math.exp %268 : vector<4x8x8xf32>
    %cst_87 = arith.constant dense<0.000000e+00> : vector<4x8xf32>
    %270 = vector.multi_reduction <add>, %269, %cst_87 [2] : vector<4x8x8xf32> to vector<4x8xf32>
    %271 = vector.shape_cast %270 : vector<4x8xf32> to vector<4x8x1xf32>
    %272 = vector.broadcast %271 : vector<4x8x1xf32> to vector<4x8x8xf32>
    %273 = arith.divf %269, %272 : vector<4x8x8xf32>
    %274 = arith.truncf %273 : vector<4x8x8xf32> to vector<4x8x8xbf16>
    %cst_88 = arith.constant dense<0.000000e+00> : vector<4x8x8xf32>
    %275 = tpu.matmul %258, %274, %cst_88 {dimension_numbers = #tpu.dot_dimension_numbers<[2], [2], [1], [1], [0, 0, 0, 1, 1, 1], [0], [0]>} : vector<4x8x8xbf16>, vector<4x8x8xbf16>, vector<4x8x8xf32> -> vector<4x8x8xf32>
    %276 = vector.shape_cast %275 : vector<4x8x8xf32> to vector<32x8xf32>
    %277 = tpu.transpose %276, [1, 0] : vector<32x8xf32> -> vector<8x32xf32>
    %278 = arith.truncf %277 : vector<8x32xf32> to vector<8x32xbf16>
    %c0_89 = arith.constant 0 : index
    %c0_90 = arith.constant 0 : index
    %c0_91 = arith.constant 0 : index
    %279 = vector.load %arg14[%c0_89, %c0_90, %c0_91] : memref<2x32x32xbf16, #tpu.memory_space<vmem>>, vector<1x32x32xbf16>
    %280 = vector.shape_cast %279 : vector<1x32x32xbf16> to vector<32x32xbf16>
    %cst_92 = arith.constant dense<0.000000e+00> : vector<8x32xf32>
    %281 = tpu.matmul %278, %280, %cst_92 {dimension_numbers = #tpu.dot_dimension_numbers<[1], [0], [0], [1], [0, 0, 1, 1], [], []>} : vector<8x32xbf16>, vector<32x32xbf16>, vector<8x32xf32> -> vector<8x32xf32>
    %282 = vector.broadcast %231 : vector<1x32xf32> to vector<8x32xf32>
    %283 = arith.addf %281, %282 : vector<8x32xf32>
    %284 = arith.addf %227, %283 : vector<8x32xf32>
    %cst_93 = arith.constant dense<0.000000e+00> : vector<8xf32>
    %285 = vector.multi_reduction <add>, %284, %cst_93 [1] : vector<8x32xf32> to vector<8xf32>
    %286 = vector.shape_cast %285 : vector<8xf32> to vector<8x1xf32>
    %cst_94 = arith.constant 3.200000e+01 : f32
    %287 = vector.broadcast %cst_94 : f32 to vector<8x1xf32>
    %288 = arith.divf %286, %287 : vector<8x1xf32>
    %289 = vector.broadcast %288 : vector<8x1xf32> to vector<8x32xf32>
    %290 = arith.subf %284, %289 : vector<8x32xf32>
    %291 = arith.mulf %290, %290 : vector<8x32xf32>
    %cst_95 = arith.constant dense<0.000000e+00> : vector<8xf32>
    %292 = vector.multi_reduction <add>, %291, %cst_95 [1] : vector<8x32xf32> to vector<8xf32>
    %293 = vector.shape_cast %292 : vector<8xf32> to vector<8x1xf32>
    %cst_96 = arith.constant 3.200000e+01 : f32
    %294 = vector.broadcast %cst_96 : f32 to vector<8x1xf32>
    %295 = arith.divf %293, %294 : vector<8x1xf32>
    %296 = vector.broadcast %288 : vector<8x1xf32> to vector<8x32xf32>
    %297 = arith.subf %284, %296 : vector<8x32xf32>
    %cst_97 = arith.constant 9.99999974E-6 : f32
    %298 = vector.broadcast %cst_97 : f32 to vector<8x1xf32>
    %299 = arith.addf %295, %298 : vector<8x1xf32>
    %300 = math.rsqrt %299 : vector<8x1xf32>
    %301 = vector.broadcast %300 : vector<8x1xf32> to vector<8x32xf32>
    %302 = arith.mulf %297, %301 : vector<8x32xf32>
    %303 = vector.broadcast %237 : vector<1x32xf32> to vector<8x32xf32>
    %304 = arith.mulf %302, %303 : vector<8x32xf32>
    %305 = vector.broadcast %238 : vector<1x32xf32> to vector<8x32xf32>
    %306 = arith.addf %304, %305 : vector<8x32xf32>
    %307 = arith.truncf %306 : vector<8x32xf32> to vector<8x32xbf16>
    %c0_98 = arith.constant 0 : index
    %c0_99 = arith.constant 0 : index
    %c0_100 = arith.constant 0 : index
    %308 = vector.load %arg15[%c0_98, %c0_99, %c0_100] : memref<2x32x32xbf16, #tpu.memory_space<vmem>>, vector<1x32x32xbf16>
    %309 = vector.shape_cast %308 : vector<1x32x32xbf16> to vector<32x32xbf16>
    %cst_101 = arith.constant dense<0.000000e+00> : vector<8x32xf32>
    %310 = tpu.matmul %307, %309, %cst_101 {dimension_numbers = #tpu.dot_dimension_numbers<[1], [0], [0], [1], [0, 0, 1, 1], [], []>} : vector<8x32xbf16>, vector<32x32xbf16>, vector<8x32xf32> -> vector<8x32xf32>
    %311 = vector.broadcast %232 : vector<1x32xf32> to vector<8x32xf32>
    %312 = arith.addf %310, %311 : vector<8x32xf32>
    %c0_102 = arith.constant 0 : index
    %c0_103 = arith.constant 0 : index
    %c0_104 = arith.constant 0 : index
    %313 = vector.load %arg16[%c0_102, %c0_103, %c0_104] : memref<2x32x64xbf16, #tpu.memory_space<vmem>>, vector<1x32x64xbf16>
    %314 = vector.shape_cast %313 : vector<1x32x64xbf16> to vector<32x64xbf16>
    %cst_105 = arith.constant dense<0.000000e+00> : vector<8x64xf32>
    %315 = tpu.matmul %214, %314, %cst_105 {dimension_numbers = #tpu.dot_dimension_numbers<[1], [0], [0], [1], [0, 0, 1, 1], [], []>} : vector<8x32xbf16>, vector<32x64xbf16>, vector<8x64xf32> -> vector<8x64xf32>
    %316 = vector.broadcast %233 : vector<1x64xf32> to vector<8x64xf32>
    %317 = arith.addf %315, %316 : vector<8x64xf32>
    %318 = tpu.transpose %317, [1, 0] : vector<8x64xf32> -> vector<64x8xf32>
    %319 = tpu.transpose %312, [1, 0] : vector<8x32xf32> -> vector<32x8xf32>
    %320 = vector.extract_strided_slice %318 {offsets = [0, 0], sizes = [32, 8], strides = [1, 1]} : vector<64x8xf32> to vector<32x8xf32>
    %321 = vector.extract_strided_slice %318 {offsets = [32, 0], sizes = [32, 8], strides = [1, 1]} : vector<64x8xf32> to vector<32x8xf32>
    %322 = vector.shape_cast %319 : vector<32x8xf32> to vector<4x8x8xf32>
    %323 = arith.truncf %322 : vector<4x8x8xf32> to vector<4x8x8xbf16>
    %324 = vector.shape_cast %320 : vector<32x8xf32> to vector<4x8x8xf32>
    %325 = arith.truncf %324 : vector<4x8x8xf32> to vector<4x8x8xbf16>
    %326 = vector.shape_cast %321 : vector<32x8xf32> to vector<4x8x8xf32>
    %327 = arith.truncf %326 : vector<4x8x8xf32> to vector<4x8x8xbf16>
    %cst_106 = arith.constant dense<0.000000e+00> : vector<4x8x8xf32>
    %328 = tpu.matmul %323, %325, %cst_106 {dimension_numbers = #tpu.dot_dimension_numbers<[1], [1], [2], [2], [0, 0, 0, 2, 1, 2], [0], [0]>} : vector<4x8x8xbf16>, vector<4x8x8xbf16>, vector<4x8x8xf32> -> vector<4x8x8xf32>
    %cst_107 = arith.constant 0.353553385 : f32
    %329 = vector.broadcast %cst_107 : f32 to vector<4x8x8xf32>
    %330 = arith.mulf %328, %329 : vector<4x8x8xf32>
    %331 = vector.shape_cast %218 : vector<1x8xf32> to vector<1x1x8xf32>
    %332 = vector.broadcast %331 : vector<1x1x8xf32> to vector<4x8x8xf32>
    %333 = arith.addf %330, %332 : vector<4x8x8xf32>
    %cst_108 = arith.constant dense<0xFF800000> : vector<4x8xf32>
    %334 = vector.multi_reduction <maximumf>, %333, %cst_108 [2] : vector<4x8x8xf32> to vector<4x8xf32>
    %335 = vector.shape_cast %334 : vector<4x8xf32> to vector<4x8x1xf32>
    %336 = vector.broadcast %335 : vector<4x8x1xf32> to vector<4x8x8xf32>
    %337 = arith.subf %333, %336 : vector<4x8x8xf32>
    %338 = math.exp %337 : vector<4x8x8xf32>
    %cst_109 = arith.constant dense<0.000000e+00> : vector<4x8xf32>
    %339 = vector.multi_reduction <add>, %338, %cst_109 [2] : vector<4x8x8xf32> to vector<4x8xf32>
    %340 = vector.shape_cast %339 : vector<4x8xf32> to vector<4x8x1xf32>
    %341 = vector.broadcast %340 : vector<4x8x1xf32> to vector<4x8x8xf32>
    %342 = arith.divf %338, %341 : vector<4x8x8xf32>
    %343 = arith.truncf %342 : vector<4x8x8xf32> to vector<4x8x8xbf16>
    %cst_110 = arith.constant dense<0.000000e+00> : vector<4x8x8xf32>
    %344 = tpu.matmul %327, %343, %cst_110 {dimension_numbers = #tpu.dot_dimension_numbers<[2], [2], [1], [1], [0, 0, 0, 1, 1, 1], [0], [0]>} : vector<4x8x8xbf16>, vector<4x8x8xbf16>, vector<4x8x8xf32> -> vector<4x8x8xf32>
    %345 = vector.shape_cast %344 : vector<4x8x8xf32> to vector<32x8xf32>
    %346 = tpu.transpose %345, [1, 0] : vector<32x8xf32> -> vector<8x32xf32>
    %347 = arith.truncf %346 : vector<8x32xf32> to vector<8x32xbf16>
    %c0_111 = arith.constant 0 : index
    %c0_112 = arith.constant 0 : index
    %c0_113 = arith.constant 0 : index
    %348 = vector.load %arg17[%c0_111, %c0_112, %c0_113] : memref<2x32x32xbf16, #tpu.memory_space<vmem>>, vector<1x32x32xbf16>
    %349 = vector.shape_cast %348 : vector<1x32x32xbf16> to vector<32x32xbf16>
    %cst_114 = arith.constant dense<0.000000e+00> : vector<8x32xf32>
    %350 = tpu.matmul %347, %349, %cst_114 {dimension_numbers = #tpu.dot_dimension_numbers<[1], [0], [0], [1], [0, 0, 1, 1], [], []>} : vector<8x32xbf16>, vector<32x32xbf16>, vector<8x32xf32> -> vector<8x32xf32>
    %351 = vector.broadcast %234 : vector<1x32xf32> to vector<8x32xf32>
    %352 = arith.addf %350, %351 : vector<8x32xf32>
    %353 = arith.addf %306, %352 : vector<8x32xf32>
    %cst_115 = arith.constant dense<0.000000e+00> : vector<8xf32>
    %354 = vector.multi_reduction <add>, %353, %cst_115 [1] : vector<8x32xf32> to vector<8xf32>
    %355 = vector.shape_cast %354 : vector<8xf32> to vector<8x1xf32>
    %cst_116 = arith.constant 3.200000e+01 : f32
    %356 = vector.broadcast %cst_116 : f32 to vector<8x1xf32>
    %357 = arith.divf %355, %356 : vector<8x1xf32>
    %358 = vector.broadcast %357 : vector<8x1xf32> to vector<8x32xf32>
    %359 = arith.subf %353, %358 : vector<8x32xf32>
    %360 = arith.mulf %359, %359 : vector<8x32xf32>
    %cst_117 = arith.constant dense<0.000000e+00> : vector<8xf32>
    %361 = vector.multi_reduction <add>, %360, %cst_117 [1] : vector<8x32xf32> to vector<8xf32>
    %362 = vector.shape_cast %361 : vector<8xf32> to vector<8x1xf32>
    %cst_118 = arith.constant 3.200000e+01 : f32
    %363 = vector.broadcast %cst_118 : f32 to vector<8x1xf32>
    %364 = arith.divf %362, %363 : vector<8x1xf32>
    %365 = vector.broadcast %357 : vector<8x1xf32> to vector<8x32xf32>
    %366 = arith.subf %353, %365 : vector<8x32xf32>
    %cst_119 = arith.constant 9.99999974E-6 : f32
    %367 = vector.broadcast %cst_119 : f32 to vector<8x1xf32>
    %368 = arith.addf %364, %367 : vector<8x1xf32>
    %369 = math.rsqrt %368 : vector<8x1xf32>
    %370 = vector.broadcast %369 : vector<8x1xf32> to vector<8x32xf32>
    %371 = arith.mulf %366, %370 : vector<8x32xf32>
    %372 = vector.broadcast %239 : vector<1x32xf32> to vector<8x32xf32>
    %373 = arith.mulf %371, %372 : vector<8x32xf32>
    %374 = vector.broadcast %240 : vector<1x32xf32> to vector<8x32xf32>
    %375 = arith.addf %373, %374 : vector<8x32xf32>
    %376 = arith.truncf %375 : vector<8x32xf32> to vector<8x32xbf16>
    %c0_120 = arith.constant 0 : index
    %c0_121 = arith.constant 0 : index
    %c0_122 = arith.constant 0 : index
    %377 = vector.load %arg18[%c0_120, %c0_121, %c0_122] : memref<2x32x64xbf16, #tpu.memory_space<vmem>>, vector<1x32x64xbf16>
    %378 = vector.shape_cast %377 : vector<1x32x64xbf16> to vector<32x64xbf16>
    %cst_123 = arith.constant dense<0.000000e+00> : vector<8x64xf32>
    %379 = tpu.matmul %376, %378, %cst_123 {dimension_numbers = #tpu.dot_dimension_numbers<[1], [0], [0], [1], [0, 0, 1, 1], [], []>} : vector<8x32xbf16>, vector<32x64xbf16>, vector<8x64xf32> -> vector<8x64xf32>
    %380 = vector.broadcast %235 : vector<1x64xf32> to vector<8x64xf32>
    %381 = arith.addf %379, %380 : vector<8x64xf32>
    %cst_124 = arith.constant 0.000000e+00 : f32
    %382 = vector.broadcast %cst_124 : f32 to vector<8x64xf32>
    %383 = arith.maximumf %381, %382 : vector<8x64xf32>
    %384 = arith.truncf %383 : vector<8x64xf32> to vector<8x64xbf16>
    %c0_125 = arith.constant 0 : index
    %c0_126 = arith.constant 0 : index
    %c0_127 = arith.constant 0 : index
    %385 = vector.load %arg19[%c0_125, %c0_126, %c0_127] : memref<2x64x32xbf16, #tpu.memory_space<vmem>>, vector<1x64x32xbf16>
    %386 = vector.shape_cast %385 : vector<1x64x32xbf16> to vector<64x32xbf16>
    %cst_128 = arith.constant dense<0.000000e+00> : vector<8x32xf32>
    %387 = tpu.matmul %384, %386, %cst_128 {dimension_numbers = #tpu.dot_dimension_numbers<[1], [0], [0], [1], [0, 0, 1, 1], [], []>} : vector<8x64xbf16>, vector<64x32xbf16>, vector<8x32xf32> -> vector<8x32xf32>
    %388 = vector.broadcast %236 : vector<1x32xf32> to vector<8x32xf32>
    %389 = arith.addf %387, %388 : vector<8x32xf32>
    %390 = arith.addf %375, %389 : vector<8x32xf32>
    %cst_129 = arith.constant dense<0.000000e+00> : vector<8xf32>
    %391 = vector.multi_reduction <add>, %390, %cst_129 [1] : vector<8x32xf32> to vector<8xf32>
    %392 = vector.shape_cast %391 : vector<8xf32> to vector<8x1xf32>
    %cst_130 = arith.constant 3.200000e+01 : f32
    %393 = vector.broadcast %cst_130 : f32 to vector<8x1xf32>
    %394 = arith.divf %392, %393 : vector<8x1xf32>
    %395 = vector.broadcast %394 : vector<8x1xf32> to vector<8x32xf32>
    %396 = arith.subf %390, %395 : vector<8x32xf32>
    %397 = arith.mulf %396, %396 : vector<8x32xf32>
    %cst_131 = arith.constant dense<0.000000e+00> : vector<8xf32>
    %398 = vector.multi_reduction <add>, %397, %cst_131 [1] : vector<8x32xf32> to vector<8xf32>
    %399 = vector.shape_cast %398 : vector<8xf32> to vector<8x1xf32>
    %cst_132 = arith.constant 3.200000e+01 : f32
    %400 = vector.broadcast %cst_132 : f32 to vector<8x1xf32>
    %401 = arith.divf %399, %400 : vector<8x1xf32>
    %402 = vector.broadcast %394 : vector<8x1xf32> to vector<8x32xf32>
    %403 = arith.subf %390, %402 : vector<8x32xf32>
    %cst_133 = arith.constant 9.99999974E-6 : f32
    %404 = vector.broadcast %cst_133 : f32 to vector<8x1xf32>
    %405 = arith.addf %401, %404 : vector<8x1xf32>
    %406 = math.rsqrt %405 : vector<8x1xf32>
    %407 = vector.broadcast %406 : vector<8x1xf32> to vector<8x32xf32>
    %408 = arith.mulf %403, %407 : vector<8x32xf32>
    %409 = vector.broadcast %241 : vector<1x32xf32> to vector<8x32xf32>
    %410 = arith.mulf %408, %409 : vector<8x32xf32>
    %411 = vector.broadcast %242 : vector<1x32xf32> to vector<8x32xf32>
    %412 = arith.addf %410, %411 : vector<8x32xf32>
    %c1_134 = arith.constant 1 : index
    %c0_135 = arith.constant 0 : index
    %c0_136 = arith.constant 0 : index
    %413 = vector.load %arg20[%c1_134, %c0_135, %c0_136] : memref<2x16x96xf32, #tpu.memory_space<vmem>>, vector<1x16x96xf32>
    %414 = vector.shape_cast %413 : vector<1x16x96xf32> to vector<16x96xf32>
    %415 = vector.extract_strided_slice %414 {offsets = [0, 0], sizes = [1, 96], strides = [1, 1]} : vector<16x96xf32> to vector<1x96xf32>
    %416 = vector.extract_strided_slice %414 {offsets = [1, 0], sizes = [1, 32], strides = [1, 1]} : vector<16x96xf32> to vector<1x32xf32>
    %417 = vector.extract_strided_slice %414 {offsets = [2, 0], sizes = [1, 32], strides = [1, 1]} : vector<16x96xf32> to vector<1x32xf32>
    %418 = vector.extract_strided_slice %414 {offsets = [3, 0], sizes = [1, 64], strides = [1, 1]} : vector<16x96xf32> to vector<1x64xf32>
    %419 = vector.extract_strided_slice %414 {offsets = [4, 0], sizes = [1, 32], strides = [1, 1]} : vector<16x96xf32> to vector<1x32xf32>
    %420 = vector.extract_strided_slice %414 {offsets = [5, 0], sizes = [1, 64], strides = [1, 1]} : vector<16x96xf32> to vector<1x64xf32>
    %421 = vector.extract_strided_slice %414 {offsets = [6, 0], sizes = [1, 32], strides = [1, 1]} : vector<16x96xf32> to vector<1x32xf32>
    %422 = vector.extract_strided_slice %414 {offsets = [7, 0], sizes = [1, 32], strides = [1, 1]} : vector<16x96xf32> to vector<1x32xf32>
    %423 = vector.extract_strided_slice %414 {offsets = [8, 0], sizes = [1, 32], strides = [1, 1]} : vector<16x96xf32> to vector<1x32xf32>
    %424 = vector.extract_strided_slice %414 {offsets = [9, 0], sizes = [1, 32], strides = [1, 1]} : vector<16x96xf32> to vector<1x32xf32>
    %425 = vector.extract_strided_slice %414 {offsets = [10, 0], sizes = [1, 32], strides = [1, 1]} : vector<16x96xf32> to vector<1x32xf32>
    %426 = vector.extract_strided_slice %414 {offsets = [11, 0], sizes = [1, 32], strides = [1, 1]} : vector<16x96xf32> to vector<1x32xf32>
    %427 = vector.extract_strided_slice %414 {offsets = [12, 0], sizes = [1, 32], strides = [1, 1]} : vector<16x96xf32> to vector<1x32xf32>
    %428 = arith.truncf %412 : vector<8x32xf32> to vector<8x32xbf16>
    %c1_137 = arith.constant 1 : index
    %c0_138 = arith.constant 0 : index
    %c0_139 = arith.constant 0 : index
    %429 = vector.load %arg13[%c1_137, %c0_138, %c0_139] : memref<2x32x96xbf16, #tpu.memory_space<vmem>>, vector<1x32x96xbf16>
    %430 = vector.shape_cast %429 : vector<1x32x96xbf16> to vector<32x96xbf16>
    %cst_140 = arith.constant dense<0.000000e+00> : vector<8x96xf32>
    %431 = tpu.matmul %428, %430, %cst_140 {dimension_numbers = #tpu.dot_dimension_numbers<[1], [0], [0], [1], [0, 0, 1, 1], [], []>} : vector<8x32xbf16>, vector<32x96xbf16>, vector<8x96xf32> -> vector<8x96xf32>
    %432 = vector.broadcast %415 : vector<1x96xf32> to vector<8x96xf32>
    %433 = arith.addf %431, %432 : vector<8x96xf32>
    %434 = tpu.transpose %433, [1, 0] : vector<8x96xf32> -> vector<96x8xf32>
    %435 = vector.extract_strided_slice %434 {offsets = [0, 0], sizes = [32, 8], strides = [1, 1]} : vector<96x8xf32> to vector<32x8xf32>
    %436 = vector.extract_strided_slice %434 {offsets = [32, 0], sizes = [32, 8], strides = [1, 1]} : vector<96x8xf32> to vector<32x8xf32>
    %437 = vector.extract_strided_slice %434 {offsets = [64, 0], sizes = [32, 8], strides = [1, 1]} : vector<96x8xf32> to vector<32x8xf32>
    %438 = vector.shape_cast %435 : vector<32x8xf32> to vector<4x8x8xf32>
    %439 = arith.truncf %438 : vector<4x8x8xf32> to vector<4x8x8xbf16>
    %440 = vector.shape_cast %436 : vector<32x8xf32> to vector<4x8x8xf32>
    %441 = arith.truncf %440 : vector<4x8x8xf32> to vector<4x8x8xbf16>
    %442 = vector.shape_cast %437 : vector<32x8xf32> to vector<4x8x8xf32>
    %443 = arith.truncf %442 : vector<4x8x8xf32> to vector<4x8x8xbf16>
    %cst_141 = arith.constant dense<0.000000e+00> : vector<4x8x8xf32>
    %444 = tpu.matmul %439, %441, %cst_141 {dimension_numbers = #tpu.dot_dimension_numbers<[1], [1], [2], [2], [0, 0, 0, 2, 1, 2], [0], [0]>} : vector<4x8x8xbf16>, vector<4x8x8xbf16>, vector<4x8x8xf32> -> vector<4x8x8xf32>
    %cst_142 = arith.constant 0.353553385 : f32
    %445 = vector.broadcast %cst_142 : f32 to vector<4x8x8xf32>
    %446 = arith.mulf %444, %445 : vector<4x8x8xf32>
    %447 = vector.shape_cast %225 : vector<8x8xf32> to vector<1x8x8xf32>
    %448 = vector.broadcast %447 : vector<1x8x8xf32> to vector<4x8x8xf32>
    %449 = arith.addf %446, %448 : vector<4x8x8xf32>
    %cst_143 = arith.constant dense<0xFF800000> : vector<4x8xf32>
    %450 = vector.multi_reduction <maximumf>, %449, %cst_143 [2] : vector<4x8x8xf32> to vector<4x8xf32>
    %451 = vector.shape_cast %450 : vector<4x8xf32> to vector<4x8x1xf32>
    %452 = vector.broadcast %451 : vector<4x8x1xf32> to vector<4x8x8xf32>
    %453 = arith.subf %449, %452 : vector<4x8x8xf32>
    %454 = math.exp %453 : vector<4x8x8xf32>
    %cst_144 = arith.constant dense<0.000000e+00> : vector<4x8xf32>
    %455 = vector.multi_reduction <add>, %454, %cst_144 [2] : vector<4x8x8xf32> to vector<4x8xf32>
    %456 = vector.shape_cast %455 : vector<4x8xf32> to vector<4x8x1xf32>
    %457 = vector.broadcast %456 : vector<4x8x1xf32> to vector<4x8x8xf32>
    %458 = arith.divf %454, %457 : vector<4x8x8xf32>
    %459 = arith.truncf %458 : vector<4x8x8xf32> to vector<4x8x8xbf16>
    %cst_145 = arith.constant dense<0.000000e+00> : vector<4x8x8xf32>
    %460 = tpu.matmul %443, %459, %cst_145 {dimension_numbers = #tpu.dot_dimension_numbers<[2], [2], [1], [1], [0, 0, 0, 1, 1, 1], [0], [0]>} : vector<4x8x8xbf16>, vector<4x8x8xbf16>, vector<4x8x8xf32> -> vector<4x8x8xf32>
    %461 = vector.shape_cast %460 : vector<4x8x8xf32> to vector<32x8xf32>
    %462 = tpu.transpose %461, [1, 0] : vector<32x8xf32> -> vector<8x32xf32>
    %463 = arith.truncf %462 : vector<8x32xf32> to vector<8x32xbf16>
    %c1_146 = arith.constant 1 : index
    %c0_147 = arith.constant 0 : index
    %c0_148 = arith.constant 0 : index
    %464 = vector.load %arg14[%c1_146, %c0_147, %c0_148] : memref<2x32x32xbf16, #tpu.memory_space<vmem>>, vector<1x32x32xbf16>
    %465 = vector.shape_cast %464 : vector<1x32x32xbf16> to vector<32x32xbf16>
    %cst_149 = arith.constant dense<0.000000e+00> : vector<8x32xf32>
    %466 = tpu.matmul %463, %465, %cst_149 {dimension_numbers = #tpu.dot_dimension_numbers<[1], [0], [0], [1], [0, 0, 1, 1], [], []>} : vector<8x32xbf16>, vector<32x32xbf16>, vector<8x32xf32> -> vector<8x32xf32>
    %467 = vector.broadcast %416 : vector<1x32xf32> to vector<8x32xf32>
    %468 = arith.addf %466, %467 : vector<8x32xf32>
    %469 = arith.addf %412, %468 : vector<8x32xf32>
    %cst_150 = arith.constant dense<0.000000e+00> : vector<8xf32>
    %470 = vector.multi_reduction <add>, %469, %cst_150 [1] : vector<8x32xf32> to vector<8xf32>
    %471 = vector.shape_cast %470 : vector<8xf32> to vector<8x1xf32>
    %cst_151 = arith.constant 3.200000e+01 : f32
    %472 = vector.broadcast %cst_151 : f32 to vector<8x1xf32>
    %473 = arith.divf %471, %472 : vector<8x1xf32>
    %474 = vector.broadcast %473 : vector<8x1xf32> to vector<8x32xf32>
    %475 = arith.subf %469, %474 : vector<8x32xf32>
    %476 = arith.mulf %475, %475 : vector<8x32xf32>
    %cst_152 = arith.constant dense<0.000000e+00> : vector<8xf32>
    %477 = vector.multi_reduction <add>, %476, %cst_152 [1] : vector<8x32xf32> to vector<8xf32>
    %478 = vector.shape_cast %477 : vector<8xf32> to vector<8x1xf32>
    %cst_153 = arith.constant 3.200000e+01 : f32
    %479 = vector.broadcast %cst_153 : f32 to vector<8x1xf32>
    %480 = arith.divf %478, %479 : vector<8x1xf32>
    %481 = vector.broadcast %473 : vector<8x1xf32> to vector<8x32xf32>
    %482 = arith.subf %469, %481 : vector<8x32xf32>
    %cst_154 = arith.constant 9.99999974E-6 : f32
    %483 = vector.broadcast %cst_154 : f32 to vector<8x1xf32>
    %484 = arith.addf %480, %483 : vector<8x1xf32>
    %485 = math.rsqrt %484 : vector<8x1xf32>
    %486 = vector.broadcast %485 : vector<8x1xf32> to vector<8x32xf32>
    %487 = arith.mulf %482, %486 : vector<8x32xf32>
    %488 = vector.broadcast %422 : vector<1x32xf32> to vector<8x32xf32>
    %489 = arith.mulf %487, %488 : vector<8x32xf32>
    %490 = vector.broadcast %423 : vector<1x32xf32> to vector<8x32xf32>
    %491 = arith.addf %489, %490 : vector<8x32xf32>
    %492 = arith.truncf %491 : vector<8x32xf32> to vector<8x32xbf16>
    %c1_155 = arith.constant 1 : index
    %c0_156 = arith.constant 0 : index
    %c0_157 = arith.constant 0 : index
    %493 = vector.load %arg15[%c1_155, %c0_156, %c0_157] : memref<2x32x32xbf16, #tpu.memory_space<vmem>>, vector<1x32x32xbf16>
    %494 = vector.shape_cast %493 : vector<1x32x32xbf16> to vector<32x32xbf16>
    %cst_158 = arith.constant dense<0.000000e+00> : vector<8x32xf32>
    %495 = tpu.matmul %492, %494, %cst_158 {dimension_numbers = #tpu.dot_dimension_numbers<[1], [0], [0], [1], [0, 0, 1, 1], [], []>} : vector<8x32xbf16>, vector<32x32xbf16>, vector<8x32xf32> -> vector<8x32xf32>
    %496 = vector.broadcast %417 : vector<1x32xf32> to vector<8x32xf32>
    %497 = arith.addf %495, %496 : vector<8x32xf32>
    %c1_159 = arith.constant 1 : index
    %c0_160 = arith.constant 0 : index
    %c0_161 = arith.constant 0 : index
    %498 = vector.load %arg16[%c1_159, %c0_160, %c0_161] : memref<2x32x64xbf16, #tpu.memory_space<vmem>>, vector<1x32x64xbf16>
    %499 = vector.shape_cast %498 : vector<1x32x64xbf16> to vector<32x64xbf16>
    %cst_162 = arith.constant dense<0.000000e+00> : vector<8x64xf32>
    %500 = tpu.matmul %214, %499, %cst_162 {dimension_numbers = #tpu.dot_dimension_numbers<[1], [0], [0], [1], [0, 0, 1, 1], [], []>} : vector<8x32xbf16>, vector<32x64xbf16>, vector<8x64xf32> -> vector<8x64xf32>
    %501 = vector.broadcast %418 : vector<1x64xf32> to vector<8x64xf32>
    %502 = arith.addf %500, %501 : vector<8x64xf32>
    %503 = tpu.transpose %502, [1, 0] : vector<8x64xf32> -> vector<64x8xf32>
    %504 = tpu.transpose %497, [1, 0] : vector<8x32xf32> -> vector<32x8xf32>
    %505 = vector.extract_strided_slice %503 {offsets = [0, 0], sizes = [32, 8], strides = [1, 1]} : vector<64x8xf32> to vector<32x8xf32>
    %506 = vector.extract_strided_slice %503 {offsets = [32, 0], sizes = [32, 8], strides = [1, 1]} : vector<64x8xf32> to vector<32x8xf32>
    %507 = vector.shape_cast %504 : vector<32x8xf32> to vector<4x8x8xf32>
    %508 = arith.truncf %507 : vector<4x8x8xf32> to vector<4x8x8xbf16>
    %509 = vector.shape_cast %505 : vector<32x8xf32> to vector<4x8x8xf32>
    %510 = arith.truncf %509 : vector<4x8x8xf32> to vector<4x8x8xbf16>
    %511 = vector.shape_cast %506 : vector<32x8xf32> to vector<4x8x8xf32>
    %512 = arith.truncf %511 : vector<4x8x8xf32> to vector<4x8x8xbf16>
    %cst_163 = arith.constant dense<0.000000e+00> : vector<4x8x8xf32>
    %513 = tpu.matmul %508, %510, %cst_163 {dimension_numbers = #tpu.dot_dimension_numbers<[1], [1], [2], [2], [0, 0, 0, 2, 1, 2], [0], [0]>} : vector<4x8x8xbf16>, vector<4x8x8xbf16>, vector<4x8x8xf32> -> vector<4x8x8xf32>
    %cst_164 = arith.constant 0.353553385 : f32
    %514 = vector.broadcast %cst_164 : f32 to vector<4x8x8xf32>
    %515 = arith.mulf %513, %514 : vector<4x8x8xf32>
    %516 = vector.shape_cast %218 : vector<1x8xf32> to vector<1x1x8xf32>
    %517 = vector.broadcast %516 : vector<1x1x8xf32> to vector<4x8x8xf32>
    %518 = arith.addf %515, %517 : vector<4x8x8xf32>
    %cst_165 = arith.constant dense<0xFF800000> : vector<4x8xf32>
    %519 = vector.multi_reduction <maximumf>, %518, %cst_165 [2] : vector<4x8x8xf32> to vector<4x8xf32>
    %520 = vector.shape_cast %519 : vector<4x8xf32> to vector<4x8x1xf32>
    %521 = vector.broadcast %520 : vector<4x8x1xf32> to vector<4x8x8xf32>
    %522 = arith.subf %518, %521 : vector<4x8x8xf32>
    %523 = math.exp %522 : vector<4x8x8xf32>
    %cst_166 = arith.constant dense<0.000000e+00> : vector<4x8xf32>
    %524 = vector.multi_reduction <add>, %523, %cst_166 [2] : vector<4x8x8xf32> to vector<4x8xf32>
    %525 = vector.shape_cast %524 : vector<4x8xf32> to vector<4x8x1xf32>
    %526 = vector.broadcast %525 : vector<4x8x1xf32> to vector<4x8x8xf32>
    %527 = arith.divf %523, %526 : vector<4x8x8xf32>
    %528 = arith.truncf %527 : vector<4x8x8xf32> to vector<4x8x8xbf16>
    %cst_167 = arith.constant dense<0.000000e+00> : vector<4x8x8xf32>
    %529 = tpu.matmul %512, %528, %cst_167 {dimension_numbers = #tpu.dot_dimension_numbers<[2], [2], [1], [1], [0, 0, 0, 1, 1, 1], [0], [0]>} : vector<4x8x8xbf16>, vector<4x8x8xbf16>, vector<4x8x8xf32> -> vector<4x8x8xf32>
    %530 = vector.shape_cast %529 : vector<4x8x8xf32> to vector<32x8xf32>
    %531 = tpu.transpose %530, [1, 0] : vector<32x8xf32> -> vector<8x32xf32>
    %532 = arith.truncf %531 : vector<8x32xf32> to vector<8x32xbf16>
    %c1_168 = arith.constant 1 : index
    %c0_169 = arith.constant 0 : index
    %c0_170 = arith.constant 0 : index
    %533 = vector.load %arg17[%c1_168, %c0_169, %c0_170] : memref<2x32x32xbf16, #tpu.memory_space<vmem>>, vector<1x32x32xbf16>
    %534 = vector.shape_cast %533 : vector<1x32x32xbf16> to vector<32x32xbf16>
    %cst_171 = arith.constant dense<0.000000e+00> : vector<8x32xf32>
    %535 = tpu.matmul %532, %534, %cst_171 {dimension_numbers = #tpu.dot_dimension_numbers<[1], [0], [0], [1], [0, 0, 1, 1], [], []>} : vector<8x32xbf16>, vector<32x32xbf16>, vector<8x32xf32> -> vector<8x32xf32>
    %536 = vector.broadcast %419 : vector<1x32xf32> to vector<8x32xf32>
    %537 = arith.addf %535, %536 : vector<8x32xf32>
    %538 = arith.addf %491, %537 : vector<8x32xf32>
    %cst_172 = arith.constant dense<0.000000e+00> : vector<8xf32>
    %539 = vector.multi_reduction <add>, %538, %cst_172 [1] : vector<8x32xf32> to vector<8xf32>
    %540 = vector.shape_cast %539 : vector<8xf32> to vector<8x1xf32>
    %cst_173 = arith.constant 3.200000e+01 : f32
    %541 = vector.broadcast %cst_173 : f32 to vector<8x1xf32>
    %542 = arith.divf %540, %541 : vector<8x1xf32>
    %543 = vector.broadcast %542 : vector<8x1xf32> to vector<8x32xf32>
    %544 = arith.subf %538, %543 : vector<8x32xf32>
    %545 = arith.mulf %544, %544 : vector<8x32xf32>
    %cst_174 = arith.constant dense<0.000000e+00> : vector<8xf32>
    %546 = vector.multi_reduction <add>, %545, %cst_174 [1] : vector<8x32xf32> to vector<8xf32>
    %547 = vector.shape_cast %546 : vector<8xf32> to vector<8x1xf32>
    %cst_175 = arith.constant 3.200000e+01 : f32
    %548 = vector.broadcast %cst_175 : f32 to vector<8x1xf32>
    %549 = arith.divf %547, %548 : vector<8x1xf32>
    %550 = vector.broadcast %542 : vector<8x1xf32> to vector<8x32xf32>
    %551 = arith.subf %538, %550 : vector<8x32xf32>
    %cst_176 = arith.constant 9.99999974E-6 : f32
    %552 = vector.broadcast %cst_176 : f32 to vector<8x1xf32>
    %553 = arith.addf %549, %552 : vector<8x1xf32>
    %554 = math.rsqrt %553 : vector<8x1xf32>
    %555 = vector.broadcast %554 : vector<8x1xf32> to vector<8x32xf32>
    %556 = arith.mulf %551, %555 : vector<8x32xf32>
    %557 = vector.broadcast %424 : vector<1x32xf32> to vector<8x32xf32>
    %558 = arith.mulf %556, %557 : vector<8x32xf32>
    %559 = vector.broadcast %425 : vector<1x32xf32> to vector<8x32xf32>
    %560 = arith.addf %558, %559 : vector<8x32xf32>
    %561 = arith.truncf %560 : vector<8x32xf32> to vector<8x32xbf16>
    %c1_177 = arith.constant 1 : index
    %c0_178 = arith.constant 0 : index
    %c0_179 = arith.constant 0 : index
    %562 = vector.load %arg18[%c1_177, %c0_178, %c0_179] : memref<2x32x64xbf16, #tpu.memory_space<vmem>>, vector<1x32x64xbf16>
    %563 = vector.shape_cast %562 : vector<1x32x64xbf16> to vector<32x64xbf16>
    %cst_180 = arith.constant dense<0.000000e+00> : vector<8x64xf32>
    %564 = tpu.matmul %561, %563, %cst_180 {dimension_numbers = #tpu.dot_dimension_numbers<[1], [0], [0], [1], [0, 0, 1, 1], [], []>} : vector<8x32xbf16>, vector<32x64xbf16>, vector<8x64xf32> -> vector<8x64xf32>
    %565 = vector.broadcast %420 : vector<1x64xf32> to vector<8x64xf32>
    %566 = arith.addf %564, %565 : vector<8x64xf32>
    %cst_181 = arith.constant 0.000000e+00 : f32
    %567 = vector.broadcast %cst_181 : f32 to vector<8x64xf32>
    %568 = arith.maximumf %566, %567 : vector<8x64xf32>
    %569 = arith.truncf %568 : vector<8x64xf32> to vector<8x64xbf16>
    %c1_182 = arith.constant 1 : index
    %c0_183 = arith.constant 0 : index
    %c0_184 = arith.constant 0 : index
    %570 = vector.load %arg19[%c1_182, %c0_183, %c0_184] : memref<2x64x32xbf16, #tpu.memory_space<vmem>>, vector<1x64x32xbf16>
    %571 = vector.shape_cast %570 : vector<1x64x32xbf16> to vector<64x32xbf16>
    %cst_185 = arith.constant dense<0.000000e+00> : vector<8x32xf32>
    %572 = tpu.matmul %569, %571, %cst_185 {dimension_numbers = #tpu.dot_dimension_numbers<[1], [0], [0], [1], [0, 0, 1, 1], [], []>} : vector<8x64xbf16>, vector<64x32xbf16>, vector<8x32xf32> -> vector<8x32xf32>
    %573 = vector.broadcast %421 : vector<1x32xf32> to vector<8x32xf32>
    %574 = arith.addf %572, %573 : vector<8x32xf32>
    %575 = arith.addf %560, %574 : vector<8x32xf32>
    %cst_186 = arith.constant dense<0.000000e+00> : vector<8xf32>
    %576 = vector.multi_reduction <add>, %575, %cst_186 [1] : vector<8x32xf32> to vector<8xf32>
    %577 = vector.shape_cast %576 : vector<8xf32> to vector<8x1xf32>
    %cst_187 = arith.constant 3.200000e+01 : f32
    %578 = vector.broadcast %cst_187 : f32 to vector<8x1xf32>
    %579 = arith.divf %577, %578 : vector<8x1xf32>
    %580 = vector.broadcast %579 : vector<8x1xf32> to vector<8x32xf32>
    %581 = arith.subf %575, %580 : vector<8x32xf32>
    %582 = arith.mulf %581, %581 : vector<8x32xf32>
    %cst_188 = arith.constant dense<0.000000e+00> : vector<8xf32>
    %583 = vector.multi_reduction <add>, %582, %cst_188 [1] : vector<8x32xf32> to vector<8xf32>
    %584 = vector.shape_cast %583 : vector<8xf32> to vector<8x1xf32>
    %cst_189 = arith.constant 3.200000e+01 : f32
    %585 = vector.broadcast %cst_189 : f32 to vector<8x1xf32>
    %586 = arith.divf %584, %585 : vector<8x1xf32>
    %587 = vector.broadcast %579 : vector<8x1xf32> to vector<8x32xf32>
    %588 = arith.subf %575, %587 : vector<8x32xf32>
    %cst_190 = arith.constant 9.99999974E-6 : f32
    %589 = vector.broadcast %cst_190 : f32 to vector<8x1xf32>
    %590 = arith.addf %586, %589 : vector<8x1xf32>
    %591 = math.rsqrt %590 : vector<8x1xf32>
    %592 = vector.broadcast %591 : vector<8x1xf32> to vector<8x32xf32>
    %593 = arith.mulf %588, %592 : vector<8x32xf32>
    %594 = vector.broadcast %426 : vector<1x32xf32> to vector<8x32xf32>
    %595 = arith.mulf %593, %594 : vector<8x32xf32>
    %596 = vector.broadcast %427 : vector<1x32xf32> to vector<8x32xf32>
    %597 = arith.addf %595, %596 : vector<8x32xf32>
    %c0_191 = arith.constant 0 : index
    %c0_192 = arith.constant 0 : index
    %598 = vector.load %arg24[%c0_191, %c0_192] : memref<8x64xf32, #tpu.memory_space<vmem>>, vector<8x64xf32>
    %599 = vector.extract_strided_slice %598 {offsets = [0, 0], sizes = [1, 60], strides = [1, 1]} : vector<8x64xf32> to vector<1x60xf32>
    %600 = vector.extract_strided_slice %598 {offsets = [1, 0], sizes = [1, 32], strides = [1, 1]} : vector<8x64xf32> to vector<1x32xf32>
    %601 = vector.extract_strided_slice %598 {offsets = [2, 0], sizes = [1, 2], strides = [1, 1]} : vector<8x64xf32> to vector<1x2xf32>
    %602 = arith.truncf %597 : vector<8x32xf32> to vector<8x32xbf16>
    %c0_193 = arith.constant 0 : index
    %c0_194 = arith.constant 0 : index
    %603 = vector.load %arg21[%c0_193, %c0_194] : memref<32x60xbf16, #tpu.memory_space<vmem>>, vector<32x60xbf16>
    %cst_195 = arith.constant dense<0.000000e+00> : vector<8x60xf32>
    %604 = tpu.matmul %602, %603, %cst_195 {dimension_numbers = #tpu.dot_dimension_numbers<[1], [0], [0], [1], [0, 0, 1, 1], [], []>} : vector<8x32xbf16>, vector<32x60xbf16>, vector<8x60xf32> -> vector<8x60xf32>
    %605 = vector.broadcast %599 : vector<1x60xf32> to vector<8x60xf32>
    %606 = arith.addf %604, %605 : vector<8x60xf32>
    %cst_196 = arith.constant dense<0xFF800000> : vector<8xf32>
    %607 = vector.multi_reduction <maximumf>, %606, %cst_196 [1] : vector<8x60xf32> to vector<8xf32>
    %608 = vector.shape_cast %607 : vector<8xf32> to vector<8x1xf32>
    %609 = vector.broadcast %608 : vector<8x1xf32> to vector<8x60xf32>
    %610 = arith.subf %606, %609 : vector<8x60xf32>
    %611 = math.exp %610 : vector<8x60xf32>
    %cst_197 = arith.constant dense<0.000000e+00> : vector<8xf32>
    %612 = vector.multi_reduction <add>, %611, %cst_197 [1] : vector<8x60xf32> to vector<8xf32>
    %613 = vector.shape_cast %612 : vector<8xf32> to vector<8x1xf32>
    %614 = vector.broadcast %613 : vector<8x1xf32> to vector<8x60xf32>
    %615 = arith.divf %611, %614 : vector<8x60xf32>
    %c0_198 = arith.constant 0 : index
    %c0_199 = arith.constant 0 : index
    %c0_200 = arith.constant 0 : index
    %616 = vector.load %arg6[%c0_198, %c0_199, %c0_200] : memref<1x8x1xi32, #tpu.memory_space<vmem>>, vector<1x8x1xi32>
    %617 = vector.shape_cast %616 : vector<1x8x1xi32> to vector<8x1xi32>
    %618 = tpu.iota {dimensions = array<i32: 1>} : vector<8x60xi32>
    %619 = vector.broadcast %617 : vector<8x1xi32> to vector<8x60xi32>
    %620 = arith.cmpi eq, %618, %619 : vector<8x60xi32>
    %621 = arith.extui %620 : vector<8x60xi1> to vector<8x60xi32>
    %622 = arith.sitofp %621 : vector<8x60xi32> to vector<8x60xf32>
    %623 = arith.mulf %615, %622 : vector<8x60xf32>
    %cst_201 = arith.constant dense<0.000000e+00> : vector<8xf32>
    %624 = vector.multi_reduction <add>, %623, %cst_201 [1] : vector<8x60xf32> to vector<8xf32>
    %625 = vector.shape_cast %624 : vector<8xf32> to vector<8x1xf32>
    %c0_202 = arith.constant 0 : index
    %c0_203 = arith.constant 0 : index
    %626 = vector.load %arg22[%c0_202, %c0_203] : memref<32x32xbf16, #tpu.memory_space<vmem>>, vector<32x32xbf16>
    %cst_204 = arith.constant dense<0.000000e+00> : vector<8x32xf32>
    %627 = tpu.matmul %602, %626, %cst_204 {dimension_numbers = #tpu.dot_dimension_numbers<[1], [0], [0], [1], [0, 0, 1, 1], [], []>} : vector<8x32xbf16>, vector<32x32xbf16>, vector<8x32xf32> -> vector<8x32xf32>
    %628 = vector.broadcast %600 : vector<1x32xf32> to vector<8x32xf32>
    %629 = arith.addf %627, %628 : vector<8x32xf32>
    %630 = arith.truncf %629 : vector<8x32xf32> to vector<8x32xbf16>
    %cst_205 = arith.constant dense<0.000000e+00> : vector<8x8xf32>
    %631 = tpu.matmul %630, %214, %cst_205 {dimension_numbers = #tpu.dot_dimension_numbers<[1], [1], [0], [0], [0, 0, 1, 0], [], []>} : vector<8x32xbf16>, vector<8x32xbf16>, vector<8x8xf32> -> vector<8x8xf32>
    %632 = vector.broadcast %218 : vector<1x8xf32> to vector<8x8xf32>
    %633 = arith.addf %631, %632 : vector<8x8xf32>
    %cst_206 = arith.constant dense<0xFF800000> : vector<8xf32>
    %634 = vector.multi_reduction <maximumf>, %633, %cst_206 [1] : vector<8x8xf32> to vector<8xf32>
    %635 = vector.shape_cast %634 : vector<8xf32> to vector<8x1xf32>
    %636 = vector.broadcast %635 : vector<8x1xf32> to vector<8x8xf32>
    %637 = arith.subf %633, %636 : vector<8x8xf32>
    %638 = math.exp %637 : vector<8x8xf32>
    %cst_207 = arith.constant dense<0.000000e+00> : vector<8xf32>
    %639 = vector.multi_reduction <add>, %638, %cst_207 [1] : vector<8x8xf32> to vector<8xf32>
    %640 = vector.shape_cast %639 : vector<8xf32> to vector<8x1xf32>
    %641 = vector.broadcast %640 : vector<8x1xf32> to vector<8x8xf32>
    %642 = arith.divf %638, %641 : vector<8x8xf32>
    %c0_208 = arith.constant 0 : index
    %c0_209 = arith.constant 0 : index
    %c0_210 = arith.constant 0 : index
    %643 = vector.load %arg7[%c0_208, %c0_209, %c0_210] : memref<1x8x8xf32, #tpu.memory_space<vmem>>, vector<1x8x8xf32>
    %644 = vector.shape_cast %643 : vector<1x8x8xf32> to vector<8x8xf32>
    %645 = arith.mulf %642, %644 : vector<8x8xf32>
    %cst_211 = arith.constant dense<0.000000e+00> : vector<8xf32>
    %646 = vector.multi_reduction <add>, %645, %cst_211 [1] : vector<8x8xf32> to vector<8xf32>
    %647 = vector.shape_cast %646 : vector<8xf32> to vector<8x1xf32>
    %c0_212 = arith.constant 0 : index
    %c0_213 = arith.constant 0 : index
    %648 = vector.load %arg23[%c0_212, %c0_213] : memref<32x2xbf16, #tpu.memory_space<vmem>>, vector<32x2xbf16>
    %cst_214 = arith.constant dense<0.000000e+00> : vector<8x2xf32>
    %649 = tpu.matmul %602, %648, %cst_214 {dimension_numbers = #tpu.dot_dimension_numbers<[1], [0], [0], [1], [0, 0, 1, 1], [], []>} : vector<8x32xbf16>, vector<32x2xbf16>, vector<8x2xf32> -> vector<8x2xf32>
    %650 = vector.broadcast %601 : vector<1x2xf32> to vector<8x2xf32>
    %651 = arith.addf %649, %650 : vector<8x2xf32>
    %cst_215 = arith.constant dense<0xFF800000> : vector<8xf32>
    %652 = vector.multi_reduction <maximumf>, %651, %cst_215 [1] : vector<8x2xf32> to vector<8xf32>
    %653 = vector.shape_cast %652 : vector<8xf32> to vector<8x1xf32>
    %654 = vector.broadcast %653 : vector<8x1xf32> to vector<8x2xf32>
    %655 = arith.subf %651, %654 : vector<8x2xf32>
    %656 = math.exp %655 : vector<8x2xf32>
    %cst_216 = arith.constant dense<0.000000e+00> : vector<8xf32>
    %657 = vector.multi_reduction <add>, %656, %cst_216 [1] : vector<8x2xf32> to vector<8xf32>
    %658 = vector.shape_cast %657 : vector<8xf32> to vector<8x1xf32>
    %659 = vector.broadcast %658 : vector<8x1xf32> to vector<8x2xf32>
    %660 = arith.divf %656, %659 : vector<8x2xf32>
    %661 = vector.extract_strided_slice %660 {offsets = [0, 0], sizes = [8, 1], strides = [1, 1]} : vector<8x2xf32> to vector<8x1xf32>
    %662 = arith.mulf %661, %625 : vector<8x1xf32>
    %c0_217 = arith.constant 0 : index
    %c0_218 = arith.constant 0 : index
    %c0_219 = arith.constant 0 : index
    %663 = vector.load %arg8[%c0_217, %c0_218, %c0_219] : memref<1x8x1xf32, #tpu.memory_space<vmem>>, vector<1x8x1xf32>
    %664 = vector.shape_cast %663 : vector<1x8x1xf32> to vector<8x1xf32>
    %665 = arith.mulf %662, %664 : vector<8x1xf32>
    %666 = vector.extract_strided_slice %660 {offsets = [0, 1], sizes = [8, 1], strides = [1, 1]} : vector<8x2xf32> to vector<8x1xf32>
    %667 = arith.mulf %666, %647 : vector<8x1xf32>
    %668 = arith.addf %665, %667 : vector<8x1xf32>
    %c0_i32 = arith.constant 0 : i32
    %669 = vector.broadcast %c0_i32 : i32 to vector<8x1xi32>
    %670 = arith.cmpi ne, %617, %669 : vector<8x1xi32>
    %671 = arith.extui %670 : vector<8x1xi1> to vector<8x1xi32>
    %672 = arith.sitofp %671 : vector<8x1xi32> to vector<8x1xf32>
    %cst_220 = arith.constant 1.000000e-10 : f32
    %673 = vector.broadcast %cst_220 : f32 to vector<8x1xf32>
    %674 = arith.addf %668, %673 : vector<8x1xf32>
    %675 = math.log %674 : vector<8x1xf32>
    %676 = arith.mulf %675, %672 : vector<8x1xf32>
    %cst_221 = arith.constant dense<0.000000e+00> : vector<1xf32>
    %677 = vector.multi_reduction <add>, %676, %cst_221 [0] : vector<8x1xf32> to vector<1xf32>
    %678 = vector.shape_cast %677 : vector<1xf32> to vector<1x1xf32>
    %679 = vector.shape_cast %678 : vector<1x1xf32> to vector<1x1xf32>
    %680 = vector.broadcast %679 : vector<1x1xf32> to vector<1x128xf32>
    %c0_222 = arith.constant 0 : index
    %c0_223 = arith.constant 0 : index
    %c0_224 = arith.constant 0 : index
    %681 = vector.load %arg25[%c0_222, %c0_223, %c0_224] : memref<1x1x128xf32, #tpu.memory_space<vmem>>, vector<1x1x128xf32>
    %682 = vector.shape_cast %681 : vector<1x1x128xf32> to vector<1x128xf32>
    %683 = vector.shape_cast %680 : vector<1x128xf32> to vector<1x1x128xf32>
    tpu.vector_store %arg25[%c0_222, %c0_223, %c0_224], %683 {strides = array<i32>} : memref<1x1x128xf32, #tpu.memory_space<vmem>>, vector<1x1x128xf32>,
    return
  }
  func.func @transform_0(%arg0: i32) -> (i32, i32, i32) {
    %c0_i32 = arith.constant 0 : i32
    %c0_i32_0 = arith.constant 0 : i32
    %c0_i32_1 = arith.constant 0 : i32
    return %arg0, %c0_i32, %c0_i32_0 : i32, i32, i32
  }
  func.func @transform_1(%arg0: i32) -> (i32, i32, i32) {
    %c0_i32 = arith.constant 0 : i32
    %c0_i32_0 = arith.constant 0 : i32
    %c0_i32_1 = arith.constant 0 : i32
    return %arg0, %c0_i32, %c0_i32_0 : i32, i32, i32
  }
  func.func @transform_2(%arg0: i32) -> (i32, i32, i32) {
    %c0_i32 = arith.constant 0 : i32
    %c0_i32_0 = arith.constant 0 : i32
    %c0_i32_1 = arith.constant 0 : i32
    return %arg0, %c0_i32, %c0_i32_0 : i32, i32, i32
  }
  func.func @transform_3(%arg0: i32) -> (i32, i32, i32) {
    %c0_i32 = arith.constant 0 : i32
    %c0_i32_0 = arith.constant 0 : i32
    %c0_i32_1 = arith.constant 0 : i32
    return %arg0, %c0_i32, %c0_i32_0 : i32, i32, i32
  }
  func.func @transform_4(%arg0: i32) -> (i32, i32, i32) {
    %c0_i32 = arith.constant 0 : i32
    %c0_i32_0 = arith.constant 0 : i32
    %c0_i32_1 = arith.constant 0 : i32
    return %arg0, %c0_i32, %c0_i32_0 : i32, i32, i32
  }
  func.func @transform_5(%arg0: i32) -> (i32, i32, i32) {
    %c0_i32 = arith.constant 0 : i32
    %c0_i32_0 = arith.constant 0 : i32
    %c0_i32_1 = arith.constant 0 : i32
    return %arg0, %c0_i32, %c0_i32_0 : i32, i32, i32
  }
  func.func @transform_6(%arg0: i32) -> (i32, i32, i32) {
    %c0_i32 = arith.constant 0 : i32
    %c0_i32_0 = arith.constant 0 : i32
    %c0_i32_1 = arith.constant 0 : i32
    return %arg0, %c0_i32, %c0_i32_0 : i32, i32, i32
  }
  func.func @transform_7(%arg0: i32) -> (i32, i32, i32) {
    %c0_i32 = arith.constant 0 : i32
    %c0_i32_0 = arith.constant 0 : i32
    %c0_i32_1 = arith.constant 0 : i32
    return %arg0, %c0_i32, %c0_i32_0 : i32, i32, i32
  }
  func.func @transform_8(%arg0: i32) -> (i32, i32, i32) {
    %c0_i32 = arith.constant 0 : i32
    %c0_i32_0 = arith.constant 0 : i32
    %c0_i32_1 = arith.constant 0 : i32
    %c0_i32_2 = arith.constant 0 : i32
    return %c0_i32, %c0_i32_0, %c0_i32_1 : i32, i32, i32
  }
  func.func @transform_9(%arg0: i32) -> (i32, i32, i32) {
    %c0_i32 = arith.constant 0 : i32
    %c0_i32_0 = arith.constant 0 : i32
    %c0_i32_1 = arith.constant 0 : i32
    %c0_i32_2 = arith.constant 0 : i32
    return %c0_i32, %c0_i32_0, %c0_i32_1 : i32, i32, i32
  }
  func.func @transform_10(%arg0: i32) -> (i32, i32, i32) {
    %c0_i32 = arith.constant 0 : i32
    %c0_i32_0 = arith.constant 0 : i32
    %c0_i32_1 = arith.constant 0 : i32
    %c0_i32_2 = arith.constant 0 : i32
    return %c0_i32, %c0_i32_0, %c0_i32_1 : i32, i32, i32
  }
  func.func @transform_11(%arg0: i32) -> (i32, i32, i32) {
    %c0_i32 = arith.constant 0 : i32
    %c0_i32_0 = arith.constant 0 : i32
    %c0_i32_1 = arith.constant 0 : i32
    %c0_i32_2 = arith.constant 0 : i32
    return %c0_i32, %c0_i32_0, %c0_i32_1 : i32, i32, i32
  }
  func.func @transform_12(%arg0: i32) -> (i32, i32, i32) {
    %c0_i32 = arith.constant 0 : i32
    %c0_i32_0 = arith.constant 0 : i32
    %c0_i32_1 = arith.constant 0 : i32
    %c0_i32_2 = arith.constant 0 : i32
    return %c0_i32, %c0_i32_0, %c0_i32_1 : i32, i32, i32
  }
  func.func @transform_13(%arg0: i32) -> (i32, i32, i32) {
    %c0_i32 = arith.constant 0 : i32
    %c0_i32_0 = arith.constant 0 : i32
    %c0_i32_1 = arith.constant 0 : i32
    %c0_i32_2 = arith.constant 0 : i32
    return %c0_i32, %c0_i32_0, %c0_i32_1 : i32, i32, i32
  }
  func.func @transform_14(%arg0: i32) -> (i32, i32, i32) {
    %c0_i32 = arith.constant 0 : i32
    %c0_i32_0 = arith.constant 0 : i32
    %c0_i32_1 = arith.constant 0 : i32
    %c0_i32_2 = arith.constant 0 : i32
    return %c0_i32, %c0_i32_0, %c0_i32_1 : i32, i32, i32
  }
  func.func @transform_15(%arg0: i32) -> (i32, i32, i32) {
    %c0_i32 = arith.constant 0 : i32
    %c0_i32_0 = arith.constant 0 : i32
    %c0_i32_1 = arith.constant 0 : i32
    %c0_i32_2 = arith.constant 0 : i32
    return %c0_i32, %c0_i32_0, %c0_i32_1 : i32, i32, i32
  }
  func.func @transform_16(%arg0: i32) -> (i32, i32, i32) {
    %c0_i32 = arith.constant 0 : i32
    %c0_i32_0 = arith.constant 0 : i32
    %c0_i32_1 = arith.constant 0 : i32
    %c0_i32_2 = arith.constant 0 : i32
    return %c0_i32, %c0_i32_0, %c0_i32_1 : i32, i32, i32
  }
  func.func @transform_17(%arg0: i32) -> (i32, i32, i32) {
    %c0_i32 = arith.constant 0 : i32
    %c0_i32_0 = arith.constant 0 : i32
    %c0_i32_1 = arith.constant 0 : i32
    %c0_i32_2 = arith.constant 0 : i32
    return %c0_i32, %c0_i32_0, %c0_i32_1 : i32, i32, i32
  }
  func.func @transform_18(%arg0: i32) -> (i32, i32, i32) {
    %c0_i32 = arith.constant 0 : i32
    %c0_i32_0 = arith.constant 0 : i32
    %c0_i32_1 = arith.constant 0 : i32
    %c0_i32_2 = arith.constant 0 : i32
    return %c0_i32, %c0_i32_0, %c0_i32_1 : i32, i32, i32
  }
  func.func @transform_19(%arg0: i32) -> (i32, i32, i32) {
    %c0_i32 = arith.constant 0 : i32
    %c0_i32_0 = arith.constant 0 : i32
    %c0_i32_1 = arith.constant 0 : i32
    %c0_i32_2 = arith.constant 0 : i32
    return %c0_i32, %c0_i32_0, %c0_i32_1 : i32, i32, i32
  }
  func.func @transform_20(%arg0: i32) -> (i32, i32) {
    %c0_i32 = arith.constant 0 : i32
    %c0_i32_0 = arith.constant 0 : i32
    %c0_i32_1 = arith.constant 0 : i32
    return %c0_i32, %c0_i32_0 : i32, i32
  }
  func.func @transform_21(%arg0: i32) -> (i32, i32) {
    %c0_i32 = arith.constant 0 : i32
    %c0_i32_0 = arith.constant 0 : i32
    %c0_i32_1 = arith.constant 0 : i32
    return %c0_i32, %c0_i32_0 : i32, i32
  }
  func.func @transform_22(%arg0: i32) -> (i32, i32) {
    %c0_i32 = arith.constant 0 : i32
    %c0_i32_0 = arith.constant 0 : i32
    %c0_i32_1 = arith.constant 0 : i32
    return %c0_i32, %c0_i32_0 : i32, i32
  }
  func.func @transform_23(%arg0: i32) -> (i32, i32) {
    %c0_i32 = arith.constant 0 : i32
    %c0_i32_0 = arith.constant 0 : i32
    %c0_i32_1 = arith.constant 0 : i32
    return %c0_i32, %c0_i32_0 : i32, i32
  }
  func.func @transform_24(%arg0: i32) -> (i32, i32, i32) {
    %c0_i32 = arith.constant 0 : i32
    %c0_i32_0 = arith.constant 0 : i32
    %c0_i32_1 = arith.constant 0 : i32
    return %arg0, %c0_i32, %c0_i32_0 : i32, i32, i32
  }
}

</mosaic_0001>

<llo_original>
// kernel: hgt_copy_transformer_forward.1
$region0: #{hgt_copy_transformer_forward.1}
  #allocation0 [shape = 'u32[]', space=smem, size = 0x4, offset = 0x4, fixed_abs, tag = 'smem constant byte address 0x4 - core index']
  #allocation1 [shape = 'u32[144,128]{1,0:T(1,128)}', space=vmem, size = 0x12000, scoped, tag = 'internal scratch']
  %s0 = inlined_call_operand.vmem [shape: f32[2,8,32], index: 0, kind: input, shape index: {}]
  %s1 = inlined_call_operand.vmem [shape: f32[2,8,8], index: 1, kind: input, shape index: {}]
  %s2 = inlined_call_operand.vmem [shape: f32[2,1,8], index: 2, kind: input, shape index: {}]
  %s3 = inlined_call_operand.vmem [shape: f32[2,8,1], index: 3, kind: input, shape index: {}]
  %s4 = inlined_call_operand.vmem [shape: f32[2,8,32], index: 4, kind: input, shape index: {}]
  %s5 = inlined_call_operand.vmem [shape: s32[2,8,1], index: 5, kind: input, shape index: {}]
  %s6 = inlined_call_operand.vmem [shape: f32[2,8,8], index: 6, kind: input, shape index: {}]
  %s7 = inlined_call_operand.vmem [shape: f32[2,8,1], index: 7, kind: input, shape index: {}]
  %s8 = inlined_call_operand.vmem [shape: bf16[2,32,96], index: 8, kind: input, shape index: {}]
  %s9 = inlined_call_operand.vmem [shape: bf16[2,32,32], index: 9, kind: input, shape index: {}]
  %s10 = inlined_call_operand.vmem [shape: bf16[2,32,32], index: 10, kind: input, shape index: {}]
  %s11 = inlined_call_operand.vmem [shape: f32[2,8,96], index: 11, kind: input, shape index: {}]
  %s12 = inlined_call_operand.vmem [shape: bf16[2,32,96], index: 12, kind: input, shape index: {}]
  %s13 = inlined_call_operand.vmem [shape: bf16[2,32,32], index: 13, kind: input, shape index: {}]
  %s14 = inlined_call_operand.vmem [shape: bf16[2,32,32], index: 14, kind: input, shape index: {}]
  %s15 = inlined_call_operand.vmem [shape: bf16[2,32,64], index: 15, kind: input, shape index: {}]
  %s16 = inlined_call_operand.vmem [shape: bf16[2,32,32], index: 16, kind: input, shape index: {}]
  %s17 = inlined_call_operand.vmem [shape: bf16[2,32,64], index: 17, kind: input, shape index: {}]
  %s18 = inlined_call_operand.vmem [shape: bf16[2,64,32], index: 18, kind: input, shape index: {}]
  %s19 = inlined_call_operand.vmem [shape: f32[2,16,96], index: 19, kind: input, shape index: {}]
  %s20 = inlined_call_operand.vmem [shape: bf16[32,60], index: 20, kind: input, shape index: {}]
  %s21 = inlined_call_operand.vmem [shape: bf16[32,32], index: 21, kind: input, shape index: {}]
  %s22 = inlined_call_operand.vmem [shape: bf16[32,2], index: 22, kind: input, shape index: {}]
  %s23 = inlined_call_operand.vmem [shape: f32[8,64], index: 23, kind: input, shape index: {}]
  %s24 = inlined_call_operand.vmem [shape: f32[2,1,128], index: 24, kind: output, shape index: {}]
  %s25 = sld [smem:[#allocation0]]
  $region129: #{hgt_copy_transformer_forward.1} parent=0
    _
  %s27 = ssub.s32 1, %s25
  %s28 = scalar_select 0, %s27, %s25
  loop: start=0, step=1, limit=4
  $region2: #{hgt_copy_transformer_forward.1} parent=0 // loop_pre_header
    _
  $region3: #{hgt_copy_transformer_forward.1} parent=0 // loop_header
    %s30 = sphi 0, %s34
    %p31 = scmp.ge.s32.totalorder %s30, 4
    %s40 = sphi 0, %s42
    %s43 = sphi 0, %s40
    %s44 = sphi 0, %s43
    %s60 = sphi 0, %s44
    %s66 = sphi 0, %s68
    %s69 = sphi 0, %s66
    %s70 = sphi 0, %s69
    %s86 = sphi 0, %s70
    %s92 = sphi 0, %s94
    %s95 = sphi 0, %s92
    %s96 = sphi 0, %s95
    %s112 = sphi 0, %s96
    %s118 = sphi 0, %s120
    %s121 = sphi 0, %s118
    %s122 = sphi 0, %s121
    %s138 = sphi 0, %s122
    %s144 = sphi 0, %s146
    %s147 = sphi 0, %s144
    %s148 = sphi 0, %s147
    %s164 = sphi 0, %s148
    %s170 = sphi 0, %s172
    %s173 = sphi 0, %s170
    %s174 = sphi 0, %s173
    %s190 = sphi 0, %s174
    %s196 = sphi 0, %s198
    %s199 = sphi 0, %s196
    %s200 = sphi 0, %s199
    %s216 = sphi 0, %s200
    %s222 = sphi 0, %s224
    %s225 = sphi 0, %s222
    %s226 = sphi 0, %s225
    %s242 = sphi 0, %s226
    %s246 = sphi 0, %s246
    %s248 = sphi 0, %s246
    %s249 = sphi 0, %s248
    %s263 = sphi 0, %s249
    %s267 = sphi 0, %s267
    %s269 = sphi 0, %s267
    %s270 = sphi 0, %s269
    %s284 = sphi 0, %s270
    %s288 = sphi 0, %s288
    %s290 = sphi 0, %s288
    %s291 = sphi 0, %s290
    %s305 = sphi 0, %s291
    %s309 = sphi 0, %s309
    %s311 = sphi 0, %s309
    %s312 = sphi 0, %s311
    %s326 = sphi 0, %s312
    %s330 = sphi 0, %s330
    %s332 = sphi 0, %s330
    %s333 = sphi 0, %s332
    %s347 = sphi 0, %s333
    %s351 = sphi 0, %s351
    %s353 = sphi 0, %s351
    %s354 = sphi 0, %s353
    %s368 = sphi 0, %s354
    %s372 = sphi 0, %s372
    %s374 = sphi 0, %s372
    %s375 = sphi 0, %s374
    %s389 = sphi 0, %s375
    %s393 = sphi 0, %s393
    %s395 = sphi 0, %s393
    %s396 = sphi 0, %s395
    %s410 = sphi 0, %s396
    %s414 = sphi 0, %s414
    %s416 = sphi 0, %s414
    %s417 = sphi 0, %s416
    %s431 = sphi 0, %s417
    %s435 = sphi 0, %s435
    %s437 = sphi 0, %s435
    %s438 = sphi 0, %s437
    %s452 = sphi 0, %s438
    %s456 = sphi 0, %s456
    %s458 = sphi 0, %s456
    %s459 = sphi 0, %s458
    %s473 = sphi 0, %s459
    %s477 = sphi 0, %s477
    %s479 = sphi 0, %s477
    %s480 = sphi 0, %s479
    %s494 = sphi 0, %s480
    %s498 = sphi 0, %s498
    %s500 = sphi 0, %s498
    %s501 = sphi 0, %s500
    %s515 = sphi 0, %s501
    %s519 = sphi 0, %s519
    %s521 = sphi 0, %s519
    %s522 = sphi 0, %s521
    %s536 = sphi 0, %s522
    %s540 = sphi 0, %s540
    %s542 = sphi 0, %s540
    %s543 = sphi 0, %s542
    %s557 = sphi 0, %s543
    %s561 = sphi 0, %s561
    %s563 = sphi 0, %s561
    %s564 = sphi 0, %s563
    %s578 = sphi 0, %s564
    %s584 = sphi 0, %s586
    %s587 = sphi 0, %s584
    %s588 = sphi 0, %s587
    %s604 = sphi 0, %s588
  $region4: #{hgt_copy_transformer_forward.1} parent=0 // loop_header_branch
    %33 = sbr.rel (%p31) target = $region8
  $region5: #{hgt_copy_transformer_forward.1} parent=0 // loop_body
    %s35 = ssub.s32 %s30, 1
    %s36 = ssub.s32 %s30, 2
    %s37 = sadd.s32 %s30, 1
    %s38 = ssub.s32 %s30, %s37
    %p39 = scmp.eq.s32.totalorder %s38, 0
    %s41 = sadd.s32 %s40, 1
    %s42 = scalar_select %p39, %s40, %s41
    %p45 = pneg %p39
    %p46 = scmp.eq.s32.totalorder %s30, 1
    %p47 = por %p45, %p46
    %p48 = scmp.ne.s32.totalorder %s40, %s43
    %p49 = scmp.eq.s32.totalorder %s30, 0
    %p50 = por %p48, %p49
    %p51 = scmp.ne.s32.totalorder %s40, %s43
    %p52 = scmp.eq.s32.totalorder %s35, 1
    %p53 = por %p51, %p52
    %p54 = scmp.ne.s32.totalorder %s43, %s44
    %p55 = scmp.eq.s32.totalorder %s35, 0
    %p56 = por %p54, %p55
    %p57 = scmp.ne.s32.totalorder %s43, %s44
    %p58 = scmp.eq.s32.totalorder %s36, 1
    %p59 = por %p57, %p58
    %p61 = scmp.ne.s32.totalorder %s44, %s60
    %p62 = scmp.eq.s32.totalorder %s36, 0
    %p63 = por %p61, %p62
    %s64 = ssub.s32 %s30, %s37
    %p65 = scmp.eq.s32.totalorder %s64, 0
    %s67 = sadd.s32 %s66, 1
    %s68 = scalar_select %p65, %s66, %s67
    %p71 = pneg %p65
    %p72 = scmp.eq.s32.totalorder %s30, 1
    %p73 = por %p71, %p72
    %p74 = scmp.ne.s32.totalorder %s66, %s69
    %p75 = scmp.eq.s32.totalorder %s30, 0
    %p76 = por %p74, %p75
    %p77 = scmp.ne.s32.totalorder %s66, %s69
    %p78 = scmp.eq.s32.totalorder %s35, 1
    %p79 = por %p77, %p78
    %p80 = scmp.ne.s32.totalorder %s69, %s70
    %p81 = scmp.eq.s32.totalorder %s35, 0
    %p82 = por %p80, %p81
    %p83 = scmp.ne.s32.totalorder %s69, %s70
    %p84 = scmp.eq.s32.totalorder %s36, 1
    %p85 = por %p83, %p84
    %p87 = scmp.ne.s32.totalorder %s70, %s86
    %p88 = scmp.eq.s32.totalorder %s36, 0
    %p89 = por %p87, %p88
    %s90 = ssub.s32 %s30, %s37
    %p91 = scmp.eq.s32.totalorder %s90, 0
    %s93 = sadd.s32 %s92, 1
    %s94 = scalar_select %p91, %s92, %s93
    %p97 = pneg %p91
    %p98 = scmp.eq.s32.totalorder %s30, 1
    %p99 = por %p97, %p98
    %p100 = scmp.ne.s32.totalorder %s92, %s95
    %p101 = scmp.eq.s32.totalorder %s30, 0
    %p102 = por %p100, %p101
    %p103 = scmp.ne.s32.totalorder %s92, %s95
    %p104 = scmp.eq.s32.totalorder %s35, 1
    %p105 = por %p103, %p104
    %p106 = scmp.ne.s32.totalorder %s95, %s96
    %p107 = scmp.eq.s32.totalorder %s35, 0
    %p108 = por %p106, %p107
    %p109 = scmp.ne.s32.totalorder %s95, %s96
    %p110 = scmp.eq.s32.totalorder %s36, 1
    %p111 = por %p109, %p110
    %p113 = scmp.ne.s32.totalorder %s96, %s112
    %p114 = scmp.eq.s32.totalorder %s36, 0
    %p115 = por %p113, %p114
    %s116 = ssub.s32 %s30, %s37
    %p117 = scmp.eq.s32.totalorder %s116, 0
    %s119 = sadd.s32 %s118, 1
    %s120 = scalar_select %p117, %s118, %s119
    %p123 = pneg %p117
    %p124 = scmp.eq.s32.totalorder %s30, 1
    %p125 = por %p123, %p124
    %p126 = scmp.ne.s32.totalorder %s118, %s121
    %p127 = scmp.eq.s32.totalorder %s30, 0
    %p128 = por %p126, %p127
    %p129 = scmp.ne.s32.totalorder %s118, %s121
    %p130 = scmp.eq.s32.totalorder %s35, 1
    %p131 = por %p129, %p130
    %p132 = scmp.ne.s32.totalorder %s121, %s122
    %p133 = scmp.eq.s32.totalorder %s35, 0
    %p134 = por %p132, %p133
    %p135 = scmp.ne.s32.totalorder %s121, %s122
    %p136 = scmp.eq.s32.totalorder %s36, 1
    %p137 = por %p135, %p136
    %p139 = scmp.ne.s32.totalorder %s122, %s138
    %p140 = scmp.eq.s32.totalorder %s36, 0
    %p141 = por %p139, %p140
    %s142 = ssub.s32 %s30, %s37
    %p143 = scmp.eq.s32.totalorder %s142, 0
    %s145 = sadd.s32 %s144, 1
    %s146 = scalar_select %p143, %s144, %s145
    %p149 = pneg %p143
    %p150 = scmp.eq.s32.totalorder %s30, 1
    %p151 = por %p149, %p150
    %p152 = scmp.ne.s32.totalorder %s144, %s147
    %p153 = scmp.eq.s32.totalorder %s30, 0
    %p154 = por %p152, %p153
    %p155 = scmp.ne.s32.totalorder %s144, %s147
    %p156 = scmp.eq.s32.totalorder %s35, 1
    %p157 = por %p155, %p156
    %p158 = scmp.ne.s32.totalorder %s147, %s148
    %p159 = scmp.eq.s32.totalorder %s35, 0
    %p160 = por %p158, %p159
    %p161 = scmp.ne.s32.totalorder %s147, %s148
    %p162 = scmp.eq.s32.totalorder %s36, 1
    %p163 = por %p161, %p162
    %p165 = scmp.ne.s32.totalorder %s148, %s164
    %p166 = scmp.eq.s32.totalorder %s36, 0
    %p167 = por %p165, %p166
    %s168 = ssub.s32 %s30, %s37
    %p169 = scmp.eq.s32.totalorder %s168, 0
    %s171 = sadd.s32 %s170, 1
    %s172 = scalar_select %p169, %s170, %s171
    %p175 = pneg %p169
    %p176 = scmp.eq.s32.totalorder %s30, 1
    %p177 = por %p175, %p176
    %p178 = scmp.ne.s32.totalorder %s170, %s173
    %p179 = scmp.eq.s32.totalorder %s30, 0
    %p180 = por %p178, %p179
    %p181 = scmp.ne.s32.totalorder %s170, %s173
    %p182 = scmp.eq.s32.totalorder %s35, 1
    %p183 = por %p181, %p182
    %p184 = scmp.ne.s32.totalorder %s173, %s174
    %p185 = scmp.eq.s32.totalorder %s35, 0
    %p186 = por %p184, %p185
    %p187 = scmp.ne.s32.totalorder %s173, %s174
    %p188 = scmp.eq.s32.totalorder %s36, 1
    %p189 = por %p187, %p188
    %p191 = scmp.ne.s32.totalorder %s174, %s190
    %p192 = scmp.eq.s32.totalorder %s36, 0
    %p193 = por %p191, %p192
    %s194 = ssub.s32 %s30, %s37
    %p195 = scmp.eq.s32.totalorder %s194, 0
    %s197 = sadd.s32 %s196, 1
    %s198 = scalar_select %p195, %s196, %s197
    %p201 = pneg %p195
    %p202 = scmp.eq.s32.totalorder %s30, 1
    %p203 = por %p201, %p202
    %p204 = scmp.ne.s32.totalorder %s196, %s199
    %p205 = scmp.eq.s32.totalorder %s30, 0
    %p206 = por %p204, %p205
    %p207 = scmp.ne.s32.totalorder %s196, %s199
    %p208 = scmp.eq.s32.totalorder %s35, 1
    %p209 = por %p207, %p208
    %p210 = scmp.ne.s32.totalorder %s199, %s200
    %p211 = scmp.eq.s32.totalorder %s35, 0
    %p212 = por %p210, %p211
    %p213 = scmp.ne.s32.totalorder %s199, %s200
    %p214 = scmp.eq.s32.totalorder %s36, 1
    %p215 = por %p213, %p214
    %p217 = scmp.ne.s32.totalorder %s200, %s216
    %p218 = scmp.eq.s32.totalorder %s36, 0
    %p219 = por %p217, %p218
    %s220 = ssub.s32 %s30, %s37
    %p221 = scmp.eq.s32.totalorder %s220, 0
    %s223 = sadd.s32 %s222, 1
    %s224 = scalar_select %p221, %s222, %s223
    %p227 = pneg %p221
    %p228 = scmp.eq.s32.totalorder %s30, 1
    %p229 = por %p227, %p228
    %p230 = scmp.ne.s32.totalorder %s222, %s225
    %p231 = scmp.eq.s32.totalorder %s30, 0
    %p232 = por %p230, %p231
    %p233 = scmp.ne.s32.totalorder %s222, %s225
    %p234 = scmp.eq.s32.totalorder %s35, 1
    %p235 = por %p233, %p234
    %p236 = scmp.ne.s32.totalorder %s225, %s226
    %p237 = scmp.eq.s32.totalorder %s35, 0
    %p238 = por %p236, %p237
    %p239 = scmp.ne.s32.totalorder %s225, %s226
    %p240 = scmp.eq.s32.totalorder %s36, 1
    %p241 = por %p239, %p240
    %p243 = scmp.ne.s32.totalorder %s226, %s242
    %p244 = scmp.eq.s32.totalorder %s36, 0
    %p245 = por %p243, %p244
    %s247 = sadd.s32 %s246, 1
    %p250 = scmp.eq.s32.totalorder %s30, 1
    %p251 = scmp.ne.s32.totalorder %s246, %s248
    %p252 = scmp.eq.s32.totalorder %s30, 0
    %p253 = por %p251, %p252
    %p254 = scmp.ne.s32.totalorder %s246, %s248
    %p255 = scmp.eq.s32.totalorder %s35, 1
    %p256 = por %p254, %p255
    %p257 = scmp.ne.s32.totalorder %s248, %s249
    %p258 = scmp.eq.s32.totalorder %s35, 0
    %p259 = por %p257, %p258
    %p260 = scmp.ne.s32.totalorder %s248, %s249
    %p261 = scmp.eq.s32.totalorder %s36, 1
    %p262 = por %p260, %p261
    %p264 = scmp.ne.s32.totalorder %s249, %s263
    %p265 = scmp.eq.s32.totalorder %s36, 0
    %p266 = por %p264, %p265
    %s268 = sadd.s32 %s267, 1
    %p271 = scmp.eq.s32.totalorder %s30, 1
    %p272 = scmp.ne.s32.totalorder %s267, %s269
    %p273 = scmp.eq.s32.totalorder %s30, 0
    %p274 = por %p272, %p273
    %p275 = scmp.ne.s32.totalorder %s267, %s269
    %p276 = scmp.eq.s32.totalorder %s35, 1
    %p277 = por %p275, %p276
    %p278 = scmp.ne.s32.totalorder %s269, %s270
    %p279 = scmp.eq.s32.totalorder %s35, 0
    %p280 = por %p278, %p279
    %p281 = scmp.ne.s32.totalorder %s269, %s270
    %p282 = scmp.eq.s32.totalorder %s36, 1
    %p283 = por %p281, %p282
    %p285 = scmp.ne.s32.totalorder %s270, %s284
    %p286 = scmp.eq.s32.totalorder %s36, 0
    %p287 = por %p285, %p286
    %s289 = sadd.s32 %s288, 1
    %p292 = scmp.eq.s32.totalorder %s30, 1
    %p293 = scmp.ne.s32.totalorder %s288, %s290
    %p294 = scmp.eq.s32.totalorder %s30, 0
    %p295 = por %p293, %p294
    %p296 = scmp.ne.s32.totalorder %s288, %s290
    %p297 = scmp.eq.s32.totalorder %s35, 1
    %p298 = por %p296, %p297
    %p299 = scmp.ne.s32.totalorder %s290, %s291
    %p300 = scmp.eq.s32.totalorder %s35, 0
    %p301 = por %p299, %p300
    %p302 = scmp.ne.s32.totalorder %s290, %s291
    %p303 = scmp.eq.s32.totalorder %s36, 1
    %p304 = por %p302, %p303
    %p306 = scmp.ne.s32.totalorder %s291, %s305
    %p307 = scmp.eq.s32.totalorder %s36, 0
    %p308 = por %p306, %p307
    %s310 = sadd.s32 %s309, 1
    %p313 = scmp.eq.s32.totalorder %s30, 1
    %p314 = scmp.ne.s32.totalorder %s309, %s311
    %p315 = scmp.eq.s32.totalorder %s30, 0
    %p316 = por %p314, %p315
    %p317 = scmp.ne.s32.totalorder %s309, %s311
    %p318 = scmp.eq.s32.totalorder %s35, 1
    %p319 = por %p317, %p318
    %p320 = scmp.ne.s32.totalorder %s311, %s312
    %p321 = scmp.eq.s32.totalorder %s35, 0
    %p322 = por %p320, %p321
    %p323 = scmp.ne.s32.totalorder %s311, %s312
    %p324 = scmp.eq.s32.totalorder %s36, 1
    %p325 = por %p323, %p324
    %p327 = scmp.ne.s32.totalorder %s312, %s326
    %p328 = scmp.eq.s32.totalorder %s36, 0
    %p329 = por %p327, %p328
    %s331 = sadd.s32 %s330, 1
    %p334 = scmp.eq.s32.totalorder %s30, 1
    %p335 = scmp.ne.s32.totalorder %s330, %s332
    %p336 = scmp.eq.s32.totalorder %s30, 0
    %p337 = por %p335, %p336
    %p338 = scmp.ne.s32.totalorder %s330, %s332
    %p339 = scmp.eq.s32.totalorder %s35, 1
    %p340 = por %p338, %p339
    %p341 = scmp.ne.s32.totalorder %s332, %s333
    %p342 = scmp.eq.s32.totalorder %s35, 0
    %p343 = por %p341, %p342
    %p344 = scmp.ne.s32.totalorder %s332, %s333
    %p345 = scmp.eq.s32.totalorder %s36, 1
    %p346 = por %p344, %p345
    %p348 = scmp.ne.s32.totalorder %s333, %s347
    %p349 = scmp.eq.s32.totalorder %s36, 0
    %p350 = por %p348, %p349
    %s352 = sadd.s32 %s351, 1
    %p355 = scmp.eq.s32.totalorder %s30, 1
    %p356 = scmp.ne.s32.totalorder %s351, %s353
    %p357 = scmp.eq.s32.totalorder %s30, 0
    %p358 = por %p356, %p357
    %p359 = scmp.ne.s32.totalorder %s351, %s353
    %p360 = scmp.eq.s32.totalorder %s35, 1
    %p361 = por %p359, %p360
    %p362 = scmp.ne.s32.totalorder %s353, %s354
    %p363 = scmp.eq.s32.totalorder %s35, 0
    %p364 = por %p362, %p363
    %p365 = scmp.ne.s32.totalorder %s353, %s354
    %p366 = scmp.eq.s32.totalorder %s36, 1
    %p367 = por %p365, %p366
    %p369 = scmp.ne.s32.totalorder %s354, %s368
    %p370 = scmp.eq.s32.totalorder %s36, 0
    %p371 = por %p369, %p370
    %s373 = sadd.s32 %s372, 1
    %p376 = scmp.eq.s32.totalorder %s30, 1
    %p377 = scmp.ne.s32.totalorder %s372, %s374
    %p378 = scmp.eq.s32.totalorder %s30, 0
    %p379 = por %p377, %p378
    %p380 = scmp.ne.s32.totalorder %s372, %s374
    %p381 = scmp.eq.s32.totalorder %s35, 1
    %p382 = por %p380, %p381
    %p383 = scmp.ne.s32.totalorder %s374, %s375
    %p384 = scmp.eq.s32.totalorder %s35, 0
    %p385 = por %p383, %p384
    %p386 = scmp.ne.s32.totalorder %s374, %s375
    %p387 = scmp.eq.s32.totalorder %s36, 1
    %p388 = por %p386, %p387
    %p390 = scmp.ne.s32.totalorder %s375, %s389
    %p391 = scmp.eq.s32.totalorder %s36, 0
    %p392 = por %p390, %p391
    %s394 = sadd.s32 %s393, 1
    %p397 = scmp.eq.s32.totalorder %s30, 1
    %p398 = scmp.ne.s32.totalorder %s393, %s395
    %p399 = scmp.eq.s32.totalorder %s30, 0
    %p400 = por %p398, %p399
    %p401 = scmp.ne.s32.totalorder %s393, %s395
    %p402 = scmp.eq.s32.totalorder %s35, 1
    %p403 = por %p401, %p402
    %p404 = scmp.ne.s32.totalorder %s395, %s396
    %p405 = scmp.eq.s32.totalorder %s35, 0
    %p406 = por %p404, %p405
    %p407 = scmp.ne.s32.totalorder %s395, %s396
    %p408 = scmp.eq.s32.totalorder %s36, 1
    %p409 = por %p407, %p408
    %p411 = scmp.ne.s32.totalorder %s396, %s410
    %p412 = scmp.eq.s32.totalorder %s36, 0
    %p413 = por %p411, %p412
    %s415 = sadd.s32 %s414, 1
    %p418 = scmp.eq.s32.totalorder %s30, 1
    %p419 = scmp.ne.s32.totalorder %s414, %s416
    %p420 = scmp.eq.s32.totalorder %s30, 0
    %p421 = por %p419, %p420
    %p422 = scmp.ne.s32.totalorder %s414, %s416
    %p423 = scmp.eq.s32.totalorder %s35, 1
    %p424 = por %p422, %p423
    %p425 = scmp.ne.s32.totalorder %s416, %s417
    %p426 = scmp.eq.s32.totalorder %s35, 0
    %p427 = por %p425, %p426
    %p428 = scmp.ne.s32.totalorder %s416, %s417
    %p429 = scmp.eq.s32.totalorder %s36, 1
    %p430 = por %p428, %p429
    %p432 = scmp.ne.s32.totalorder %s417, %s431
    %p433 = scmp.eq.s32.totalorder %s36, 0
    %p434 = por %p432, %p433
    %s436 = sadd.s32 %s435, 1
    %p439 = scmp.eq.s32.totalorder %s30, 1
    %p440 = scmp.ne.s32.totalorder %s435, %s437
    %p441 = scmp.eq.s32.totalorder %s30, 0
    %p442 = por %p440, %p441
    %p443 = scmp.ne.s32.totalorder %s435, %s437
    %p444 = scmp.eq.s32.totalorder %s35, 1
    %p445 = por %p443, %p444
    %p446 = scmp.ne.s32.totalorder %s437, %s438
    %p447 = scmp.eq.s32.totalorder %s35, 0
    %p448 = por %p446, %p447
    %p449 = scmp.ne.s32.totalorder %s437, %s438
    %p450 = scmp.eq.s32.totalorder %s36, 1
    %p451 = por %p449, %p450
    %p453 = scmp.ne.s32.totalorder %s438, %s452
    %p454 = scmp.eq.s32.totalorder %s36, 0
    %p455 = por %p453, %p454
    %s457 = sadd.s32 %s456, 1
    %p460 = scmp.eq.s32.totalorder %s30, 1
    %p461 = scmp.ne.s32.totalorder %s456, %s458
    %p462 = scmp.eq.s32.totalorder %s30, 0
    %p463 = por %p461, %p462
    %p464 = scmp.ne.s32.totalorder %s456, %s458
    %p465 = scmp.eq.s32.totalorder %s35, 1
    %p466 = por %p464, %p465
    %p467 = scmp.ne.s32.totalorder %s458, %s459
    %p468 = scmp.eq.s32.totalorder %s35, 0
    %p469 = por %p467, %p468
    %p470 = scmp.ne.s32.totalorder %s458, %s459
    %p471 = scmp.eq.s32.totalorder %s36, 1
    %p472 = por %p470, %p471
    %p474 = scmp.ne.s32.totalorder %s459, %s473
    %p475 = scmp.eq.s32.totalorder %s36, 0
    %p476 = por %p474, %p475
    %s478 = sadd.s32 %s477, 1
    %p481 = scmp.eq.s32.totalorder %s30, 1
    %p482 = scmp.ne.s32.totalorder %s477, %s479
    %p483 = scmp.eq.s32.totalorder %s30, 0
    %p484 = por %p482, %p483
    %p485 = scmp.ne.s32.totalorder %s477, %s479
    %p486 = scmp.eq.s32.totalorder %s35, 1
    %p487 = por %p485, %p486
    %p488 = scmp.ne.s32.totalorder %s479, %s480
    %p489 = scmp.eq.s32.totalorder %s35, 0
    %p490 = por %p488, %p489
    %p491 = scmp.ne.s32.totalorder %s479, %s480
    %p492 = scmp.eq.s32.totalorder %s36, 1
    %p493 = por %p491, %p492
    %p495 = scmp.ne.s32.totalorder %s480, %s494
    %p496 = scmp.eq.s32.totalorder %s36, 0
    %p497 = por %p495, %p496
    %s499 = sadd.s32 %s498, 1
    %p502 = scmp.eq.s32.totalorder %s30, 1
    %p503 = scmp.ne.s32.totalorder %s498, %s500
    %p504 = scmp.eq.s32.totalorder %s30, 0
    %p505 = por %p503, %p504
    %p506 = scmp.ne.s32.totalorder %s498, %s500
    %p507 = scmp.eq.s32.totalorder %s35, 1
    %p508 = por %p506, %p507
    %p509 = scmp.ne.s32.totalorder %s500, %s501
    %p510 = scmp.eq.s32.totalorder %s35, 0
    %p511 = por %p509, %p510
    %p512 = scmp.ne.s32.totalorder %s500, %s501
    %p513 = scmp.eq.s32.totalorder %s36, 1
    %p514 = por %p512, %p513
    %p516 = scmp.ne.s32.totalorder %s501, %s515
    %p517 = scmp.eq.s32.totalorder %s36, 0
    %p518 = por %p516, %p517
    %s520 = sadd.s32 %s519, 1
    %p523 = scmp.eq.s32.totalorder %s30, 1
    %p524 = scmp.ne.s32.totalorder %s519, %s521
    %p525 = scmp.eq.s32.totalorder %s30, 0
    %p526 = por %p524, %p525
    %p527 = scmp.ne.s32.totalorder %s519, %s521
    %p528 = scmp.eq.s32.totalorder %s35, 1
    %p529 = por %p527, %p528
    %p530 = scmp.ne.s32.totalorder %s521, %s522
    %p531 = scmp.eq.s32.totalorder %s35, 0
    %p532 = por %p530, %p531
    %p533 = scmp.ne.s32.totalorder %s521, %s522
    %p534 = scmp.eq.s32.totalorder %s36, 1
    %p535 = por %p533, %p534
    %p537 = scmp.ne.s32.totalorder %s522, %s536
    %p538 = scmp.eq.s32.totalorder %s36, 0
    %p539 = por %p537, %p538
    %s541 = sadd.s32 %s540, 1
    %p544 = scmp.eq.s32.totalorder %s30, 1
    %p545 = scmp.ne.s32.totalorder %s540, %s542
    %p546 = scmp.eq.s32.totalorder %s30, 0
    %p547 = por %p545, %p546
    %p548 = scmp.ne.s32.totalorder %s540, %s542
    %p549 = scmp.eq.s32.totalorder %s35, 1
    %p550 = por %p548, %p549
    %p551 = scmp.ne.s32.totalorder %s542, %s543
    %p552 = scmp.eq.s32.totalorder %s35, 0
    %p553 = por %p551, %p552
    %p554 = scmp.ne.s32.totalorder %s542, %s543
    %p555 = scmp.eq.s32.totalorder %s36, 1
    %p556 = por %p554, %p555
    %p558 = scmp.ne.s32.totalorder %s543, %s557
    %p559 = scmp.eq.s32.totalorder %s36, 0
    %p560 = por %p558, %p559
    %s562 = sadd.s32 %s561, 1
    %p565 = scmp.eq.s32.totalorder %s30, 1
    %p566 = scmp.ne.s32.totalorder %s561, %s563
    %p567 = scmp.eq.s32.totalorder %s30, 0
    %p568 = por %p566, %p567
    %p569 = scmp.ne.s32.totalorder %s561, %s563
    %p570 = scmp.eq.s32.totalorder %s35, 1
    %p571 = por %p569, %p570
    %p572 = scmp.ne.s32.totalorder %s563, %s564
    %p573 = scmp.eq.s32.totalorder %s35, 0
    %p574 = por %p572, %p573
    %p575 = scmp.ne.s32.totalorder %s563, %s564
    %p576 = scmp.eq.s32.totalorder %s36, 1
    %p577 = por %p575, %p576
    %p579 = scmp.ne.s32.totalorder %s564, %s578
    %p580 = scmp.eq.s32.totalorder %s36, 0
    %p581 = por %p579, %p580
    %s582 = ssub.s32 %s30, %s37
    %p583 = scmp.eq.s32.totalorder %s582, 0
    %s585 = sadd.s32 %s584, 1
    %s586 = scalar_select %p583, %s584, %s585
    %p589 = pneg %p583
    %p590 = scmp.eq.s32.totalorder %s30, 1
    %p591 = por %p589, %p590
    %p592 = scmp.ne.s32.totalorder %s584, %s587
    %p593 = scmp.eq.s32.totalorder %s30, 0
    %p594 = por %p592, %p593
    %p595 = scmp.ne.s32.totalorder %s584, %s587
    %p596 = scmp.eq.s32.totalorder %s35, 1
    %p597 = por %p595, %p596
    %p598 = scmp.ne.s32.totalorder %s587, %s588
    %p599 = scmp.eq.s32.totalorder %s35, 0
    %p600 = por %p598, %p599
    %p601 = scmp.ne.s32.totalorder %s587, %s588
    %p602 = scmp.eq.s32.totalorder %s36, 1
    %p603 = por %p601, %p602
    %p605 = scmp.ne.s32.totalorder %s588, %s604
    %p606 = scmp.eq.s32.totalorder %s36, 0
    %p607 = por %p605, %p606
    %p608 = scmp.le.s32.totalorder 1, %s30
    %p609 = scmp.lt.s32.totalorder %s30, 3
    %p610 = pnand %p608, %p609
    %p611 = pneg %p610
    // Predicated region
    $region9: #{hgt_copy_transformer_forward.1} parent=5 // pred_check
      _
    $region10: #{hgt_copy_transformer_forward.1} parent=5 // pred_check_branch
      %613 = sbr.rel (%p610) target = $region12
    $region11: #{hgt_copy_transformer_forward.1} parent=5 // pred_region
      %s614 = ssub.s32 %s30, 1
      // Predicated region
      $region13: #{hgt_copy_transformer_forward.1} parent=11 // pred_check
        %p615 = pneg %p259
      $region14: #{hgt_copy_transformer_forward.1} parent=11 // pred_check_branch
        %617 = sbr.rel (%p615) target = $region16
      $region15: #{hgt_copy_transformer_forward.1} parent=11 // pred_region
        _
      $region16: #{hgt_copy_transformer_forward.1} parent=11 // pred_fallthru
        _
      // Predicated region
      $region17: #{hgt_copy_transformer_forward.1} parent=11 // pred_check
        %p618 = pneg %p280
      $region18: #{hgt_copy_transformer_forward.1} parent=11 // pred_check_branch
        %620 = sbr.rel (%p618) target = $region20
      $region19: #{hgt_copy_transformer_forward.1} parent=11 // pred_region
        _
      $region20: #{hgt_copy_transformer_forward.1} parent=11 // pred_fallthru
        _
      // Predicated region
      $region21: #{hgt_copy_transformer_forward.1} parent=11 // pred_check
        %p621 = pneg %p301
      $region22: #{hgt_copy_transformer_forward.1} parent=11 // pred_check_branch
        %623 = sbr.rel (%p621) target = $region24
      $region23: #{hgt_copy_transformer_forward.1} parent=11 // pred_region
        _
      $region24: #{hgt_copy_transformer_forward.1} parent=11 // pred_fallthru
        _
      // Predicated region
      $region25: #{hgt_copy_transformer_forward.1} parent=11 // pred_check
        %p624 = pneg %p322
      $region26: #{hgt_copy_transformer_forward.1} parent=11 // pred_check_branch
        %626 = sbr.rel (%p624) target = $region28
      $region27: #{hgt_copy_transformer_forward.1} parent=11 // pred_region
        _
      $region28: #{hgt_copy_transformer_forward.1} parent=11 // pred_fallthru
        _
      // Predicated region
      $region29: #{hgt_copy_transformer_forward.1} parent=11 // pred_check
        %p627 = pneg %p343
      $region30: #{hgt_copy_transformer_forward.1} parent=11 // pred_check_branch
        %629 = sbr.rel (%p627) target = $region32
      $region31: #{hgt_copy_transformer_forward.1} parent=11 // pred_region
        _
      $region32: #{hgt_copy_transformer_forward.1} parent=11 // pred_fallthru
        _
      // Predicated region
      $region33: #{hgt_copy_transformer_forward.1} parent=11 // pred_check
        %p630 = pneg %p364
      $region34: #{hgt_copy_transformer_forward.1} parent=11 // pred_check_branch
        %632 = sbr.rel (%p630) target = $region36
      $region35: #{hgt_copy_transformer_forward.1} parent=11 // pred_region
        _
      $region36: #{hgt_copy_transformer_forward.1} parent=11 // pred_fallthru
        _
      // Predicated region
      $region37: #{hgt_copy_transformer_forward.1} parent=11 // pred_check
        %p633 = pneg %p385
      $region38: #{hgt_copy_transformer_forward.1} parent=11 // pred_check_branch
        %635 = sbr.rel (%p633) target = $region40
      $region39: #{hgt_copy_transformer_forward.1} parent=11 // pred_region
        _
      $region40: #{hgt_copy_transformer_forward.1} parent=11 // pred_fallthru
        _
      // Predicated region
      $region41: #{hgt_copy_transformer_forward.1} parent=11 // pred_check
        %p636 = pneg %p406
      $region42: #{hgt_copy_transformer_forward.1} parent=11 // pred_check_branch
        %638 = sbr.rel (%p636) target = $region44
      $region43: #{hgt_copy_transformer_forward.1} parent=11 // pred_region
        _
      $region44: #{hgt_copy_transformer_forward.1} parent=11 // pred_fallthru
        _
      // Predicated region
      $region45: #{hgt_copy_transformer_forward.1} parent=11 // pred_check
        %p639 = pneg %p427
      $region46: #{hgt_copy_transformer_forward.1} parent=11 // pred_check_branch
        %641 = sbr.rel (%p639) target = $region48
      $region47: #{hgt_copy_transformer_forward.1} parent=11 // pred_region
        _
      $region48: #{hgt_copy_transformer_forward.1} parent=11 // pred_fallthru
        _
      // Predicated region
      $region49: #{hgt_copy_transformer_forward.1} parent=11 // pred_check
        %p642 = pneg %p448
      $region50: #{hgt_copy_transformer_forward.1} parent=11 // pred_check_branch
        %644 = sbr.rel (%p642) target = $region52
      $region51: #{hgt_copy_transformer_forward.1} parent=11 // pred_region
        _
      $region52: #{hgt_copy_transformer_forward.1} parent=11 // pred_fallthru
        _
      // Predicated region
      $region53: #{hgt_copy_transformer_forward.1} parent=11 // pred_check
        %p645 = pneg %p469
      $region54: #{hgt_copy_transformer_forward.1} parent=11 // pred_check_branch
        %647 = sbr.rel (%p645) target = $region56
      $region55: #{hgt_copy_transformer_forward.1} parent=11 // pred_region
        _
      $region56: #{hgt_copy_transformer_forward.1} parent=11 // pred_fallthru
        _
      // Predicated region
      $region57: #{hgt_copy_transformer_forward.1} parent=11 // pred_check
        %p648 = pneg %p490
      $region58: #{hgt_copy_transformer_forward.1} parent=11 // pred_check_branch
        %650 = sbr.rel (%p648) target = $region60
      $region59: #{hgt_copy_transformer_forward.1} parent=11 // pred_region
        _
      $region60: #{hgt_copy_transformer_forward.1} parent=11 // pred_fallthru
        _
      // Predicated region
      $region61: #{hgt_copy_transformer_forward.1} parent=11 // pred_check
        %p651 = pneg %p511
      $region62: #{hgt_copy_transformer_forward.1} parent=11 // pred_check_branch
        %653 = sbr.rel (%p651) target = $region64
      $region63: #{hgt_copy_transformer_forward.1} parent=11 // pred_region
        _
      $region64: #{hgt_copy_transformer_forward.1} parent=11 // pred_fallthru
        _
      // Predicated region
      $region65: #{hgt_copy_transformer_forward.1} parent=11 // pred_check
        %p654 = pneg %p532
      $region66: #{hgt_copy_transformer_forward.1} parent=11 // pred_check_branch
        %656 = sbr.rel (%p654) target = $region68
      $region67: #{hgt_copy_transformer_forward.1} parent=11 // pred_region
        _
      $region68: #{hgt_copy_transformer_forward.1} parent=11 // pred_fallthru
        _
      // Predicated region
      $region69: #{hgt_copy_transformer_forward.1} parent=11 // pred_check
        %p657 = pneg %p553
      $region70: #{hgt_copy_transformer_forward.1} parent=11 // pred_check_branch
        %659 = sbr.rel (%p657) target = $region72
      $region71: #{hgt_copy_transformer_forward.1} parent=11 // pred_region
        _
      $region72: #{hgt_copy_transformer_forward.1} parent=11 // pred_fallthru
        _
      // Predicated region
      $region73: #{hgt_copy_transformer_forward.1} parent=11 // pred_check
        %p660 = pneg %p574
      $region74: #{hgt_copy_transformer_forward.1} parent=11 // pred_check_branch
        %662 = sbr.rel (%p660) target = $region76
      $region75: #{hgt_copy_transformer_forward.1} parent=11 // pred_region
        _
      $region76: #{hgt_copy_transformer_forward.1} parent=11 // pred_fallthru
        _
    $region12: #{hgt_copy_transformer_forward.1} parent=5 // pred_fallthru
      _
    %p663 = scmp.lt.s32.totalorder %s30, 2
    // Predicated region
    $region77: #{hgt_copy_transformer_forward.1} parent=5 // pred_check
      %p664 = pneg %p663
    $region78: #{hgt_copy_transformer_forward.1} parent=5 // pred_check_branch
      %666 = sbr.rel (%p664) target = $region80
    $region79: #{hgt_copy_transformer_forward.1} parent=5 // pred_region
      // Predicated region
      $region81: #{hgt_copy_transformer_forward.1} parent=79 // pred_check
        %p667 = pneg %p50
      $region82: #{hgt_copy_transformer_forward.1} parent=79 // pred_check_branch
        %669 = sbr.rel (%p667) target = $region84
      $region83: #{hgt_copy_transformer_forward.1} parent=79 // pred_region
        %p670 = scmp.lt.s32.totalorder %s30, 1
        %s671 = scalar_select %p670, %s30, 1
        %s672 = smul.addr %s671, 8
        %s673 = scalar_lea.vmem %s0, %s672
      $region84: #{hgt_copy_transformer_forward.1} parent=79 // pred_fallthru
        _
      // Predicated region
      $region85: #{hgt_copy_transformer_forward.1} parent=79 // pred_check
        %p674 = pneg %p76
      $region86: #{hgt_copy_transformer_forward.1} parent=79 // pred_check_branch
        %676 = sbr.rel (%p674) target = $region88
      $region87: #{hgt_copy_transformer_forward.1} parent=79 // pred_region
        %p677 = scmp.lt.s32.totalorder %s30, 1
        %s678 = scalar_select %p677, %s30, 1
        %s679 = smul.addr %s678, 8
        %s680 = scalar_lea.vmem %s1, %s679
      $region88: #{hgt_copy_transformer_forward.1} parent=79 // pred_fallthru
        _
      // Predicated region
      $region89: #{hgt_copy_transformer_forward.1} parent=79 // pred_check
        %p681 = pneg %p102
      $region90: #{hgt_copy_transformer_forward.1} parent=79 // pred_check_branch
        %683 = sbr.rel (%p681) target = $region92
      $region91: #{hgt_copy_transformer_forward.1} parent=79 // pred_region
        %p684 = scmp.lt.s32.totalorder %s30, 1
        %s685 = scalar_select %p684, %s30, 1
        %s686 = scalar_lea.vmem %s2, %s685
      $region92: #{hgt_copy_transformer_forward.1} parent=79 // pred_fallthru
        _
      // Predicated region
      $region93: #{hgt_copy_transformer_forward.1} parent=79 // pred_check
        %p687 = pneg %p128
      $region94: #{hgt_copy_transformer_forward.1} parent=79 // pred_check_branch
        %689 = sbr.rel (%p687) target = $region96
      $region95: #{hgt_copy_transformer_forward.1} parent=79 // pred_region
        %p690 = scmp.lt.s32.totalorder %s30, 1
        %s691 = scalar_select %p690, %s30, 1
        %s692 = smul.addr %s691, 8
        %s693 = scalar_lea.vmem %s3, %s692
      $region96: #{hgt_copy_transformer_forward.1} parent=79 // pred_fallthru
        _
      // Predicated region
      $region97: #{hgt_copy_transformer_forward.1} parent=79 // pred_check
        %p694 = pneg %p154
      $region98: #{hgt_copy_transformer_forward.1} parent=79 // pred_check_branch
        %696 = sbr.rel (%p694) target = $region100
      $region99: #{hgt_copy_transformer_forward.1} parent=79 // pred_region
        %p697 = scmp.lt.s32.totalorder %s30, 1
        %s698 = scalar_select %p697, %s30, 1
        %s699 = smul.addr %s698, 8
        %s700 = scalar_lea.vmem %s4, %s699
      $region100: #{hgt_copy_transformer_forward.1} parent=79 // pred_fallthru
        _
      // Predicated region
      $region101: #{hgt_copy_transformer_forward.1} parent=79 // pred_check
        %p701 = pneg %p180
      $region102: #{hgt_copy_transformer_forward.1} parent=79 // pred_check_branch
        %703 = sbr.rel (%p701) target = $region104
      $region103: #{hgt_copy_transformer_forward.1} parent=79 // pred_region
        %p704 = scmp.lt.s32.totalorder %s30, 1
        %s705 = scalar_select %p704, %s30, 1
        %s706 = smul.addr %s705, 8
        %s707 = scalar_lea.vmem %s5, %s706
      $region104: #{hgt_copy_transformer_forward.1} parent=79 // pred_fallthru
        _
      // Predicated region
      $region105: #{hgt_copy_transformer_forward.1} parent=79 // pred_check
        %p708 = pneg %p206
      $region106: #{hgt_copy_transformer_forward.1} parent=79 // pred_check_branch
        %710 = sbr.rel (%p708) target = $region108
      $region107: #{hgt_copy_transformer_forward.1} parent=79 // pred_region
        %p711 = scmp.lt.s32.totalorder %s30, 1
        %s712 = scalar_select %p711, %s30, 1
        %s713 = smul.addr %s712, 8
        %s714 = scalar_lea.vmem %s6, %s713
      $region108: #{hgt_copy_transformer_forward.1} parent=79 // pred_fallthru
        _
      // Predicated region
      $region109: #{hgt_copy_transformer_forward.1} parent=79 // pred_check
        %p715 = pneg %p232
      $region110: #{hgt_copy_transformer_forward.1} parent=79 // pred_check_branch
        %717 = sbr.rel (%p715) target = $region112
      $region111: #{hgt_copy_transformer_forward.1} parent=79 // pred_region
        %p718 = scmp.lt.s32.totalorder %s30, 1
        %s719 = scalar_select %p718, %s30, 1
        %s720 = smul.addr %s719, 8
        %s721 = scalar_lea.vmem %s7, %s720
      $region112: #{hgt_copy_transformer_forward.1} parent=79 // pred_fallthru
        _
    $region80: #{hgt_copy_transformer_forward.1} parent=5 // pred_fallthru
      _
    %p722 = scmp.le.s32.totalorder 1, %s30
    %p723 = scmp.lt.s32.totalorder %s30, 3
    %p724 = pnand %p722, %p723
    %p725 = pneg %p724
    // Predicated region
    $region113: #{hgt_copy_transformer_forward.1} parent=5 // pred_check
      _
    $region114: #{hgt_copy_transformer_forward.1} parent=5 // pred_check_branch
      %727 = sbr.rel (%p724) target = $region116
    $region115: #{hgt_copy_transformer_forward.1} parent=5 // pred_region
      %s728 = ssub.s32 %s30, 1
      %p729 = scmp.lt.s32.totalorder %s35, 1
      %s730 = scalar_select %p729, %s35, 1
      %s731 = smul.addr %s730, 8
      %s732 = scalar_lea.vmem %s0, %s731
      %p733 = pneg %p56
      %p734 = pneg %p53
      %p735 = scmp.lt.s32.totalorder %s35, 1
      %s736 = scalar_select %p735, %s35, 1
      %s737 = smul.addr %s736, 8
      %s738 = scalar_lea.vmem %s1, %s737
      %p739 = pneg %p82
      %p740 = pneg %p79
      %p741 = scmp.lt.s32.totalorder %s35, 1
      %s742 = scalar_select %p741, %s35, 1
      %s743 = scalar_lea.vmem %s2, %s742
      %p744 = pneg %p108
      %p745 = pneg %p105
      %p746 = scmp.lt.s32.totalorder %s35, 1
      %s747 = scalar_select %p746, %s35, 1
      %s748 = smul.addr %s747, 8
      %s749 = scalar_lea.vmem %s3, %s748
      %p750 = pneg %p134
      %p751 = pneg %p131
      %p752 = scmp.lt.s32.totalorder %s35, 1
      %s753 = scalar_select %p752, %s35, 1
      %s754 = smul.addr %s753, 8
      %s755 = scalar_lea.vmem %s4, %s754
      %p756 = pneg %p160
      %p757 = pneg %p157
      %p758 = scmp.lt.s32.totalorder %s35, 1
      %s759 = scalar_select %p758, %s35, 1
      %s760 = smul.addr %s759, 8
      %s761 = scalar_lea.vmem %s5, %s760
      %p762 = pneg %p186
      %p763 = pneg %p183
      %p764 = scmp.lt.s32.totalorder %s35, 1
      %s765 = scalar_select %p764, %s35, 1
      %s766 = smul.addr %s765, 8
      %s767 = scalar_lea.vmem %s6, %s766
      %p768 = pneg %p212
      %p769 = pneg %p209
      %p770 = scmp.lt.s32.totalorder %s35, 1
      %s771 = scalar_select %p770, %s35, 1
      %s772 = smul.addr %s771, 8
      %s773 = scalar_lea.vmem %s7, %s772
      %p774 = pneg %p238
      %p775 = pneg %p235
      %p776 = pneg %p259
      %p777 = pneg %p256
      %p778 = pneg %p280
      %p779 = pneg %p277
      %p780 = pneg %p301
      %p781 = pneg %p298
      %p782 = pneg %p322
      %p783 = pneg %p319
      %p784 = pneg %p343
      %p785 = pneg %p340
      %p786 = pneg %p364
      %p787 = pneg %p361
      %p788 = pneg %p385
      %p789 = pneg %p382
      %p790 = pneg %p406
      %p791 = pneg %p403
      %p792 = pneg %p427
      %p793 = pneg %p424
      %p794 = pneg %p448
      %p795 = pneg %p445
      %p796 = pneg %p469
      %p797 = pneg %p466
      %p798 = pneg %p490
      %p799 = pneg %p487
      %p800 = pneg %p511
      %p801 = pneg %p508
      %p802 = pneg %p532
      %p803 = pneg %p529
      %p804 = pneg %p553
      %p805 = pneg %p550
      %p806 = pneg %p574
      %p807 = pneg %p571
      %p808 = pneg %p600
      %p809 = pneg %p597
      %p810 = scmp.lt.s32.totalorder %s35, 1
      %s811 = scalar_select %p810, %s35, 1
      %s812 = scalar_lea.vmem %s24, %s811
      %p813 = scmp.lt.s32.totalorder %s35, 1
      %s814 = scalar_select %p813, %s35, 1
      %s815 = smul.addr %s814, 8
      %s816 = scalar_lea.vmem %s0, %s815
      %p817 = scmp.lt.s32.totalorder %s35, 1
      %s818 = scalar_select %p817, %s35, 1
      %s819 = smul.addr %s818, 8
      %s820 = scalar_lea.vmem %s1, %s819
      %p821 = scmp.lt.s32.totalorder %s35, 1
      %s822 = scalar_select %p821, %s35, 1
      %s823 = scalar_lea.vmem %s2, %s822
      %p824 = scmp.lt.s32.totalorder %s35, 1
      %s825 = scalar_select %p824, %s35, 1
      %s826 = smul.addr %s825, 8
      %s827 = scalar_lea.vmem %s3, %s826
      %p828 = scmp.lt.s32.totalorder %s35, 1
      %s829 = scalar_select %p828, %s35, 1
      %s830 = smul.addr %s829, 8
      %s831 = scalar_lea.vmem %s4, %s830
      %p832 = scmp.lt.s32.totalorder %s35, 1
      %s833 = scalar_select %p832, %s35, 1
      %s834 = smul.addr %s833, 8
      %s835 = scalar_lea.vmem %s5, %s834
      %p836 = scmp.lt.s32.totalorder %s35, 1
      %s837 = scalar_select %p836, %s35, 1
      %s838 = smul.addr %s837, 8
      %s839 = scalar_lea.vmem %s6, %s838
      %p840 = scmp.lt.s32.totalorder %s35, 1
      %s841 = scalar_select %p840, %s35, 1
      %s842 = smul.addr %s841, 8
      %s843 = scalar_lea.vmem %s7, %s842
      %p844 = scmp.lt.s32.totalorder %s35, 1
      %s845 = scalar_select %p844, %s35, 1
      %s846 = scalar_lea.vmem %s24, %s845
      %v848 = vld [vmem:[%s816] sm:$0xff]
      %v849 = vld [vmem:[%s820] sm:$0xff]
      %v850 = vld [vmem:[%s11] sm:$0xff]
      %v851 = vpack.c.bf16 %v848, %v848
      %v852 = vld [vmem:[%s8] sm:$0xf]
      %v853 = vld [vmem:[%s8 + $0x4] sm:$0xf]
      %v854 = vld [vmem:[%s8 + $0x8] sm:$0xf]
      %v855 = vld [vmem:[%s8 + $0xc] sm:$0xf]
      %v856 = vlaneseq
      %v857 = vshrl.u32 %v856, 7
      %v858 = vsub.s32 0, %v857
      %v859 = vrot.slane %v850, %v858
      %v864 = vunpack.c.l.b16 %v852
      %v865 = vunpack.c.l.b16 %v853
      %v866 = vunpack.c.l.b16 %v854
      %v867 = vunpack.c.l.b16 %v855
      %v868 = vpack.c.b16 %v865, %v864
      %v869 = vpack.c.b16 %v867, %v866
      %vm872 = vcmask 261120
      %v874 = vsel %vm872, %v851, 0
      %876 = vmatprep.subr.bf16.mxu0 0
      %877 = vmatpush1.bf16.msra.mxu0 %v868
      %878 = vmatprep.subr.bf16.mxu0 0
      %879 = vmatpush1.bf16.msra.mxu0 %v869
      %880 = vmatprep.subr.bf16.mxu0 0
      %881 = vmatpush1.bf16.msra.mxu0 0
      %882 = vmatprep.subr.bf16.mxu0 0
      %883 = vmatpush1.bf16.msra.mxu0 0
      %884 = vmatprep.subr.bf16.mxu0 0
      %885 = vmatpush1.bf16.msra.mxu0 0
      %886 = vmatprep.subr.bf16.mxu0 0
      %887 = vmatpush1.bf16.msra.mxu0 0
      %888 = vmatprep.subr.bf16.mxu0 0
      %889 = vmatpush1.bf16.msra.mxu0 0
      %890 = vmatprep.subr.bf16.mxu0 0
      %891 = vmatpush1.bf16.msra.mxu0 0
      %892 = vmatprep.subr.bf16.mxu0 0
      %893 = vmatpush1.bf16.msra.mxu0 0
      %894 = vmatprep.subr.bf16.mxu0 0
      %895 = vmatpush1.bf16.msra.mxu0 0
      %896 = vmatprep.subr.bf16.mxu0 0
      %897 = vmatpush1.bf16.msra.mxu0 0
      %898 = vmatprep.subr.bf16.mxu0 0
      %899 = vmatpush1.bf16.msra.mxu0 0
      %900 = vmatprep.subr.bf16.mxu0 0
      %901 = vmatpush1.bf16.msra.mxu0 0
      %902 = vmatprep.subr.bf16.mxu0 0
      %903 = vmatpush1.bf16.msra.mxu0 0
      %904 = vmatprep.subr.bf16.mxu0 0
      %905 = vmatpush1.bf16.msra.mxu0 0
      %906 = vmatprep.subr.bf16.mxu0 0
      %907 = vmatpush1.bf16.msra.mxu0 0
      %908 = vmatprep.mubr.bf16.mxu0 0
      %909 = vmatmul.mubr.bf16.gmra.mrb[0].mxu0 %v874
      %v910 = vpop.f32.mrb[0].mxu0
      %v911 = vadd.f32 %v859, %v910
      %v912 = vpop.f32.mrb[0].mxu0
      %v913 = vpop.f32.mrb[0].mxu0
      %v914 = vpop.f32.mrb[0].mxu0
      %915 = vdwg.mxu0
      %916 = vxpose.xlu0.b32.start [1/16] %v911, 128
      %917 = vxpose.xlu0.b32.cont [2/16] 0.0, 128
      %918 = vxpose.xlu0.b32.cont [3/16] 0.0, 128
      %919 = vxpose.xlu0.b32.cont [4/16] 0.0, 128
      %920 = vxpose.xlu0.b32.cont [5/16] 0.0, 128
      %921 = vxpose.xlu0.b32.cont [6/16] 0.0, 128
      %922 = vxpose.xlu0.b32.cont [7/16] 0.0, 128
      %923 = vxpose.xlu0.b32.cont [8/16] 0.0, 128
      %924 = vxpose.xlu0.b32.cont [9/16] 0.0, 128
      %925 = vxpose.xlu0.b32.cont [10/16] 0.0, 128
      %926 = vxpose.xlu0.b32.cont [11/16] 0.0, 128
      %927 = vxpose.xlu0.b32.cont [12/16] 0.0, 128
      %928 = vxpose.xlu0.b32.cont [13/16] 0.0, 128
      %929 = vxpose.xlu0.b32.cont [14/16] 0.0, 128
      %930 = vxpose.xlu0.b32.cont [15/16] 0.0, 128
      %931 = vxpose.xlu0.b32.end [16/16] 0.0, 128
      %v932 = vpop.trf.xlu0
      %v933 = vpop.trf.xlu0
      %v934 = vpop.trf.xlu0
      %v935 = vpop.trf.xlu0
      %v936 = vpop.trf.xlu0
      %v937 = vpop.trf.xlu0
      %v938 = vpop.trf.xlu0
      %v939 = vpop.trf.xlu0
      %v940 = vpop.trf.xlu0
      %v941 = vpop.trf.xlu0
      %v942 = vpop.trf.xlu0
      %v943 = vpop.trf.xlu0
      %v944 = vpop.trf.xlu0
      %v945 = vpop.trf.xlu0
      %v946 = vpop.trf.xlu0
      %v947 = vpop.trf.xlu0
      %v948 = vpack.c.bf16 %v932, %v932
      %v949 = vpack.c.bf16 %v933, %v933
      %v950 = vpack.c.bf16 %v934, %v934
      %v951 = vpack.c.bf16 %v935, %v935
      %v952 = vpack.c.bf16 %v936, %v936
      %v953 = vpack.c.bf16 %v937, %v937
      %v954 = vpack.c.bf16 %v938, %v938
      %v955 = vpack.c.bf16 %v939, %v939
      %v956 = vpack.c.bf16 %v940, %v940
      %v957 = vpack.c.bf16 %v941, %v941
      %v958 = vpack.c.bf16 %v942, %v942
      %v959 = vpack.c.bf16 %v943, %v943
      %960 = vxpose.xlu0.c.b16.start [1/8] %v948, 128
      %961 = vxpose.xlu0.c.b16.cont [2/8] 0, 128
      %962 = vxpose.xlu0.c.b16.cont [3/8] 0, 128
      %963 = vxpose.xlu0.c.b16.cont [4/8] 0, 128
      %964 = vxpose.xlu0.c.b16.cont [5/8] 0, 128
      %965 = vxpose.xlu0.c.b16.cont [6/8] 0, 128
      %966 = vxpose.xlu0.c.b16.cont [7/8] 0, 128
      %967 = vxpose.xlu0.c.b16.end [8/8] 0, 128
      %v968 = vpop.trf.xlu0
      %v969 = vpop.trf.xlu0
      %v970 = vpop.trf.xlu0
      %v971 = vpop.trf.xlu0
      %v972 = vpop.trf.xlu0
      %v973 = vpop.trf.xlu0
      %v974 = vpop.trf.xlu0
      %v975 = vpop.trf.xlu0
      %vm976 = vcmask 64512
      %v978 = vsel %vm976, %v968, 0
      %vm980 = vcmask 1043456
      %v982 = vsel %vm980, %v952, 0
      %984 = vmatprep.subr.bf16.mxu0 0
      %985 = vmatpush1.bf16.msra.mxu0 %v982
      %986 = vmatprep.subr.bf16.mxu0 0
      %987 = vmatpush1.bf16.msra.mxu0 0
      %988 = vmatprep.subr.bf16.mxu0 0
      %989 = vmatpush1.bf16.msra.mxu0 0
      %990 = vmatprep.subr.bf16.mxu0 0
      %991 = vmatpush1.bf16.msra.mxu0 0
      %992 = vmatprep.subr.bf16.mxu0 0
      %993 = vmatpush1.bf16.msra.mxu0 0
      %994 = vmatprep.subr.bf16.mxu0 0
      %995 = vmatpush1.bf16.msra.mxu0 0
      %996 = vmatprep.subr.bf16.mxu0 0
      %997 = vmatpush1.bf16.msra.mxu0 0
      %998 = vmatprep.subr.bf16.mxu0 0
      %999 = vmatpush1.bf16.msra.mxu0 0
      %1000 = vmatprep.subr.bf16.mxu0 0
      %1001 = vmatpush1.bf16.msra.mxu0 0
      %1002 = vmatprep.subr.bf16.mxu0 0
      %1003 = vmatpush1.bf16.msra.mxu0 0
      %1004 = vmatprep.subr.bf16.mxu0 0
      %1005 = vmatpush1.bf16.msra.mxu0 0
      %1006 = vmatprep.subr.bf16.mxu0 0
      %1007 = vmatpush1.bf16.msra.mxu0 0
      %1008 = vmatprep.subr.bf16.mxu0 0
      %1009 = vmatpush1.bf16.msra.mxu0 0
      %1010 = vmatprep.subr.bf16.mxu0 0
      %1011 = vmatpush1.bf16.msra.mxu0 0
      %1012 = vmatprep.subr.bf16.mxu0 0
      %1013 = vmatpush1.bf16.msra.mxu0 0
      %1014 = vmatprep.subr.bf16.mxu0 0
      %1015 = vmatpush1.bf16.msra.mxu0 0
      %1016 = vmatprep.mubr.bf16.mxu0 0
      %1017 = vmatmul.mubr.bf16.gmra.mrb[0].mxu0 %v978
      %v1018 = vpop.f32.mrb[0].mxu0
      %v1019 = vadd.f32 0.0, %v1018
      %v1020 = vpop.f32.mrb[0].mxu0
      %v1021 = vpop.f32.mrb[0].mxu0
      %v1022 = vpop.f32.mrb[0].mxu0
      %1023 = vdwg.mxu0
      %1024 = vxpose.xlu0.c.b16.start [1/8] %v949, 128
      %1025 = vxpose.xlu0.c.b16.cont [2/8] 0, 128
      %1026 = vxpose.xlu0.c.b16.cont [3/8] 0, 128
      %1027 = vxpose.xlu0.c.b16.cont [4/8] 0, 128
      %1028 = vxpose.xlu0.c.b16.cont [5/8] 0, 128
      %1029 = vxpose.xlu0.c.b16.cont [6/8] 0, 128
      %1030 = vxpose.xlu0.c.b16.cont [7/8] 0, 128
      %1031 = vxpose.xlu0.c.b16.end [8/8] 0, 128
      %v1032 = vpop.trf.xlu0
      %v1033 = vpop.trf.xlu0
      %v1034 = vpop.trf.xlu0
      %v1035 = vpop.trf.xlu0
      %v1036 = vpop.trf.xlu0
      %v1037 = vpop.trf.xlu0
      %v1038 = vpop.trf.xlu0
      %v1039 = vpop.trf.xlu0
      %v1041 = vsel %vm976, %v1032, 0
      %v1044 = vsel %vm980, %v953, 0
      %1046 = vmatprep.subr.bf16.mxu0 0
      %1047 = vmatpush1.bf16.msra.mxu0 %v1044
      %1048 = vmatprep.subr.bf16.mxu0 0
      %1049 = vmatpush1.bf16.msra.mxu0 0
      %1050 = vmatprep.subr.bf16.mxu0 0
      %1051 = vmatpush1.bf16.msra.mxu0 0
      %1052 = vmatprep.subr.bf16.mxu0 0
      %1053 = vmatpush1.bf16.msra.mxu0 0
      %1054 = vmatprep.subr.bf16.mxu0 0
      %1055 = vmatpush1.bf16.msra.mxu0 0
      %1056 = vmatprep.subr.bf16.mxu0 0
      %1057 = vmatpush1.bf16.msra.mxu0 0
      %1058 = vmatprep.subr.bf16.mxu0 0
      %1059 = vmatpush1.bf16.msra.mxu0 0
      %1060 = vmatprep.subr.bf16.mxu0 0
      %1061 = vmatpush1.bf16.msra.mxu0 0
      %1062 = vmatprep.subr.bf16.mxu0 0
      %1063 = vmatpush1.bf16.msra.mxu0 0
      %1064 = vmatprep.subr.bf16.mxu0 0
      %1065 = vmatpush1.bf16.msra.mxu0 0
      %1066 = vmatprep.subr.bf16.mxu0 0
      %1067 = vmatpush1.bf16.msra.mxu0 0
      %1068 = vmatprep.subr.bf16.mxu0 0
      %1069 = vmatpush1.bf16.msra.mxu0 0
      %1070 = vmatprep.subr.bf16.mxu0 0
      %1071 = vmatpush1.bf16.msra.mxu0 0
      %1072 = vmatprep.subr.bf16.mxu0 0
      %1073 = vmatpush1.bf16.msra.mxu0 0
      %1074 = vmatprep.subr.bf16.mxu0 0
      %1075 = vmatpush1.bf16.msra.mxu0 0
      %1076 = vmatprep.subr.bf16.mxu0 0
      %1077 = vmatpush1.bf16.msra.mxu0 0
      %1078 = vmatprep.mubr.bf16.mxu0 0
      %1079 = vmatmul.mubr.bf16.gmra.mrb[0].mxu0 %v1041
      %v1080 = vpop.f32.mrb[0].mxu0
      %v1081 = vadd.f32 0.0, %v1080
      %v1082 = vpop.f32.mrb[0].mxu0
      %v1083 = vpop.f32.mrb[0].mxu0
      %v1084 = vpop.f32.mrb[0].mxu0
      %1085 = vdwg.mxu0
      %1086 = vxpose.xlu0.c.b16.start [1/8] %v950, 128
      %1087 = vxpose.xlu0.c.b16.cont [2/8] 0, 128
      %1088 = vxpose.xlu0.c.b16.cont [3/8] 0, 128
      %1089 = vxpose.xlu0.c.b16.cont [4/8] 0, 128
      %1090 = vxpose.xlu0.c.b16.cont [5/8] 0, 128
      %1091 = vxpose.xlu0.c.b16.cont [6/8] 0, 128
      %1092 = vxpose.xlu0.c.b16.cont [7/8] 0, 128
      %1093 = vxpose.xlu0.c.b16.end [8/8] 0, 128
      %v1094 = vpop.trf.xlu0
      %v1095 = vpop.trf.xlu0
      %v1096 = vpop.trf.xlu0
      %v1097 = vpop.trf.xlu0
      %v1098 = vpop.trf.xlu0
      %v1099 = vpop.trf.xlu0
      %v1100 = vpop.trf.xlu0
      %v1101 = vpop.trf.xlu0
      %v1103 = vsel %vm976, %v1094, 0
      %v1106 = vsel %vm980, %v954, 0
      %1108 = vmatprep.subr.bf16.mxu0 0
      %1109 = vmatpush1.bf16.msra.mxu0 %v1106
      %1110 = vmatprep.subr.bf16.mxu0 0
      %1111 = vmatpush1.bf16.msra.mxu0 0
      %1112 = vmatprep.subr.bf16.mxu0 0
      %1113 = vmatpush1.bf16.msra.mxu0 0
      %1114 = vmatprep.subr.bf16.mxu0 0
      %1115 = vmatpush1.bf16.msra.mxu0 0
      %1116 = vmatprep.subr.bf16.mxu0 0
      %1117 = vmatpush1.bf16.msra.mxu0 0
      %1118 = vmatprep.subr.bf16.mxu0 0
      %1119 = vmatpush1.bf16.msra.mxu0 0
      %1120 = vmatprep.subr.bf16.mxu0 0
      %1121 = vmatpush1.bf16.msra.mxu0 0
      %1122 = vmatprep.subr.bf16.mxu0 0
      %1123 = vmatpush1.bf16.msra.mxu0 0
      %1124 = vmatprep.subr.bf16.mxu0 0
      %1125 = vmatpush1.bf16.msra.mxu0 0
      %1126 = vmatprep.subr.bf16.mxu0 0
      %1127 = vmatpush1.bf16.msra.mxu0 0
      %1128 = vmatprep.subr.bf16.mxu0 0
      %1129 = vmatpush1.bf16.msra.mxu0 0
      %1130 = vmatprep.subr.bf16.mxu0 0
      %1131 = vmatpush1.bf16.msra.mxu0 0
      %1132 = vmatprep.subr.bf16.mxu0 0
      %1133 = vmatpush1.bf16.msra.mxu0 0
      %1134 = vmatprep.subr.bf16.mxu0 0
      %1135 = vmatpush1.bf16.msra.mxu0 0
      %1136 = vmatprep.subr.bf16.mxu0 0
      %1137 = vmatpush1.bf16.msra.mxu0 0
      %1138 = vmatprep.subr.bf16.mxu0 0
      %1139 = vmatpush1.bf16.msra.mxu0 0
      %1140 = vmatprep.mubr.bf16.mxu0 0
      %1141 = vmatmul.mubr.bf16.gmra.mrb[0].mxu0 %v1103
      %v1142 = vpop.f32.mrb[0].mxu0
      %v1143 = vadd.f32 0.0, %v1142
      %v1144 = vpop.f32.mrb[0].mxu0
      %v1145 = vpop.f32.mrb[0].mxu0
      %v1146 = vpop.f32.mrb[0].mxu0
      %1147 = vdwg.mxu0
      %1148 = vxpose.xlu0.c.b16.start [1/8] %v951, 128
      %1149 = vxpose.xlu0.c.b16.cont [2/8] 0, 128
      %1150 = vxpose.xlu0.c.b16.cont [3/8] 0, 128
      %1151 = vxpose.xlu0.c.b16.cont [4/8] 0, 128
      %1152 = vxpose.xlu0.c.b16.cont [5/8] 0, 128
      %1153 = vxpose.xlu0.c.b16.cont [6/8] 0, 128
      %1154 = vxpose.xlu0.c.b16.cont [7/8] 0, 128
      %1155 = vxpose.xlu0.c.b16.end [8/8] 0, 128
      %v1156 = vpop.trf.xlu0
      %v1157 = vpop.trf.xlu0
      %v1158 = vpop.trf.xlu0
      %v1159 = vpop.trf.xlu0
      %v1160 = vpop.trf.xlu0
      %v1161 = vpop.trf.xlu0
      %v1162 = vpop.trf.xlu0
      %v1163 = vpop.trf.xlu0
      %v1165 = vsel %vm976, %v1156, 0
      %v1168 = vsel %vm980, %v955, 0
      %1170 = vmatprep.subr.bf16.mxu0 0
      %1171 = vmatpush1.bf16.msra.mxu0 %v1168
      %1172 = vmatprep.subr.bf16.mxu0 0
      %1173 = vmatpush1.bf16.msra.mxu0 0
      %1174 = vmatprep.subr.bf16.mxu0 0
      %1175 = vmatpush1.bf16.msra.mxu0 0
      %1176 = vmatprep.subr.bf16.mxu0 0
      %1177 = vmatpush1.bf16.msra.mxu0 0
      %1178 = vmatprep.subr.bf16.mxu0 0
      %1179 = vmatpush1.bf16.msra.mxu0 0
      %1180 = vmatprep.subr.bf16.mxu0 0
      %1181 = vmatpush1.bf16.msra.mxu0 0
      %1182 = vmatprep.subr.bf16.mxu0 0
      %1183 = vmatpush1.bf16.msra.mxu0 0
      %1184 = vmatprep.subr.bf16.mxu0 0
      %1185 = vmatpush1.bf16.msra.mxu0 0
      %1186 = vmatprep.subr.bf16.mxu0 0
      %1187 = vmatpush1.bf16.msra.mxu0 0
      %1188 = vmatprep.subr.bf16.mxu0 0
      %1189 = vmatpush1.bf16.msra.mxu0 0
      %1190 = vmatprep.subr.bf16.mxu0 0
      %1191 = vmatpush1.bf16.msra.mxu0 0
      %1192 = vmatprep.subr.bf16.mxu0 0
      %1193 = vmatpush1.bf16.msra.mxu0 0
      %1194 = vmatprep.subr.bf16.mxu0 0
      %1195 = vmatpush1.bf16.msra.mxu0 0
      %1196 = vmatprep.subr.bf16.mxu0 0
      %1197 = vmatpush1.bf16.msra.mxu0 0
      %1198 = vmatprep.subr.bf16.mxu0 0
      %1199 = vmatpush1.bf16.msra.mxu0 0
      %1200 = vmatprep.subr.bf16.mxu0 0
      %1201 = vmatpush1.bf16.msra.mxu0 0
      %1202 = vmatprep.mubr.bf16.mxu0 0
      %1203 = vmatmul.mubr.bf16.gmra.mrb[0].mxu0 %v1165
      %v1204 = vpop.f32.mrb[0].mxu0
      %v1205 = vadd.f32 0.0, %v1204
      %v1206 = vpop.f32.mrb[0].mxu0
      %v1207 = vpop.f32.mrb[0].mxu0
      %v1208 = vpop.f32.mrb[0].mxu0
      %1209 = vdwg.mxu0
      %v1210 = vmul.f32 %v1019, 0.35355338
      %v1211 = vmul.f32 %v1081, 0.35355338
      %v1212 = vmul.f32 %v1143, 0.35355338
      %v1213 = vmul.f32 %v1205, 0.35355338
      %v1214 = vadd.f32 %v1210, %v849
      %v1215 = vadd.f32 %v1211, %v849
      %v1216 = vadd.f32 %v1212, %v849
      %v1217 = vadd.f32 %v1213, %v849
      %v1218 = vsel %vm976, %v1214, -inf
      %1219 = vmax.xlane.f32.xlu0 %v1218
      %v1220 = vpop.xlane.xlu0 %1219
      %v1221 = vsel %vm976, %v1215, -inf
      %1222 = vmax.xlane.f32.xlu0 %v1221
      %v1223 = vpop.xlane.xlu0 %1222
      %v1224 = vsel %vm976, %v1216, -inf
      %1225 = vmax.xlane.f32.xlu0 %v1224
      %v1226 = vpop.xlane.xlu0 %1225
      %v1227 = vsel %vm976, %v1217, -inf
      %1228 = vmax.xlane.f32.xlu0 %v1227
      %v1229 = vpop.xlane.xlu0 %1228
      %v1230 = vsub.f32 %v1214, %v1220
      %v1231 = vsub.f32 %v1215, %v1223
      %v1232 = vsub.f32 %v1216, %v1226
      %v1233 = vsub.f32 %v1217, %v1229
      %v1234 = vmul.f32 %v1230, 1.442695
      %v1235 = vpow.pop %v1234
      %v1236 = vmul.f32 %v1231, 1.442695
      %v1237 = vpow.pop %v1236
      %v1238 = vmul.f32 %v1232, 1.442695
      %v1239 = vpow.pop %v1238
      %v1240 = vmul.f32 %v1233, 1.442695
      %v1241 = vpow.pop %v1240
      %v1242 = vsel %vm976, %v1235, 0.0
      %1243 = vadd.xlane.f32.xlu0 %v1242
      %v1244 = vpop.xlane.xlu0 %1243
      %v1245 = vsel %vm976, %v1237, 0.0
      %1246 = vadd.xlane.f32.xlu0 %v1245
      %v1247 = vpop.xlane.xlu0 %1246
      %v1248 = vsel %vm976, %v1239, 0.0
      %1249 = vadd.xlane.f32.xlu0 %v1248
      %v1250 = vpop.xlane.xlu0 %1249
      %v1251 = vsel %vm976, %v1241, 0.0
      %1252 = vadd.xlane.f32.xlu0 %v1251
      %v1253 = vpop.xlane.xlu0 %1252
      %v1254 = vrcp.pop %v1244
      %v1255 = vmul.f32 %v1235, %v1254
      %v1256 = vrcp.pop %v1247
      %v1257 = vmul.f32 %v1237, %v1256
      %v1258 = vrcp.pop %v1250
      %v1259 = vmul.f32 %v1239, %v1258
      %v1260 = vrcp.pop %v1253
      %v1261 = vmul.f32 %v1241, %v1260
      %v1262 = vpack.c.bf16 %v1255, %v1255
      %v1263 = vpack.c.bf16 %v1257, %v1257
      %v1264 = vpack.c.bf16 %v1259, %v1259
      %v1265 = vpack.c.bf16 %v1261, %v1261
      %v1267 = vsel %vm976, %v956, 0
      %v1270 = vsel %vm976, %v1262, 0
      %1272 = vmatprep.subr.bf16.mxu0 0
      %1273 = vmatpush1.bf16.xpose.msra.mxu0 %v1270
      %1274 = vmatprep.subr.bf16.mxu0 0
      %1275 = vmatpush1.bf16.xpose.msra.mxu0 0
      %1276 = vmatprep.subr.bf16.mxu0 0
      %1277 = vmatpush1.bf16.xpose.msra.mxu0 0
      %1278 = vmatprep.subr.bf16.mxu0 0
      %1279 = vmatpush1.bf16.xpose.msra.mxu0 0
      %1280 = vmatprep.subr.bf16.mxu0 0
      %1281 = vmatpush1.bf16.xpose.msra.mxu0 0
      %1282 = vmatprep.subr.bf16.mxu0 0
      %1283 = vmatpush1.bf16.xpose.msra.mxu0 0
      %1284 = vmatprep.subr.bf16.mxu0 0
      %1285 = vmatpush1.bf16.xpose.msra.mxu0 0
      %1286 = vmatprep.subr.bf16.mxu0 0
      %1287 = vmatpush1.bf16.xpose.msra.mxu0 0
      %1288 = vmatprep.subr.bf16.mxu0 0
      %1289 = vmatpush1.bf16.xpose.msra.mxu0 0
      %1290 = vmatprep.subr.bf16.mxu0 0
      %1291 = vmatpush1.bf16.xpose.msra.mxu0 0
      %1292 = vmatprep.subr.bf16.mxu0 0
      %1293 = vmatpush1.bf16.xpose.msra.mxu0 0
      %1294 = vmatprep.subr.bf16.mxu0 0
      %1295 = vmatpush1.bf16.xpose.msra.mxu0 0
      %1296 = vmatprep.subr.bf16.mxu0 0
      %1297 = vmatpush1.bf16.xpose.msra.mxu0 0
      %1298 = vmatprep.subr.bf16.mxu0 0
      %1299 = vmatpush1.bf16.xpose.msra.mxu0 0
      %1300 = vmatprep.subr.bf16.mxu0 0
      %1301 = vmatpush1.bf16.xpose.msra.mxu0 0
      %1302 = vmatprep.subr.bf16.mxu0 0
      %1303 = vmatpush1.bf16.xpose.msra.mxu0 0
      %1304 = vmatprep.mubr.bf16.mxu0 0
      %1305 = vmatmul.mubr.bf16.gmra.mrb[0].mxu0 %v1267
      %v1306 = vpop.f32.mrb[0].mxu0
      %v1307 = vadd.f32 0.0, %v1306
      %v1308 = vpop.f32.mrb[0].mxu0
      %v1309 = vpop.f32.mrb[0].mxu0
      %v1310 = vpop.f32.mrb[0].mxu0
      %1311 = vdwg.mxu0
      %v1313 = vsel %vm976, %v957, 0
      %v1316 = vsel %vm976, %v1263, 0
      %1318 = vmatprep.subr.bf16.mxu0 0
      %1319 = vmatpush1.bf16.xpose.msra.mxu0 %v1316
      %1320 = vmatprep.subr.bf16.mxu0 0
      %1321 = vmatpush1.bf16.xpose.msra.mxu0 0
      %1322 = vmatprep.subr.bf16.mxu0 0
      %1323 = vmatpush1.bf16.xpose.msra.mxu0 0
      %1324 = vmatprep.subr.bf16.mxu0 0
      %1325 = vmatpush1.bf16.xpose.msra.mxu0 0
      %1326 = vmatprep.subr.bf16.mxu0 0
      %1327 = vmatpush1.bf16.xpose.msra.mxu0 0
      %1328 = vmatprep.subr.bf16.mxu0 0
      %1329 = vmatpush1.bf16.xpose.msra.mxu0 0
      %1330 = vmatprep.subr.bf16.mxu0 0
      %1331 = vmatpush1.bf16.xpose.msra.mxu0 0
      %1332 = vmatprep.subr.bf16.mxu0 0
      %1333 = vmatpush1.bf16.xpose.msra.mxu0 0
      %1334 = vmatprep.subr.bf16.mxu0 0
      %1335 = vmatpush1.bf16.xpose.msra.mxu0 0
      %1336 = vmatprep.subr.bf16.mxu0 0
      %1337 = vmatpush1.bf16.xpose.msra.mxu0 0
      %1338 = vmatprep.subr.bf16.mxu0 0
      %1339 = vmatpush1.bf16.xpose.msra.mxu0 0
      %1340 = vmatprep.subr.bf16.mxu0 0
      %1341 = vmatpush1.bf16.xpose.msra.mxu0 0
      %1342 = vmatprep.subr.bf16.mxu0 0
      %1343 = vmatpush1.bf16.xpose.msra.mxu0 0
      %1344 = vmatprep.subr.bf16.mxu0 0
      %1345 = vmatpush1.bf16.xpose.msra.mxu0 0
      %1346 = vmatprep.subr.bf16.mxu0 0
      %1347 = vmatpush1.bf16.xpose.msra.mxu0 0
      %1348 = vmatprep.subr.bf16.mxu0 0
      %1349 = vmatpush1.bf16.xpose.msra.mxu0 0
      %1350 = vmatprep.mubr.bf16.mxu0 0
      %1351 = vmatmul.mubr.bf16.gmra.mrb[0].mxu0 %v1313
      %v1352 = vpop.f32.mrb[0].mxu0
      %v1353 = vadd.f32 0.0, %v1352
      %v1354 = vpop.f32.mrb[0].mxu0
      %v1355 = vpop.f32.mrb[0].mxu0
      %v1356 = vpop.f32.mrb[0].mxu0
      %1357 = vdwg.mxu0
      %v1359 = vsel %vm976, %v958, 0
      %v1362 = vsel %vm976, %v1264, 0
      %1364 = vmatprep.subr.bf16.mxu0 0
      %1365 = vmatpush1.bf16.xpose.msra.mxu0 %v1362
      %1366 = vmatprep.subr.bf16.mxu0 0
      %1367 = vmatpush1.bf16.xpose.msra.mxu0 0
      %1368 = vmatprep.subr.bf16.mxu0 0
      %1369 = vmatpush1.bf16.xpose.msra.mxu0 0
      %1370 = vmatprep.subr.bf16.mxu0 0
      %1371 = vmatpush1.bf16.xpose.msra.mxu0 0
      %1372 = vmatprep.subr.bf16.mxu0 0
      %1373 = vmatpush1.bf16.xpose.msra.mxu0 0
      %1374 = vmatprep.subr.bf16.mxu0 0
      %1375 = vmatpush1.bf16.xpose.msra.mxu0 0
      %1376 = vmatprep.subr.bf16.mxu0 0
      %1377 = vmatpush1.bf16.xpose.msra.mxu0 0
      %1378 = vmatprep.subr.bf16.mxu0 0
      %1379 = vmatpush1.bf16.xpose.msra.mxu0 0
      %1380 = vmatprep.subr.bf16.mxu0 0
      %1381 = vmatpush1.bf16.xpose.msra.mxu0 0
      %1382 = vmatprep.subr.bf16.mxu0 0
      %1383 = vmatpush1.bf16.xpose.msra.mxu0 0
      %1384 = vmatprep.subr.bf16.mxu0 0
      %1385 = vmatpush1.bf16.xpose.msra.mxu0 0
      %1386 = vmatprep.subr.bf16.mxu0 0
      %1387 = vmatpush1.bf16.xpose.msra.mxu0 0
      %1388 = vmatprep.subr.bf16.mxu0 0
      %1389 = vmatpush1.bf16.xpose.msra.mxu0 0
      %1390 = vmatprep.subr.bf16.mxu0 0
      %1391 = vmatpush1.bf16.xpose.msra.mxu0 0
      %1392 = vmatprep.subr.bf16.mxu0 0
      %1393 = vmatpush1.bf16.xpose.msra.mxu0 0
      %1394 = vmatprep.subr.bf16.mxu0 0
      %1395 = vmatpush1.bf16.xpose.msra.mxu0 0
      %1396 = vmatprep.mubr.bf16.mxu0 0
      %1397 = vmatmul.mubr.bf16.gmra.mrb[0].mxu0 %v1359
      %v1398 = vpop.f32.mrb[0].mxu0
      %v1399 = vadd.f32 0.0, %v1398
      %v1400 = vpop.f32.mrb[0].mxu0
      %v1401 = vpop.f32.mrb[0].mxu0
      %v1402 = vpop.f32.mrb[0].mxu0
      %1403 = vdwg.mxu0
      %v1405 = vsel %vm976, %v959, 0
      %v1408 = vsel %vm976, %v1265, 0
      %1410 = vmatprep.subr.bf16.mxu0 0
      %1411 = vmatpush1.bf16.xpose.msra.mxu0 %v1408
      %1412 = vmatprep.subr.bf16.mxu0 0
      %1413 = vmatpush1.bf16.xpose.msra.mxu0 0
      %1414 = vmatprep.subr.bf16.mxu0 0
      %1415 = vmatpush1.bf16.xpose.msra.mxu0 0
      %1416 = vmatprep.subr.bf16.mxu0 0
      %1417 = vmatpush1.bf16.xpose.msra.mxu0 0
      %1418 = vmatprep.subr.bf16.mxu0 0
      %1419 = vmatpush1.bf16.xpose.msra.mxu0 0
      %1420 = vmatprep.subr.bf16.mxu0 0
      %1421 = vmatpush1.bf16.xpose.msra.mxu0 0
      %1422 = vmatprep.subr.bf16.mxu0 0
      %1423 = vmatpush1.bf16.xpose.msra.mxu0 0
      %1424 = vmatprep.subr.bf16.mxu0 0
      %1425 = vmatpush1.bf16.xpose.msra.mxu0 0
      %1426 = vmatprep.subr.bf16.mxu0 0
      %1427 = vmatpush1.bf16.xpose.msra.mxu0 0
      %1428 = vmatprep.subr.bf16.mxu0 0
      %1429 = vmatpush1.bf16.xpose.msra.mxu0 0
      %1430 = vmatprep.subr.bf16.mxu0 0
      %1431 = vmatpush1.bf16.xpose.msra.mxu0 0
      %1432 = vmatprep.subr.bf16.mxu0 0
      %1433 = vmatpush1.bf16.xpose.msra.mxu0 0
      %1434 = vmatprep.subr.bf16.mxu0 0
      %1435 = vmatpush1.bf16.xpose.msra.mxu0 0
      %1436 = vmatprep.subr.bf16.mxu0 0
      %1437 = vmatpush1.bf16.xpose.msra.mxu0 0
      %1438 = vmatprep.subr.bf16.mxu0 0
      %1439 = vmatpush1.bf16.xpose.msra.mxu0 0
      %1440 = vmatprep.subr.bf16.mxu0 0
      %1441 = vmatpush1.bf16.xpose.msra.mxu0 0
      %1442 = vmatprep.mubr.bf16.mxu0 0
      %1443 = vmatmul.mubr.bf16.gmra.mrb[0].mxu0 %v1405
      %v1444 = vpop.f32.mrb[0].mxu0
      %v1445 = vadd.f32 0.0, %v1444
      %v1446 = vpop.f32.mrb[0].mxu0
      %v1447 = vpop.f32.mrb[0].mxu0
      %v1448 = vpop.f32.mrb[0].mxu0
      %1449 = vdwg.mxu0
      %1450 = vxpose.xlu0.b32.start [1/16] %v1307, 128
      %1451 = vxpose.xlu0.b32.cont [2/16] %v1353, 128
      %1452 = vxpose.xlu0.b32.cont [3/16] %v1399, 128
      %1453 = vxpose.xlu0.b32.cont [4/16] %v1445, 128
      %1454 = vxpose.xlu0.b32.cont [5/16] 0.0, 128
      %1455 = vxpose.xlu0.b32.cont [6/16] 0.0, 128
      %1456 = vxpose.xlu0.b32.cont [7/16] 0.0, 128
      %1457 = vxpose.xlu0.b32.cont [8/16] 0.0, 128
      %1458 = vxpose.xlu0.b32.cont [9/16] 0.0, 128
      %1459 = vxpose.xlu0.b32.cont [10/16] 0.0, 128
      %1460 = vxpose.xlu0.b32.cont [11/16] 0.0, 128
      %1461 = vxpose.xlu0.b32.cont [12/16] 0.0, 128
      %1462 = vxpose.xlu0.b32.cont [13/16] 0.0, 128
      %1463 = vxpose.xlu0.b32.cont [14/16] 0.0, 128
      %1464 = vxpose.xlu0.b32.cont [15/16] 0.0, 128
      %1465 = vxpose.xlu0.b32.end [16/16] 0.0, 128
      %v1466 = vpop.trf.xlu0
      %v1467 = vpop.trf.xlu0
      %v1468 = vpop.trf.xlu0
      %v1469 = vpop.trf.xlu0
      %v1470 = vpop.trf.xlu0
      %v1471 = vpop.trf.xlu0
      %v1472 = vpop.trf.xlu0
      %v1473 = vpop.trf.xlu0
      %v1474 = vpop.trf.xlu0
      %v1475 = vpop.trf.xlu0
      %v1476 = vpop.trf.xlu0
      %v1477 = vpop.trf.xlu0
      %v1478 = vpop.trf.xlu0
      %v1479 = vpop.trf.xlu0
      %v1480 = vpop.trf.xlu0
      %v1481 = vpop.trf.xlu0
      %v1482 = vpack.c.bf16 %v1466, %v1466
      %v1483 = vld [vmem:[%s9] sm:$0xf]
      %v1484 = vld [vmem:[%s9 + $0x4] sm:$0xf]
      %v1485 = vld [vmem:[%s9 + $0x8] sm:$0xf]
      %v1486 = vld [vmem:[%s9 + $0xc] sm:$0xf]
      %v1487 = vlaneseq
      %v1488 = vshrl.u32 %v1487, 7
      %v1489 = vsub.s32 1, %v1488
      %v1490 = vrot.slane %v850, %v1489
      %v1495 = vunpack.c.l.b16 %v1483
      %v1496 = vunpack.c.l.b16 %v1484
      %v1497 = vunpack.c.l.b16 %v1485
      %v1498 = vunpack.c.l.b16 %v1486
      %v1499 = vpack.c.b16 %v1496, %v1495
      %v1500 = vpack.c.b16 %v1498, %v1497
      %v1504 = vsel %vm872, %v1482, 0
      %1506 = vmatprep.subr.bf16.mxu0 0
      %1507 = vmatpush1.bf16.msra.mxu0 %v1499
      %1508 = vmatprep.subr.bf16.mxu0 0
      %1509 = vmatpush1.bf16.msra.mxu0 %v1500
      %1510 = vmatprep.subr.bf16.mxu0 0
      %1511 = vmatpush1.bf16.msra.mxu0 0
      %1512 = vmatprep.subr.bf16.mxu0 0
      %1513 = vmatpush1.bf16.msra.mxu0 0
      %1514 = vmatprep.subr.bf16.mxu0 0
      %1515 = vmatpush1.bf16.msra.mxu0 0
      %1516 = vmatprep.subr.bf16.mxu0 0
      %1517 = vmatpush1.bf16.msra.mxu0 0
      %1518 = vmatprep.subr.bf16.mxu0 0
      %1519 = vmatpush1.bf16.msra.mxu0 0
      %1520 = vmatprep.subr.bf16.mxu0 0
      %1521 = vmatpush1.bf16.msra.mxu0 0
      %1522 = vmatprep.subr.bf16.mxu0 0
      %1523 = vmatpush1.bf16.msra.mxu0 0
      %1524 = vmatprep.subr.bf16.mxu0 0
      %1525 = vmatpush1.bf16.msra.mxu0 0
      %1526 = vmatprep.subr.bf16.mxu0 0
      %1527 = vmatpush1.bf16.msra.mxu0 0
      %1528 = vmatprep.subr.bf16.mxu0 0
      %1529 = vmatpush1.bf16.msra.mxu0 0
      %1530 = vmatprep.subr.bf16.mxu0 0
      %1531 = vmatpush1.bf16.msra.mxu0 0
      %1532 = vmatprep.subr.bf16.mxu0 0
      %1533 = vmatpush1.bf16.msra.mxu0 0
      %1534 = vmatprep.subr.bf16.mxu0 0
      %1535 = vmatpush1.bf16.msra.mxu0 0
      %1536 = vmatprep.subr.bf16.mxu0 0
      %1537 = vmatpush1.bf16.msra.mxu0 0
      %1538 = vmatprep.mubr.bf16.mxu0 0
      %1539 = vmatmul.mubr.bf16.gmra.mrb[0].mxu0 %v1504
      %v1540 = vpop.f32.mrb[0].mxu0
      %v1541 = vadd.f32 %v1490, %v1540
      %v1542 = vpop.f32.mrb[0].mxu0
      %v1543 = vpop.f32.mrb[0].mxu0
      %v1544 = vpop.f32.mrb[0].mxu0
      %1545 = vdwg.mxu0
      %v1546 = vpack.c.bf16 %v1541, %v1541
      %v1547 = vld [vmem:[%s10] sm:$0xf]
      %v1548 = vld [vmem:[%s10 + $0x4] sm:$0xf]
      %v1549 = vld [vmem:[%s10 + $0x8] sm:$0xf]
      %v1550 = vld [vmem:[%s10 + $0xc] sm:$0xf]
      %v1551 = vlaneseq
      %v1552 = vshrl.u32 %v1551, 7
      %v1553 = vsub.s32 2, %v1552
      %v1554 = vrot.slane %v850, %v1553
      %v1559 = vunpack.c.l.b16 %v1547
      %v1560 = vunpack.c.l.b16 %v1548
      %v1561 = vunpack.c.l.b16 %v1549
      %v1562 = vunpack.c.l.b16 %v1550
      %v1563 = vpack.c.b16 %v1560, %v1559
      %v1564 = vpack.c.b16 %v1562, %v1561
      %v1568 = vsel %vm872, %v1546, 0
      %1570 = vmatprep.subr.bf16.mxu0 0
      %1571 = vmatpush1.bf16.msra.mxu0 %v1563
      %1572 = vmatprep.subr.bf16.mxu0 0
      %1573 = vmatpush1.bf16.msra.mxu0 %v1564
      %1574 = vmatprep.subr.bf16.mxu0 0
      %1575 = vmatpush1.bf16.msra.mxu0 0
      %1576 = vmatprep.subr.bf16.mxu0 0
      %1577 = vmatpush1.bf16.msra.mxu0 0
      %1578 = vmatprep.subr.bf16.mxu0 0
      %1579 = vmatpush1.bf16.msra.mxu0 0
      %1580 = vmatprep.subr.bf16.mxu0 0
      %1581 = vmatpush1.bf16.msra.mxu0 0
      %1582 = vmatprep.subr.bf16.mxu0 0
      %1583 = vmatpush1.bf16.msra.mxu0 0
      %1584 = vmatprep.subr.bf16.mxu0 0
      %1585 = vmatpush1.bf16.msra.mxu0 0
      %1586 = vmatprep.subr.bf16.mxu0 0
      %1587 = vmatpush1.bf16.msra.mxu0 0
      %1588 = vmatprep.subr.bf16.mxu0 0
      %1589 = vmatpush1.bf16.msra.mxu0 0
      %1590 = vmatprep.subr.bf16.mxu0 0
      %1591 = vmatpush1.bf16.msra.mxu0 0
      %1592 = vmatprep.subr.bf16.mxu0 0
      %1593 = vmatpush1.bf16.msra.mxu0 0
      %1594 = vmatprep.subr.bf16.mxu0 0
      %1595 = vmatpush1.bf16.msra.mxu0 0
      %1596 = vmatprep.subr.bf16.mxu0 0
      %1597 = vmatpush1.bf16.msra.mxu0 0
      %1598 = vmatprep.subr.bf16.mxu0 0
      %1599 = vmatpush1.bf16.msra.mxu0 0
      %1600 = vmatprep.subr.bf16.mxu0 0
      %1601 = vmatpush1.bf16.msra.mxu0 0
      %1602 = vmatprep.mubr.bf16.mxu0 0
      %1603 = vmatmul.mubr.bf16.gmra.mrb[0].mxu0 %v1568
      %v1604 = vpop.f32.mrb[0].mxu0
      %v1605 = vadd.f32 %v1554, %v1604
      %v1606 = vpop.f32.mrb[0].mxu0
      %v1607 = vpop.f32.mrb[0].mxu0
      %v1608 = vpop.f32.mrb[0].mxu0
      %1609 = vdwg.mxu0
      %v1610 = vmul.f32 %v1605, %v1605
      %v1611 = vmul.f32 %v1605, %v1610
      %v1612 = vmul.f32 %v1611, 0.044715
      %v1613 = vadd.f32 %v1605, %v1612
      %v1614 = vmul.f32 %v1613, 0.7978846
      %v1615 = vtanh.pop %v1614
      %v1616 = vadd.f32 %v1615, 1.0
      %v1617 = vmul.f32 %v1616, 0.5
      %v1618 = vmul.f32 %v1605, %v1617
      %v1619 = vxor.u32 %v850, 2147483648
      %v1620 = vmul.f32 %v1619, 1.442695
      %v1621 = vpow.pop %v1620
      %v1622 = vadd.f32 %v1621, 1.0
      %v1623 = vrcp.pop %v1622
      %v1624 = vmul.f32 1.0, %v1623
      %v1626 = vrot.slane %v1624, 5
      %s1627 = vtos %v1626
      %v1628 = vstv %s1627
      %v1630 = vmul.f32 %v1628, %v1618
      %v1631 = vsub.f32 1.0, %v1624
      %v1633 = vrot.slane %v1631, 5
      %s1634 = vtos %v1633
      %v1635 = vstv %s1634
      %v1637 = vmul.f32 %v1635, %v848
      %v1638 = vadd.f32 %v1630, %v1637
      %v1639 = vsel %vm872, %v1638, 0.0
      %1640 = vadd.xlane.f32.xlu0 %v1639
      %v1641 = vpop.xlane.xlu0 %1640
      %v1642 = vrcp.pop 32.0
      %v1643 = vmul.f32 %v1641, %v1642
      %v1644 = vsub.f32 %v1638, %v1643
      %v1645 = vmul.f32 %v1644, %v1644
      %v1646 = vsel %vm872, %v1645, 0.0
      %1647 = vadd.xlane.f32.xlu0 %v1646
      %v1648 = vpop.xlane.xlu0 %1647
      %v1649 = vmul.f32 %v1648, %v1642
      %v1650 = vadd.f32 %v1649, 1e-05
      %v1651 = vrsqrt.pop %v1650
      %v1652 = vmul.f32 %v1644, %v1651
      %v1653 = vlaneseq
      %v1654 = vshrl.u32 %v1653, 7
      %v1655 = vsub.s32 3, %v1654
      %v1656 = vrot.slane %v850, %v1655
      %v1657 = vmul.f32 %v1652, %v1656
      %v1658 = vlaneseq
      %v1659 = vshrl.u32 %v1658, 7
      %v1660 = vsub.s32 4, %v1659
      %v1661 = vrot.slane %v850, %v1660
      %v1662 = vadd.f32 %v1657, %v1661
      %s1663 = scalar_lea.vmem %s11, 8
      %v1664 = vld [vmem:[%s1663] sm:$0xff]
      %v1665 = vpack.c.bf16 %v1662, %v1662
      %s1666 = scalar_lea.vmem %s8, 16
      %v1667 = vld [vmem:[%s1666] sm:$0xf]
      %v1668 = vld [vmem:[%s1666 + $0x4] sm:$0xf]
      %v1669 = vld [vmem:[%s1666 + $0x8] sm:$0xf]
      %v1670 = vld [vmem:[%s1666 + $0xc] sm:$0xf]
      %v1671 = vlaneseq
      %v1672 = vshrl.u32 %v1671, 7
      %v1673 = vsub.s32 0, %v1672
      %v1674 = vrot.slane %v1664, %v1673
      %v1679 = vunpack.c.l.b16 %v1667
      %v1680 = vunpack.c.l.b16 %v1668
      %v1681 = vunpack.c.l.b16 %v1669
      %v1682 = vunpack.c.l.b16 %v1670
      %v1683 = vpack.c.b16 %v1680, %v1679
      %v1684 = vpack.c.b16 %v1682, %v1681
      %v1688 = vsel %vm872, %v1665, 0
      %1690 = vmatprep.subr.bf16.mxu0 0
      %1691 = vmatpush1.bf16.msra.mxu0 %v1683
      %1692 = vmatprep.subr.bf16.mxu0 0
      %1693 = vmatpush1.bf16.msra.mxu0 %v1684
      %1694 = vmatprep.subr.bf16.mxu0 0
      %1695 = vmatpush1.bf16.msra.mxu0 0
      %1696 = vmatprep.subr.bf16.mxu0 0
      %1697 = vmatpush1.bf16.msra.mxu0 0
      %1698 = vmatprep.subr.bf16.mxu0 0
      %1699 = vmatpush1.bf16.msra.mxu0 0
      %1700 = vmatprep.subr.bf16.mxu0 0
      %1701 = vmatpush1.bf16.msra.mxu0 0
      %1702 = vmatprep.subr.bf16.mxu0 0
      %1703 = vmatpush1.bf16.msra.mxu0 0
      %1704 = vmatprep.subr.bf16.mxu0 0
      %1705 = vmatpush1.bf16.msra.mxu0 0
      %1706 = vmatprep.subr.bf16.mxu0 0
      %1707 = vmatpush1.bf16.msra.mxu0 0
      %1708 = vmatprep.subr.bf16.mxu0 0
      %1709 = vmatpush1.bf16.msra.mxu0 0
      %1710 = vmatprep.subr.bf16.mxu0 0
      %1711 = vmatpush1.bf16.msra.mxu0 0
      %1712 = vmatprep.subr.bf16.mxu0 0
      %1713 = vmatpush1.bf16.msra.mxu0 0
      %1714 = vmatprep.subr.bf16.mxu0 0
      %1715 = vmatpush1.bf16.msra.mxu0 0
      %1716 = vmatprep.subr.bf16.mxu0 0
      %1717 = vmatpush1.bf16.msra.mxu0 0
      %1718 = vmatprep.subr.bf16.mxu0 0
      %1719 = vmatpush1.bf16.msra.mxu0 0
      %1720 = vmatprep.subr.bf16.mxu0 0
      %1721 = vmatpush1.bf16.msra.mxu0 0
      %1722 = vmatprep.mubr.bf16.mxu0 0
      %1723 = vmatmul.mubr.bf16.gmra.mrb[0].mxu0 %v1688
      %v1724 = vpop.f32.mrb[0].mxu0
      %v1725 = vadd.f32 %v1674, %v1724
      %v1726 = vpop.f32.mrb[0].mxu0
      %v1727 = vpop.f32.mrb[0].mxu0
      %v1728 = vpop.f32.mrb[0].mxu0
      %1729 = vdwg.mxu0
      %1730 = vxpose.xlu0.b32.start [1/16] %v1725, 128
      %1731 = vxpose.xlu0.b32.cont [2/16] 0.0, 128
      %1732 = vxpose.xlu0.b32.cont [3/16] 0.0, 128
      %1733 = vxpose.xlu0.b32.cont [4/16] 0.0, 128
      %1734 = vxpose.xlu0.b32.cont [5/16] 0.0, 128
      %1735 = vxpose.xlu0.b32.cont [6/16] 0.0, 128
      %1736 = vxpose.xlu0.b32.cont [7/16] 0.0, 128
      %1737 = vxpose.xlu0.b32.cont [8/16] 0.0, 128
      %1738 = vxpose.xlu0.b32.cont [9/16] 0.0, 128
      %1739 = vxpose.xlu0.b32.cont [10/16] 0.0, 128
      %1740 = vxpose.xlu0.b32.cont [11/16] 0.0, 128
      %1741 = vxpose.xlu0.b32.cont [12/16] 0.0, 128
      %1742 = vxpose.xlu0.b32.cont [13/16] 0.0, 128
      %1743 = vxpose.xlu0.b32.cont [14/16] 0.0, 128
      %1744 = vxpose.xlu0.b32.cont [15/16] 0.0, 128
      %1745 = vxpose.xlu0.b32.end [16/16] 0.0, 128
      %v1746 = vpop.trf.xlu0
      %v1747 = vpop.trf.xlu0
      %v1748 = vpop.trf.xlu0
      %v1749 = vpop.trf.xlu0
      %v1750 = vpop.trf.xlu0
      %v1751 = vpop.trf.xlu0
      %v1752 = vpop.trf.xlu0
      %v1753 = vpop.trf.xlu0
      %v1754 = vpop.trf.xlu0
      %v1755 = vpop.trf.xlu0
      %v1756 = vpop.trf.xlu0
      %v1757 = vpop.trf.xlu0
      %v1758 = vpop.trf.xlu0
      %v1759 = vpop.trf.xlu0
      %v1760 = vpop.trf.xlu0
      %v1761 = vpop.trf.xlu0
      %v1762 = vpack.c.bf16 %v1746, %v1746
      %v1763 = vpack.c.bf16 %v1747, %v1747
      %v1764 = vpack.c.bf16 %v1748, %v1748
      %v1765 = vpack.c.bf16 %v1749, %v1749
      %v1766 = vpack.c.bf16 %v1750, %v1750
      %v1767 = vpack.c.bf16 %v1751, %v1751
      %v1768 = vpack.c.bf16 %v1752, %v1752
      %v1769 = vpack.c.bf16 %v1753, %v1753
      %v1770 = vpack.c.bf16 %v1754, %v1754
      %v1771 = vpack.c.bf16 %v1755, %v1755
      %v1772 = vpack.c.bf16 %v1756, %v1756
      %v1773 = vpack.c.bf16 %v1757, %v1757
      %1774 = vxpose.xlu0.c.b16.start [1/8] %v1762, 128
      %1775 = vxpose.xlu0.c.b16.cont [2/8] 0, 128
      %1776 = vxpose.xlu0.c.b16.cont [3/8] 0, 128
      %1777 = vxpose.xlu0.c.b16.cont [4/8] 0, 128
      %1778 = vxpose.xlu0.c.b16.cont [5/8] 0, 128
      %1779 = vxpose.xlu0.c.b16.cont [6/8] 0, 128
      %1780 = vxpose.xlu0.c.b16.cont [7/8] 0, 128
      %1781 = vxpose.xlu0.c.b16.end [8/8] 0, 128
      %v1782 = vpop.trf.xlu0
      %v1783 = vpop.trf.xlu0
      %v1784 = vpop.trf.xlu0
      %v1785 = vpop.trf.xlu0
      %v1786 = vpop.trf.xlu0
      %v1787 = vpop.trf.xlu0
      %v1788 = vpop.trf.xlu0
      %v1789 = vpop.trf.xlu0
      %v1791 = vsel %vm976, %v1782, 0
      %v1794 = vsel %vm980, %v1766, 0
      %1796 = vmatprep.subr.bf16.mxu0 0
      %1797 = vmatpush1.bf16.msra.mxu0 %v1794
      %1798 = vmatprep.subr.bf16.mxu0 0
      %1799 = vmatpush1.bf16.msra.mxu0 0
      %1800 = vmatprep.subr.bf16.mxu0 0
      %1801 = vmatpush1.bf16.msra.mxu0 0
      %1802 = vmatprep.subr.bf16.mxu0 0
      %1803 = vmatpush1.bf16.msra.mxu0 0
      %1804 = vmatprep.subr.bf16.mxu0 0
      %1805 = vmatpush1.bf16.msra.mxu0 0
      %1806 = vmatprep.subr.bf16.mxu0 0
      %1807 = vmatpush1.bf16.msra.mxu0 0
      %1808 = vmatprep.subr.bf16.mxu0 0
      %1809 = vmatpush1.bf16.msra.mxu0 0
      %1810 = vmatprep.subr.bf16.mxu0 0
      %1811 = vmatpush1.bf16.msra.mxu0 0
      %1812 = vmatprep.subr.bf16.mxu0 0
      %1813 = vmatpush1.bf16.msra.mxu0 0
      %1814 = vmatprep.subr.bf16.mxu0 0
      %1815 = vmatpush1.bf16.msra.mxu0 0
      %1816 = vmatprep.subr.bf16.mxu0 0
      %1817 = vmatpush1.bf16.msra.mxu0 0
      %1818 = vmatprep.subr.bf16.mxu0 0
      %1819 = vmatpush1.bf16.msra.mxu0 0
      %1820 = vmatprep.subr.bf16.mxu0 0
      %1821 = vmatpush1.bf16.msra.mxu0 0
      %1822 = vmatprep.subr.bf16.mxu0 0
      %1823 = vmatpush1.bf16.msra.mxu0 0
      %1824 = vmatprep.subr.bf16.mxu0 0
      %1825 = vmatpush1.bf16.msra.mxu0 0
      %1826 = vmatprep.subr.bf16.mxu0 0
      %1827 = vmatpush1.bf16.msra.mxu0 0
      %1828 = vmatprep.mubr.bf16.mxu0 0
      %1829 = vmatmul.mubr.bf16.gmra.mrb[0].mxu0 %v1791
      %v1830 = vpop.f32.mrb[0].mxu0
      %v1831 = vadd.f32 0.0, %v1830
      %v1832 = vpop.f32.mrb[0].mxu0
      %v1833 = vpop.f32.mrb[0].mxu0
      %v1834 = vpop.f32.mrb[0].mxu0
      %1835 = vdwg.mxu0
      %1836 = vxpose.xlu0.c.b16.start [1/8] %v1763, 128
      %1837 = vxpose.xlu0.c.b16.cont [2/8] 0, 128
      %1838 = vxpose.xlu0.c.b16.cont [3/8] 0, 128
      %1839 = vxpose.xlu0.c.b16.cont [4/8] 0, 128
      %1840 = vxpose.xlu0.c.b16.cont [5/8] 0, 128
      %1841 = vxpose.xlu0.c.b16.cont [6/8] 0, 128
      %1842 = vxpose.xlu0.c.b16.cont [7/8] 0, 128
      %1843 = vxpose.xlu0.c.b16.end [8/8] 0, 128
      %v1844 = vpop.trf.xlu0
      %v1845 = vpop.trf.xlu0
      %v1846 = vpop.trf.xlu0
      %v1847 = vpop.trf.xlu0
      %v1848 = vpop.trf.xlu0
      %v1849 = vpop.trf.xlu0
      %v1850 = vpop.trf.xlu0
      %v1851 = vpop.trf.xlu0
      %v1853 = vsel %vm976, %v1844, 0
      %v1856 = vsel %vm980, %v1767, 0
      %1858 = vmatprep.subr.bf16.mxu0 0
      %1859 = vmatpush1.bf16.msra.mxu0 %v1856
      %1860 = vmatprep.subr.bf16.mxu0 0
      %1861 = vmatpush1.bf16.msra.mxu0 0
      %1862 = vmatprep.subr.bf16.mxu0 0
      %1863 = vmatpush1.bf16.msra.mxu0 0
      %1864 = vmatprep.subr.bf16.mxu0 0
      %1865 = vmatpush1.bf16.msra.mxu0 0
      %1866 = vmatprep.subr.bf16.mxu0 0
      %1867 = vmatpush1.bf16.msra.mxu0 0
      %1868 = vmatprep.subr.bf16.mxu0 0
      %1869 = vmatpush1.bf16.msra.mxu0 0
      %1870 = vmatprep.subr.bf16.mxu0 0
      %1871 = vmatpush1.bf16.msra.mxu0 0
      %1872 = vmatprep.subr.bf16.mxu0 0
      %1873 = vmatpush1.bf16.msra.mxu0 0
      %1874 = vmatprep.subr.bf16.mxu0 0
      %1875 = vmatpush1.bf16.msra.mxu0 0
      %1876 = vmatprep.subr.bf16.mxu0 0
      %1877 = vmatpush1.bf16.msra.mxu0 0
      %1878 = vmatprep.subr.bf16.mxu0 0
      %1879 = vmatpush1.bf16.msra.mxu0 0
      %1880 = vmatprep.subr.bf16.mxu0 0
      %1881 = vmatpush1.bf16.msra.mxu0 0
      %1882 = vmatprep.subr.bf16.mxu0 0
      %1883 = vmatpush1.bf16.msra.mxu0 0
      %1884 = vmatprep.subr.bf16.mxu0 0
      %1885 = vmatpush1.bf16.msra.mxu0 0
      %1886 = vmatprep.subr.bf16.mxu0 0
      %1887 = vmatpush1.bf16.msra.mxu0 0
      %1888 = vmatprep.subr.bf16.mxu0 0
      %1889 = vmatpush1.bf16.msra.mxu0 0
      %1890 = vmatprep.mubr.bf16.mxu0 0
      %1891 = vmatmul.mubr.bf16.gmra.mrb[0].mxu0 %v1853
      %v1892 = vpop.f32.mrb[0].mxu0
      %v1893 = vadd.f32 0.0, %v1892
      %v1894 = vpop.f32.mrb[0].mxu0
      %v1895 = vpop.f32.mrb[0].mxu0
      %v1896 = vpop.f32.mrb[0].mxu0
      %1897 = vdwg.mxu0
      %1898 = vxpose.xlu0.c.b16.start [1/8] %v1764, 128
      %1899 = vxpose.xlu0.c.b16.cont [2/8] 0, 128
      %1900 = vxpose.xlu0.c.b16.cont [3/8] 0, 128
      %1901 = vxpose.xlu0.c.b16.cont [4/8] 0, 128
      %1902 = vxpose.xlu0.c.b16.cont [5/8] 0, 128
      %1903 = vxpose.xlu0.c.b16.cont [6/8] 0, 128
      %1904 = vxpose.xlu0.c.b16.cont [7/8] 0, 128
      %1905 = vxpose.xlu0.c.b16.end [8/8] 0, 128
      %v1906 = vpop.trf.xlu0
      %v1907 = vpop.trf.xlu0
      %v1908 = vpop.trf.xlu0
      %v1909 = vpop.trf.xlu0
      %v1910 = vpop.trf.xlu0
      %v1911 = vpop.trf.xlu0
      %v1912 = vpop.trf.xlu0
      %v1913 = vpop.trf.xlu0
      %v1915 = vsel %vm976, %v1906, 0
      %v1918 = vsel %vm980, %v1768, 0
      %1920 = vmatprep.subr.bf16.mxu0 0
      %1921 = vmatpush1.bf16.msra.mxu0 %v1918
      %1922 = vmatprep.subr.bf16.mxu0 0
      %1923 = vmatpush1.bf16.msra.mxu0 0
      %1924 = vmatprep.subr.bf16.mxu0 0
      %1925 = vmatpush1.bf16.msra.mxu0 0
      %1926 = vmatprep.subr.bf16.mxu0 0
      %1927 = vmatpush1.bf16.msra.mxu0 0
      %1928 = vmatprep.subr.bf16.mxu0 0
      %1929 = vmatpush1.bf16.msra.mxu0 0
      %1930 = vmatprep.subr.bf16.mxu0 0
      %1931 = vmatpush1.bf16.msra.mxu0 0
      %1932 = vmatprep.subr.bf16.mxu0 0
      %1933 = vmatpush1.bf16.msra.mxu0 0
      %1934 = vmatprep.subr.bf16.mxu0 0
      %1935 = vmatpush1.bf16.msra.mxu0 0
      %1936 = vmatprep.subr.bf16.mxu0 0
      %1937 = vmatpush1.bf16.msra.mxu0 0
      %1938 = vmatprep.subr.bf16.mxu0 0
      %1939 = vmatpush1.bf16.msra.mxu0 0
      %1940 = vmatprep.subr.bf16.mxu0 0
      %1941 = vmatpush1.bf16.msra.mxu0 0
      %1942 = vmatprep.subr.bf16.mxu0 0
      %1943 = vmatpush1.bf16.msra.mxu0 0
      %1944 = vmatprep.subr.bf16.mxu0 0
      %1945 = vmatpush1.bf16.msra.mxu0 0
      %1946 = vmatprep.subr.bf16.mxu0 0
      %1947 = vmatpush1.bf16.msra.mxu0 0
      %1948 = vmatprep.subr.bf16.mxu0 0
      %1949 = vmatpush1.bf16.msra.mxu0 0
      %1950 = vmatprep.subr.bf16.mxu0 0
      %1951 = vmatpush1.bf16.msra.mxu0 0
      %1952 = vmatprep.mubr.bf16.mxu0 0
      %1953 = vmatmul.mubr.bf16.gmra.mrb[0].mxu0 %v1915
      %v1954 = vpop.f32.mrb[0].mxu0
      %v1955 = vadd.f32 0.0, %v1954
      %v1956 = vpop.f32.mrb[0].mxu0
      %v1957 = vpop.f32.mrb[0].mxu0
      %v1958 = vpop.f32.mrb[0].mxu0
      %1959 = vdwg.mxu0
      %1960 = vxpose.xlu0.c.b16.start [1/8] %v1765, 128
      %1961 = vxpose.xlu0.c.b16.cont [2/8] 0, 128
      %1962 = vxpose.xlu0.c.b16.cont [3/8] 0, 128
      %1963 = vxpose.xlu0.c.b16.cont [4/8] 0, 128
      %1964 = vxpose.xlu0.c.b16.cont [5/8] 0, 128
      %1965 = vxpose.xlu0.c.b16.cont [6/8] 0, 128
      %1966 = vxpose.xlu0.c.b16.cont [7/8] 0, 128
      %1967 = vxpose.xlu0.c.b16.end [8/8] 0, 128
      %v1968 = vpop.trf.xlu0
      %v1969 = vpop.trf.xlu0
      %v1970 = vpop.trf.xlu0
      %v1971 = vpop.trf.xlu0
      %v1972 = vpop.trf.xlu0
      %v1973 = vpop.trf.xlu0
      %v1974 = vpop.trf.xlu0
      %v1975 = vpop.trf.xlu0
      %v1977 = vsel %vm976, %v1968, 0
      %v1980 = vsel %vm980, %v1769, 0
      %1982 = vmatprep.subr.bf16.mxu0 0
      %1983 = vmatpush1.bf16.msra.mxu0 %v1980
      %1984 = vmatprep.subr.bf16.mxu0 0
      %1985 = vmatpush1.bf16.msra.mxu0 0
      %1986 = vmatprep.subr.bf16.mxu0 0
      %1987 = vmatpush1.bf16.msra.mxu0 0
      %1988 = vmatprep.subr.bf16.mxu0 0
      %1989 = vmatpush1.bf16.msra.mxu0 0
      %1990 = vmatprep.subr.bf16.mxu0 0
      %1991 = vmatpush1.bf16.msra.mxu0 0
      %1992 = vmatprep.subr.bf16.mxu0 0
      %1993 = vmatpush1.bf16.msra.mxu0 0
      %1994 = vmatprep.subr.bf16.mxu0 0
      %1995 = vmatpush1.bf16.msra.mxu0 0
      %1996 = vmatprep.subr.bf16.mxu0 0
      %1997 = vmatpush1.bf16.msra.mxu0 0
      %1998 = vmatprep.subr.bf16.mxu0 0
      %1999 = vmatpush1.bf16.msra.mxu0 0
      %2000 = vmatprep.subr.bf16.mxu0 0
      %2001 = vmatpush1.bf16.msra.mxu0 0
      %2002 = vmatprep.subr.bf16.mxu0 0
      %2003 = vmatpush1.bf16.msra.mxu0 0
      %2004 = vmatprep.subr.bf16.mxu0 0
      %2005 = vmatpush1.bf16.msra.mxu0 0
      %2006 = vmatprep.subr.bf16.mxu0 0
      %2007 = vmatpush1.bf16.msra.mxu0 0
      %2008 = vmatprep.subr.bf16.mxu0 0
      %2009 = vmatpush1.bf16.msra.mxu0 0
      %2010 = vmatprep.subr.bf16.mxu0 0
      %2011 = vmatpush1.bf16.msra.mxu0 0
      %2012 = vmatprep.subr.bf16.mxu0 0
      %2013 = vmatpush1.bf16.msra.mxu0 0
      %2014 = vmatprep.mubr.bf16.mxu0 0
      %2015 = vmatmul.mubr.bf16.gmra.mrb[0].mxu0 %v1977
      %v2016 = vpop.f32.mrb[0].mxu0
      %v2017 = vadd.f32 0.0, %v2016
      %v2018 = vpop.f32.mrb[0].mxu0
      %v2019 = vpop.f32.mrb[0].mxu0
      %v2020 = vpop.f32.mrb[0].mxu0
      %2021 = vdwg.mxu0
      %v2022 = vmul.f32 %v1831, 0.35355338
      %v2023 = vmul.f32 %v1893, 0.35355338
      %v2024 = vmul.f32 %v1955, 0.35355338
      %v2025 = vmul.f32 %v2017, 0.35355338
      %v2026 = vadd.f32 %v2022, %v849
      %v2027 = vadd.f32 %v2023, %v849
      %v2028 = vadd.f32 %v2024, %v849
      %v2029 = vadd.f32 %v2025, %v849
      %v2030 = vsel %vm976, %v2026, -inf
      %2031 = vmax.xlane.f32.xlu0 %v2030
      %v2032 = vpop.xlane.xlu0 %2031
      %v2033 = vsel %vm976, %v2027, -inf
      %2034 = vmax.xlane.f32.xlu0 %v2033
      %v2035 = vpop.xlane.xlu0 %2034
      %v2036 = vsel %vm976, %v2028, -inf
      %2037 = vmax.xlane.f32.xlu0 %v2036
      %v2038 = vpop.xlane.xlu0 %2037
      %v2039 = vsel %vm976, %v2029, -inf
      %2040 = vmax.xlane.f32.xlu0 %v2039
      %v2041 = vpop.xlane.xlu0 %2040
      %v2042 = vsub.f32 %v2026, %v2032
      %v2043 = vsub.f32 %v2027, %v2035
      %v2044 = vsub.f32 %v2028, %v2038
      %v2045 = vsub.f32 %v2029, %v2041
      %v2046 = vmul.f32 %v2042, 1.442695
      %v2047 = vpow.pop %v2046
      %v2048 = vmul.f32 %v2043, 1.442695
      %v2049 = vpow.pop %v2048
      %v2050 = vmul.f32 %v2044, 1.442695
      %v2051 = vpow.pop %v2050
      %v2052 = vmul.f32 %v2045, 1.442695
      %v2053 = vpow.pop %v2052
      %v2054 = vsel %vm976, %v2047, 0.0
      %2055 = vadd.xlane.f32.xlu0 %v2054
      %v2056 = vpop.xlane.xlu0 %2055
      %v2057 = vsel %vm976, %v2049, 0.0
      %2058 = vadd.xlane.f32.xlu0 %v2057
      %v2059 = vpop.xlane.xlu0 %2058
      %v2060 = vsel %vm976, %v2051, 0.0
      %2061 = vadd.xlane.f32.xlu0 %v2060
      %v2062 = vpop.xlane.xlu0 %2061
      %v2063 = vsel %vm976, %v2053, 0.0
      %2064 = vadd.xlane.f32.xlu0 %v2063
      %v2065 = vpop.xlane.xlu0 %2064
      %v2066 = vrcp.pop %v2056
      %v2067 = vmul.f32 %v2047, %v2066
      %v2068 = vrcp.pop %v2059
      %v2069 = vmul.f32 %v2049, %v2068
      %v2070 = vrcp.pop %v2062
      %v2071 = vmul.f32 %v2051, %v2070
      %v2072 = vrcp.pop %v2065
      %v2073 = vmul.f32 %v2053, %v2072
      %v2074 = vpack.c.bf16 %v2067, %v2067
      %v2075 = vpack.c.bf16 %v2069, %v2069
      %v2076 = vpack.c.bf16 %v2071, %v2071
      %v2077 = vpack.c.bf16 %v2073, %v2073
      %v2079 = vsel %vm976, %v1770, 0
      %v2082 = vsel %vm976, %v2074, 0
      %2084 = vmatprep.subr.bf16.mxu0 0
      %2085 = vmatpush1.bf16.xpose.msra.mxu0 %v2082
      %2086 = vmatprep.subr.bf16.mxu0 0
      %2087 = vmatpush1.bf16.xpose.msra.mxu0 0
      %2088 = vmatprep.subr.bf16.mxu0 0
      %2089 = vmatpush1.bf16.xpose.msra.mxu0 0
      %2090 = vmatprep.subr.bf16.mxu0 0
      %2091 = vmatpush1.bf16.xpose.msra.mxu0 0
      %2092 = vmatprep.subr.bf16.mxu0 0
      %2093 = vmatpush1.bf16.xpose.msra.mxu0 0
      %2094 = vmatprep.subr.bf16.mxu0 0
      %2095 = vmatpush1.bf16.xpose.msra.mxu0 0
      %2096 = vmatprep.subr.bf16.mxu0 0
      %2097 = vmatpush1.bf16.xpose.msra.mxu0 0
      %2098 = vmatprep.subr.bf16.mxu0 0
      %2099 = vmatpush1.bf16.xpose.msra.mxu0 0
      %2100 = vmatprep.subr.bf16.mxu0 0
      %2101 = vmatpush1.bf16.xpose.msra.mxu0 0
      %2102 = vmatprep.subr.bf16.mxu0 0
      %2103 = vmatpush1.bf16.xpose.msra.mxu0 0
      %2104 = vmatprep.subr.bf16.mxu0 0
      %2105 = vmatpush1.bf16.xpose.msra.mxu0 0
      %2106 = vmatprep.subr.bf16.mxu0 0
      %2107 = vmatpush1.bf16.xpose.msra.mxu0 0
      %2108 = vmatprep.subr.bf16.mxu0 0
      %2109 = vmatpush1.bf16.xpose.msra.mxu0 0
      %2110 = vmatprep.subr.bf16.mxu0 0
      %2111 = vmatpush1.bf16.xpose.msra.mxu0 0
      %2112 = vmatprep.subr.bf16.mxu0 0
      %2113 = vmatpush1.bf16.xpose.msra.mxu0 0
      %2114 = vmatprep.subr.bf16.mxu0 0
      %2115 = vmatpush1.bf16.xpose.msra.mxu0 0
      %2116 = vmatprep.mubr.bf16.mxu0 0
      %2117 = vmatmul.mubr.bf16.gmra.mrb[0].mxu0 %v2079
      %v2118 = vpop.f32.mrb[0].mxu0
      %v2119 = vadd.f32 0.0, %v2118
      %v2120 = vpop.f32.mrb[0].mxu0
      %v2121 = vpop.f32.mrb[0].mxu0
      %v2122 = vpop.f32.mrb[0].mxu0
      %2123 = vdwg.mxu0
      %v2125 = vsel %vm976, %v1771, 0
      %v2128 = vsel %vm976, %v2075, 0
      %2130 = vmatprep.subr.bf16.mxu0 0
      %2131 = vmatpush1.bf16.xpose.msra.mxu0 %v2128
      %2132 = vmatprep.subr.bf16.mxu0 0
      %2133 = vmatpush1.bf16.xpose.msra.mxu0 0
      %2134 = vmatprep.subr.bf16.mxu0 0
      %2135 = vmatpush1.bf16.xpose.msra.mxu0 0
      %2136 = vmatprep.subr.bf16.mxu0 0
      %2137 = vmatpush1.bf16.xpose.msra.mxu0 0
      %2138 = vmatprep.subr.bf16.mxu0 0
      %2139 = vmatpush1.bf16.xpose.msra.mxu0 0
      %2140 = vmatprep.subr.bf16.mxu0 0
      %2141 = vmatpush1.bf16.xpose.msra.mxu0 0
      %2142 = vmatprep.subr.bf16.mxu0 0
      %2143 = vmatpush1.bf16.xpose.msra.mxu0 0
      %2144 = vmatprep.subr.bf16.mxu0 0
      %2145 = vmatpush1.bf16.xpose.msra.mxu0 0
      %2146 = vmatprep.subr.bf16.mxu0 0
      %2147 = vmatpush1.bf16.xpose.msra.mxu0 0
      %2148 = vmatprep.subr.bf16.mxu0 0
      %2149 = vmatpush1.bf16.xpose.msra.mxu0 0
      %2150 = vmatprep.subr.bf16.mxu0 0
      %2151 = vmatpush1.bf16.xpose.msra.mxu0 0
      %2152 = vmatprep.subr.bf16.mxu0 0
      %2153 = vmatpush1.bf16.xpose.msra.mxu0 0
      %2154 = vmatprep.subr.bf16.mxu0 0
      %2155 = vmatpush1.bf16.xpose.msra.mxu0 0
      %2156 = vmatprep.subr.bf16.mxu0 0
      %2157 = vmatpush1.bf16.xpose.msra.mxu0 0
      %2158 = vmatprep.subr.bf16.mxu0 0
      %2159 = vmatpush1.bf16.xpose.msra.mxu0 0
      %2160 = vmatprep.subr.bf16.mxu0 0
      %2161 = vmatpush1.bf16.xpose.msra.mxu0 0
      %2162 = vmatprep.mubr.bf16.mxu0 0
      %2163 = vmatmul.mubr.bf16.gmra.mrb[0].mxu0 %v2125
      %v2164 = vpop.f32.mrb[0].mxu0
      %v2165 = vadd.f32 0.0, %v2164
      %v2166 = vpop.f32.mrb[0].mxu0
      %v2167 = vpop.f32.mrb[0].mxu0
      %v2168 = vpop.f32.mrb[0].mxu0
      %2169 = vdwg.mxu0
      %v2171 = vsel %vm976, %v1772, 0
      %v2174 = vsel %vm976, %v2076, 0
      %2176 = vmatprep.subr.bf16.mxu0 0
      %2177 = vmatpush1.bf16.xpose.msra.mxu0 %v2174
      %2178 = vmatprep.subr.bf16.mxu0 0
      %2179 = vmatpush1.bf16.xpose.msra.mxu0 0
      %2180 = vmatprep.subr.bf16.mxu0 0
      %2181 = vmatpush1.bf16.xpose.msra.mxu0 0
      %2182 = vmatprep.subr.bf16.mxu0 0
      %2183 = vmatpush1.bf16.xpose.msra.mxu0 0
      %2184 = vmatprep.subr.bf16.mxu0 0
      %2185 = vmatpush1.bf16.xpose.msra.mxu0 0
      %2186 = vmatprep.subr.bf16.mxu0 0
      %2187 = vmatpush1.bf16.xpose.msra.mxu0 0
      %2188 = vmatprep.subr.bf16.mxu0 0
      %2189 = vmatpush1.bf16.xpose.msra.mxu0 0
      %2190 = vmatprep.subr.bf16.mxu0 0
      %2191 = vmatpush1.bf16.xpose.msra.mxu0 0
      %2192 = vmatprep.subr.bf16.mxu0 0
      %2193 = vmatpush1.bf16.xpose.msra.mxu0 0
      %2194 = vmatprep.subr.bf16.mxu0 0
      %2195 = vmatpush1.bf16.xpose.msra.mxu0 0
      %2196 = vmatprep.subr.bf16.mxu0 0
      %2197 = vmatpush1.bf16.xpose.msra.mxu0 0
      %2198 = vmatprep.subr.bf16.mxu0 0
      %2199 = vmatpush1.bf16.xpose.msra.mxu0 0
      %2200 = vmatprep.subr.bf16.mxu0 0
      %2201 = vmatpush1.bf16.xpose.msra.mxu0 0
      %2202 = vmatprep.subr.bf16.mxu0 0
      %2203 = vmatpush1.bf16.xpose.msra.mxu0 0
      %2204 = vmatprep.subr.bf16.mxu0 0
      %2205 = vmatpush1.bf16.xpose.msra.mxu0 0
      %2206 = vmatprep.subr.bf16.mxu0 0
      %2207 = vmatpush1.bf16.xpose.msra.mxu0 0
      %2208 = vmatprep.mubr.bf16.mxu0 0
      %2209 = vmatmul.mubr.bf16.gmra.mrb[0].mxu0 %v2171
      %v2210 = vpop.f32.mrb[0].mxu0
      %v2211 = vadd.f32 0.0, %v2210
      %v2212 = vpop.f32.mrb[0].mxu0
      %v2213 = vpop.f32.mrb[0].mxu0
      %v2214 = vpop.f32.mrb[0].mxu0
      %2215 = vdwg.mxu0
      %v2217 = vsel %vm976, %v1773, 0
      %v2220 = vsel %vm976, %v2077, 0
      %2222 = vmatprep.subr.bf16.mxu0 0
      %2223 = vmatpush1.bf16.xpose.msra.mxu0 %v2220
      %2224 = vmatprep.subr.bf16.mxu0 0
      %2225 = vmatpush1.bf16.xpose.msra.mxu0 0
      %2226 = vmatprep.subr.bf16.mxu0 0
      %2227 = vmatpush1.bf16.xpose.msra.mxu0 0
      %2228 = vmatprep.subr.bf16.mxu0 0
      %2229 = vmatpush1.bf16.xpose.msra.mxu0 0
      %2230 = vmatprep.subr.bf16.mxu0 0
      %2231 = vmatpush1.bf16.xpose.msra.mxu0 0
      %2232 = vmatprep.subr.bf16.mxu0 0
      %2233 = vmatpush1.bf16.xpose.msra.mxu0 0
      %2234 = vmatprep.subr.bf16.mxu0 0
      %2235 = vmatpush1.bf16.xpose.msra.mxu0 0
      %2236 = vmatprep.subr.bf16.mxu0 0
      %2237 = vmatpush1.bf16.xpose.msra.mxu0 0
      %2238 = vmatprep.subr.bf16.mxu0 0
      %2239 = vmatpush1.bf16.xpose.msra.mxu0 0
      %2240 = vmatprep.subr.bf16.mxu0 0
      %2241 = vmatpush1.bf16.xpose.msra.mxu0 0
      %2242 = vmatprep.subr.bf16.mxu0 0
      %2243 = vmatpush1.bf16.xpose.msra.mxu0 0
      %2244 = vmatprep.subr.bf16.mxu0 0
      %2245 = vmatpush1.bf16.xpose.msra.mxu0 0
      %2246 = vmatprep.subr.bf16.mxu0 0
      %2247 = vmatpush1.bf16.xpose.msra.mxu0 0
      %2248 = vmatprep.subr.bf16.mxu0 0
      %2249 = vmatpush1.bf16.xpose.msra.mxu0 0
      %2250 = vmatprep.subr.bf16.mxu0 0
      %2251 = vmatpush1.bf16.xpose.msra.mxu0 0
      %2252 = vmatprep.subr.bf16.mxu0 0
      %2253 = vmatpush1.bf16.xpose.msra.mxu0 0
      %2254 = vmatprep.mubr.bf16.mxu0 0
      %2255 = vmatmul.mubr.bf16.gmra.mrb[0].mxu0 %v2217
      %v2256 = vpop.f32.mrb[0].mxu0
      %v2257 = vadd.f32 0.0, %v2256
      %v2258 = vpop.f32.mrb[0].mxu0
      %v2259 = vpop.f32.mrb[0].mxu0
      %v2260 = vpop.f32.mrb[0].mxu0
      %2261 = vdwg.mxu0
      %2262 = vxpose.xlu0.b32.start [1/16] %v2119, 128
      %2263 = vxpose.xlu0.b32.cont [2/16] %v2165, 128
      %2264 = vxpose.xlu0.b32.cont [3/16] %v2211, 128
      %2265 = vxpose.xlu0.b32.cont [4/16] %v2257, 128
      %2266 = vxpose.xlu0.b32.cont [5/16] 0.0, 128
      %2267 = vxpose.xlu0.b32.cont [6/16] 0.0, 128
      %2268 = vxpose.xlu0.b32.cont [7/16] 0.0, 128
      %2269 = vxpose.xlu0.b32.cont [8/16] 0.0, 128
      %2270 = vxpose.xlu0.b32.cont [9/16] 0.0, 128
      %2271 = vxpose.xlu0.b32.cont [10/16] 0.0, 128
      %2272 = vxpose.xlu0.b32.cont [11/16] 0.0, 128
      %2273 = vxpose.xlu0.b32.cont [12/16] 0.0, 128
      %2274 = vxpose.xlu0.b32.cont [13/16] 0.0, 128
      %2275 = vxpose.xlu0.b32.cont [14/16] 0.0, 128
      %2276 = vxpose.xlu0.b32.cont [15/16] 0.0, 128
      %2277 = vxpose.xlu0.b32.end [16/16] 0.0, 128
      %v2278 = vpop.trf.xlu0
      %v2279 = vpop.trf.xlu0
      %v2280 = vpop.trf.xlu0
      %v2281 = vpop.trf.xlu0
      %v2282 = vpop.trf.xlu0
      %v2283 = vpop.trf.xlu0
      %v2284 = vpop.trf.xlu0
      %v2285 = vpop.trf.xlu0
      %v2286 = vpop.trf.xlu0
      %v2287 = vpop.trf.xlu0
      %v2288 = vpop.trf.xlu0
      %v2289 = vpop.trf.xlu0
      %v2290 = vpop.trf.xlu0
      %v2291 = vpop.trf.xlu0
      %v2292 = vpop.trf.xlu0
      %v2293 = vpop.trf.xlu0
      %v2294 = vpack.c.bf16 %v2278, %v2278
      %s2295 = scalar_lea.vmem %s9, 16
      %v2296 = vld [vmem:[%s2295] sm:$0xf]
      %v2297 = vld [vmem:[%s2295 + $0x4] sm:$0xf]
      %v2298 = vld [vmem:[%s2295 + $0x8] sm:$0xf]
      %v2299 = vld [vmem:[%s2295 + $0xc] sm:$0xf]
      %v2300 = vlaneseq
      %v2301 = vshrl.u32 %v2300, 7
      %v2302 = vsub.s32 1, %v2301
      %v2303 = vrot.slane %v1664, %v2302
      %v2308 = vunpack.c.l.b16 %v2296
      %v2309 = vunpack.c.l.b16 %v2297
      %v2310 = vunpack.c.l.b16 %v2298
      %v2311 = vunpack.c.l.b16 %v2299
      %v2312 = vpack.c.b16 %v2309, %v2308
      %v2313 = vpack.c.b16 %v2311, %v2310
      %v2317 = vsel %vm872, %v2294, 0
      %2319 = vmatprep.subr.bf16.mxu0 0
      %2320 = vmatpush1.bf16.msra.mxu0 %v2312
      %2321 = vmatprep.subr.bf16.mxu0 0
      %2322 = vmatpush1.bf16.msra.mxu0 %v2313
      %2323 = vmatprep.subr.bf16.mxu0 0
      %2324 = vmatpush1.bf16.msra.mxu0 0
      %2325 = vmatprep.subr.bf16.mxu0 0
      %2326 = vmatpush1.bf16.msra.mxu0 0
      %2327 = vmatprep.subr.bf16.mxu0 0
      %2328 = vmatpush1.bf16.msra.mxu0 0
      %2329 = vmatprep.subr.bf16.mxu0 0
      %2330 = vmatpush1.bf16.msra.mxu0 0
      %2331 = vmatprep.subr.bf16.mxu0 0
      %2332 = vmatpush1.bf16.msra.mxu0 0
      %2333 = vmatprep.subr.bf16.mxu0 0
      %2334 = vmatpush1.bf16.msra.mxu0 0
      %2335 = vmatprep.subr.bf16.mxu0 0
      %2336 = vmatpush1.bf16.msra.mxu0 0
      %2337 = vmatprep.subr.bf16.mxu0 0
      %2338 = vmatpush1.bf16.msra.mxu0 0
      %2339 = vmatprep.subr.bf16.mxu0 0
      %2340 = vmatpush1.bf16.msra.mxu0 0
      %2341 = vmatprep.subr.bf16.mxu0 0
      %2342 = vmatpush1.bf16.msra.mxu0 0
      %2343 = vmatprep.subr.bf16.mxu0 0
      %2344 = vmatpush1.bf16.msra.mxu0 0
      %2345 = vmatprep.subr.bf16.mxu0 0
      %2346 = vmatpush1.bf16.msra.mxu0 0
      %2347 = vmatprep.subr.bf16.mxu0 0
      %2348 = vmatpush1.bf16.msra.mxu0 0
      %2349 = vmatprep.subr.bf16.mxu0 0
      %2350 = vmatpush1.bf16.msra.mxu0 0
      %2351 = vmatprep.mubr.bf16.mxu0 0
      %2352 = vmatmul.mubr.bf16.gmra.mrb[0].mxu0 %v2317
      %v2353 = vpop.f32.mrb[0].mxu0
      %v2354 = vadd.f32 %v2303, %v2353
      %v2355 = vpop.f32.mrb[0].mxu0
      %v2356 = vpop.f32.mrb[0].mxu0
      %v2357 = vpop.f32.mrb[0].mxu0
      %2358 = vdwg.mxu0
      %v2359 = vpack.c.bf16 %v2354, %v2354
      %s2360 = scalar_lea.vmem %s10, 16
      %v2361 = vld [vmem:[%s2360] sm:$0xf]
      %v2362 = vld [vmem:[%s2360 + $0x4] sm:$0xf]
      %v2363 = vld [vmem:[%s2360 + $0x8] sm:$0xf]
      %v2364 = vld [vmem:[%s2360 + $0xc] sm:$0xf]
      %v2365 = vlaneseq
      %v2366 = vshrl.u32 %v2365, 7
      %v2367 = vsub.s32 2, %v2366
      %v2368 = vrot.slane %v1664, %v2367
      %v2373 = vunpack.c.l.b16 %v2361
      %v2374 = vunpack.c.l.b16 %v2362
      %v2375 = vunpack.c.l.b16 %v2363
      %v2376 = vunpack.c.l.b16 %v2364
      %v2377 = vpack.c.b16 %v2374, %v2373
      %v2378 = vpack.c.b16 %v2376, %v2375
      %v2382 = vsel %vm872, %v2359, 0
      %2384 = vmatprep.subr.bf16.mxu0 0
      %2385 = vmatpush1.bf16.msra.mxu0 %v2377
      %2386 = vmatprep.subr.bf16.mxu0 0
      %2387 = vmatpush1.bf16.msra.mxu0 %v2378
      %2388 = vmatprep.subr.bf16.mxu0 0
      %2389 = vmatpush1.bf16.msra.mxu0 0
      %2390 = vmatprep.subr.bf16.mxu0 0
      %2391 = vmatpush1.bf16.msra.mxu0 0
      %2392 = vmatprep.subr.bf16.mxu0 0
      %2393 = vmatpush1.bf16.msra.mxu0 0
      %2394 = vmatprep.subr.bf16.mxu0 0
      %2395 = vmatpush1.bf16.msra.mxu0 0
      %2396 = vmatprep.subr.bf16.mxu0 0
      %2397 = vmatpush1.bf16.msra.mxu0 0
      %2398 = vmatprep.subr.bf16.mxu0 0
      %2399 = vmatpush1.bf16.msra.mxu0 0
      %2400 = vmatprep.subr.bf16.mxu0 0
      %2401 = vmatpush1.bf16.msra.mxu0 0
      %2402 = vmatprep.subr.bf16.mxu0 0
      %2403 = vmatpush1.bf16.msra.mxu0 0
      %2404 = vmatprep.subr.bf16.mxu0 0
      %2405 = vmatpush1.bf16.msra.mxu0 0
      %2406 = vmatprep.subr.bf16.mxu0 0
      %2407 = vmatpush1.bf16.msra.mxu0 0
      %2408 = vmatprep.subr.bf16.mxu0 0
      %2409 = vmatpush1.bf16.msra.mxu0 0
      %2410 = vmatprep.subr.bf16.mxu0 0
      %2411 = vmatpush1.bf16.msra.mxu0 0
      %2412 = vmatprep.subr.bf16.mxu0 0
      %2413 = vmatpush1.bf16.msra.mxu0 0
      %2414 = vmatprep.subr.bf16.mxu0 0
      %2415 = vmatpush1.bf16.msra.mxu0 0
      %2416 = vmatprep.mubr.bf16.mxu0 0
      %2417 = vmatmul.mubr.bf16.gmra.mrb[0].mxu0 %v2382
      %v2418 = vpop.f32.mrb[0].mxu0
      %v2419 = vadd.f32 %v2368, %v2418
      %v2420 = vpop.f32.mrb[0].mxu0
      %v2421 = vpop.f32.mrb[0].mxu0
      %v2422 = vpop.f32.mrb[0].mxu0
      %2423 = vdwg.mxu0
      %v2424 = vmul.f32 %v2419, %v2419
      %v2425 = vmul.f32 %v2419, %v2424
      %v2426 = vmul.f32 %v2425, 0.044715
      %v2427 = vadd.f32 %v2419, %v2426
      %v2428 = vmul.f32 %v2427, 0.7978846
      %v2429 = vtanh.pop %v2428
      %v2430 = vadd.f32 %v2429, 1.0
      %v2431 = vmul.f32 %v2430, 0.5
      %v2432 = vmul.f32 %v2419, %v2431
      %v2433 = vxor.u32 %v1664, 2147483648
      %v2434 = vmul.f32 %v2433, 1.442695
      %v2435 = vpow.pop %v2434
      %v2436 = vadd.f32 %v2435, 1.0
      %v2437 = vrcp.pop %v2436
      %v2438 = vmul.f32 1.0, %v2437
      %v2440 = vrot.slane %v2438, 5
      %s2441 = vtos %v2440
      %v2442 = vstv %s2441
      %v2444 = vmul.f32 %v2442, %v2432
      %v2445 = vsub.f32 1.0, %v2438
      %v2447 = vrot.slane %v2445, 5
      %s2448 = vtos %v2447
      %v2449 = vstv %s2448
      %v2451 = vmul.f32 %v2449, %v1662
      %v2452 = vadd.f32 %v2444, %v2451
      %v2453 = vsel %vm872, %v2452, 0.0
      %2454 = vadd.xlane.f32.xlu0 %v2453
      %v2455 = vpop.xlane.xlu0 %2454
      %v2456 = vmul.f32 %v2455, %v1642
      %v2457 = vsub.f32 %v2452, %v2456
      %v2458 = vmul.f32 %v2457, %v2457
      %v2459 = vsel %vm872, %v2458, 0.0
      %2460 = vadd.xlane.f32.xlu0 %v2459
      %v2461 = vpop.xlane.xlu0 %2460
      %v2462 = vmul.f32 %v2461, %v1642
      %v2463 = vadd.f32 %v2462, 1e-05
      %v2464 = vrsqrt.pop %v2463
      %v2465 = vmul.f32 %v2457, %v2464
      %v2466 = vlaneseq
      %v2467 = vshrl.u32 %v2466, 7
      %v2468 = vsub.s32 3, %v2467
      %v2469 = vrot.slane %v1664, %v2468
      %v2470 = vmul.f32 %v2465, %v2469
      %v2471 = vlaneseq
      %v2472 = vshrl.u32 %v2471, 7
      %v2473 = vsub.s32 4, %v2472
      %v2474 = vrot.slane %v1664, %v2473
      %v2475 = vadd.f32 %v2470, %v2474
      %v2476 = vld [vmem:[%s827] sm:$0xff]
      %v2477 = vsub.f32 1.0, %v2476
      %2479 = vset.pattern.permute.xlu0 0
      %2480 = vperm.xlu0 %2479, %v2477
      %v2481 = vpop.permute.xlu0 %2480
      %v2483 = vmul.f32 %v2475, %v2481
      %v2484 = vpack.c.bf16 %v2483, %v2483
      %v2485 = vld [vmem:[%s823] sm:$0x1]
      %v2486 = vmul.f32 %v2485, -1e+09
      %v2487 = vlaneseq
      %v2488 = vshrl.u32 %v2487, 7
      %v2489 = vlaneseq
      %v2490 = vand.u32 %v2489, 127
      %vm2491 = vcmp.gt.s32.totalorder %v2490, %v2488
      %v2492 = vsel %vm2491, 1, 0
      %v2493 = vcvt.s32.f32 %v2492
      %v2494 = vmul.f32 %v2493, -1e+09
      %v2495 = vld [vmem:[%s831] sm:$0xff]
      %v2496 = vld [vmem:[%s19] sm:$0xff]
      %v2497 = vld [vmem:[%s19 + $0x8] sm:$0xff]
      %v2498 = vpack.c.bf16 %v2495, %v2495
      %v2499 = vld [vmem:[%s12] sm:$0xf]
      %v2500 = vld [vmem:[%s12 + $0x4] sm:$0xf]
      %v2501 = vld [vmem:[%s12 + $0x8] sm:$0xf]
      %v2502 = vld [vmem:[%s12 + $0xc] sm:$0xf]
      %v2503 = vlaneseq
      %v2504 = vshrl.u32 %v2503, 7
      %v2505 = vsub.s32 0, %v2504
      %v2506 = vrot.slane %v2496, %v2505
      %v2511 = vunpack.c.l.b16 %v2499
      %v2512 = vunpack.c.l.b16 %v2500
      %v2513 = vunpack.c.l.b16 %v2501
      %v2514 = vunpack.c.l.b16 %v2502
      %v2515 = vpack.c.b16 %v2512, %v2511
      %v2516 = vpack.c.b16 %v2514, %v2513
      %v2520 = vsel %vm872, %v2498, 0
      %2522 = vmatprep.subr.bf16.mxu0 0
      %2523 = vmatpush1.bf16.msra.mxu0 %v2515
      %2524 = vmatprep.subr.bf16.mxu0 0
      %2525 = vmatpush1.bf16.msra.mxu0 %v2516
      %2526 = vmatprep.subr.bf16.mxu0 0
      %2527 = vmatpush1.bf16.msra.mxu0 0
      %2528 = vmatprep.subr.bf16.mxu0 0
      %2529 = vmatpush1.bf16.msra.mxu0 0
      %2530 = vmatprep.subr.bf16.mxu0 0
      %2531 = vmatpush1.bf16.msra.mxu0 0
      %2532 = vmatprep.subr.bf16.mxu0 0
      %2533 = vmatpush1.bf16.msra.mxu0 0
      %2534 = vmatprep.subr.bf16.mxu0 0
      %2535 = vmatpush1.bf16.msra.mxu0 0
      %2536 = vmatprep.subr.bf16.mxu0 0
      %2537 = vmatpush1.bf16.msra.mxu0 0
      %2538 = vmatprep.subr.bf16.mxu0 0
      %2539 = vmatpush1.bf16.msra.mxu0 0
      %2540 = vmatprep.subr.bf16.mxu0 0
      %2541 = vmatpush1.bf16.msra.mxu0 0
      %2542 = vmatprep.subr.bf16.mxu0 0
      %2543 = vmatpush1.bf16.msra.mxu0 0
      %2544 = vmatprep.subr.bf16.mxu0 0
      %2545 = vmatpush1.bf16.msra.mxu0 0
      %2546 = vmatprep.subr.bf16.mxu0 0
      %2547 = vmatpush1.bf16.msra.mxu0 0
      %2548 = vmatprep.subr.bf16.mxu0 0
      %2549 = vmatpush1.bf16.msra.mxu0 0
      %2550 = vmatprep.subr.bf16.mxu0 0
      %2551 = vmatpush1.bf16.msra.mxu0 0
      %2552 = vmatprep.subr.bf16.mxu0 0
      %2553 = vmatpush1.bf16.msra.mxu0 0
      %2554 = vmatprep.mubr.bf16.mxu0 0
      %2555 = vmatmul.mubr.bf16.gmra.mrb[0].mxu0 %v2520
      %v2556 = vpop.f32.mrb[0].mxu0
      %v2557 = vadd.f32 %v2506, %v2556
      %v2558 = vpop.f32.mrb[0].mxu0
      %v2559 = vpop.f32.mrb[0].mxu0
      %v2560 = vpop.f32.mrb[0].mxu0
      %2561 = vdwg.mxu0
      %2562 = vxpose.xlu0.b32.start [1/16] %v2557, 128
      %2563 = vxpose.xlu0.b32.cont [2/16] 0.0, 128
      %2564 = vxpose.xlu0.b32.cont [3/16] 0.0, 128
      %2565 = vxpose.xlu0.b32.cont [4/16] 0.0, 128
      %2566 = vxpose.xlu0.b32.cont [5/16] 0.0, 128
      %2567 = vxpose.xlu0.b32.cont [6/16] 0.0, 128
      %2568 = vxpose.xlu0.b32.cont [7/16] 0.0, 128
      %2569 = vxpose.xlu0.b32.cont [8/16] 0.0, 128
      %2570 = vxpose.xlu0.b32.cont [9/16] 0.0, 128
      %2571 = vxpose.xlu0.b32.cont [10/16] 0.0, 128
      %2572 = vxpose.xlu0.b32.cont [11/16] 0.0, 128
      %2573 = vxpose.xlu0.b32.cont [12/16] 0.0, 128
      %2574 = vxpose.xlu0.b32.cont [13/16] 0.0, 128
      %2575 = vxpose.xlu0.b32.cont [14/16] 0.0, 128
      %2576 = vxpose.xlu0.b32.cont [15/16] 0.0, 128
      %2577 = vxpose.xlu0.b32.end [16/16] 0.0, 128
      %v2578 = vpop.trf.xlu0
      %v2579 = vpop.trf.xlu0
      %v2580 = vpop.trf.xlu0
      %v2581 = vpop.trf.xlu0
      %v2582 = vpop.trf.xlu0
      %v2583 = vpop.trf.xlu0
      %v2584 = vpop.trf.xlu0
      %v2585 = vpop.trf.xlu0
      %v2586 = vpop.trf.xlu0
      %v2587 = vpop.trf.xlu0
      %v2588 = vpop.trf.xlu0
      %v2589 = vpop.trf.xlu0
      %v2590 = vpop.trf.xlu0
      %v2591 = vpop.trf.xlu0
      %v2592 = vpop.trf.xlu0
      %v2593 = vpop.trf.xlu0
      %v2594 = vpack.c.bf16 %v2578, %v2578
      %v2595 = vpack.c.bf16 %v2579, %v2579
      %v2596 = vpack.c.bf16 %v2580, %v2580
      %v2597 = vpack.c.bf16 %v2581, %v2581
      %v2598 = vpack.c.bf16 %v2582, %v2582
      %v2599 = vpack.c.bf16 %v2583, %v2583
      %v2600 = vpack.c.bf16 %v2584, %v2584
      %v2601 = vpack.c.bf16 %v2585, %v2585
      %v2602 = vpack.c.bf16 %v2586, %v2586
      %v2603 = vpack.c.bf16 %v2587, %v2587
      %v2604 = vpack.c.bf16 %v2588, %v2588
      %v2605 = vpack.c.bf16 %v2589, %v2589
      %2606 = vxpose.xlu0.c.b16.start [1/8] %v2594, 128
      %2607 = vxpose.xlu0.c.b16.cont [2/8] 0, 128
      %2608 = vxpose.xlu0.c.b16.cont [3/8] 0, 128
      %2609 = vxpose.xlu0.c.b16.cont [4/8] 0, 128
      %2610 = vxpose.xlu0.c.b16.cont [5/8] 0, 128
      %2611 = vxpose.xlu0.c.b16.cont [6/8] 0, 128
      %2612 = vxpose.xlu0.c.b16.cont [7/8] 0, 128
      %2613 = vxpose.xlu0.c.b16.end [8/8] 0, 128
      %v2614 = vpop.trf.xlu0
      %v2615 = vpop.trf.xlu0
      %v2616 = vpop.trf.xlu0
      %v2617 = vpop.trf.xlu0
      %v2618 = vpop.trf.xlu0
      %v2619 = vpop.trf.xlu0
      %v2620 = vpop.trf.xlu0
      %v2621 = vpop.trf.xlu0
      %v2623 = vsel %vm976, %v2614, 0
      %v2626 = vsel %vm980, %v2598, 0
      %2628 = vmatprep.subr.bf16.mxu0 0
      %2629 = vmatpush1.bf16.msra.mxu0 %v2626
      %2630 = vmatprep.subr.bf16.mxu0 0
      %2631 = vmatpush1.bf16.msra.mxu0 0
      %2632 = vmatprep.subr.bf16.mxu0 0
      %2633 = vmatpush1.bf16.msra.mxu0 0
      %2634 = vmatprep.subr.bf16.mxu0 0
      %2635 = vmatpush1.bf16.msra.mxu0 0
      %2636 = vmatprep.subr.bf16.mxu0 0
      %2637 = vmatpush1.bf16.msra.mxu0 0
      %2638 = vmatprep.subr.bf16.mxu0 0
      %2639 = vmatpush1.bf16.msra.mxu0 0
      %2640 = vmatprep.subr.bf16.mxu0 0
      %2641 = vmatpush1.bf16.msra.mxu0 0
      %2642 = vmatprep.subr.bf16.mxu0 0
      %2643 = vmatpush1.bf16.msra.mxu0 0
      %2644 = vmatprep.subr.bf16.mxu0 0
      %2645 = vmatpush1.bf16.msra.mxu0 0
      %2646 = vmatprep.subr.bf16.mxu0 0
      %2647 = vmatpush1.bf16.msra.mxu0 0
      %2648 = vmatprep.subr.bf16.mxu0 0
      %2649 = vmatpush1.bf16.msra.mxu0 0
      %2650 = vmatprep.subr.bf16.mxu0 0
      %2651 = vmatpush1.bf16.msra.mxu0 0
      %2652 = vmatprep.subr.bf16.mxu0 0
      %2653 = vmatpush1.bf16.msra.mxu0 0
      %2654 = vmatprep.subr.bf16.mxu0 0
      %2655 = vmatpush1.bf16.msra.mxu0 0
      %2656 = vmatprep.subr.bf16.mxu0 0
      %2657 = vmatpush1.bf16.msra.mxu0 0
      %2658 = vmatprep.subr.bf16.mxu0 0
      %2659 = vmatpush1.bf16.msra.mxu0 0
      %2660 = vmatprep.mubr.bf16.mxu0 0
      %2661 = vmatmul.mubr.bf16.gmra.mrb[0].mxu0 %v2623
      %v2662 = vpop.f32.mrb[0].mxu0
      %v2663 = vadd.f32 0.0, %v2662
      %v2664 = vpop.f32.mrb[0].mxu0
      %v2665 = vpop.f32.mrb[0].mxu0
      %v2666 = vpop.f32.mrb[0].mxu0
      %2667 = vdwg.mxu0
      %2668 = vxpose.xlu0.c.b16.start [1/8] %v2595, 128
      %2669 = vxpose.xlu0.c.b16.cont [2/8] 0, 128
      %2670 = vxpose.xlu0.c.b16.cont [3/8] 0, 128
      %2671 = vxpose.xlu0.c.b16.cont [4/8] 0, 128
      %2672 = vxpose.xlu0.c.b16.cont [5/8] 0, 128
      %2673 = vxpose.xlu0.c.b16.cont [6/8] 0, 128
      %2674 = vxpose.xlu0.c.b16.cont [7/8] 0, 128
      %2675 = vxpose.xlu0.c.b16.end [8/8] 0, 128
      %v2676 = vpop.trf.xlu0
      %v2677 = vpop.trf.xlu0
      %v2678 = vpop.trf.xlu0
      %v2679 = vpop.trf.xlu0
      %v2680 = vpop.trf.xlu0
      %v2681 = vpop.trf.xlu0
      %v2682 = vpop.trf.xlu0
      %v2683 = vpop.trf.xlu0
      %v2685 = vsel %vm976, %v2676, 0
      %v2688 = vsel %vm980, %v2599, 0
      %2690 = vmatprep.subr.bf16.mxu0 0
      %2691 = vmatpush1.bf16.msra.mxu0 %v2688
      %2692 = vmatprep.subr.bf16.mxu0 0
      %2693 = vmatpush1.bf16.msra.mxu0 0
      %2694 = vmatprep.subr.bf16.mxu0 0
      %2695 = vmatpush1.bf16.msra.mxu0 0
      %2696 = vmatprep.subr.bf16.mxu0 0
      %2697 = vmatpush1.bf16.msra.mxu0 0
      %2698 = vmatprep.subr.bf16.mxu0 0
      %2699 = vmatpush1.bf16.msra.mxu0 0
      %2700 = vmatprep.subr.bf16.mxu0 0
      %2701 = vmatpush1.bf16.msra.mxu0 0
      %2702 = vmatprep.subr.bf16.mxu0 0
      %2703 = vmatpush1.bf16.msra.mxu0 0
      %2704 = vmatprep.subr.bf16.mxu0 0
      %2705 = vmatpush1.bf16.msra.mxu0 0
      %2706 = vmatprep.subr.bf16.mxu0 0
      %2707 = vmatpush1.bf16.msra.mxu0 0
      %2708 = vmatprep.subr.bf16.mxu0 0
      %2709 = vmatpush1.bf16.msra.mxu0 0
      %2710 = vmatprep.subr.bf16.mxu0 0
      %2711 = vmatpush1.bf16.msra.mxu0 0
      %2712 = vmatprep.subr.bf16.mxu0 0
      %2713 = vmatpush1.bf16.msra.mxu0 0
      %2714 = vmatprep.subr.bf16.mxu0 0
      %2715 = vmatpush1.bf16.msra.mxu0 0
      %2716 = vmatprep.subr.bf16.mxu0 0
      %2717 = vmatpush1.bf16.msra.mxu0 0
      %2718 = vmatprep.subr.bf16.mxu0 0
      %2719 = vmatpush1.bf16.msra.mxu0 0
      %2720 = vmatprep.subr.bf16.mxu0 0
      %2721 = vmatpush1.bf16.msra.mxu0 0
      %2722 = vmatprep.mubr.bf16.mxu0 0
      %2723 = vmatmul.mubr.bf16.gmra.mrb[0].mxu0 %v2685
      %v2724 = vpop.f32.mrb[0].mxu0
      %v2725 = vadd.f32 0.0, %v2724
      %v2726 = vpop.f32.mrb[0].mxu0
      %v2727 = vpop.f32.mrb[0].mxu0
      %v2728 = vpop.f32.mrb[0].mxu0
      %2729 = vdwg.mxu0
      %2730 = vxpose.xlu0.c.b16.start [1/8] %v2596, 128
      %2731 = vxpose.xlu0.c.b16.cont [2/8] 0, 128
      %2732 = vxpose.xlu0.c.b16.cont [3/8] 0, 128
      %2733 = vxpose.xlu0.c.b16.cont [4/8] 0, 128
      %2734 = vxpose.xlu0.c.b16.cont [5/8] 0, 128
      %2735 = vxpose.xlu0.c.b16.cont [6/8] 0, 128
      %2736 = vxpose.xlu0.c.b16.cont [7/8] 0, 128
      %2737 = vxpose.xlu0.c.b16.end [8/8] 0, 128
      %v2738 = vpop.trf.xlu0
      %v2739 = vpop.trf.xlu0
      %v2740 = vpop.trf.xlu0
      %v2741 = vpop.trf.xlu0
      %v2742 = vpop.trf.xlu0
      %v2743 = vpop.trf.xlu0
      %v2744 = vpop.trf.xlu0
      %v2745 = vpop.trf.xlu0
      %v2747 = vsel %vm976, %v2738, 0
      %v2750 = vsel %vm980, %v2600, 0
      %2752 = vmatprep.subr.bf16.mxu0 0
      %2753 = vmatpush1.bf16.msra.mxu0 %v2750
      %2754 = vmatprep.subr.bf16.mxu0 0
      %2755 = vmatpush1.bf16.msra.mxu0 0
      %2756 = vmatprep.subr.bf16.mxu0 0
      %2757 = vmatpush1.bf16.msra.mxu0 0
      %2758 = vmatprep.subr.bf16.mxu0 0
      %2759 = vmatpush1.bf16.msra.mxu0 0
      %2760 = vmatprep.subr.bf16.mxu0 0
      %2761 = vmatpush1.bf16.msra.mxu0 0
      %2762 = vmatprep.subr.bf16.mxu0 0
      %2763 = vmatpush1.bf16.msra.mxu0 0
      %2764 = vmatprep.subr.bf16.mxu0 0
      %2765 = vmatpush1.bf16.msra.mxu0 0
      %2766 = vmatprep.subr.bf16.mxu0 0
      %2767 = vmatpush1.bf16.msra.mxu0 0
      %2768 = vmatprep.subr.bf16.mxu0 0
      %2769 = vmatpush1.bf16.msra.mxu0 0
      %2770 = vmatprep.subr.bf16.mxu0 0
      %2771 = vmatpush1.bf16.msra.mxu0 0
      %2772 = vmatprep.subr.bf16.mxu0 0
      %2773 = vmatpush1.bf16.msra.mxu0 0
      %2774 = vmatprep.subr.bf16.mxu0 0
      %2775 = vmatpush1.bf16.msra.mxu0 0
      %2776 = vmatprep.subr.bf16.mxu0 0
      %2777 = vmatpush1.bf16.msra.mxu0 0
      %2778 = vmatprep.subr.bf16.mxu0 0
      %2779 = vmatpush1.bf16.msra.mxu0 0
      %2780 = vmatprep.subr.bf16.mxu0 0
      %2781 = vmatpush1.bf16.msra.mxu0 0
      %2782 = vmatprep.subr.bf16.mxu0 0
      %2783 = vmatpush1.bf16.msra.mxu0 0
      %2784 = vmatprep.mubr.bf16.mxu0 0
      %2785 = vmatmul.mubr.bf16.gmra.mrb[0].mxu0 %v2747
      %v2786 = vpop.f32.mrb[0].mxu0
      %v2787 = vadd.f32 0.0, %v2786
      %v2788 = vpop.f32.mrb[0].mxu0
      %v2789 = vpop.f32.mrb[0].mxu0
      %v2790 = vpop.f32.mrb[0].mxu0
      %2791 = vdwg.mxu0
      %2792 = vxpose.xlu0.c.b16.start [1/8] %v2597, 128
      %2793 = vxpose.xlu0.c.b16.cont [2/8] 0, 128
      %2794 = vxpose.xlu0.c.b16.cont [3/8] 0, 128
      %2795 = vxpose.xlu0.c.b16.cont [4/8] 0, 128
      %2796 = vxpose.xlu0.c.b16.cont [5/8] 0, 128
      %2797 = vxpose.xlu0.c.b16.cont [6/8] 0, 128
      %2798 = vxpose.xlu0.c.b16.cont [7/8] 0, 128
      %2799 = vxpose.xlu0.c.b16.end [8/8] 0, 128
      %v2800 = vpop.trf.xlu0
      %v2801 = vpop.trf.xlu0
      %v2802 = vpop.trf.xlu0
      %v2803 = vpop.trf.xlu0
      %v2804 = vpop.trf.xlu0
      %v2805 = vpop.trf.xlu0
      %v2806 = vpop.trf.xlu0
      %v2807 = vpop.trf.xlu0
      %v2809 = vsel %vm976, %v2800, 0
      %v2812 = vsel %vm980, %v2601, 0
      %2814 = vmatprep.subr.bf16.mxu0 0
      %2815 = vmatpush1.bf16.msra.mxu0 %v2812
      %2816 = vmatprep.subr.bf16.mxu0 0
      %2817 = vmatpush1.bf16.msra.mxu0 0
      %2818 = vmatprep.subr.bf16.mxu0 0
      %2819 = vmatpush1.bf16.msra.mxu0 0
      %2820 = vmatprep.subr.bf16.mxu0 0
      %2821 = vmatpush1.bf16.msra.mxu0 0
      %2822 = vmatprep.subr.bf16.mxu0 0
      %2823 = vmatpush1.bf16.msra.mxu0 0
      %2824 = vmatprep.subr.bf16.mxu0 0
      %2825 = vmatpush1.bf16.msra.mxu0 0
      %2826 = vmatprep.subr.bf16.mxu0 0
      %2827 = vmatpush1.bf16.msra.mxu0 0
      %2828 = vmatprep.subr.bf16.mxu0 0
      %2829 = vmatpush1.bf16.msra.mxu0 0
      %2830 = vmatprep.subr.bf16.mxu0 0
      %2831 = vmatpush1.bf16.msra.mxu0 0
      %2832 = vmatprep.subr.bf16.mxu0 0
      %2833 = vmatpush1.bf16.msra.mxu0 0
      %2834 = vmatprep.subr.bf16.mxu0 0
      %2835 = vmatpush1.bf16.msra.mxu0 0
      %2836 = vmatprep.subr.bf16.mxu0 0
      %2837 = vmatpush1.bf16.msra.mxu0 0
      %2838 = vmatprep.subr.bf16.mxu0 0
      %2839 = vmatpush1.bf16.msra.mxu0 0
      %2840 = vmatprep.subr.bf16.mxu0 0
      %2841 = vmatpush1.bf16.msra.mxu0 0
      %2842 = vmatprep.subr.bf16.mxu0 0
      %2843 = vmatpush1.bf16.msra.mxu0 0
      %2844 = vmatprep.subr.bf16.mxu0 0
      %2845 = vmatpush1.bf16.msra.mxu0 0
      %2846 = vmatprep.mubr.bf16.mxu0 0
      %2847 = vmatmul.mubr.bf16.gmra.mrb[0].mxu0 %v2809
      %v2848 = vpop.f32.mrb[0].mxu0
      %v2849 = vadd.f32 0.0, %v2848
      %v2850 = vpop.f32.mrb[0].mxu0
      %v2851 = vpop.f32.mrb[0].mxu0
      %v2852 = vpop.f32.mrb[0].mxu0
      %2853 = vdwg.mxu0
      %v2854 = vmul.f32 %v2663, 0.35355338
      %v2855 = vmul.f32 %v2725, 0.35355338
      %v2856 = vmul.f32 %v2787, 0.35355338
      %v2857 = vmul.f32 %v2849, 0.35355338
      %v2858 = vadd.f32 %v2854, %v2494
      %v2859 = vadd.f32 %v2855, %v2494
      %v2860 = vadd.f32 %v2856, %v2494
      %v2861 = vadd.f32 %v2857, %v2494
      %v2862 = vsel %vm976, %v2858, -inf
      %2863 = vmax.xlane.f32.xlu0 %v2862
      %v2864 = vpop.xlane.xlu0 %2863
      %v2865 = vsel %vm976, %v2859, -inf
      %2866 = vmax.xlane.f32.xlu0 %v2865
      %v2867 = vpop.xlane.xlu0 %2866
      %v2868 = vsel %vm976, %v2860, -inf
      %2869 = vmax.xlane.f32.xlu0 %v2868
      %v2870 = vpop.xlane.xlu0 %2869
      %v2871 = vsel %vm976, %v2861, -inf
      %2872 = vmax.xlane.f32.xlu0 %v2871
      %v2873 = vpop.xlane.xlu0 %2872
      %v2874 = vsub.f32 %v2858, %v2864
      %v2875 = vsub.f32 %v2859, %v2867
      %v2876 = vsub.f32 %v2860, %v2870
      %v2877 = vsub.f32 %v2861, %v2873
      %v2878 = vmul.f32 %v2874, 1.442695
      %v2879 = vpow.pop %v2878
      %v2880 = vmul.f32 %v2875, 1.442695
      %v2881 = vpow.pop %v2880
      %v2882 = vmul.f32 %v2876, 1.442695
      %v2883 = vpow.pop %v2882
      %v2884 = vmul.f32 %v2877, 1.442695
      %v2885 = vpow.pop %v2884
      %v2886 = vsel %vm976, %v2879, 0.0
      %2887 = vadd.xlane.f32.xlu0 %v2886
      %v2888 = vpop.xlane.xlu0 %2887
      %v2889 = vsel %vm976, %v2881, 0.0
      %2890 = vadd.xlane.f32.xlu0 %v2889
      %v2891 = vpop.xlane.xlu0 %2890
      %v2892 = vsel %vm976, %v2883, 0.0
      %2893 = vadd.xlane.f32.xlu0 %v2892
      %v2894 = vpop.xlane.xlu0 %2893
      %v2895 = vsel %vm976, %v2885, 0.0
      %2896 = vadd.xlane.f32.xlu0 %v2895
      %v2897 = vpop.xlane.xlu0 %2896
      %v2898 = vrcp.pop %v2888
      %v2899 = vmul.f32 %v2879, %v2898
      %v2900 = vrcp.pop %v2891
      %v2901 = vmul.f32 %v2881, %v2900
      %v2902 = vrcp.pop %v2894
      %v2903 = vmul.f32 %v2883, %v2902
      %v2904 = vrcp.pop %v2897
      %v2905 = vmul.f32 %v2885, %v2904
      %v2906 = vpack.c.bf16 %v2899, %v2899
      %v2907 = vpack.c.bf16 %v2901, %v2901
      %v2908 = vpack.c.bf16 %v2903, %v2903
      %v2909 = vpack.c.bf16 %v2905, %v2905
      %v2911 = vsel %vm976, %v2602, 0
      %v2914 = vsel %vm976, %v2906, 0
      %2916 = vmatprep.subr.bf16.mxu0 0
      %2917 = vmatpush1.bf16.xpose.msra.mxu0 %v2914
      %2918 = vmatprep.subr.bf16.mxu0 0
      %2919 = vmatpush1.bf16.xpose.msra.mxu0 0
      %2920 = vmatprep.subr.bf16.mxu0 0
      %2921 = vmatpush1.bf16.xpose.msra.mxu0 0
      %2922 = vmatprep.subr.bf16.mxu0 0
      %2923 = vmatpush1.bf16.xpose.msra.mxu0 0
      %2924 = vmatprep.subr.bf16.mxu0 0
      %2925 = vmatpush1.bf16.xpose.msra.mxu0 0
      %2926 = vmatprep.subr.bf16.mxu0 0
      %2927 = vmatpush1.bf16.xpose.msra.mxu0 0
      %2928 = vmatprep.subr.bf16.mxu0 0
      %2929 = vmatpush1.bf16.xpose.msra.mxu0 0
      %2930 = vmatprep.subr.bf16.mxu0 0
      %2931 = vmatpush1.bf16.xpose.msra.mxu0 0
      %2932 = vmatprep.subr.bf16.mxu0 0
      %2933 = vmatpush1.bf16.xpose.msra.mxu0 0
      %2934 = vmatprep.subr.bf16.mxu0 0
      %2935 = vmatpush1.bf16.xpose.msra.mxu0 0
      %2936 = vmatprep.subr.bf16.mxu0 0
      %2937 = vmatpush1.bf16.xpose.msra.mxu0 0
      %2938 = vmatprep.subr.bf16.mxu0 0
      %2939 = vmatpush1.bf16.xpose.msra.mxu0 0
      %2940 = vmatprep.subr.bf16.mxu0 0
      %2941 = vmatpush1.bf16.xpose.msra.mxu0 0
      %2942 = vmatprep.subr.bf16.mxu0 0
      %2943 = vmatpush1.bf16.xpose.msra.mxu0 0
      %2944 = vmatprep.subr.bf16.mxu0 0
      %2945 = vmatpush1.bf16.xpose.msra.mxu0 0
      %2946 = vmatprep.subr.bf16.mxu0 0
      %2947 = vmatpush1.bf16.xpose.msra.mxu0 0
      %2948 = vmatprep.mubr.bf16.mxu0 0
      %2949 = vmatmul.mubr.bf16.gmra.mrb[0].mxu0 %v2911
      %v2950 = vpop.f32.mrb[0].mxu0
      %v2951 = vadd.f32 0.0, %v2950
      %v2952 = vpop.f32.mrb[0].mxu0
      %v2953 = vpop.f32.mrb[0].mxu0
      %v2954 = vpop.f32.mrb[0].mxu0
      %2955 = vdwg.mxu0
      %v2957 = vsel %vm976, %v2603, 0
      %v2960 = vsel %vm976, %v2907, 0
      %2962 = vmatprep.subr.bf16.mxu0 0
      %2963 = vmatpush1.bf16.xpose.msra.mxu0 %v2960
      %2964 = vmatprep.subr.bf16.mxu0 0
      %2965 = vmatpush1.bf16.xpose.msra.mxu0 0
      %2966 = vmatprep.subr.bf16.mxu0 0
      %2967 = vmatpush1.bf16.xpose.msra.mxu0 0
      %2968 = vmatprep.subr.bf16.mxu0 0
      %2969 = vmatpush1.bf16.xpose.msra.mxu0 0
      %2970 = vmatprep.subr.bf16.mxu0 0
      %2971 = vmatpush1.bf16.xpose.msra.mxu0 0
      %2972 = vmatprep.subr.bf16.mxu0 0
      %2973 = vmatpush1.bf16.xpose.msra.mxu0 0
      %2974 = vmatprep.subr.bf16.mxu0 0
      %2975 = vmatpush1.bf16.xpose.msra.mxu0 0
      %2976 = vmatprep.subr.bf16.mxu0 0
      %2977 = vmatpush1.bf16.xpose.msra.mxu0 0
      %2978 = vmatprep.subr.bf16.mxu0 0
      %2979 = vmatpush1.bf16.xpose.msra.mxu0 0
      %2980 = vmatprep.subr.bf16.mxu0 0
      %2981 = vmatpush1.bf16.xpose.msra.mxu0 0
      %2982 = vmatprep.subr.bf16.mxu0 0
      %2983 = vmatpush1.bf16.xpose.msra.mxu0 0
      %2984 = vmatprep.subr.bf16.mxu0 0
      %2985 = vmatpush1.bf16.xpose.msra.mxu0 0
      %2986 = vmatprep.subr.bf16.mxu0 0
      %2987 = vmatpush1.bf16.xpose.msra.mxu0 0
      %2988 = vmatprep.subr.bf16.mxu0 0
      %2989 = vmatpush1.bf16.xpose.msra.mxu0 0
      %2990 = vmatprep.subr.bf16.mxu0 0
      %2991 = vmatpush1.bf16.xpose.msra.mxu0 0
      %2992 = vmatprep.subr.bf16.mxu0 0
      %2993 = vmatpush1.bf16.xpose.msra.mxu0 0
      %2994 = vmatprep.mubr.bf16.mxu0 0
      %2995 = vmatmul.mubr.bf16.gmra.mrb[0].mxu0 %v2957
      %v2996 = vpop.f32.mrb[0].mxu0
      %v2997 = vadd.f32 0.0, %v2996
      %v2998 = vpop.f32.mrb[0].mxu0
      %v2999 = vpop.f32.mrb[0].mxu0
      %v3000 = vpop.f32.mrb[0].mxu0
      %3001 = vdwg.mxu0
      %v3003 = vsel %vm976, %v2604, 0
      %v3006 = vsel %vm976, %v2908, 0
      %3008 = vmatprep.subr.bf16.mxu0 0
      %3009 = vmatpush1.bf16.xpose.msra.mxu0 %v3006
      %3010 = vmatprep.subr.bf16.mxu0 0
      %3011 = vmatpush1.bf16.xpose.msra.mxu0 0
      %3012 = vmatprep.subr.bf16.mxu0 0
      %3013 = vmatpush1.bf16.xpose.msra.mxu0 0
      %3014 = vmatprep.subr.bf16.mxu0 0
      %3015 = vmatpush1.bf16.xpose.msra.mxu0 0
      %3016 = vmatprep.subr.bf16.mxu0 0
      %3017 = vmatpush1.bf16.xpose.msra.mxu0 0
      %3018 = vmatprep.subr.bf16.mxu0 0
      %3019 = vmatpush1.bf16.xpose.msra.mxu0 0
      %3020 = vmatprep.subr.bf16.mxu0 0
      %3021 = vmatpush1.bf16.xpose.msra.mxu0 0
      %3022 = vmatprep.subr.bf16.mxu0 0
      %3023 = vmatpush1.bf16.xpose.msra.mxu0 0
      %3024 = vmatprep.subr.bf16.mxu0 0
      %3025 = vmatpush1.bf16.xpose.msra.mxu0 0
      %3026 = vmatprep.subr.bf16.mxu0 0
      %3027 = vmatpush1.bf16.xpose.msra.mxu0 0
      %3028 = vmatprep.subr.bf16.mxu0 0
      %3029 = vmatpush1.bf16.xpose.msra.mxu0 0
      %3030 = vmatprep.subr.bf16.mxu0 0
      %3031 = vmatpush1.bf16.xpose.msra.mxu0 0
      %3032 = vmatprep.subr.bf16.mxu0 0
      %3033 = vmatpush1.bf16.xpose.msra.mxu0 0
      %3034 = vmatprep.subr.bf16.mxu0 0
      %3035 = vmatpush1.bf16.xpose.msra.mxu0 0
      %3036 = vmatprep.subr.bf16.mxu0 0
      %3037 = vmatpush1.bf16.xpose.msra.mxu0 0
      %3038 = vmatprep.subr.bf16.mxu0 0
      %3039 = vmatpush1.bf16.xpose.msra.mxu0 0
      %3040 = vmatprep.mubr.bf16.mxu0 0
      %3041 = vmatmul.mubr.bf16.gmra.mrb[0].mxu0 %v3003
      %v3042 = vpop.f32.mrb[0].mxu0
      %v3043 = vadd.f32 0.0, %v3042
      %v3044 = vpop.f32.mrb[0].mxu0
      %v3045 = vpop.f32.mrb[0].mxu0
      %v3046 = vpop.f32.mrb[0].mxu0
      %3047 = vdwg.mxu0
      %v3049 = vsel %vm976, %v2605, 0
      %v3052 = vsel %vm976, %v2909, 0
      %3054 = vmatprep.subr.bf16.mxu0 0
      %3055 = vmatpush1.bf16.xpose.msra.mxu0 %v3052
      %3056 = vmatprep.subr.bf16.mxu0 0
      %3057 = vmatpush1.bf16.xpose.msra.mxu0 0
      %3058 = vmatprep.subr.bf16.mxu0 0
      %3059 = vmatpush1.bf16.xpose.msra.mxu0 0
      %3060 = vmatprep.subr.bf16.mxu0 0
      %3061 = vmatpush1.bf16.xpose.msra.mxu0 0
      %3062 = vmatprep.subr.bf16.mxu0 0
      %3063 = vmatpush1.bf16.xpose.msra.mxu0 0
      %3064 = vmatprep.subr.bf16.mxu0 0
      %3065 = vmatpush1.bf16.xpose.msra.mxu0 0
      %3066 = vmatprep.subr.bf16.mxu0 0
      %3067 = vmatpush1.bf16.xpose.msra.mxu0 0
      %3068 = vmatprep.subr.bf16.mxu0 0
      %3069 = vmatpush1.bf16.xpose.msra.mxu0 0
      %3070 = vmatprep.subr.bf16.mxu0 0
      %3071 = vmatpush1.bf16.xpose.msra.mxu0 0
      %3072 = vmatprep.subr.bf16.mxu0 0
      %3073 = vmatpush1.bf16.xpose.msra.mxu0 0
      %3074 = vmatprep.subr.bf16.mxu0 0
      %3075 = vmatpush1.bf16.xpose.msra.mxu0 0
      %3076 = vmatprep.subr.bf16.mxu0 0
      %3077 = vmatpush1.bf16.xpose.msra.mxu0 0
      %3078 = vmatprep.subr.bf16.mxu0 0
      %3079 = vmatpush1.bf16.xpose.msra.mxu0 0
      %3080 = vmatprep.subr.bf16.mxu0 0
      %3081 = vmatpush1.bf16.xpose.msra.mxu0 0
      %3082 = vmatprep.subr.bf16.mxu0 0
      %3083 = vmatpush1.bf16.xpose.msra.mxu0 0
      %3084 = vmatprep.subr.bf16.mxu0 0
      %3085 = vmatpush1.bf16.xpose.msra.mxu0 0
      %3086 = vmatprep.mubr.bf16.mxu0 0
      %3087 = vmatmul.mubr.bf16.gmra.mrb[0].mxu0 %v3049
      %v3088 = vpop.f32.mrb[0].mxu0
      %v3089 = vadd.f32 0.0, %v3088
      %v3090 = vpop.f32.mrb[0].mxu0
      %v3091 = vpop.f32.mrb[0].mxu0
      %v3092 = vpop.f32.mrb[0].mxu0
      %3093 = vdwg.mxu0
      %3094 = vxpose.xlu0.b32.start [1/16] %v2951, 128
      %3095 = vxpose.xlu0.b32.cont [2/16] %v2997, 128
      %3096 = vxpose.xlu0.b32.cont [3/16] %v3043, 128
      %3097 = vxpose.xlu0.b32.cont [4/16] %v3089, 128
      %3098 = vxpose.xlu0.b32.cont [5/16] 0.0, 128
      %3099 = vxpose.xlu0.b32.cont [6/16] 0.0, 128
      %3100 = vxpose.xlu0.b32.cont [7/16] 0.0, 128
      %3101 = vxpose.xlu0.b32.cont [8/16] 0.0, 128
      %3102 = vxpose.xlu0.b32.cont [9/16] 0.0, 128
      %3103 = vxpose.xlu0.b32.cont [10/16] 0.0, 128
      %3104 = vxpose.xlu0.b32.cont [11/16] 0.0, 128
      %3105 = vxpose.xlu0.b32.cont [12/16] 0.0, 128
      %3106 = vxpose.xlu0.b32.cont [13/16] 0.0, 128
      %3107 = vxpose.xlu0.b32.cont [14/16] 0.0, 128
      %3108 = vxpose.xlu0.b32.cont [15/16] 0.0, 128
      %3109 = vxpose.xlu0.b32.end [16/16] 0.0, 128
      %v3110 = vpop.trf.xlu0
      %v3111 = vpop.trf.xlu0
      %v3112 = vpop.trf.xlu0
      %v3113 = vpop.trf.xlu0
      %v3114 = vpop.trf.xlu0
      %v3115 = vpop.trf.xlu0
      %v3116 = vpop.trf.xlu0
      %v3117 = vpop.trf.xlu0
      %v3118 = vpop.trf.xlu0
      %v3119 = vpop.trf.xlu0
      %v3120 = vpop.trf.xlu0
      %v3121 = vpop.trf.xlu0
      %v3122 = vpop.trf.xlu0
      %v3123 = vpop.trf.xlu0
      %v3124 = vpop.trf.xlu0
      %v3125 = vpop.trf.xlu0
      %v3126 = vpack.c.bf16 %v3110, %v3110
      %v3127 = vld [vmem:[%s13] sm:$0xf]
      %v3128 = vld [vmem:[%s13 + $0x4] sm:$0xf]
      %v3129 = vld [vmem:[%s13 + $0x8] sm:$0xf]
      %v3130 = vld [vmem:[%s13 + $0xc] sm:$0xf]
      %v3131 = vlaneseq
      %v3132 = vshrl.u32 %v3131, 7
      %v3133 = vsub.s32 1, %v3132
      %v3134 = vrot.slane %v2496, %v3133
      %v3139 = vunpack.c.l.b16 %v3127
      %v3140 = vunpack.c.l.b16 %v3128
      %v3141 = vunpack.c.l.b16 %v3129
      %v3142 = vunpack.c.l.b16 %v3130
      %v3143 = vpack.c.b16 %v3140, %v3139
      %v3144 = vpack.c.b16 %v3142, %v3141
      %v3148 = vsel %vm872, %v3126, 0
      %3150 = vmatprep.subr.bf16.mxu0 0
      %3151 = vmatpush1.bf16.msra.mxu0 %v3143
      %3152 = vmatprep.subr.bf16.mxu0 0
      %3153 = vmatpush1.bf16.msra.mxu0 %v3144
      %3154 = vmatprep.subr.bf16.mxu0 0
      %3155 = vmatpush1.bf16.msra.mxu0 0
      %3156 = vmatprep.subr.bf16.mxu0 0
      %3157 = vmatpush1.bf16.msra.mxu0 0
      %3158 = vmatprep.subr.bf16.mxu0 0
      %3159 = vmatpush1.bf16.msra.mxu0 0
      %3160 = vmatprep.subr.bf16.mxu0 0
      %3161 = vmatpush1.bf16.msra.mxu0 0
      %3162 = vmatprep.subr.bf16.mxu0 0
      %3163 = vmatpush1.bf16.msra.mxu0 0
      %3164 = vmatprep.subr.bf16.mxu0 0
      %3165 = vmatpush1.bf16.msra.mxu0 0
      %3166 = vmatprep.subr.bf16.mxu0 0
      %3167 = vmatpush1.bf16.msra.mxu0 0
      %3168 = vmatprep.subr.bf16.mxu0 0
      %3169 = vmatpush1.bf16.msra.mxu0 0
      %3170 = vmatprep.subr.bf16.mxu0 0
      %3171 = vmatpush1.bf16.msra.mxu0 0
      %3172 = vmatprep.subr.bf16.mxu0 0
      %3173 = vmatpush1.bf16.msra.mxu0 0
      %3174 = vmatprep.subr.bf16.mxu0 0
      %3175 = vmatpush1.bf16.msra.mxu0 0
      %3176 = vmatprep.subr.bf16.mxu0 0
      %3177 = vmatpush1.bf16.msra.mxu0 0
      %3178 = vmatprep.subr.bf16.mxu0 0
      %3179 = vmatpush1.bf16.msra.mxu0 0
      %3180 = vmatprep.subr.bf16.mxu0 0
      %3181 = vmatpush1.bf16.msra.mxu0 0
      %3182 = vmatprep.mubr.bf16.mxu0 0
      %3183 = vmatmul.mubr.bf16.gmra.mrb[0].mxu0 %v3148
      %v3184 = vpop.f32.mrb[0].mxu0
      %v3185 = vadd.f32 %v3134, %v3184
      %v3186 = vpop.f32.mrb[0].mxu0
      %v3187 = vpop.f32.mrb[0].mxu0
      %v3188 = vpop.f32.mrb[0].mxu0
      %3189 = vdwg.mxu0
      %v3190 = vadd.f32 %v2495, %v3185
      %v3191 = vsel %vm872, %v3190, 0.0
      %3192 = vadd.xlane.f32.xlu0 %v3191
      %v3193 = vpop.xlane.xlu0 %3192
      %v3194 = vmul.f32 %v3193, %v1642
      %v3195 = vsub.f32 %v3190, %v3194
      %v3196 = vmul.f32 %v3195, %v3195
      %v3197 = vsel %vm872, %v3196, 0.0
      %3198 = vadd.xlane.f32.xlu0 %v3197
      %v3199 = vpop.xlane.xlu0 %3198
      %v3200 = vmul.f32 %v3199, %v1642
      %v3201 = vadd.f32 %v3200, 1e-05
      %v3202 = vrsqrt.pop %v3201
      %v3203 = vmul.f32 %v3195, %v3202
      %v3204 = vlaneseq
      %v3205 = vshrl.u32 %v3204, 7
      %v3206 = vsub.s32 7, %v3205
      %v3207 = vrot.slane %v2496, %v3206
      %v3208 = vmul.f32 %v3203, %v3207
      %v3209 = vlaneseq
      %v3210 = vshrl.u32 %v3209, 7
      %v3211 = vsub.s32 0, %v3210
      %v3212 = vrot.slane %v2497, %v3211
      %v3213 = vadd.f32 %v3208, %v3212
      %v3214 = vpack.c.bf16 %v3213, %v3213
      %v3215 = vld [vmem:[%s14] sm:$0xf]
      %v3216 = vld [vmem:[%s14 + $0x4] sm:$0xf]
      %v3217 = vld [vmem:[%s14 + $0x8] sm:$0xf]
      %v3218 = vld [vmem:[%s14 + $0xc] sm:$0xf]
      %v3219 = vlaneseq
      %v3220 = vshrl.u32 %v3219, 7
      %v3221 = vsub.s32 2, %v3220
      %v3222 = vrot.slane %v2496, %v3221
      %v3227 = vunpack.c.l.b16 %v3215
      %v3228 = vunpack.c.l.b16 %v3216
      %v3229 = vunpack.c.l.b16 %v3217
      %v3230 = vunpack.c.l.b16 %v3218
      %v3231 = vpack.c.b16 %v3228, %v3227
      %v3232 = vpack.c.b16 %v3230, %v3229
      %v3236 = vsel %vm872, %v3214, 0
      %3238 = vmatprep.subr.bf16.mxu0 0
      %3239 = vmatpush1.bf16.msra.mxu0 %v3231
      %3240 = vmatprep.subr.bf16.mxu0 0
      %3241 = vmatpush1.bf16.msra.mxu0 %v3232
      %3242 = vmatprep.subr.bf16.mxu0 0
      %3243 = vmatpush1.bf16.msra.mxu0 0
      %3244 = vmatprep.subr.bf16.mxu0 0
      %3245 = vmatpush1.bf16.msra.mxu0 0
      %3246 = vmatprep.subr.bf16.mxu0 0
      %3247 = vmatpush1.bf16.msra.mxu0 0
      %3248 = vmatprep.subr.bf16.mxu0 0
      %3249 = vmatpush1.bf16.msra.mxu0 0
      %3250 = vmatprep.subr.bf16.mxu0 0
      %3251 = vmatpush1.bf16.msra.mxu0 0
      %3252 = vmatprep.subr.bf16.mxu0 0
      %3253 = vmatpush1.bf16.msra.mxu0 0
      %3254 = vmatprep.subr.bf16.mxu0 0
      %3255 = vmatpush1.bf16.msra.mxu0 0
      %3256 = vmatprep.subr.bf16.mxu0 0
      %3257 = vmatpush1.bf16.msra.mxu0 0
      %3258 = vmatprep.subr.bf16.mxu0 0
      %3259 = vmatpush1.bf16.msra.mxu0 0
      %3260 = vmatprep.subr.bf16.mxu0 0
      %3261 = vmatpush1.bf16.msra.mxu0 0
      %3262 = vmatprep.subr.bf16.mxu0 0
      %3263 = vmatpush1.bf16.msra.mxu0 0
      %3264 = vmatprep.subr.bf16.mxu0 0
      %3265 = vmatpush1.bf16.msra.mxu0 0
      %3266 = vmatprep.subr.bf16.mxu0 0
      %3267 = vmatpush1.bf16.msra.mxu0 0
      %3268 = vmatprep.subr.bf16.mxu0 0
      %3269 = vmatpush1.bf16.msra.mxu0 0
      %3270 = vmatprep.mubr.bf16.mxu0 0
      %3271 = vmatmul.mubr.bf16.gmra.mrb[0].mxu0 %v3236
      %v3272 = vpop.f32.mrb[0].mxu0
      %v3273 = vadd.f32 %v3222, %v3272
      %v3274 = vpop.f32.mrb[0].mxu0
      %v3275 = vpop.f32.mrb[0].mxu0
      %v3276 = vpop.f32.mrb[0].mxu0
      %3277 = vdwg.mxu0
      %v3278 = vld [vmem:[%s15] sm:$0xf]
      %v3279 = vld [vmem:[%s15 + $0x4] sm:$0xf]
      %v3280 = vld [vmem:[%s15 + $0x8] sm:$0xf]
      %v3281 = vld [vmem:[%s15 + $0xc] sm:$0xf]
      %v3282 = vlaneseq
      %v3283 = vshrl.u32 %v3282, 7
      %v3284 = vsub.s32 3, %v3283
      %v3285 = vrot.slane %v2496, %v3284
      %v3290 = vunpack.c.l.b16 %v3278
      %v3291 = vunpack.c.l.b16 %v3279
      %v3292 = vunpack.c.l.b16 %v3280
      %v3293 = vunpack.c.l.b16 %v3281
      %v3294 = vpack.c.b16 %v3291, %v3290
      %v3295 = vpack.c.b16 %v3293, %v3292
      %v3299 = vsel %vm872, %v2484, 0
      %3301 = vmatprep.subr.bf16.mxu0 0
      %3302 = vmatpush1.bf16.msra.mxu0 %v3294
      %3303 = vmatprep.subr.bf16.mxu0 0
      %3304 = vmatpush1.bf16.msra.mxu0 %v3295
      %3305 = vmatprep.subr.bf16.mxu0 0
      %3306 = vmatpush1.bf16.msra.mxu0 0
      %3307 = vmatprep.subr.bf16.mxu0 0
      %3308 = vmatpush1.bf16.msra.mxu0 0
      %3309 = vmatprep.subr.bf16.mxu0 0
      %3310 = vmatpush1.bf16.msra.mxu0 0
      %3311 = vmatprep.subr.bf16.mxu0 0
      %3312 = vmatpush1.bf16.msra.mxu0 0
      %3313 = vmatprep.subr.bf16.mxu0 0
      %3314 = vmatpush1.bf16.msra.mxu0 0
      %3315 = vmatprep.subr.bf16.mxu0 0
      %3316 = vmatpush1.bf16.msra.mxu0 0
      %3317 = vmatprep.subr.bf16.mxu0 0
      %3318 = vmatpush1.bf16.msra.mxu0 0
      %3319 = vmatprep.subr.bf16.mxu0 0
      %3320 = vmatpush1.bf16.msra.mxu0 0
      %3321 = vmatprep.subr.bf16.mxu0 0
      %3322 = vmatpush1.bf16.msra.mxu0 0
      %3323 = vmatprep.subr.bf16.mxu0 0
      %3324 = vmatpush1.bf16.msra.mxu0 0
      %3325 = vmatprep.subr.bf16.mxu0 0
      %3326 = vmatpush1.bf16.msra.mxu0 0
      %3327 = vmatprep.subr.bf16.mxu0 0
      %3328 = vmatpush1.bf16.msra.mxu0 0
      %3329 = vmatprep.subr.bf16.mxu0 0
      %3330 = vmatpush1.bf16.msra.mxu0 0
      %3331 = vmatprep.subr.bf16.mxu0 0
      %3332 = vmatpush1.bf16.msra.mxu0 0
      %3333 = vmatprep.mubr.bf16.mxu0 0
      %3334 = vmatmul.mubr.bf16.gmra.mrb[0].mxu0 %v3299
      %v3335 = vpop.f32.mrb[0].mxu0
      %v3336 = vadd.f32 %v3285, %v3335
      %v3337 = vpop.f32.mrb[0].mxu0
      %v3338 = vpop.f32.mrb[0].mxu0
      %v3339 = vpop.f32.mrb[0].mxu0
      %3340 = vdwg.mxu0
      %3341 = vxpose.xlu0.b32.start [1/16] %v3336, 128
      %3342 = vxpose.xlu0.b32.cont [2/16] 0.0, 128
      %3343 = vxpose.xlu0.b32.cont [3/16] 0.0, 128
      %3344 = vxpose.xlu0.b32.cont [4/16] 0.0, 128
      %3345 = vxpose.xlu0.b32.cont [5/16] 0.0, 128
      %3346 = vxpose.xlu0.b32.cont [6/16] 0.0, 128
      %3347 = vxpose.xlu0.b32.cont [7/16] 0.0, 128
      %3348 = vxpose.xlu0.b32.cont [8/16] 0.0, 128
      %3349 = vxpose.xlu0.b32.cont [9/16] 0.0, 128
      %3350 = vxpose.xlu0.b32.cont [10/16] 0.0, 128
      %3351 = vxpose.xlu0.b32.cont [11/16] 0.0, 128
      %3352 = vxpose.xlu0.b32.cont [12/16] 0.0, 128
      %3353 = vxpose.xlu0.b32.cont [13/16] 0.0, 128
      %3354 = vxpose.xlu0.b32.cont [14/16] 0.0, 128
      %3355 = vxpose.xlu0.b32.cont [15/16] 0.0, 128
      %3356 = vxpose.xlu0.b32.end [16/16] 0.0, 128
      %v3357 = vpop.trf.xlu0
      %v3358 = vpop.trf.xlu0
      %v3359 = vpop.trf.xlu0
      %v3360 = vpop.trf.xlu0
      %v3361 = vpop.trf.xlu0
      %v3362 = vpop.trf.xlu0
      %v3363 = vpop.trf.xlu0
      %v3364 = vpop.trf.xlu0
      %v3365 = vpop.trf.xlu0
      %v3366 = vpop.trf.xlu0
      %v3367 = vpop.trf.xlu0
      %v3368 = vpop.trf.xlu0
      %v3369 = vpop.trf.xlu0
      %v3370 = vpop.trf.xlu0
      %v3371 = vpop.trf.xlu0
      %v3372 = vpop.trf.xlu0
      %3373 = vxpose.xlu0.b32.start [1/16] %v3273, 128
      %3374 = vxpose.xlu0.b32.cont [2/16] 0.0, 128
      %3375 = vxpose.xlu0.b32.cont [3/16] 0.0, 128
      %3376 = vxpose.xlu0.b32.cont [4/16] 0.0, 128
      %3377 = vxpose.xlu0.b32.cont [5/16] 0.0, 128
      %3378 = vxpose.xlu0.b32.cont [6/16] 0.0, 128
      %3379 = vxpose.xlu0.b32.cont [7/16] 0.0, 128
      %3380 = vxpose.xlu0.b32.cont [8/16] 0.0, 128
      %3381 = vxpose.xlu0.b32.cont [9/16] 0.0, 128
      %3382 = vxpose.xlu0.b32.cont [10/16] 0.0, 128
      %3383 = vxpose.xlu0.b32.cont [11/16] 0.0, 128
      %3384 = vxpose.xlu0.b32.cont [12/16] 0.0, 128
      %3385 = vxpose.xlu0.b32.cont [13/16] 0.0, 128
      %3386 = vxpose.xlu0.b32.cont [14/16] 0.0, 128
      %3387 = vxpose.xlu0.b32.cont [15/16] 0.0, 128
      %3388 = vxpose.xlu0.b32.end [16/16] 0.0, 128
      %v3389 = vpop.trf.xlu0
      %v3390 = vpop.trf.xlu0
      %v3391 = vpop.trf.xlu0
      %v3392 = vpop.trf.xlu0
      %v3393 = vpop.trf.xlu0
      %v3394 = vpop.trf.xlu0
      %v3395 = vpop.trf.xlu0
      %v3396 = vpop.trf.xlu0
      %v3397 = vpop.trf.xlu0
      %v3398 = vpop.trf.xlu0
      %v3399 = vpop.trf.xlu0
      %v3400 = vpop.trf.xlu0
      %v3401 = vpop.trf.xlu0
      %v3402 = vpop.trf.xlu0
      %v3403 = vpop.trf.xlu0
      %v3404 = vpop.trf.xlu0
      %v3405 = vpack.c.bf16 %v3389, %v3389
      %v3406 = vpack.c.bf16 %v3390, %v3390
      %v3407 = vpack.c.bf16 %v3391, %v3391
      %v3408 = vpack.c.bf16 %v3392, %v3392
      %v3409 = vpack.c.bf16 %v3357, %v3357
      %v3410 = vpack.c.bf16 %v3358, %v3358
      %v3411 = vpack.c.bf16 %v3359, %v3359
      %v3412 = vpack.c.bf16 %v3360, %v3360
      %v3413 = vpack.c.bf16 %v3361, %v3361
      %v3414 = vpack.c.bf16 %v3362, %v3362
      %v3415 = vpack.c.bf16 %v3363, %v3363
      %v3416 = vpack.c.bf16 %v3364, %v3364
      %3417 = vxpose.xlu0.c.b16.start [1/8] %v3405, 128
      %3418 = vxpose.xlu0.c.b16.cont [2/8] 0, 128
      %3419 = vxpose.xlu0.c.b16.cont [3/8] 0, 128
      %3420 = vxpose.xlu0.c.b16.cont [4/8] 0, 128
      %3421 = vxpose.xlu0.c.b16.cont [5/8] 0, 128
      %3422 = vxpose.xlu0.c.b16.cont [6/8] 0, 128
      %3423 = vxpose.xlu0.c.b16.cont [7/8] 0, 128
      %3424 = vxpose.xlu0.c.b16.end [8/8] 0, 128
      %v3425 = vpop.trf.xlu0
      %v3426 = vpop.trf.xlu0
      %v3427 = vpop.trf.xlu0
      %v3428 = vpop.trf.xlu0
      %v3429 = vpop.trf.xlu0
      %v3430 = vpop.trf.xlu0
      %v3431 = vpop.trf.xlu0
      %v3432 = vpop.trf.xlu0
      %v3434 = vsel %vm976, %v3425, 0
      %v3437 = vsel %vm980, %v3409, 0
      %3439 = vmatprep.subr.bf16.mxu0 0
      %3440 = vmatpush1.bf16.msra.mxu0 %v3437
      %3441 = vmatprep.subr.bf16.mxu0 0
      %3442 = vmatpush1.bf16.msra.mxu0 0
      %3443 = vmatprep.subr.bf16.mxu0 0
      %3444 = vmatpush1.bf16.msra.mxu0 0
      %3445 = vmatprep.subr.bf16.mxu0 0
      %3446 = vmatpush1.bf16.msra.mxu0 0
      %3447 = vmatprep.subr.bf16.mxu0 0
      %3448 = vmatpush1.bf16.msra.mxu0 0
      %3449 = vmatprep.subr.bf16.mxu0 0
      %3450 = vmatpush1.bf16.msra.mxu0 0
      %3451 = vmatprep.subr.bf16.mxu0 0
      %3452 = vmatpush1.bf16.msra.mxu0 0
      %3453 = vmatprep.subr.bf16.mxu0 0
      %3454 = vmatpush1.bf16.msra.mxu0 0
      %3455 = vmatprep.subr.bf16.mxu0 0
      %3456 = vmatpush1.bf16.msra.mxu0 0
      %3457 = vmatprep.subr.bf16.mxu0 0
      %3458 = vmatpush1.bf16.msra.mxu0 0
      %3459 = vmatprep.subr.bf16.mxu0 0
      %3460 = vmatpush1.bf16.msra.mxu0 0
      %3461 = vmatprep.subr.bf16.mxu0 0
      %3462 = vmatpush1.bf16.msra.mxu0 0
      %3463 = vmatprep.subr.bf16.mxu0 0
      %3464 = vmatpush1.bf16.msra.mxu0 0
      %3465 = vmatprep.subr.bf16.mxu0 0
      %3466 = vmatpush1.bf16.msra.mxu0 0
      %3467 = vmatprep.subr.bf16.mxu0 0
      %3468 = vmatpush1.bf16.msra.mxu0 0
      %3469 = vmatprep.subr.bf16.mxu0 0
      %3470 = vmatpush1.bf16.msra.mxu0 0
      %3471 = vmatprep.mubr.bf16.mxu0 0
      %3472 = vmatmul.mubr.bf16.gmra.mrb[0].mxu0 %v3434
      %v3473 = vpop.f32.mrb[0].mxu0
      %v3474 = vadd.f32 0.0, %v3473
      %v3475 = vpop.f32.mrb[0].mxu0
      %v3476 = vpop.f32.mrb[0].mxu0
      %v3477 = vpop.f32.mrb[0].mxu0
      %3478 = vdwg.mxu0
      %3479 = vxpose.xlu0.c.b16.start [1/8] %v3406, 128
      %3480 = vxpose.xlu0.c.b16.cont [2/8] 0, 128
      %3481 = vxpose.xlu0.c.b16.cont [3/8] 0, 128
      %3482 = vxpose.xlu0.c.b16.cont [4/8] 0, 128
      %3483 = vxpose.xlu0.c.b16.cont [5/8] 0, 128
      %3484 = vxpose.xlu0.c.b16.cont [6/8] 0, 128
      %3485 = vxpose.xlu0.c.b16.cont [7/8] 0, 128
      %3486 = vxpose.xlu0.c.b16.end [8/8] 0, 128
      %v3487 = vpop.trf.xlu0
      %v3488 = vpop.trf.xlu0
      %v3489 = vpop.trf.xlu0
      %v3490 = vpop.trf.xlu0
      %v3491 = vpop.trf.xlu0
      %v3492 = vpop.trf.xlu0
      %v3493 = vpop.trf.xlu0
      %v3494 = vpop.trf.xlu0
      %v3496 = vsel %vm976, %v3487, 0
      %v3499 = vsel %vm980, %v3410, 0
      %3501 = vmatprep.subr.bf16.mxu0 0
      %3502 = vmatpush1.bf16.msra.mxu0 %v3499
      %3503 = vmatprep.subr.bf16.mxu0 0
      %3504 = vmatpush1.bf16.msra.mxu0 0
      %3505 = vmatprep.subr.bf16.mxu0 0
      %3506 = vmatpush1.bf16.msra.mxu0 0
      %3507 = vmatprep.subr.bf16.mxu0 0
      %3508 = vmatpush1.bf16.msra.mxu0 0
      %3509 = vmatprep.subr.bf16.mxu0 0
      %3510 = vmatpush1.bf16.msra.mxu0 0
      %3511 = vmatprep.subr.bf16.mxu0 0
      %3512 = vmatpush1.bf16.msra.mxu0 0
      %3513 = vmatprep.subr.bf16.mxu0 0
      %3514 = vmatpush1.bf16.msra.mxu0 0
      %3515 = vmatprep.subr.bf16.mxu0 0
      %3516 = vmatpush1.bf16.msra.mxu0 0
      %3517 = vmatprep.subr.bf16.mxu0 0
      %3518 = vmatpush1.bf16.msra.mxu0 0
      %3519 = vmatprep.subr.bf16.mxu0 0
      %3520 = vmatpush1.bf16.msra.mxu0 0
      %3521 = vmatprep.subr.bf16.mxu0 0
      %3522 = vmatpush1.bf16.msra.mxu0 0
      %3523 = vmatprep.subr.bf16.mxu0 0
      %3524 = vmatpush1.bf16.msra.mxu0 0
      %3525 = vmatprep.subr.bf16.mxu0 0
      %3526 = vmatpush1.bf16.msra.mxu0 0
      %3527 = vmatprep.subr.bf16.mxu0 0
      %3528 = vmatpush1.bf16.msra.mxu0 0
      %3529 = vmatprep.subr.bf16.mxu0 0
      %3530 = vmatpush1.bf16.msra.mxu0 0
      %3531 = vmatprep.subr.bf16.mxu0 0
      %3532 = vmatpush1.bf16.msra.mxu0 0
      %3533 = vmatprep.mubr.bf16.mxu0 0
      %3534 = vmatmul.mubr.bf16.gmra.mrb[0].mxu0 %v3496
      %v3535 = vpop.f32.mrb[0].mxu0
      %v3536 = vadd.f32 0.0, %v3535
      %v3537 = vpop.f32.mrb[0].mxu0
      %v3538 = vpop.f32.mrb[0].mxu0
      %v3539 = vpop.f32.mrb[0].mxu0
      %3540 = vdwg.mxu0
      %3541 = vxpose.xlu0.c.b16.start [1/8] %v3407, 128
      %3542 = vxpose.xlu0.c.b16.cont [2/8] 0, 128
      %3543 = vxpose.xlu0.c.b16.cont [3/8] 0, 128
      %3544 = vxpose.xlu0.c.b16.cont [4/8] 0, 128
      %3545 = vxpose.xlu0.c.b16.cont [5/8] 0, 128
      %3546 = vxpose.xlu0.c.b16.cont [6/8] 0, 128
      %3547 = vxpose.xlu0.c.b16.cont [7/8] 0, 128
      %3548 = vxpose.xlu0.c.b16.end [8/8] 0, 128
      %v3549 = vpop.trf.xlu0
      %v3550 = vpop.trf.xlu0
      %v3551 = vpop.trf.xlu0
      %v3552 = vpop.trf.xlu0
      %v3553 = vpop.trf.xlu0
      %v3554 = vpop.trf.xlu0
      %v3555 = vpop.trf.xlu0
      %v3556 = vpop.trf.xlu0
      %v3558 = vsel %vm976, %v3549, 0
      %v3561 = vsel %vm980, %v3411, 0
      %3563 = vmatprep.subr.bf16.mxu0 0
      %3564 = vmatpush1.bf16.msra.mxu0 %v3561
      %3565 = vmatprep.subr.bf16.mxu0 0
      %3566 = vmatpush1.bf16.msra.mxu0 0
      %3567 = vmatprep.subr.bf16.mxu0 0
      %3568 = vmatpush1.bf16.msra.mxu0 0
      %3569 = vmatprep.subr.bf16.mxu0 0
      %3570 = vmatpush1.bf16.msra.mxu0 0
      %3571 = vmatprep.subr.bf16.mxu0 0
      %3572 = vmatpush1.bf16.msra.mxu0 0
      %3573 = vmatprep.subr.bf16.mxu0 0
      %3574 = vmatpush1.bf16.msra.mxu0 0
      %3575 = vmatprep.subr.bf16.mxu0 0
      %3576 = vmatpush1.bf16.msra.mxu0 0
      %3577 = vmatprep.subr.bf16.mxu0 0
      %3578 = vmatpush1.bf16.msra.mxu0 0
      %3579 = vmatprep.subr.bf16.mxu0 0
      %3580 = vmatpush1.bf16.msra.mxu0 0
      %3581 = vmatprep.subr.bf16.mxu0 0
      %3582 = vmatpush1.bf16.msra.mxu0 0
      %3583 = vmatprep.subr.bf16.mxu0 0
      %3584 = vmatpush1.bf16.msra.mxu0 0
      %3585 = vmatprep.subr.bf16.mxu0 0
      %3586 = vmatpush1.bf16.msra.mxu0 0
      %3587 = vmatprep.subr.bf16.mxu0 0
      %3588 = vmatpush1.bf16.msra.mxu0 0
      %3589 = vmatprep.subr.bf16.mxu0 0
      %3590 = vmatpush1.bf16.msra.mxu0 0
      %3591 = vmatprep.subr.bf16.mxu0 0
      %3592 = vmatpush1.bf16.msra.mxu0 0
      %3593 = vmatprep.subr.bf16.mxu0 0
      %3594 = vmatpush1.bf16.msra.mxu0 0
      %3595 = vmatprep.mubr.bf16.mxu0 0
      %3596 = vmatmul.mubr.bf16.gmra.mrb[0].mxu0 %v3558
      %v3597 = vpop.f32.mrb[0].mxu0
      %v3598 = vadd.f32 0.0, %v3597
      %v3599 = vpop.f32.mrb[0].mxu0
      %v3600 = vpop.f32.mrb[0].mxu0
      %v3601 = vpop.f32.mrb[0].mxu0
      %3602 = vdwg.mxu0
      %3603 = vxpose.xlu0.c.b16.start [1/8] %v3408, 128
      %3604 = vxpose.xlu0.c.b16.cont [2/8] 0, 128
      %3605 = vxpose.xlu0.c.b16.cont [3/8] 0, 128
      %3606 = vxpose.xlu0.c.b16.cont [4/8] 0, 128
      %3607 = vxpose.xlu0.c.b16.cont [5/8] 0, 128
      %3608 = vxpose.xlu0.c.b16.cont [6/8] 0, 128
      %3609 = vxpose.xlu0.c.b16.cont [7/8] 0, 128
      %3610 = vxpose.xlu0.c.b16.end [8/8] 0, 128
      %v3611 = vpop.trf.xlu0
      %v3612 = vpop.trf.xlu0
      %v3613 = vpop.trf.xlu0
      %v3614 = vpop.trf.xlu0
      %v3615 = vpop.trf.xlu0
      %v3616 = vpop.trf.xlu0
      %v3617 = vpop.trf.xlu0
      %v3618 = vpop.trf.xlu0
      %v3620 = vsel %vm976, %v3611, 0
      %v3623 = vsel %vm980, %v3412, 0
      %3625 = vmatprep.subr.bf16.mxu0 0
      %3626 = vmatpush1.bf16.msra.mxu0 %v3623
      %3627 = vmatprep.subr.bf16.mxu0 0
      %3628 = vmatpush1.bf16.msra.mxu0 0
      %3629 = vmatprep.subr.bf16.mxu0 0
      %3630 = vmatpush1.bf16.msra.mxu0 0
      %3631 = vmatprep.subr.bf16.mxu0 0
      %3632 = vmatpush1.bf16.msra.mxu0 0
      %3633 = vmatprep.subr.bf16.mxu0 0
      %3634 = vmatpush1.bf16.msra.mxu0 0
      %3635 = vmatprep.subr.bf16.mxu0 0
      %3636 = vmatpush1.bf16.msra.mxu0 0
      %3637 = vmatprep.subr.bf16.mxu0 0
      %3638 = vmatpush1.bf16.msra.mxu0 0
      %3639 = vmatprep.subr.bf16.mxu0 0
      %3640 = vmatpush1.bf16.msra.mxu0 0
      %3641 = vmatprep.subr.bf16.mxu0 0
      %3642 = vmatpush1.bf16.msra.mxu0 0
      %3643 = vmatprep.subr.bf16.mxu0 0
      %3644 = vmatpush1.bf16.msra.mxu0 0
      %3645 = vmatprep.subr.bf16.mxu0 0
      %3646 = vmatpush1.bf16.msra.mxu0 0
      %3647 = vmatprep.subr.bf16.mxu0 0
      %3648 = vmatpush1.bf16.msra.mxu0 0
      %3649 = vmatprep.subr.bf16.mxu0 0
      %3650 = vmatpush1.bf16.msra.mxu0 0
      %3651 = vmatprep.subr.bf16.mxu0 0
      %3652 = vmatpush1.bf16.msra.mxu0 0
      %3653 = vmatprep.subr.bf16.mxu0 0
      %3654 = vmatpush1.bf16.msra.mxu0 0
      %3655 = vmatprep.subr.bf16.mxu0 0
      %3656 = vmatpush1.bf16.msra.mxu0 0
      %3657 = vmatprep.mubr.bf16.mxu0 0
      %3658 = vmatmul.mubr.bf16.gmra.mrb[0].mxu0 %v3620
      %v3659 = vpop.f32.mrb[0].mxu0
      %v3660 = vadd.f32 0.0, %v3659
      %v3661 = vpop.f32.mrb[0].mxu0
      %v3662 = vpop.f32.mrb[0].mxu0
      %v3663 = vpop.f32.mrb[0].mxu0
      %3664 = vdwg.mxu0
      %v3665 = vmul.f32 %v3474, 0.35355338
      %v3666 = vmul.f32 %v3536, 0.35355338
      %v3667 = vmul.f32 %v3598, 0.35355338
      %v3668 = vmul.f32 %v3660, 0.35355338
      %v3670 = vlaneseq
      %v3671 = vshrl.u32 %v3670, 7
      %v3672 = vsub.s32 0, %v3671
      %v3673 = vrot.slane %v2486, %v3672
      %v3675 = vadd.f32 %v3665, %v3673
      %v3676 = vadd.f32 %v3666, %v3673
      %v3677 = vadd.f32 %v3667, %v3673
      %v3678 = vadd.f32 %v3668, %v3673
      %v3679 = vsel %vm976, %v3675, -inf
      %3680 = vmax.xlane.f32.xlu0 %v3679
      %v3681 = vpop.xlane.xlu0 %3680
      %v3682 = vsel %vm976, %v3676, -inf
      %3683 = vmax.xlane.f32.xlu0 %v3682
      %v3684 = vpop.xlane.xlu0 %3683
      %v3685 = vsel %vm976, %v3677, -inf
      %3686 = vmax.xlane.f32.xlu0 %v3685
      %v3687 = vpop.xlane.xlu0 %3686
      %v3688 = vsel %vm976, %v3678, -inf
      %3689 = vmax.xlane.f32.xlu0 %v3688
      %v3690 = vpop.xlane.xlu0 %3689
      %v3691 = vsub.f32 %v3675, %v3681
      %v3692 = vsub.f32 %v3676, %v3684
      %v3693 = vsub.f32 %v3677, %v3687
      %v3694 = vsub.f32 %v3678, %v3690
      %v3695 = vmul.f32 %v3691, 1.442695
      %v3696 = vpow.pop %v3695
      %v3697 = vmul.f32 %v3692, 1.442695
      %v3698 = vpow.pop %v3697
      %v3699 = vmul.f32 %v3693, 1.442695
      %v3700 = vpow.pop %v3699
      %v3701 = vmul.f32 %v3694, 1.442695
      %v3702 = vpow.pop %v3701
      %v3703 = vsel %vm976, %v3696, 0.0
      %3704 = vadd.xlane.f32.xlu0 %v3703
      %v3705 = vpop.xlane.xlu0 %3704
      %v3706 = vsel %vm976, %v3698, 0.0
      %3707 = vadd.xlane.f32.xlu0 %v3706
      %v3708 = vpop.xlane.xlu0 %3707
      %v3709 = vsel %vm976, %v3700, 0.0
      %3710 = vadd.xlane.f32.xlu0 %v3709
      %v3711 = vpop.xlane.xlu0 %3710
      %v3712 = vsel %vm976, %v3702, 0.0
      %3713 = vadd.xlane.f32.xlu0 %v3712
      %v3714 = vpop.xlane.xlu0 %3713
      %v3715 = vrcp.pop %v3705
      %v3716 = vmul.f32 %v3696, %v3715
      %v3717 = vrcp.pop %v3708
      %v3718 = vmul.f32 %v3698, %v3717
      %v3719 = vrcp.pop %v3711
      %v3720 = vmul.f32 %v3700, %v3719
      %v3721 = vrcp.pop %v3714
      %v3722 = vmul.f32 %v3702, %v3721
      %v3723 = vpack.c.bf16 %v3716, %v3716
      %v3724 = vpack.c.bf16 %v3718, %v3718
      %v3725 = vpack.c.bf16 %v3720, %v3720
      %v3726 = vpack.c.bf16 %v3722, %v3722
      %v3728 = vsel %vm976, %v3413, 0
      %v3731 = vsel %vm976, %v3723, 0
      %3733 = vmatprep.subr.bf16.mxu0 0
      %3734 = vmatpush1.bf16.xpose.msra.mxu0 %v3731
      %3735 = vmatprep.subr.bf16.mxu0 0
      %3736 = vmatpush1.bf16.xpose.msra.mxu0 0
      %3737 = vmatprep.subr.bf16.mxu0 0
      %3738 = vmatpush1.bf16.xpose.msra.mxu0 0
      %3739 = vmatprep.subr.bf16.mxu0 0
      %3740 = vmatpush1.bf16.xpose.msra.mxu0 0
      %3741 = vmatprep.subr.bf16.mxu0 0
      %3742 = vmatpush1.bf16.xpose.msra.mxu0 0
      %3743 = vmatprep.subr.bf16.mxu0 0
      %3744 = vmatpush1.bf16.xpose.msra.mxu0 0
      %3745 = vmatprep.subr.bf16.mxu0 0
      %3746 = vmatpush1.bf16.xpose.msra.mxu0 0
      %3747 = vmatprep.subr.bf16.mxu0 0
      %3748 = vmatpush1.bf16.xpose.msra.mxu0 0
      %3749 = vmatprep.subr.bf16.mxu0 0
      %3750 = vmatpush1.bf16.xpose.msra.mxu0 0
      %3751 = vmatprep.subr.bf16.mxu0 0
      %3752 = vmatpush1.bf16.xpose.msra.mxu0 0
      %3753 = vmatprep.subr.bf16.mxu0 0
      %3754 = vmatpush1.bf16.xpose.msra.mxu0 0
      %3755 = vmatprep.subr.bf16.mxu0 0
      %3756 = vmatpush1.bf16.xpose.msra.mxu0 0
      %3757 = vmatprep.subr.bf16.mxu0 0
      %3758 = vmatpush1.bf16.xpose.msra.mxu0 0
      %3759 = vmatprep.subr.bf16.mxu0 0
      %3760 = vmatpush1.bf16.xpose.msra.mxu0 0
      %3761 = vmatprep.subr.bf16.mxu0 0
      %3762 = vmatpush1.bf16.xpose.msra.mxu0 0
      %3763 = vmatprep.subr.bf16.mxu0 0
      %3764 = vmatpush1.bf16.xpose.msra.mxu0 0
      %3765 = vmatprep.mubr.bf16.mxu0 0
      %3766 = vmatmul.mubr.bf16.gmra.mrb[0].mxu0 %v3728
      %v3767 = vpop.f32.mrb[0].mxu0
      %v3768 = vadd.f32 0.0, %v3767
      %v3769 = vpop.f32.mrb[0].mxu0
      %v3770 = vpop.f32.mrb[0].mxu0
      %v3771 = vpop.f32.mrb[0].mxu0
      %3772 = vdwg.mxu0
      %v3774 = vsel %vm976, %v3414, 0
      %v3777 = vsel %vm976, %v3724, 0
      %3779 = vmatprep.subr.bf16.mxu0 0
      %3780 = vmatpush1.bf16.xpose.msra.mxu0 %v3777
      %3781 = vmatprep.subr.bf16.mxu0 0
      %3782 = vmatpush1.bf16.xpose.msra.mxu0 0
      %3783 = vmatprep.subr.bf16.mxu0 0
      %3784 = vmatpush1.bf16.xpose.msra.mxu0 0
      %3785 = vmatprep.subr.bf16.mxu0 0
      %3786 = vmatpush1.bf16.xpose.msra.mxu0 0
      %3787 = vmatprep.subr.bf16.mxu0 0
      %3788 = vmatpush1.bf16.xpose.msra.mxu0 0
      %3789 = vmatprep.subr.bf16.mxu0 0
      %3790 = vmatpush1.bf16.xpose.msra.mxu0 0
      %3791 = vmatprep.subr.bf16.mxu0 0
      %3792 = vmatpush1.bf16.xpose.msra.mxu0 0
      %3793 = vmatprep.subr.bf16.mxu0 0
      %3794 = vmatpush1.bf16.xpose.msra.mxu0 0
      %3795 = vmatprep.subr.bf16.mxu0 0
      %3796 = vmatpush1.bf16.xpose.msra.mxu0 0
      %3797 = vmatprep.subr.bf16.mxu0 0
      %3798 = vmatpush1.bf16.xpose.msra.mxu0 0
      %3799 = vmatprep.subr.bf16.mxu0 0
      %3800 = vmatpush1.bf16.xpose.msra.mxu0 0
      %3801 = vmatprep.subr.bf16.mxu0 0
      %3802 = vmatpush1.bf16.xpose.msra.mxu0 0
      %3803 = vmatprep.subr.bf16.mxu0 0
      %3804 = vmatpush1.bf16.xpose.msra.mxu0 0
      %3805 = vmatprep.subr.bf16.mxu0 0
      %3806 = vmatpush1.bf16.xpose.msra.mxu0 0
      %3807 = vmatprep.subr.bf16.mxu0 0
      %3808 = vmatpush1.bf16.xpose.msra.mxu0 0
      %3809 = vmatprep.subr.bf16.mxu0 0
      %3810 = vmatpush1.bf16.xpose.msra.mxu0 0
      %3811 = vmatprep.mubr.bf16.mxu0 0
      %3812 = vmatmul.mubr.bf16.gmra.mrb[0].mxu0 %v3774
      %v3813 = vpop.f32.mrb[0].mxu0
      %v3814 = vadd.f32 0.0, %v3813
      %v3815 = vpop.f32.mrb[0].mxu0
      %v3816 = vpop.f32.mrb[0].mxu0
      %v3817 = vpop.f32.mrb[0].mxu0
      %3818 = vdwg.mxu0
      %v3820 = vsel %vm976, %v3415, 0
      %v3823 = vsel %vm976, %v3725, 0
      %3825 = vmatprep.subr.bf16.mxu0 0
      %3826 = vmatpush1.bf16.xpose.msra.mxu0 %v3823
      %3827 = vmatprep.subr.bf16.mxu0 0
      %3828 = vmatpush1.bf16.xpose.msra.mxu0 0
      %3829 = vmatprep.subr.bf16.mxu0 0
      %3830 = vmatpush1.bf16.xpose.msra.mxu0 0
      %3831 = vmatprep.subr.bf16.mxu0 0
      %3832 = vmatpush1.bf16.xpose.msra.mxu0 0
      %3833 = vmatprep.subr.bf16.mxu0 0
      %3834 = vmatpush1.bf16.xpose.msra.mxu0 0
      %3835 = vmatprep.subr.bf16.mxu0 0
      %3836 = vmatpush1.bf16.xpose.msra.mxu0 0
      %3837 = vmatprep.subr.bf16.mxu0 0
      %3838 = vmatpush1.bf16.xpose.msra.mxu0 0
      %3839 = vmatprep.subr.bf16.mxu0 0
      %3840 = vmatpush1.bf16.xpose.msra.mxu0 0
      %3841 = vmatprep.subr.bf16.mxu0 0
      %3842 = vmatpush1.bf16.xpose.msra.mxu0 0
      %3843 = vmatprep.subr.bf16.mxu0 0
      %3844 = vmatpush1.bf16.xpose.msra.mxu0 0
      %3845 = vmatprep.subr.bf16.mxu0 0
      %3846 = vmatpush1.bf16.xpose.msra.mxu0 0
      %3847 = vmatprep.subr.bf16.mxu0 0
      %3848 = vmatpush1.bf16.xpose.msra.mxu0 0
      %3849 = vmatprep.subr.bf16.mxu0 0
      %3850 = vmatpush1.bf16.xpose.msra.mxu0 0
      %3851 = vmatprep.subr.bf16.mxu0 0
      %3852 = vmatpush1.bf16.xpose.msra.mxu0 0
      %3853 = vmatprep.subr.bf16.mxu0 0
      %3854 = vmatpush1.bf16.xpose.msra.mxu0 0
      %3855 = vmatprep.subr.bf16.mxu0 0
      %3856 = vmatpush1.bf16.xpose.msra.mxu0 0
      %3857 = vmatprep.mubr.bf16.mxu0 0
      %3858 = vmatmul.mubr.bf16.gmra.mrb[0].mxu0 %v3820
      %v3859 = vpop.f32.mrb[0].mxu0
      %v3860 = vadd.f32 0.0, %v3859
      %v3861 = vpop.f32.mrb[0].mxu0
      %v3862 = vpop.f32.mrb[0].mxu0
      %v3863 = vpop.f32.mrb[0].mxu0
      %3864 = vdwg.mxu0
      %v3866 = vsel %vm976, %v3416, 0
      %v3869 = vsel %vm976, %v3726, 0
      %3871 = vmatprep.subr.bf16.mxu0 0
      %3872 = vmatpush1.bf16.xpose.msra.mxu0 %v3869
      %3873 = vmatprep.subr.bf16.mxu0 0
      %3874 = vmatpush1.bf16.xpose.msra.mxu0 0
      %3875 = vmatprep.subr.bf16.mxu0 0
      %3876 = vmatpush1.bf16.xpose.msra.mxu0 0
      %3877 = vmatprep.subr.bf16.mxu0 0
      %3878 = vmatpush1.bf16.xpose.msra.mxu0 0
      %3879 = vmatprep.subr.bf16.mxu0 0
      %3880 = vmatpush1.bf16.xpose.msra.mxu0 0
      %3881 = vmatprep.subr.bf16.mxu0 0
      %3882 = vmatpush1.bf16.xpose.msra.mxu0 0
      %3883 = vmatprep.subr.bf16.mxu0 0
      %3884 = vmatpush1.bf16.xpose.msra.mxu0 0
      %3885 = vmatprep.subr.bf16.mxu0 0
      %3886 = vmatpush1.bf16.xpose.msra.mxu0 0
      %3887 = vmatprep.subr.bf16.mxu0 0
      %3888 = vmatpush1.bf16.xpose.msra.mxu0 0
      %3889 = vmatprep.subr.bf16.mxu0 0
      %3890 = vmatpush1.bf16.xpose.msra.mxu0 0
      %3891 = vmatprep.subr.bf16.mxu0 0
      %3892 = vmatpush1.bf16.xpose.msra.mxu0 0
      %3893 = vmatprep.subr.bf16.mxu0 0
      %3894 = vmatpush1.bf16.xpose.msra.mxu0 0
      %3895 = vmatprep.subr.bf16.mxu0 0
      %3896 = vmatpush1.bf16.xpose.msra.mxu0 0
      %3897 = vmatprep.subr.bf16.mxu0 0
      %3898 = vmatpush1.bf16.xpose.msra.mxu0 0
      %3899 = vmatprep.subr.bf16.mxu0 0
      %3900 = vmatpush1.bf16.xpose.msra.mxu0 0
      %3901 = vmatprep.subr.bf16.mxu0 0
      %3902 = vmatpush1.bf16.xpose.msra.mxu0 0
      %3903 = vmatprep.mubr.bf16.mxu0 0
      %3904 = vmatmul.mubr.bf16.gmra.mrb[0].mxu0 %v3866
      %v3905 = vpop.f32.mrb[0].mxu0
      %v3906 = vadd.f32 0.0, %v3905
      %v3907 = vpop.f32.mrb[0].mxu0
      %v3908 = vpop.f32.mrb[0].mxu0
      %v3909 = vpop.f32.mrb[0].mxu0
      %3910 = vdwg.mxu0
      %3911 = vxpose.xlu0.b32.start [1/16] %v3768, 128
      %3912 = vxpose.xlu0.b32.cont [2/16] %v3814, 128
      %3913 = vxpose.xlu0.b32.cont [3/16] %v3860, 128
      %3914 = vxpose.xlu0.b32.cont [4/16] %v3906, 128
      %3915 = vxpose.xlu0.b32.cont [5/16] 0.0, 128
      %3916 = vxpose.xlu0.b32.cont [6/16] 0.0, 128
      %3917 = vxpose.xlu0.b32.cont [7/16] 0.0, 128
      %3918 = vxpose.xlu0.b32.cont [8/16] 0.0, 128
      %3919 = vxpose.xlu0.b32.cont [9/16] 0.0, 128
      %3920 = vxpose.xlu0.b32.cont [10/16] 0.0, 128
      %3921 = vxpose.xlu0.b32.cont [11/16] 0.0, 128
      %3922 = vxpose.xlu0.b32.cont [12/16] 0.0, 128
      %3923 = vxpose.xlu0.b32.cont [13/16] 0.0, 128
      %3924 = vxpose.xlu0.b32.cont [14/16] 0.0, 128
      %3925 = vxpose.xlu0.b32.cont [15/16] 0.0, 128
      %3926 = vxpose.xlu0.b32.end [16/16] 0.0, 128
      %v3927 = vpop.trf.xlu0
      %v3928 = vpop.trf.xlu0
      %v3929 = vpop.trf.xlu0
      %v3930 = vpop.trf.xlu0
      %v3931 = vpop.trf.xlu0
      %v3932 = vpop.trf.xlu0
      %v3933 = vpop.trf.xlu0
      %v3934 = vpop.trf.xlu0
      %v3935 = vpop.trf.xlu0
      %v3936 = vpop.trf.xlu0
      %v3937 = vpop.trf.xlu0
      %v3938 = vpop.trf.xlu0
      %v3939 = vpop.trf.xlu0
      %v3940 = vpop.trf.xlu0
      %v3941 = vpop.trf.xlu0
      %v3942 = vpop.trf.xlu0
      %v3943 = vpack.c.bf16 %v3927, %v3927
      %v3944 = vld [vmem:[%s16] sm:$0xf]
      %v3945 = vld [vmem:[%s16 + $0x4] sm:$0xf]
      %v3946 = vld [vmem:[%s16 + $0x8] sm:$0xf]
      %v3947 = vld [vmem:[%s16 + $0xc] sm:$0xf]
      %v3948 = vlaneseq
      %v3949 = vshrl.u32 %v3948, 7
      %v3950 = vsub.s32 4, %v3949
      %v3951 = vrot.slane %v2496, %v3950
      %v3956 = vunpack.c.l.b16 %v3944
      %v3957 = vunpack.c.l.b16 %v3945
      %v3958 = vunpack.c.l.b16 %v3946
      %v3959 = vunpack.c.l.b16 %v3947
      %v3960 = vpack.c.b16 %v3957, %v3956
      %v3961 = vpack.c.b16 %v3959, %v3958
      %v3965 = vsel %vm872, %v3943, 0
      %3967 = vmatprep.subr.bf16.mxu0 0
      %3968 = vmatpush1.bf16.msra.mxu0 %v3960
      %3969 = vmatprep.subr.bf16.mxu0 0
      %3970 = vmatpush1.bf16.msra.mxu0 %v3961
      %3971 = vmatprep.subr.bf16.mxu0 0
      %3972 = vmatpush1.bf16.msra.mxu0 0
      %3973 = vmatprep.subr.bf16.mxu0 0
      %3974 = vmatpush1.bf16.msra.mxu0 0
      %3975 = vmatprep.subr.bf16.mxu0 0
      %3976 = vmatpush1.bf16.msra.mxu0 0
      %3977 = vmatprep.subr.bf16.mxu0 0
      %3978 = vmatpush1.bf16.msra.mxu0 0
      %3979 = vmatprep.subr.bf16.mxu0 0
      %3980 = vmatpush1.bf16.msra.mxu0 0
      %3981 = vmatprep.subr.bf16.mxu0 0
      %3982 = vmatpush1.bf16.msra.mxu0 0
      %3983 = vmatprep.subr.bf16.mxu0 0
      %3984 = vmatpush1.bf16.msra.mxu0 0
      %3985 = vmatprep.subr.bf16.mxu0 0
      %3986 = vmatpush1.bf16.msra.mxu0 0
      %3987 = vmatprep.subr.bf16.mxu0 0
      %3988 = vmatpush1.bf16.msra.mxu0 0
      %3989 = vmatprep.subr.bf16.mxu0 0
      %3990 = vmatpush1.bf16.msra.mxu0 0
      %3991 = vmatprep.subr.bf16.mxu0 0
      %3992 = vmatpush1.bf16.msra.mxu0 0
      %3993 = vmatprep.subr.bf16.mxu0 0
      %3994 = vmatpush1.bf16.msra.mxu0 0
      %3995 = vmatprep.subr.bf16.mxu0 0
      %3996 = vmatpush1.bf16.msra.mxu0 0
      %3997 = vmatprep.subr.bf16.mxu0 0
      %3998 = vmatpush1.bf16.msra.mxu0 0
      %3999 = vmatprep.mubr.bf16.mxu0 0
      %4000 = vmatmul.mubr.bf16.gmra.mrb[0].mxu0 %v3965
      %v4001 = vpop.f32.mrb[0].mxu0
      %v4002 = vadd.f32 %v3951, %v4001
      %v4003 = vpop.f32.mrb[0].mxu0
      %v4004 = vpop.f32.mrb[0].mxu0
      %v4005 = vpop.f32.mrb[0].mxu0
      %4006 = vdwg.mxu0
      %v4007 = vadd.f32 %v3213, %v4002
      %v4008 = vsel %vm872, %v4007, 0.0
      %4009 = vadd.xlane.f32.xlu0 %v4008
      %v4010 = vpop.xlane.xlu0 %4009
      %v4011 = vmul.f32 %v4010, %v1642
      %v4012 = vsub.f32 %v4007, %v4011
      %v4013 = vmul.f32 %v4012, %v4012
      %v4014 = vsel %vm872, %v4013, 0.0
      %4015 = vadd.xlane.f32.xlu0 %v4014
      %v4016 = vpop.xlane.xlu0 %4015
      %v4017 = vmul.f32 %v4016, %v1642
      %v4018 = vadd.f32 %v4017, 1e-05
      %v4019 = vrsqrt.pop %v4018
      %v4020 = vmul.f32 %v4012, %v4019
      %v4021 = vlaneseq
      %v4022 = vshrl.u32 %v4021, 7
      %v4023 = vsub.s32 1, %v4022
      %v4024 = vrot.slane %v2497, %v4023
      %v4025 = vmul.f32 %v4020, %v4024
      %v4026 = vlaneseq
      %v4027 = vshrl.u32 %v4026, 7
      %v4028 = vsub.s32 2, %v4027
      %v4029 = vrot.slane %v2497, %v4028
      %v4030 = vadd.f32 %v4025, %v4029
      %v4031 = vpack.c.bf16 %v4030, %v4030
      %v4032 = vld [vmem:[%s17] sm:$0xf]
      %v4033 = vld [vmem:[%s17 + $0x4] sm:$0xf]
      %v4034 = vld [vmem:[%s17 + $0x8] sm:$0xf]
      %v4035 = vld [vmem:[%s17 + $0xc] sm:$0xf]
      %v4036 = vlaneseq
      %v4037 = vshrl.u32 %v4036, 7
      %v4038 = vsub.s32 5, %v4037
      %v4039 = vrot.slane %v2496, %v4038
      %v4044 = vunpack.c.l.b16 %v4032
      %v4045 = vunpack.c.l.b16 %v4033
      %v4046 = vunpack.c.l.b16 %v4034
      %v4047 = vunpack.c.l.b16 %v4035
      %v4048 = vpack.c.b16 %v4045, %v4044
      %v4049 = vpack.c.b16 %v4047, %v4046
      %v4053 = vsel %vm872, %v4031, 0
      %4055 = vmatprep.subr.bf16.mxu0 0
      %4056 = vmatpush1.bf16.msra.mxu0 %v4048
      %4057 = vmatprep.subr.bf16.mxu0 0
      %4058 = vmatpush1.bf16.msra.mxu0 %v4049
      %4059 = vmatprep.subr.bf16.mxu0 0
      %4060 = vmatpush1.bf16.msra.mxu0 0
      %4061 = vmatprep.subr.bf16.mxu0 0
      %4062 = vmatpush1.bf16.msra.mxu0 0
      %4063 = vmatprep.subr.bf16.mxu0 0
      %4064 = vmatpush1.bf16.msra.mxu0 0
      %4065 = vmatprep.subr.bf16.mxu0 0
      %4066 = vmatpush1.bf16.msra.mxu0 0
      %4067 = vmatprep.subr.bf16.mxu0 0
      %4068 = vmatpush1.bf16.msra.mxu0 0
      %4069 = vmatprep.subr.bf16.mxu0 0
      %4070 = vmatpush1.bf16.msra.mxu0 0
      %4071 = vmatprep.subr.bf16.mxu0 0
      %4072 = vmatpush1.bf16.msra.mxu0 0
      %4073 = vmatprep.subr.bf16.mxu0 0
      %4074 = vmatpush1.bf16.msra.mxu0 0
      %4075 = vmatprep.subr.bf16.mxu0 0
      %4076 = vmatpush1.bf16.msra.mxu0 0
      %4077 = vmatprep.subr.bf16.mxu0 0
      %4078 = vmatpush1.bf16.msra.mxu0 0
      %4079 = vmatprep.subr.bf16.mxu0 0
      %4080 = vmatpush1.bf16.msra.mxu0 0
      %4081 = vmatprep.subr.bf16.mxu0 0
      %4082 = vmatpush1.bf16.msra.mxu0 0
      %4083 = vmatprep.subr.bf16.mxu0 0
      %4084 = vmatpush1.bf16.msra.mxu0 0
      %4085 = vmatprep.subr.bf16.mxu0 0
      %4086 = vmatpush1.bf16.msra.mxu0 0
      %4087 = vmatprep.mubr.bf16.mxu0 0
      %4088 = vmatmul.mubr.bf16.gmra.mrb[0].mxu0 %v4053
      %v4089 = vpop.f32.mrb[0].mxu0
      %v4090 = vadd.f32 %v4039, %v4089
      %v4091 = vpop.f32.mrb[0].mxu0
      %v4092 = vpop.f32.mrb[0].mxu0
      %v4093 = vpop.f32.mrb[0].mxu0
      %4094 = vdwg.mxu0
      %v4095 = vmax.f32 %v4090, 0.0
      %v4096 = vpack.c.bf16 %v4095, %v4095
      %v4097 = vld [vmem:[%s18] sm:$0xf]
      %v4098 = vld [vmem:[%s18 + $0x4] sm:$0xf]
      %v4099 = vld [vmem:[%s18 + $0x8] sm:$0xf]
      %v4100 = vld [vmem:[%s18 + $0xc] sm:$0xf]
      %v4101 = vld [vmem:[%s18 + $0x10] sm:$0xf]
      %v4102 = vld [vmem:[%s18 + $0x14] sm:$0xf]
      %v4103 = vld [vmem:[%s18 + $0x18] sm:$0xf]
      %v4104 = vld [vmem:[%s18 + $0x1c] sm:$0xf]
      %v4105 = vlaneseq
      %v4106 = vshrl.u32 %v4105, 7
      %v4107 = vsub.s32 6, %v4106
      %v4108 = vrot.slane %v2496, %v4107
      %v4117 = vunpack.c.l.b16 %v4097
      %v4118 = vunpack.c.l.b16 %v4098
      %v4119 = vunpack.c.l.b16 %v4099
      %v4120 = vunpack.c.l.b16 %v4100
      %v4121 = vunpack.c.l.b16 %v4101
      %v4122 = vunpack.c.l.b16 %v4102
      %v4123 = vunpack.c.l.b16 %v4103
      %v4124 = vunpack.c.l.b16 %v4104
      %v4125 = vpack.c.b16 %v4118, %v4117
      %v4126 = vpack.c.b16 %v4120, %v4119
      %v4127 = vpack.c.b16 %v4122, %v4121
      %v4128 = vpack.c.b16 %v4124, %v4123
      %vm4133 = vcmask 523264
      %v4135 = vsel %vm4133, %v4096, 0
      %4137 = vmatprep.subr.bf16.mxu0 0
      %4138 = vmatpush1.bf16.msra.mxu0 %v4125
      %4139 = vmatprep.subr.bf16.mxu0 0
      %4140 = vmatpush1.bf16.msra.mxu0 %v4126
      %4141 = vmatprep.subr.bf16.mxu0 0
      %4142 = vmatpush1.bf16.msra.mxu0 %v4127
      %4143 = vmatprep.subr.bf16.mxu0 0
      %4144 = vmatpush1.bf16.msra.mxu0 %v4128
      %4145 = vmatprep.subr.bf16.mxu0 0
      %4146 = vmatpush1.bf16.msra.mxu0 0
      %4147 = vmatprep.subr.bf16.mxu0 0
      %4148 = vmatpush1.bf16.msra.mxu0 0
      %4149 = vmatprep.subr.bf16.mxu0 0
      %4150 = vmatpush1.bf16.msra.mxu0 0
      %4151 = vmatprep.subr.bf16.mxu0 0
      %4152 = vmatpush1.bf16.msra.mxu0 0
      %4153 = vmatprep.subr.bf16.mxu0 0
      %4154 = vmatpush1.bf16.msra.mxu0 0
      %4155 = vmatprep.subr.bf16.mxu0 0
      %4156 = vmatpush1.bf16.msra.mxu0 0
      %4157 = vmatprep.subr.bf16.mxu0 0
      %4158 = vmatpush1.bf16.msra.mxu0 0
      %4159 = vmatprep.subr.bf16.mxu0 0
      %4160 = vmatpush1.bf16.msra.mxu0 0
      %4161 = vmatprep.subr.bf16.mxu0 0
      %4162 = vmatpush1.bf16.msra.mxu0 0
      %4163 = vmatprep.subr.bf16.mxu0 0
      %4164 = vmatpush1.bf16.msra.mxu0 0
      %4165 = vmatprep.subr.bf16.mxu0 0
      %4166 = vmatpush1.bf16.msra.mxu0 0
      %4167 = vmatprep.subr.bf16.mxu0 0
      %4168 = vmatpush1.bf16.msra.mxu0 0
      %4169 = vmatprep.mubr.bf16.mxu0 0
      %4170 = vmatmul.mubr.bf16.gmra.mrb[0].mxu0 %v4135
      %v4171 = vpop.f32.mrb[0].mxu0
      %v4172 = vadd.f32 %v4108, %v4171
      %v4173 = vpop.f32.mrb[0].mxu0
      %v4174 = vpop.f32.mrb[0].mxu0
      %v4175 = vpop.f32.mrb[0].mxu0
      %4176 = vdwg.mxu0
      %v4177 = vadd.f32 %v4030, %v4172
      %v4178 = vsel %vm872, %v4177, 0.0
      %4179 = vadd.xlane.f32.xlu0 %v4178
      %v4180 = vpop.xlane.xlu0 %4179
      %v4181 = vmul.f32 %v4180, %v1642
      %v4182 = vsub.f32 %v4177, %v4181
      %v4183 = vmul.f32 %v4182, %v4182
      %v4184 = vsel %vm872, %v4183, 0.0
      %4185 = vadd.xlane.f32.xlu0 %v4184
      %v4186 = vpop.xlane.xlu0 %4185
      %v4187 = vmul.f32 %v4186, %v1642
      %v4188 = vadd.f32 %v4187, 1e-05
      %v4189 = vrsqrt.pop %v4188
      %v4190 = vmul.f32 %v4182, %v4189
      %v4191 = vlaneseq
      %v4192 = vshrl.u32 %v4191, 7
      %v4193 = vsub.s32 3, %v4192
      %v4194 = vrot.slane %v2497, %v4193
      %v4195 = vmul.f32 %v4190, %v4194
      %v4196 = vlaneseq
      %v4197 = vshrl.u32 %v4196, 7
      %v4198 = vsub.s32 4, %v4197
      %v4199 = vrot.slane %v2497, %v4198
      %v4200 = vadd.f32 %v4195, %v4199
      %s4201 = scalar_lea.vmem %s19, 16
      %v4202 = vld [vmem:[%s4201] sm:$0xff]
      %v4203 = vld [vmem:[%s4201 + $0x8] sm:$0xff]
      %v4204 = vpack.c.bf16 %v4200, %v4200
      %s4205 = scalar_lea.vmem %s12, 16
      %v4206 = vld [vmem:[%s4205] sm:$0xf]
      %v4207 = vld [vmem:[%s4205 + $0x4] sm:$0xf]
      %v4208 = vld [vmem:[%s4205 + $0x8] sm:$0xf]
      %v4209 = vld [vmem:[%s4205 + $0xc] sm:$0xf]
      %v4210 = vlaneseq
      %v4211 = vshrl.u32 %v4210, 7
      %v4212 = vsub.s32 0, %v4211
      %v4213 = vrot.slane %v4202, %v4212
      %v4218 = vunpack.c.l.b16 %v4206
      %v4219 = vunpack.c.l.b16 %v4207
      %v4220 = vunpack.c.l.b16 %v4208
      %v4221 = vunpack.c.l.b16 %v4209
      %v4222 = vpack.c.b16 %v4219, %v4218
      %v4223 = vpack.c.b16 %v4221, %v4220
      %v4227 = vsel %vm872, %v4204, 0
      %4229 = vmatprep.subr.bf16.mxu0 0
      %4230 = vmatpush1.bf16.msra.mxu0 %v4222
      %4231 = vmatprep.subr.bf16.mxu0 0
      %4232 = vmatpush1.bf16.msra.mxu0 %v4223
      %4233 = vmatprep.subr.bf16.mxu0 0
      %4234 = vmatpush1.bf16.msra.mxu0 0
      %4235 = vmatprep.subr.bf16.mxu0 0
      %4236 = vmatpush1.bf16.msra.mxu0 0
      %4237 = vmatprep.subr.bf16.mxu0 0
      %4238 = vmatpush1.bf16.msra.mxu0 0
      %4239 = vmatprep.subr.bf16.mxu0 0
      %4240 = vmatpush1.bf16.msra.mxu0 0
      %4241 = vmatprep.subr.bf16.mxu0 0
      %4242 = vmatpush1.bf16.msra.mxu0 0
      %4243 = vmatprep.subr.bf16.mxu0 0
      %4244 = vmatpush1.bf16.msra.mxu0 0
      %4245 = vmatprep.subr.bf16.mxu0 0
      %4246 = vmatpush1.bf16.msra.mxu0 0
      %4247 = vmatprep.subr.bf16.mxu0 0
      %4248 = vmatpush1.bf16.msra.mxu0 0
      %4249 = vmatprep.subr.bf16.mxu0 0
      %4250 = vmatpush1.bf16.msra.mxu0 0
      %4251 = vmatprep.subr.bf16.mxu0 0
      %4252 = vmatpush1.bf16.msra.mxu0 0
      %4253 = vmatprep.subr.bf16.mxu0 0
      %4254 = vmatpush1.bf16.msra.mxu0 0
      %4255 = vmatprep.subr.bf16.mxu0 0
      %4256 = vmatpush1.bf16.msra.mxu0 0
      %4257 = vmatprep.subr.bf16.mxu0 0
      %4258 = vmatpush1.bf16.msra.mxu0 0
      %4259 = vmatprep.subr.bf16.mxu0 0
      %4260 = vmatpush1.bf16.msra.mxu0 0
      %4261 = vmatprep.mubr.bf16.mxu0 0
      %4262 = vmatmul.mubr.bf16.gmra.mrb[0].mxu0 %v4227
      %v4263 = vpop.f32.mrb[0].mxu0
      %v4264 = vadd.f32 %v4213, %v4263
      %v4265 = vpop.f32.mrb[0].mxu0
      %v4266 = vpop.f32.mrb[0].mxu0
      %v4267 = vpop.f32.mrb[0].mxu0
      %4268 = vdwg.mxu0
      %4269 = vxpose.xlu0.b32.start [1/16] %v4264, 128
      %4270 = vxpose.xlu0.b32.cont [2/16] 0.0, 128
      %4271 = vxpose.xlu0.b32.cont [3/16] 0.0, 128
      %4272 = vxpose.xlu0.b32.cont [4/16] 0.0, 128
      %4273 = vxpose.xlu0.b32.cont [5/16] 0.0, 128
      %4274 = vxpose.xlu0.b32.cont [6/16] 0.0, 128
      %4275 = vxpose.xlu0.b32.cont [7/16] 0.0, 128
      %4276 = vxpose.xlu0.b32.cont [8/16] 0.0, 128
      %4277 = vxpose.xlu0.b32.cont [9/16] 0.0, 128
      %4278 = vxpose.xlu0.b32.cont [10/16] 0.0, 128
      %4279 = vxpose.xlu0.b32.cont [11/16] 0.0, 128
      %4280 = vxpose.xlu0.b32.cont [12/16] 0.0, 128
      %4281 = vxpose.xlu0.b32.cont [13/16] 0.0, 128
      %4282 = vxpose.xlu0.b32.cont [14/16] 0.0, 128
      %4283 = vxpose.xlu0.b32.cont [15/16] 0.0, 128
      %4284 = vxpose.xlu0.b32.end [16/16] 0.0, 128
      %v4285 = vpop.trf.xlu0
      %v4286 = vpop.trf.xlu0
      %v4287 = vpop.trf.xlu0
      %v4288 = vpop.trf.xlu0
      %v4289 = vpop.trf.xlu0
      %v4290 = vpop.trf.xlu0
      %v4291 = vpop.trf.xlu0
      %v4292 = vpop.trf.xlu0
      %v4293 = vpop.trf.xlu0
      %v4294 = vpop.trf.xlu0
      %v4295 = vpop.trf.xlu0
      %v4296 = vpop.trf.xlu0
      %v4297 = vpop.trf.xlu0
      %v4298 = vpop.trf.xlu0
      %v4299 = vpop.trf.xlu0
      %v4300 = vpop.trf.xlu0
      %v4301 = vpack.c.bf16 %v4285, %v4285
      %v4302 = vpack.c.bf16 %v4286, %v4286
      %v4303 = vpack.c.bf16 %v4287, %v4287
      %v4304 = vpack.c.bf16 %v4288, %v4288
      %v4305 = vpack.c.bf16 %v4289, %v4289
      %v4306 = vpack.c.bf16 %v4290, %v4290
      %v4307 = vpack.c.bf16 %v4291, %v4291
      %v4308 = vpack.c.bf16 %v4292, %v4292
      %v4309 = vpack.c.bf16 %v4293, %v4293
      %v4310 = vpack.c.bf16 %v4294, %v4294
      %v4311 = vpack.c.bf16 %v4295, %v4295
      %v4312 = vpack.c.bf16 %v4296, %v4296
      %4313 = vxpose.xlu0.c.b16.start [1/8] %v4301, 128
      %4314 = vxpose.xlu0.c.b16.cont [2/8] 0, 128
      %4315 = vxpose.xlu0.c.b16.cont [3/8] 0, 128
      %4316 = vxpose.xlu0.c.b16.cont [4/8] 0, 128
      %4317 = vxpose.xlu0.c.b16.cont [5/8] 0, 128
      %4318 = vxpose.xlu0.c.b16.cont [6/8] 0, 128
      %4319 = vxpose.xlu0.c.b16.cont [7/8] 0, 128
      %4320 = vxpose.xlu0.c.b16.end [8/8] 0, 128
      %v4321 = vpop.trf.xlu0
      %v4322 = vpop.trf.xlu0
      %v4323 = vpop.trf.xlu0
      %v4324 = vpop.trf.xlu0
      %v4325 = vpop.trf.xlu0
      %v4326 = vpop.trf.xlu0
      %v4327 = vpop.trf.xlu0
      %v4328 = vpop.trf.xlu0
      %v4330 = vsel %vm976, %v4321, 0
      %v4333 = vsel %vm980, %v4305, 0
      %4335 = vmatprep.subr.bf16.mxu0 0
      %4336 = vmatpush1.bf16.msra.mxu0 %v4333
      %4337 = vmatprep.subr.bf16.mxu0 0
      %4338 = vmatpush1.bf16.msra.mxu0 0
      %4339 = vmatprep.subr.bf16.mxu0 0
      %4340 = vmatpush1.bf16.msra.mxu0 0
      %4341 = vmatprep.subr.bf16.mxu0 0
      %4342 = vmatpush1.bf16.msra.mxu0 0
      %4343 = vmatprep.subr.bf16.mxu0 0
      %4344 = vmatpush1.bf16.msra.mxu0 0
      %4345 = vmatprep.subr.bf16.mxu0 0
      %4346 = vmatpush1.bf16.msra.mxu0 0
      %4347 = vmatprep.subr.bf16.mxu0 0
      %4348 = vmatpush1.bf16.msra.mxu0 0
      %4349 = vmatprep.subr.bf16.mxu0 0
      %4350 = vmatpush1.bf16.msra.mxu0 0
      %4351 = vmatprep.subr.bf16.mxu0 0
      %4352 = vmatpush1.bf16.msra.mxu0 0
      %4353 = vmatprep.subr.bf16.mxu0 0
      %4354 = vmatpush1.bf16.msra.mxu0 0
      %4355 = vmatprep.subr.bf16.mxu0 0
      %4356 = vmatpush1.bf16.msra.mxu0 0
      %4357 = vmatprep.subr.bf16.mxu0 0
      %4358 = vmatpush1.bf16.msra.mxu0 0
      %4359 = vmatprep.subr.bf16.mxu0 0
      %4360 = vmatpush1.bf16.msra.mxu0 0
      %4361 = vmatprep.subr.bf16.mxu0 0
      %4362 = vmatpush1.bf16.msra.mxu0 0
      %4363 = vmatprep.subr.bf16.mxu0 0
      %4364 = vmatpush1.bf16.msra.mxu0 0
      %4365 = vmatprep.subr.bf16.mxu0 0
      %4366 = vmatpush1.bf16.msra.mxu0 0
      %4367 = vmatprep.mubr.bf16.mxu0 0
      %4368 = vmatmul.mubr.bf16.gmra.mrb[0].mxu0 %v4330
      %v4369 = vpop.f32.mrb[0].mxu0
      %v4370 = vadd.f32 0.0, %v4369
      %v4371 = vpop.f32.mrb[0].mxu0
      %v4372 = vpop.f32.mrb[0].mxu0
      %v4373 = vpop.f32.mrb[0].mxu0
      %4374 = vdwg.mxu0
      %4375 = vxpose.xlu0.c.b16.start [1/8] %v4302, 128
      %4376 = vxpose.xlu0.c.b16.cont [2/8] 0, 128
      %4377 = vxpose.xlu0.c.b16.cont [3/8] 0, 128
      %4378 = vxpose.xlu0.c.b16.cont [4/8] 0, 128
      %4379 = vxpose.xlu0.c.b16.cont [5/8] 0, 128
      %4380 = vxpose.xlu0.c.b16.cont [6/8] 0, 128
      %4381 = vxpose.xlu0.c.b16.cont [7/8] 0, 128
      %4382 = vxpose.xlu0.c.b16.end [8/8] 0, 128
      %v4383 = vpop.trf.xlu0
      %v4384 = vpop.trf.xlu0
      %v4385 = vpop.trf.xlu0
      %v4386 = vpop.trf.xlu0
      %v4387 = vpop.trf.xlu0
      %v4388 = vpop.trf.xlu0
      %v4389 = vpop.trf.xlu0
      %v4390 = vpop.trf.xlu0
      %v4392 = vsel %vm976, %v4383, 0
      %v4395 = vsel %vm980, %v4306, 0
      %4397 = vmatprep.subr.bf16.mxu0 0
      %4398 = vmatpush1.bf16.msra.mxu0 %v4395
      %4399 = vmatprep.subr.bf16.mxu0 0
      %4400 = vmatpush1.bf16.msra.mxu0 0
      %4401 = vmatprep.subr.bf16.mxu0 0
      %4402 = vmatpush1.bf16.msra.mxu0 0
      %4403 = vmatprep.subr.bf16.mxu0 0
      %4404 = vmatpush1.bf16.msra.mxu0 0
      %4405 = vmatprep.subr.bf16.mxu0 0
      %4406 = vmatpush1.bf16.msra.mxu0 0
      %4407 = vmatprep.subr.bf16.mxu0 0
      %4408 = vmatpush1.bf16.msra.mxu0 0
      %4409 = vmatprep.subr.bf16.mxu0 0
      %4410 = vmatpush1.bf16.msra.mxu0 0
      %4411 = vmatprep.subr.bf16.mxu0 0
      %4412 = vmatpush1.bf16.msra.mxu0 0
      %4413 = vmatprep.subr.bf16.mxu0 0
      %4414 = vmatpush1.bf16.msra.mxu0 0
      %4415 = vmatprep.subr.bf16.mxu0 0
      %4416 = vmatpush1.bf16.msra.mxu0 0
      %4417 = vmatprep.subr.bf16.mxu0 0
      %4418 = vmatpush1.bf16.msra.mxu0 0
      %4419 = vmatprep.subr.bf16.mxu0 0
      %4420 = vmatpush1.bf16.msra.mxu0 0
      %4421 = vmatprep.subr.bf16.mxu0 0
      %4422 = vmatpush1.bf16.msra.mxu0 0
      %4423 = vmatprep.subr.bf16.mxu0 0
      %4424 = vmatpush1.bf16.msra.mxu0 0
      %4425 = vmatprep.subr.bf16.mxu0 0
      %4426 = vmatpush1.bf16.msra.mxu0 0
      %4427 = vmatprep.subr.bf16.mxu0 0
      %4428 = vmatpush1.bf16.msra.mxu0 0
      %4429 = vmatprep.mubr.bf16.mxu0 0
      %4430 = vmatmul.mubr.bf16.gmra.mrb[0].mxu0 %v4392
      %v4431 = vpop.f32.mrb[0].mxu0
      %v4432 = vadd.f32 0.0, %v4431
      %v4433 = vpop.f32.mrb[0].mxu0
      %v4434 = vpop.f32.mrb[0].mxu0
      %v4435 = vpop.f32.mrb[0].mxu0
      %4436 = vdwg.mxu0
      %4437 = vxpose.xlu0.c.b16.start [1/8] %v4303, 128
      %4438 = vxpose.xlu0.c.b16.cont [2/8] 0, 128
      %4439 = vxpose.xlu0.c.b16.cont [3/8] 0, 128
      %4440 = vxpose.xlu0.c.b16.cont [4/8] 0, 128
      %4441 = vxpose.xlu0.c.b16.cont [5/8] 0, 128
      %4442 = vxpose.xlu0.c.b16.cont [6/8] 0, 128
      %4443 = vxpose.xlu0.c.b16.cont [7/8] 0, 128
      %4444 = vxpose.xlu0.c.b16.end [8/8] 0, 128
      %v4445 = vpop.trf.xlu0
      %v4446 = vpop.trf.xlu0
      %v4447 = vpop.trf.xlu0
      %v4448 = vpop.trf.xlu0
      %v4449 = vpop.trf.xlu0
      %v4450 = vpop.trf.xlu0
      %v4451 = vpop.trf.xlu0
      %v4452 = vpop.trf.xlu0
      %v4454 = vsel %vm976, %v4445, 0
      %v4457 = vsel %vm980, %v4307, 0
      %4459 = vmatprep.subr.bf16.mxu0 0
      %4460 = vmatpush1.bf16.msra.mxu0 %v4457
      %4461 = vmatprep.subr.bf16.mxu0 0
      %4462 = vmatpush1.bf16.msra.mxu0 0
      %4463 = vmatprep.subr.bf16.mxu0 0
      %4464 = vmatpush1.bf16.msra.mxu0 0
      %4465 = vmatprep.subr.bf16.mxu0 0
      %4466 = vmatpush1.bf16.msra.mxu0 0
      %4467 = vmatprep.subr.bf16.mxu0 0
      %4468 = vmatpush1.bf16.msra.mxu0 0
      %4469 = vmatprep.subr.bf16.mxu0 0
      %4470 = vmatpush1.bf16.msra.mxu0 0
      %4471 = vmatprep.subr.bf16.mxu0 0
      %4472 = vmatpush1.bf16.msra.mxu0 0
      %4473 = vmatprep.subr.bf16.mxu0 0
      %4474 = vmatpush1.bf16.msra.mxu0 0
      %4475 = vmatprep.subr.bf16.mxu0 0
      %4476 = vmatpush1.bf16.msra.mxu0 0
      %4477 = vmatprep.subr.bf16.mxu0 0
      %4478 = vmatpush1.bf16.msra.mxu0 0
      %4479 = vmatprep.subr.bf16.mxu0 0
      %4480 = vmatpush1.bf16.msra.mxu0 0
      %4481 = vmatprep.subr.bf16.mxu0 0
      %4482 = vmatpush1.bf16.msra.mxu0 0
      %4483 = vmatprep.subr.bf16.mxu0 0
      %4484 = vmatpush1.bf16.msra.mxu0 0
      %4485 = vmatprep.subr.bf16.mxu0 0
      %4486 = vmatpush1.bf16.msra.mxu0 0
      %4487 = vmatprep.subr.bf16.mxu0 0
      %4488 = vmatpush1.bf16.msra.mxu0 0
      %4489 = vmatprep.subr.bf16.mxu0 0
      %4490 = vmatpush1.bf16.msra.mxu0 0
      %4491 = vmatprep.mubr.bf16.mxu0 0
      %4492 = vmatmul.mubr.bf16.gmra.mrb[0].mxu0 %v4454
      %v4493 = vpop.f32.mrb[0].mxu0
      %v4494 = vadd.f32 0.0, %v4493
      %v4495 = vpop.f32.mrb[0].mxu0
      %v4496 = vpop.f32.mrb[0].mxu0
      %v4497 = vpop.f32.mrb[0].mxu0
      %4498 = vdwg.mxu0
      %4499 = vxpose.xlu0.c.b16.start [1/8] %v4304, 128
      %4500 = vxpose.xlu0.c.b16.cont [2/8] 0, 128
      %4501 = vxpose.xlu0.c.b16.cont [3/8] 0, 128
      %4502 = vxpose.xlu0.c.b16.cont [4/8] 0, 128
      %4503 = vxpose.xlu0.c.b16.cont [5/8] 0, 128
      %4504 = vxpose.xlu0.c.b16.cont [6/8] 0, 128
      %4505 = vxpose.xlu0.c.b16.cont [7/8] 0, 128
      %4506 = vxpose.xlu0.c.b16.end [8/8] 0, 128
      %v4507 = vpop.trf.xlu0
      %v4508 = vpop.trf.xlu0
      %v4509 = vpop.trf.xlu0
      %v4510 = vpop.trf.xlu0
      %v4511 = vpop.trf.xlu0
      %v4512 = vpop.trf.xlu0
      %v4513 = vpop.trf.xlu0
      %v4514 = vpop.trf.xlu0
      %v4516 = vsel %vm976, %v4507, 0
      %v4519 = vsel %vm980, %v4308, 0
      %4521 = vmatprep.subr.bf16.mxu0 0
      %4522 = vmatpush1.bf16.msra.mxu0 %v4519
      %4523 = vmatprep.subr.bf16.mxu0 0
      %4524 = vmatpush1.bf16.msra.mxu0 0
      %4525 = vmatprep.subr.bf16.mxu0 0
      %4526 = vmatpush1.bf16.msra.mxu0 0
      %4527 = vmatprep.subr.bf16.mxu0 0
      %4528 = vmatpush1.bf16.msra.mxu0 0
      %4529 = vmatprep.subr.bf16.mxu0 0
      %4530 = vmatpush1.bf16.msra.mxu0 0
      %4531 = vmatprep.subr.bf16.mxu0 0
      %4532 = vmatpush1.bf16.msra.mxu0 0
      %4533 = vmatprep.subr.bf16.mxu0 0
      %4534 = vmatpush1.bf16.msra.mxu0 0
      %4535 = vmatprep.subr.bf16.mxu0 0
      %4536 = vmatpush1.bf16.msra.mxu0 0
      %4537 = vmatprep.subr.bf16.mxu0 0
      %4538 = vmatpush1.bf16.msra.mxu0 0
      %4539 = vmatprep.subr.bf16.mxu0 0
      %4540 = vmatpush1.bf16.msra.mxu0 0
      %4541 = vmatprep.subr.bf16.mxu0 0
      %4542 = vmatpush1.bf16.msra.mxu0 0
      %4543 = vmatprep.subr.bf16.mxu0 0
      %4544 = vmatpush1.bf16.msra.mxu0 0
      %4545 = vmatprep.subr.bf16.mxu0 0
      %4546 = vmatpush1.bf16.msra.mxu0 0
      %4547 = vmatprep.subr.bf16.mxu0 0
      %4548 = vmatpush1.bf16.msra.mxu0 0
      %4549 = vmatprep.subr.bf16.mxu0 0
      %4550 = vmatpush1.bf16.msra.mxu0 0
      %4551 = vmatprep.subr.bf16.mxu0 0
      %4552 = vmatpush1.bf16.msra.mxu0 0
      %4553 = vmatprep.mubr.bf16.mxu0 0
      %4554 = vmatmul.mubr.bf16.gmra.mrb[0].mxu0 %v4516
      %v4555 = vpop.f32.mrb[0].mxu0
      %v4556 = vadd.f32 0.0, %v4555
      %v4557 = vpop.f32.mrb[0].mxu0
      %v4558 = vpop.f32.mrb[0].mxu0
      %v4559 = vpop.f32.mrb[0].mxu0
      %4560 = vdwg.mxu0
      %v4561 = vmul.f32 %v4370, 0.35355338
      %v4562 = vmul.f32 %v4432, 0.35355338
      %v4563 = vmul.f32 %v4494, 0.35355338
      %v4564 = vmul.f32 %v4556, 0.35355338
      %v4565 = vadd.f32 %v4561, %v2494
      %v4566 = vadd.f32 %v4562, %v2494
      %v4567 = vadd.f32 %v4563, %v2494
      %v4568 = vadd.f32 %v4564, %v2494
      %v4569 = vsel %vm976, %v4565, -inf
      %4570 = vmax.xlane.f32.xlu0 %v4569
      %v4571 = vpop.xlane.xlu0 %4570
      %v4572 = vsel %vm976, %v4566, -inf
      %4573 = vmax.xlane.f32.xlu0 %v4572
      %v4574 = vpop.xlane.xlu0 %4573
      %v4575 = vsel %vm976, %v4567, -inf
      %4576 = vmax.xlane.f32.xlu0 %v4575
      %v4577 = vpop.xlane.xlu0 %4576
      %v4578 = vsel %vm976, %v4568, -inf
      %4579 = vmax.xlane.f32.xlu0 %v4578
      %v4580 = vpop.xlane.xlu0 %4579
      %v4581 = vsub.f32 %v4565, %v4571
      %v4582 = vsub.f32 %v4566, %v4574
      %v4583 = vsub.f32 %v4567, %v4577
      %v4584 = vsub.f32 %v4568, %v4580
      %v4585 = vmul.f32 %v4581, 1.442695
      %v4586 = vpow.pop %v4585
      %v4587 = vmul.f32 %v4582, 1.442695
      %v4588 = vpow.pop %v4587
      %v4589 = vmul.f32 %v4583, 1.442695
      %v4590 = vpow.pop %v4589
      %v4591 = vmul.f32 %v4584, 1.442695
      %v4592 = vpow.pop %v4591
      %v4593 = vsel %vm976, %v4586, 0.0
      %4594 = vadd.xlane.f32.xlu0 %v4593
      %v4595 = vpop.xlane.xlu0 %4594
      %v4596 = vsel %vm976, %v4588, 0.0
      %4597 = vadd.xlane.f32.xlu0 %v4596
      %v4598 = vpop.xlane.xlu0 %4597
      %v4599 = vsel %vm976, %v4590, 0.0
      %4600 = vadd.xlane.f32.xlu0 %v4599
      %v4601 = vpop.xlane.xlu0 %4600
      %v4602 = vsel %vm976, %v4592, 0.0
      %4603 = vadd.xlane.f32.xlu0 %v4602
      %v4604 = vpop.xlane.xlu0 %4603
      %v4605 = vrcp.pop %v4595
      %v4606 = vmul.f32 %v4586, %v4605
      %v4607 = vrcp.pop %v4598
      %v4608 = vmul.f32 %v4588, %v4607
      %v4609 = vrcp.pop %v4601
      %v4610 = vmul.f32 %v4590, %v4609
      %v4611 = vrcp.pop %v4604
      %v4612 = vmul.f32 %v4592, %v4611
      %v4613 = vpack.c.bf16 %v4606, %v4606
      %v4614 = vpack.c.bf16 %v4608, %v4608
      %v4615 = vpack.c.bf16 %v4610, %v4610
      %v4616 = vpack.c.bf16 %v4612, %v4612
      %v4618 = vsel %vm976, %v4309, 0
      %v4621 = vsel %vm976, %v4613, 0
      %4623 = vmatprep.subr.bf16.mxu0 0
      %4624 = vmatpush1.bf16.xpose.msra.mxu0 %v4621
      %4625 = vmatprep.subr.bf16.mxu0 0
      %4626 = vmatpush1.bf16.xpose.msra.mxu0 0
      %4627 = vmatprep.subr.bf16.mxu0 0
      %4628 = vmatpush1.bf16.xpose.msra.mxu0 0
      %4629 = vmatprep.subr.bf16.mxu0 0
      %4630 = vmatpush1.bf16.xpose.msra.mxu0 0
      %4631 = vmatprep.subr.bf16.mxu0 0
      %4632 = vmatpush1.bf16.xpose.msra.mxu0 0
      %4633 = vmatprep.subr.bf16.mxu0 0
      %4634 = vmatpush1.bf16.xpose.msra.mxu0 0
      %4635 = vmatprep.subr.bf16.mxu0 0
      %4636 = vmatpush1.bf16.xpose.msra.mxu0 0
      %4637 = vmatprep.subr.bf16.mxu0 0
      %4638 = vmatpush1.bf16.xpose.msra.mxu0 0
      %4639 = vmatprep.subr.bf16.mxu0 0
      %4640 = vmatpush1.bf16.xpose.msra.mxu0 0
      %4641 = vmatprep.subr.bf16.mxu0 0
      %4642 = vmatpush1.bf16.xpose.msra.mxu0 0
      %4643 = vmatprep.subr.bf16.mxu0 0
      %4644 = vmatpush1.bf16.xpose.msra.mxu0 0
      %4645 = vmatprep.subr.bf16.mxu0 0
      %4646 = vmatpush1.bf16.xpose.msra.mxu0 0
      %4647 = vmatprep.subr.bf16.mxu0 0
      %4648 = vmatpush1.bf16.xpose.msra.mxu0 0
      %4649 = vmatprep.subr.bf16.mxu0 0
      %4650 = vmatpush1.bf16.xpose.msra.mxu0 0
      %4651 = vmatprep.subr.bf16.mxu0 0
      %4652 = vmatpush1.bf16.xpose.msra.mxu0 0
      %4653 = vmatprep.subr.bf16.mxu0 0
      %4654 = vmatpush1.bf16.xpose.msra.mxu0 0
      %4655 = vmatprep.mubr.bf16.mxu0 0
      %4656 = vmatmul.mubr.bf16.gmra.mrb[0].mxu0 %v4618
      %v4657 = vpop.f32.mrb[0].mxu0
      %v4658 = vadd.f32 0.0, %v4657
      %v4659 = vpop.f32.mrb[0].mxu0
      %v4660 = vpop.f32.mrb[0].mxu0
      %v4661 = vpop.f32.mrb[0].mxu0
      %4662 = vdwg.mxu0
      %v4664 = vsel %vm976, %v4310, 0
      %v4667 = vsel %vm976, %v4614, 0
      %4669 = vmatprep.subr.bf16.mxu0 0
      %4670 = vmatpush1.bf16.xpose.msra.mxu0 %v4667
      %4671 = vmatprep.subr.bf16.mxu0 0
      %4672 = vmatpush1.bf16.xpose.msra.mxu0 0
      %4673 = vmatprep.subr.bf16.mxu0 0
      %4674 = vmatpush1.bf16.xpose.msra.mxu0 0
      %4675 = vmatprep.subr.bf16.mxu0 0
      %4676 = vmatpush1.bf16.xpose.msra.mxu0 0
      %4677 = vmatprep.subr.bf16.mxu0 0
      %4678 = vmatpush1.bf16.xpose.msra.mxu0 0
      %4679 = vmatprep.subr.bf16.mxu0 0
      %4680 = vmatpush1.bf16.xpose.msra.mxu0 0
      %4681 = vmatprep.subr.bf16.mxu0 0
      %4682 = vmatpush1.bf16.xpose.msra.mxu0 0
      %4683 = vmatprep.subr.bf16.mxu0 0
      %4684 = vmatpush1.bf16.xpose.msra.mxu0 0
      %4685 = vmatprep.subr.bf16.mxu0 0
      %4686 = vmatpush1.bf16.xpose.msra.mxu0 0
      %4687 = vmatprep.subr.bf16.mxu0 0
      %4688 = vmatpush1.bf16.xpose.msra.mxu0 0
      %4689 = vmatprep.subr.bf16.mxu0 0
      %4690 = vmatpush1.bf16.xpose.msra.mxu0 0
      %4691 = vmatprep.subr.bf16.mxu0 0
      %4692 = vmatpush1.bf16.xpose.msra.mxu0 0
      %4693 = vmatprep.subr.bf16.mxu0 0
      %4694 = vmatpush1.bf16.xpose.msra.mxu0 0
      %4695 = vmatprep.subr.bf16.mxu0 0
      %4696 = vmatpush1.bf16.xpose.msra.mxu0 0
      %4697 = vmatprep.subr.bf16.mxu0 0
      %4698 = vmatpush1.bf16.xpose.msra.mxu0 0
      %4699 = vmatprep.subr.bf16.mxu0 0
      %4700 = vmatpush1.bf16.xpose.msra.mxu0 0
      %4701 = vmatprep.mubr.bf16.mxu0 0
      %4702 = vmatmul.mubr.bf16.gmra.mrb[0].mxu0 %v4664
      %v4703 = vpop.f32.mrb[0].mxu0
      %v4704 = vadd.f32 0.0, %v4703
      %v4705 = vpop.f32.mrb[0].mxu0
      %v4706 = vpop.f32.mrb[0].mxu0
      %v4707 = vpop.f32.mrb[0].mxu0
      %4708 = vdwg.mxu0
      %v4710 = vsel %vm976, %v4311, 0
      %v4713 = vsel %vm976, %v4615, 0
      %4715 = vmatprep.subr.bf16.mxu0 0
      %4716 = vmatpush1.bf16.xpose.msra.mxu0 %v4713
      %4717 = vmatprep.subr.bf16.mxu0 0
      %4718 = vmatpush1.bf16.xpose.msra.mxu0 0
      %4719 = vmatprep.subr.bf16.mxu0 0
      %4720 = vmatpush1.bf16.xpose.msra.mxu0 0
      %4721 = vmatprep.subr.bf16.mxu0 0
      %4722 = vmatpush1.bf16.xpose.msra.mxu0 0
      %4723 = vmatprep.subr.bf16.mxu0 0
      %4724 = vmatpush1.bf16.xpose.msra.mxu0 0
      %4725 = vmatprep.subr.bf16.mxu0 0
      %4726 = vmatpush1.bf16.xpose.msra.mxu0 0
      %4727 = vmatprep.subr.bf16.mxu0 0
      %4728 = vmatpush1.bf16.xpose.msra.mxu0 0
      %4729 = vmatprep.subr.bf16.mxu0 0
      %4730 = vmatpush1.bf16.xpose.msra.mxu0 0
      %4731 = vmatprep.subr.bf16.mxu0 0
      %4732 = vmatpush1.bf16.xpose.msra.mxu0 0
      %4733 = vmatprep.subr.bf16.mxu0 0
      %4734 = vmatpush1.bf16.xpose.msra.mxu0 0
      %4735 = vmatprep.subr.bf16.mxu0 0
      %4736 = vmatpush1.bf16.xpose.msra.mxu0 0
      %4737 = vmatprep.subr.bf16.mxu0 0
      %4738 = vmatpush1.bf16.xpose.msra.mxu0 0
      %4739 = vmatprep.subr.bf16.mxu0 0
      %4740 = vmatpush1.bf16.xpose.msra.mxu0 0
      %4741 = vmatprep.subr.bf16.mxu0 0
      %4742 = vmatpush1.bf16.xpose.msra.mxu0 0
      %4743 = vmatprep.subr.bf16.mxu0 0
      %4744 = vmatpush1.bf16.xpose.msra.mxu0 0
      %4745 = vmatprep.subr.bf16.mxu0 0
      %4746 = vmatpush1.bf16.xpose.msra.mxu0 0
      %4747 = vmatprep.mubr.bf16.mxu0 0
      %4748 = vmatmul.mubr.bf16.gmra.mrb[0].mxu0 %v4710
      %v4749 = vpop.f32.mrb[0].mxu0
      %v4750 = vadd.f32 0.0, %v4749
      %v4751 = vpop.f32.mrb[0].mxu0
      %v4752 = vpop.f32.mrb[0].mxu0
      %v4753 = vpop.f32.mrb[0].mxu0
      %4754 = vdwg.mxu0
      %v4756 = vsel %vm976, %v4312, 0
      %v4759 = vsel %vm976, %v4616, 0
      %4761 = vmatprep.subr.bf16.mxu0 0
      %4762 = vmatpush1.bf16.xpose.msra.mxu0 %v4759
      %4763 = vmatprep.subr.bf16.mxu0 0
      %4764 = vmatpush1.bf16.xpose.msra.mxu0 0
      %4765 = vmatprep.subr.bf16.mxu0 0
      %4766 = vmatpush1.bf16.xpose.msra.mxu0 0
      %4767 = vmatprep.subr.bf16.mxu0 0
      %4768 = vmatpush1.bf16.xpose.msra.mxu0 0
      %4769 = vmatprep.subr.bf16.mxu0 0
      %4770 = vmatpush1.bf16.xpose.msra.mxu0 0
      %4771 = vmatprep.subr.bf16.mxu0 0
      %4772 = vmatpush1.bf16.xpose.msra.mxu0 0
      %4773 = vmatprep.subr.bf16.mxu0 0
      %4774 = vmatpush1.bf16.xpose.msra.mxu0 0
      %4775 = vmatprep.subr.bf16.mxu0 0
      %4776 = vmatpush1.bf16.xpose.msra.mxu0 0
      %4777 = vmatprep.subr.bf16.mxu0 0
      %4778 = vmatpush1.bf16.xpose.msra.mxu0 0
      %4779 = vmatprep.subr.bf16.mxu0 0
      %4780 = vmatpush1.bf16.xpose.msra.mxu0 0
      %4781 = vmatprep.subr.bf16.mxu0 0
      %4782 = vmatpush1.bf16.xpose.msra.mxu0 0
      %4783 = vmatprep.subr.bf16.mxu0 0
      %4784 = vmatpush1.bf16.xpose.msra.mxu0 0
      %4785 = vmatprep.subr.bf16.mxu0 0
      %4786 = vmatpush1.bf16.xpose.msra.mxu0 0
      %4787 = vmatprep.subr.bf16.mxu0 0
      %4788 = vmatpush1.bf16.xpose.msra.mxu0 0
      %4789 = vmatprep.subr.bf16.mxu0 0
      %4790 = vmatpush1.bf16.xpose.msra.mxu0 0
      %4791 = vmatprep.subr.bf16.mxu0 0
      %4792 = vmatpush1.bf16.xpose.msra.mxu0 0
      %4793 = vmatprep.mubr.bf16.mxu0 0
      %4794 = vmatmul.mubr.bf16.gmra.mrb[0].mxu0 %v4756
      %v4795 = vpop.f32.mrb[0].mxu0
      %v4796 = vadd.f32 0.0, %v4795
      %v4797 = vpop.f32.mrb[0].mxu0
      %v4798 = vpop.f32.mrb[0].mxu0
      %v4799 = vpop.f32.mrb[0].mxu0
      %4800 = vdwg.mxu0
      %4801 = vxpose.xlu0.b32.start [1/16] %v4658, 128
      %4802 = vxpose.xlu0.b32.cont [2/16] %v4704, 128
      %4803 = vxpose.xlu0.b32.cont [3/16] %v4750, 128
      %4804 = vxpose.xlu0.b32.cont [4/16] %v4796, 128
      %4805 = vxpose.xlu0.b32.cont [5/16] 0.0, 128
      %4806 = vxpose.xlu0.b32.cont [6/16] 0.0, 128
      %4807 = vxpose.xlu0.b32.cont [7/16] 0.0, 128
      %4808 = vxpose.xlu0.b32.cont [8/16] 0.0, 128
      %4809 = vxpose.xlu0.b32.cont [9/16] 0.0, 128
      %4810 = vxpose.xlu0.b32.cont [10/16] 0.0, 128
      %4811 = vxpose.xlu0.b32.cont [11/16] 0.0, 128
      %4812 = vxpose.xlu0.b32.cont [12/16] 0.0, 128
      %4813 = vxpose.xlu0.b32.cont [13/16] 0.0, 128
      %4814 = vxpose.xlu0.b32.cont [14/16] 0.0, 128
      %4815 = vxpose.xlu0.b32.cont [15/16] 0.0, 128
      %4816 = vxpose.xlu0.b32.end [16/16] 0.0, 128
      %v4817 = vpop.trf.xlu0
      %v4818 = vpop.trf.xlu0
      %v4819 = vpop.trf.xlu0
      %v4820 = vpop.trf.xlu0
      %v4821 = vpop.trf.xlu0
      %v4822 = vpop.trf.xlu0
      %v4823 = vpop.trf.xlu0
      %v4824 = vpop.trf.xlu0
      %v4825 = vpop.trf.xlu0
      %v4826 = vpop.trf.xlu0
      %v4827 = vpop.trf.xlu0
      %v4828 = vpop.trf.xlu0
      %v4829 = vpop.trf.xlu0
      %v4830 = vpop.trf.xlu0
      %v4831 = vpop.trf.xlu0
      %v4832 = vpop.trf.xlu0
      %v4833 = vpack.c.bf16 %v4817, %v4817
      %s4834 = scalar_lea.vmem %s13, 16
      %v4835 = vld [vmem:[%s4834] sm:$0xf]
      %v4836 = vld [vmem:[%s4834 + $0x4] sm:$0xf]
      %v4837 = vld [vmem:[%s4834 + $0x8] sm:$0xf]
      %v4838 = vld [vmem:[%s4834 + $0xc] sm:$0xf]
      %v4839 = vlaneseq
      %v4840 = vshrl.u32 %v4839, 7
      %v4841 = vsub.s32 1, %v4840
      %v4842 = vrot.slane %v4202, %v4841
      %v4847 = vunpack.c.l.b16 %v4835
      %v4848 = vunpack.c.l.b16 %v4836
      %v4849 = vunpack.c.l.b16 %v4837
      %v4850 = vunpack.c.l.b16 %v4838
      %v4851 = vpack.c.b16 %v4848, %v4847
      %v4852 = vpack.c.b16 %v4850, %v4849
      %v4856 = vsel %vm872, %v4833, 0
      %4858 = vmatprep.subr.bf16.mxu0 0
      %4859 = vmatpush1.bf16.msra.mxu0 %v4851
      %4860 = vmatprep.subr.bf16.mxu0 0
      %4861 = vmatpush1.bf16.msra.mxu0 %v4852
      %4862 = vmatprep.subr.bf16.mxu0 0
      %4863 = vmatpush1.bf16.msra.mxu0 0
      %4864 = vmatprep.subr.bf16.mxu0 0
      %4865 = vmatpush1.bf16.msra.mxu0 0
      %4866 = vmatprep.subr.bf16.mxu0 0
      %4867 = vmatpush1.bf16.msra.mxu0 0
      %4868 = vmatprep.subr.bf16.mxu0 0
      %4869 = vmatpush1.bf16.msra.mxu0 0
      %4870 = vmatprep.subr.bf16.mxu0 0
      %4871 = vmatpush1.bf16.msra.mxu0 0
      %4872 = vmatprep.subr.bf16.mxu0 0
      %4873 = vmatpush1.bf16.msra.mxu0 0
      %4874 = vmatprep.subr.bf16.mxu0 0
      %4875 = vmatpush1.bf16.msra.mxu0 0
      %4876 = vmatprep.subr.bf16.mxu0 0
      %4877 = vmatpush1.bf16.msra.mxu0 0
      %4878 = vmatprep.subr.bf16.mxu0 0
      %4879 = vmatpush1.bf16.msra.mxu0 0
      %4880 = vmatprep.subr.bf16.mxu0 0
      %4881 = vmatpush1.bf16.msra.mxu0 0
      %4882 = vmatprep.subr.bf16.mxu0 0
      %4883 = vmatpush1.bf16.msra.mxu0 0
      %4884 = vmatprep.subr.bf16.mxu0 0
      %4885 = vmatpush1.bf16.msra.mxu0 0
      %4886 = vmatprep.subr.bf16.mxu0 0
      %4887 = vmatpush1.bf16.msra.mxu0 0
      %4888 = vmatprep.subr.bf16.mxu0 0
      %4889 = vmatpush1.bf16.msra.mxu0 0
      %4890 = vmatprep.mubr.bf16.mxu0 0
      %4891 = vmatmul.mubr.bf16.gmra.mrb[0].mxu0 %v4856
      %v4892 = vpop.f32.mrb[0].mxu0
      %v4893 = vadd.f32 %v4842, %v4892
      %v4894 = vpop.f32.mrb[0].mxu0
      %v4895 = vpop.f32.mrb[0].mxu0
      %v4896 = vpop.f32.mrb[0].mxu0
      %4897 = vdwg.mxu0
      %v4898 = vadd.f32 %v4200, %v4893
      %v4899 = vsel %vm872, %v4898, 0.0
      %4900 = vadd.xlane.f32.xlu0 %v4899
      %v4901 = vpop.xlane.xlu0 %4900
      %v4902 = vmul.f32 %v4901, %v1642
      %v4903 = vsub.f32 %v4898, %v4902
      %v4904 = vmul.f32 %v4903, %v4903
      %v4905 = vsel %vm872, %v4904, 0.0
      %4906 = vadd.xlane.f32.xlu0 %v4905
      %v4907 = vpop.xlane.xlu0 %4906
      %v4908 = vmul.f32 %v4907, %v1642
      %v4909 = vadd.f32 %v4908, 1e-05
      %v4910 = vrsqrt.pop %v4909
      %v4911 = vmul.f32 %v4903, %v4910
      %v4912 = vlaneseq
      %v4913 = vshrl.u32 %v4912, 7
      %v4914 = vsub.s32 7, %v4913
      %v4915 = vrot.slane %v4202, %v4914
      %v4916 = vmul.f32 %v4911, %v4915
      %v4917 = vlaneseq
      %v4918 = vshrl.u32 %v4917, 7
      %v4919 = vsub.s32 0, %v4918
      %v4920 = vrot.slane %v4203, %v4919
      %v4921 = vadd.f32 %v4916, %v4920
      %v4922 = vpack.c.bf16 %v4921, %v4921
      %s4923 = scalar_lea.vmem %s14, 16
      %v4924 = vld [vmem:[%s4923] sm:$0xf]
      %v4925 = vld [vmem:[%s4923 + $0x4] sm:$0xf]
      %v4926 = vld [vmem:[%s4923 + $0x8] sm:$0xf]
      %v4927 = vld [vmem:[%s4923 + $0xc] sm:$0xf]
      %v4928 = vlaneseq
      %v4929 = vshrl.u32 %v4928, 7
      %v4930 = vsub.s32 2, %v4929
      %v4931 = vrot.slane %v4202, %v4930
      %v4936 = vunpack.c.l.b16 %v4924
      %v4937 = vunpack.c.l.b16 %v4925
      %v4938 = vunpack.c.l.b16 %v4926
      %v4939 = vunpack.c.l.b16 %v4927
      %v4940 = vpack.c.b16 %v4937, %v4936
      %v4941 = vpack.c.b16 %v4939, %v4938
      %v4945 = vsel %vm872, %v4922, 0
      %4947 = vmatprep.subr.bf16.mxu0 0
      %4948 = vmatpush1.bf16.msra.mxu0 %v4940
      %4949 = vmatprep.subr.bf16.mxu0 0
      %4950 = vmatpush1.bf16.msra.mxu0 %v4941
      %4951 = vmatprep.subr.bf16.mxu0 0
      %4952 = vmatpush1.bf16.msra.mxu0 0
      %4953 = vmatprep.subr.bf16.mxu0 0
      %4954 = vmatpush1.bf16.msra.mxu0 0
      %4955 = vmatprep.subr.bf16.mxu0 0
      %4956 = vmatpush1.bf16.msra.mxu0 0
      %4957 = vmatprep.subr.bf16.mxu0 0
      %4958 = vmatpush1.bf16.msra.mxu0 0
      %4959 = vmatprep.subr.bf16.mxu0 0
      %4960 = vmatpush1.bf16.msra.mxu0 0
      %4961 = vmatprep.subr.bf16.mxu0 0
      %4962 = vmatpush1.bf16.msra.mxu0 0
      %4963 = vmatprep.subr.bf16.mxu0 0
      %4964 = vmatpush1.bf16.msra.mxu0 0
      %4965 = vmatprep.subr.bf16.mxu0 0
      %4966 = vmatpush1.bf16.msra.mxu0 0
      %4967 = vmatprep.subr.bf16.mxu0 0
      %4968 = vmatpush1.bf16.msra.mxu0 0
      %4969 = vmatprep.subr.bf16.mxu0 0
      %4970 = vmatpush1.bf16.msra.mxu0 0
      %4971 = vmatprep.subr.bf16.mxu0 0
      %4972 = vmatpush1.bf16.msra.mxu0 0
      %4973 = vmatprep.subr.bf16.mxu0 0
      %4974 = vmatpush1.bf16.msra.mxu0 0
      %4975 = vmatprep.subr.bf16.mxu0 0
      %4976 = vmatpush1.bf16.msra.mxu0 0
      %4977 = vmatprep.subr.bf16.mxu0 0
      %4978 = vmatpush1.bf16.msra.mxu0 0
      %4979 = vmatprep.mubr.bf16.mxu0 0
      %4980 = vmatmul.mubr.bf16.gmra.mrb[0].mxu0 %v4945
      %v4981 = vpop.f32.mrb[0].mxu0
      %v4982 = vadd.f32 %v4931, %v4981
      %v4983 = vpop.f32.mrb[0].mxu0
      %v4984 = vpop.f32.mrb[0].mxu0
      %v4985 = vpop.f32.mrb[0].mxu0
      %4986 = vdwg.mxu0
      %s4987 = scalar_lea.vmem %s15, 16
      %v4988 = vld [vmem:[%s4987] sm:$0xf]
      %v4989 = vld [vmem:[%s4987 + $0x4] sm:$0xf]
      %v4990 = vld [vmem:[%s4987 + $0x8] sm:$0xf]
      %v4991 = vld [vmem:[%s4987 + $0xc] sm:$0xf]
      %v4992 = vlaneseq
      %v4993 = vshrl.u32 %v4992, 7
      %v4994 = vsub.s32 3, %v4993
      %v4995 = vrot.slane %v4202, %v4994
      %v5000 = vunpack.c.l.b16 %v4988
      %v5001 = vunpack.c.l.b16 %v4989
      %v5002 = vunpack.c.l.b16 %v4990
      %v5003 = vunpack.c.l.b16 %v4991
      %v5004 = vpack.c.b16 %v5001, %v5000
      %v5005 = vpack.c.b16 %v5003, %v5002
      %5008 = vmatprep.subr.bf16.mxu0 0
      %5009 = vmatpush1.bf16.msra.mxu0 %v5004
      %5010 = vmatprep.subr.bf16.mxu0 0
      %5011 = vmatpush1.bf16.msra.mxu0 %v5005
      %5012 = vmatprep.subr.bf16.mxu0 0
      %5013 = vmatpush1.bf16.msra.mxu0 0
      %5014 = vmatprep.subr.bf16.mxu0 0
      %5015 = vmatpush1.bf16.msra.mxu0 0
      %5016 = vmatprep.subr.bf16.mxu0 0
      %5017 = vmatpush1.bf16.msra.mxu0 0
      %5018 = vmatprep.subr.bf16.mxu0 0
      %5019 = vmatpush1.bf16.msra.mxu0 0
      %5020 = vmatprep.subr.bf16.mxu0 0
      %5021 = vmatpush1.bf16.msra.mxu0 0
      %5022 = vmatprep.subr.bf16.mxu0 0
      %5023 = vmatpush1.bf16.msra.mxu0 0
      %5024 = vmatprep.subr.bf16.mxu0 0
      %5025 = vmatpush1.bf16.msra.mxu0 0
      %5026 = vmatprep.subr.bf16.mxu0 0
      %5027 = vmatpush1.bf16.msra.mxu0 0
      %5028 = vmatprep.subr.bf16.mxu0 0
      %5029 = vmatpush1.bf16.msra.mxu0 0
      %5030 = vmatprep.subr.bf16.mxu0 0
      %5031 = vmatpush1.bf16.msra.mxu0 0
      %5032 = vmatprep.subr.bf16.mxu0 0
      %5033 = vmatpush1.bf16.msra.mxu0 0
      %5034 = vmatprep.subr.bf16.mxu0 0
      %5035 = vmatpush1.bf16.msra.mxu0 0
      %5036 = vmatprep.subr.bf16.mxu0 0
      %5037 = vmatpush1.bf16.msra.mxu0 0
      %5038 = vmatprep.subr.bf16.mxu0 0
      %5039 = vmatpush1.bf16.msra.mxu0 0
      %5040 = vmatprep.mubr.bf16.mxu0 0
      %5041 = vmatmul.mubr.bf16.gmra.mrb[0].mxu0 %v3299
      %v5042 = vpop.f32.mrb[0].mxu0
      %v5043 = vadd.f32 %v4995, %v5042
      %v5044 = vpop.f32.mrb[0].mxu0
      %v5045 = vpop.f32.mrb[0].mxu0
      %v5046 = vpop.f32.mrb[0].mxu0
      %5047 = vdwg.mxu0
      %5048 = vxpose.xlu0.b32.start [1/16] %v5043, 128
      %5049 = vxpose.xlu0.b32.cont [2/16] 0.0, 128
      %5050 = vxpose.xlu0.b32.cont [3/16] 0.0, 128
      %5051 = vxpose.xlu0.b32.cont [4/16] 0.0, 128
      %5052 = vxpose.xlu0.b32.cont [5/16] 0.0, 128
      %5053 = vxpose.xlu0.b32.cont [6/16] 0.0, 128
      %5054 = vxpose.xlu0.b32.cont [7/16] 0.0, 128
      %5055 = vxpose.xlu0.b32.cont [8/16] 0.0, 128
      %5056 = vxpose.xlu0.b32.cont [9/16] 0.0, 128
      %5057 = vxpose.xlu0.b32.cont [10/16] 0.0, 128
      %5058 = vxpose.xlu0.b32.cont [11/16] 0.0, 128
      %5059 = vxpose.xlu0.b32.cont [12/16] 0.0, 128
      %5060 = vxpose.xlu0.b32.cont [13/16] 0.0, 128
      %5061 = vxpose.xlu0.b32.cont [14/16] 0.0, 128
      %5062 = vxpose.xlu0.b32.cont [15/16] 0.0, 128
      %5063 = vxpose.xlu0.b32.end [16/16] 0.0, 128
      %v5064 = vpop.trf.xlu0
      %v5065 = vpop.trf.xlu0
      %v5066 = vpop.trf.xlu0
      %v5067 = vpop.trf.xlu0
      %v5068 = vpop.trf.xlu0
      %v5069 = vpop.trf.xlu0
      %v5070 = vpop.trf.xlu0
      %v5071 = vpop.trf.xlu0
      %v5072 = vpop.trf.xlu0
      %v5073 = vpop.trf.xlu0
      %v5074 = vpop.trf.xlu0
      %v5075 = vpop.trf.xlu0
      %v5076 = vpop.trf.xlu0
      %v5077 = vpop.trf.xlu0
      %v5078 = vpop.trf.xlu0
      %v5079 = vpop.trf.xlu0
      %5080 = vxpose.xlu0.b32.start [1/16] %v4982, 128
      %5081 = vxpose.xlu0.b32.cont [2/16] 0.0, 128
      %5082 = vxpose.xlu0.b32.cont [3/16] 0.0, 128
      %5083 = vxpose.xlu0.b32.cont [4/16] 0.0, 128
      %5084 = vxpose.xlu0.b32.cont [5/16] 0.0, 128
      %5085 = vxpose.xlu0.b32.cont [6/16] 0.0, 128
      %5086 = vxpose.xlu0.b32.cont [7/16] 0.0, 128
      %5087 = vxpose.xlu0.b32.cont [8/16] 0.0, 128
      %5088 = vxpose.xlu0.b32.cont [9/16] 0.0, 128
      %5089 = vxpose.xlu0.b32.cont [10/16] 0.0, 128
      %5090 = vxpose.xlu0.b32.cont [11/16] 0.0, 128
      %5091 = vxpose.xlu0.b32.cont [12/16] 0.0, 128
      %5092 = vxpose.xlu0.b32.cont [13/16] 0.0, 128
      %5093 = vxpose.xlu0.b32.cont [14/16] 0.0, 128
      %5094 = vxpose.xlu0.b32.cont [15/16] 0.0, 128
      %5095 = vxpose.xlu0.b32.end [16/16] 0.0, 128
      %v5096 = vpop.trf.xlu0
      %v5097 = vpop.trf.xlu0
      %v5098 = vpop.trf.xlu0
      %v5099 = vpop.trf.xlu0
      %v5100 = vpop.trf.xlu0
      %v5101 = vpop.trf.xlu0
      %v5102 = vpop.trf.xlu0
      %v5103 = vpop.trf.xlu0
      %v5104 = vpop.trf.xlu0
      %v5105 = vpop.trf.xlu0
      %v5106 = vpop.trf.xlu0
      %v5107 = vpop.trf.xlu0
      %v5108 = vpop.trf.xlu0
      %v5109 = vpop.trf.xlu0
      %v5110 = vpop.trf.xlu0
      %v5111 = vpop.trf.xlu0
      %v5112 = vpack.c.bf16 %v5096, %v5096
      %v5113 = vpack.c.bf16 %v5097, %v5097
      %v5114 = vpack.c.bf16 %v5098, %v5098
      %v5115 = vpack.c.bf16 %v5099, %v5099
      %v5116 = vpack.c.bf16 %v5064, %v5064
      %v5117 = vpack.c.bf16 %v5065, %v5065
      %v5118 = vpack.c.bf16 %v5066, %v5066
      %v5119 = vpack.c.bf16 %v5067, %v5067
      %v5120 = vpack.c.bf16 %v5068, %v5068
      %v5121 = vpack.c.bf16 %v5069, %v5069
      %v5122 = vpack.c.bf16 %v5070, %v5070
      %v5123 = vpack.c.bf16 %v5071, %v5071
      %5124 = vxpose.xlu0.c.b16.start [1/8] %v5112, 128
      %5125 = vxpose.xlu0.c.b16.cont [2/8] 0, 128
      %5126 = vxpose.xlu0.c.b16.cont [3/8] 0, 128
      %5127 = vxpose.xlu0.c.b16.cont [4/8] 0, 128
      %5128 = vxpose.xlu0.c.b16.cont [5/8] 0, 128
      %5129 = vxpose.xlu0.c.b16.cont [6/8] 0, 128
      %5130 = vxpose.xlu0.c.b16.cont [7/8] 0, 128
      %5131 = vxpose.xlu0.c.b16.end [8/8] 0, 128
      %v5132 = vpop.trf.xlu0
      %v5133 = vpop.trf.xlu0
      %v5134 = vpop.trf.xlu0
      %v5135 = vpop.trf.xlu0
      %v5136 = vpop.trf.xlu0
      %v5137 = vpop.trf.xlu0
      %v5138 = vpop.trf.xlu0
      %v5139 = vpop.trf.xlu0
      %v5141 = vsel %vm976, %v5132, 0
      %v5144 = vsel %vm980, %v5116, 0
      %5146 = vmatprep.subr.bf16.mxu0 0
      %5147 = vmatpush1.bf16.msra.mxu0 %v5144
      %5148 = vmatprep.subr.bf16.mxu0 0
      %5149 = vmatpush1.bf16.msra.mxu0 0
      %5150 = vmatprep.subr.bf16.mxu0 0
      %5151 = vmatpush1.bf16.msra.mxu0 0
      %5152 = vmatprep.subr.bf16.mxu0 0
      %5153 = vmatpush1.bf16.msra.mxu0 0
      %5154 = vmatprep.subr.bf16.mxu0 0
      %5155 = vmatpush1.bf16.msra.mxu0 0
      %5156 = vmatprep.subr.bf16.mxu0 0
      %5157 = vmatpush1.bf16.msra.mxu0 0
      %5158 = vmatprep.subr.bf16.mxu0 0
      %5159 = vmatpush1.bf16.msra.mxu0 0
      %5160 = vmatprep.subr.bf16.mxu0 0
      %5161 = vmatpush1.bf16.msra.mxu0 0
      %5162 = vmatprep.subr.bf16.mxu0 0
      %5163 = vmatpush1.bf16.msra.mxu0 0
      %5164 = vmatprep.subr.bf16.mxu0 0
      %5165 = vmatpush1.bf16.msra.mxu0 0
      %5166 = vmatprep.subr.bf16.mxu0 0
      %5167 = vmatpush1.bf16.msra.mxu0 0
      %5168 = vmatprep.subr.bf16.mxu0 0
      %5169 = vmatpush1.bf16.msra.mxu0 0
      %5170 = vmatprep.subr.bf16.mxu0 0
      %5171 = vmatpush1.bf16.msra.mxu0 0
      %5172 = vmatprep.subr.bf16.mxu0 0
      %5173 = vmatpush1.bf16.msra.mxu0 0
      %5174 = vmatprep.subr.bf16.mxu0 0
      %5175 = vmatpush1.bf16.msra.mxu0 0
      %5176 = vmatprep.subr.bf16.mxu0 0
      %5177 = vmatpush1.bf16.msra.mxu0 0
      %5178 = vmatprep.mubr.bf16.mxu0 0
      %5179 = vmatmul.mubr.bf16.gmra.mrb[0].mxu0 %v5141
      %v5180 = vpop.f32.mrb[0].mxu0
      %v5181 = vadd.f32 0.0, %v5180
      %v5182 = vpop.f32.mrb[0].mxu0
      %v5183 = vpop.f32.mrb[0].mxu0
      %v5184 = vpop.f32.mrb[0].mxu0
      %5185 = vdwg.mxu0
      %5186 = vxpose.xlu0.c.b16.start [1/8] %v5113, 128
      %5187 = vxpose.xlu0.c.b16.cont [2/8] 0, 128
      %5188 = vxpose.xlu0.c.b16.cont [3/8] 0, 128
      %5189 = vxpose.xlu0.c.b16.cont [4/8] 0, 128
      %5190 = vxpose.xlu0.c.b16.cont [5/8] 0, 128
      %5191 = vxpose.xlu0.c.b16.cont [6/8] 0, 128
      %5192 = vxpose.xlu0.c.b16.cont [7/8] 0, 128
      %5193 = vxpose.xlu0.c.b16.end [8/8] 0, 128
      %v5194 = vpop.trf.xlu0
      %v5195 = vpop.trf.xlu0
      %v5196 = vpop.trf.xlu0
      %v5197 = vpop.trf.xlu0
      %v5198 = vpop.trf.xlu0
      %v5199 = vpop.trf.xlu0
      %v5200 = vpop.trf.xlu0
      %v5201 = vpop.trf.xlu0
      %v5203 = vsel %vm976, %v5194, 0
      %v5206 = vsel %vm980, %v5117, 0
      %5208 = vmatprep.subr.bf16.mxu0 0
      %5209 = vmatpush1.bf16.msra.mxu0 %v5206
      %5210 = vmatprep.subr.bf16.mxu0 0
      %5211 = vmatpush1.bf16.msra.mxu0 0
      %5212 = vmatprep.subr.bf16.mxu0 0
      %5213 = vmatpush1.bf16.msra.mxu0 0
      %5214 = vmatprep.subr.bf16.mxu0 0
      %5215 = vmatpush1.bf16.msra.mxu0 0
      %5216 = vmatprep.subr.bf16.mxu0 0
      %5217 = vmatpush1.bf16.msra.mxu0 0
      %5218 = vmatprep.subr.bf16.mxu0 0
      %5219 = vmatpush1.bf16.msra.mxu0 0
      %5220 = vmatprep.subr.bf16.mxu0 0
      %5221 = vmatpush1.bf16.msra.mxu0 0
      %5222 = vmatprep.subr.bf16.mxu0 0
      %5223 = vmatpush1.bf16.msra.mxu0 0
      %5224 = vmatprep.subr.bf16.mxu0 0
      %5225 = vmatpush1.bf16.msra.mxu0 0
      %5226 = vmatprep.subr.bf16.mxu0 0
      %5227 = vmatpush1.bf16.msra.mxu0 0
      %5228 = vmatprep.subr.bf16.mxu0 0
      %5229 = vmatpush1.bf16.msra.mxu0 0
      %5230 = vmatprep.subr.bf16.mxu0 0
      %5231 = vmatpush1.bf16.msra.mxu0 0
      %5232 = vmatprep.subr.bf16.mxu0 0
      %5233 = vmatpush1.bf16.msra.mxu0 0
      %5234 = vmatprep.subr.bf16.mxu0 0
      %5235 = vmatpush1.bf16.msra.mxu0 0
      %5236 = vmatprep.subr.bf16.mxu0 0
      %5237 = vmatpush1.bf16.msra.mxu0 0
      %5238 = vmatprep.subr.bf16.mxu0 0
      %5239 = vmatpush1.bf16.msra.mxu0 0
      %5240 = vmatprep.mubr.bf16.mxu0 0
      %5241 = vmatmul.mubr.bf16.gmra.mrb[0].mxu0 %v5203
      %v5242 = vpop.f32.mrb[0].mxu0
      %v5243 = vadd.f32 0.0, %v5242
      %v5244 = vpop.f32.mrb[0].mxu0
      %v5245 = vpop.f32.mrb[0].mxu0
      %v5246 = vpop.f32.mrb[0].mxu0
      %5247 = vdwg.mxu0
      %5248 = vxpose.xlu0.c.b16.start [1/8] %v5114, 128
      %5249 = vxpose.xlu0.c.b16.cont [2/8] 0, 128
      %5250 = vxpose.xlu0.c.b16.cont [3/8] 0, 128
      %5251 = vxpose.xlu0.c.b16.cont [4/8] 0, 128
      %5252 = vxpose.xlu0.c.b16.cont [5/8] 0, 128
      %5253 = vxpose.xlu0.c.b16.cont [6/8] 0, 128
      %5254 = vxpose.xlu0.c.b16.cont [7/8] 0, 128
      %5255 = vxpose.xlu0.c.b16.end [8/8] 0, 128
      %v5256 = vpop.trf.xlu0
      %v5257 = vpop.trf.xlu0
      %v5258 = vpop.trf.xlu0
      %v5259 = vpop.trf.xlu0
      %v5260 = vpop.trf.xlu0
      %v5261 = vpop.trf.xlu0
      %v5262 = vpop.trf.xlu0
      %v5263 = vpop.trf.xlu0
      %v5265 = vsel %vm976, %v5256, 0
      %v5268 = vsel %vm980, %v5118, 0
      %5270 = vmatprep.subr.bf16.mxu0 0
      %5271 = vmatpush1.bf16.msra.mxu0 %v5268
      %5272 = vmatprep.subr.bf16.mxu0 0
      %5273 = vmatpush1.bf16.msra.mxu0 0
      %5274 = vmatprep.subr.bf16.mxu0 0
      %5275 = vmatpush1.bf16.msra.mxu0 0
      %5276 = vmatprep.subr.bf16.mxu0 0
      %5277 = vmatpush1.bf16.msra.mxu0 0
      %5278 = vmatprep.subr.bf16.mxu0 0
      %5279 = vmatpush1.bf16.msra.mxu0 0
      %5280 = vmatprep.subr.bf16.mxu0 0
      %5281 = vmatpush1.bf16.msra.mxu0 0
      %5282 = vmatprep.subr.bf16.mxu0 0
      %5283 = vmatpush1.bf16.msra.mxu0 0
      %5284 = vmatprep.subr.bf16.mxu0 0
      %5285 = vmatpush1.bf16.msra.mxu0 0
      %5286 = vmatprep.subr.bf16.mxu0 0
      %5287 = vmatpush1.bf16.msra.mxu0 0
      %5288 = vmatprep.subr.bf16.mxu0 0
      %5289 = vmatpush1.bf16.msra.mxu0 0
      %5290 = vmatprep.subr.bf16.mxu0 0
      %5291 = vmatpush1.bf16.msra.mxu0 0
      %5292 = vmatprep.subr.bf16.mxu0 0
      %5293 = vmatpush1.bf16.msra.mxu0 0
      %5294 = vmatprep.subr.bf16.mxu0 0
      %5295 = vmatpush1.bf16.msra.mxu0 0
      %5296 = vmatprep.subr.bf16.mxu0 0
      %5297 = vmatpush1.bf16.msra.mxu0 0
      %5298 = vmatprep.subr.bf16.mxu0 0
      %5299 = vmatpush1.bf16.msra.mxu0 0
      %5300 = vmatprep.subr.bf16.mxu0 0
      %5301 = vmatpush1.bf16.msra.mxu0 0
      %5302 = vmatprep.mubr.bf16.mxu0 0
      %5303 = vmatmul.mubr.bf16.gmra.mrb[0].mxu0 %v5265
      %v5304 = vpop.f32.mrb[0].mxu0
      %v5305 = vadd.f32 0.0, %v5304
      %v5306 = vpop.f32.mrb[0].mxu0
      %v5307 = vpop.f32.mrb[0].mxu0
      %v5308 = vpop.f32.mrb[0].mxu0
      %5309 = vdwg.mxu0
      %5310 = vxpose.xlu0.c.b16.start [1/8] %v5115, 128
      %5311 = vxpose.xlu0.c.b16.cont [2/8] 0, 128
      %5312 = vxpose.xlu0.c.b16.cont [3/8] 0, 128
      %5313 = vxpose.xlu0.c.b16.cont [4/8] 0, 128
      %5314 = vxpose.xlu0.c.b16.cont [5/8] 0, 128
      %5315 = vxpose.xlu0.c.b16.cont [6/8] 0, 128
      %5316 = vxpose.xlu0.c.b16.cont [7/8] 0, 128
      %5317 = vxpose.xlu0.c.b16.end [8/8] 0, 128
      %v5318 = vpop.trf.xlu0
      %v5319 = vpop.trf.xlu0
      %v5320 = vpop.trf.xlu0
      %v5321 = vpop.trf.xlu0
      %v5322 = vpop.trf.xlu0
      %v5323 = vpop.trf.xlu0
      %v5324 = vpop.trf.xlu0
      %v5325 = vpop.trf.xlu0
      %v5327 = vsel %vm976, %v5318, 0
      %v5330 = vsel %vm980, %v5119, 0
      %5332 = vmatprep.subr.bf16.mxu0 0
      %5333 = vmatpush1.bf16.msra.mxu0 %v5330
      %5334 = vmatprep.subr.bf16.mxu0 0
      %5335 = vmatpush1.bf16.msra.mxu0 0
      %5336 = vmatprep.subr.bf16.mxu0 0
      %5337 = vmatpush1.bf16.msra.mxu0 0
      %5338 = vmatprep.subr.bf16.mxu0 0
      %5339 = vmatpush1.bf16.msra.mxu0 0
      %5340 = vmatprep.subr.bf16.mxu0 0
      %5341 = vmatpush1.bf16.msra.mxu0 0
      %5342 = vmatprep.subr.bf16.mxu0 0
      %5343 = vmatpush1.bf16.msra.mxu0 0
      %5344 = vmatprep.subr.bf16.mxu0 0
      %5345 = vmatpush1.bf16.msra.mxu0 0
      %5346 = vmatprep.subr.bf16.mxu0 0
      %5347 = vmatpush1.bf16.msra.mxu0 0
      %5348 = vmatprep.subr.bf16.mxu0 0
      %5349 = vmatpush1.bf16.msra.mxu0 0
      %5350 = vmatprep.subr.bf16.mxu0 0
      %5351 = vmatpush1.bf16.msra.mxu0 0
      %5352 = vmatprep.subr.bf16.mxu0 0
      %5353 = vmatpush1.bf16.msra.mxu0 0
      %5354 = vmatprep.subr.bf16.mxu0 0
      %5355 = vmatpush1.bf16.msra.mxu0 0
      %5356 = vmatprep.subr.bf16.mxu0 0
      %5357 = vmatpush1.bf16.msra.mxu0 0
      %5358 = vmatprep.subr.bf16.mxu0 0
      %5359 = vmatpush1.bf16.msra.mxu0 0
      %5360 = vmatprep.subr.bf16.mxu0 0
      %5361 = vmatpush1.bf16.msra.mxu0 0
      %5362 = vmatprep.subr.bf16.mxu0 0
      %5363 = vmatpush1.bf16.msra.mxu0 0
      %5364 = vmatprep.mubr.bf16.mxu0 0
      %5365 = vmatmul.mubr.bf16.gmra.mrb[0].mxu0 %v5327
      %v5366 = vpop.f32.mrb[0].mxu0
      %v5367 = vadd.f32 0.0, %v5366
      %v5368 = vpop.f32.mrb[0].mxu0
      %v5369 = vpop.f32.mrb[0].mxu0
      %v5370 = vpop.f32.mrb[0].mxu0
      %5371 = vdwg.mxu0
      %v5372 = vmul.f32 %v5181, 0.35355338
      %v5373 = vmul.f32 %v5243, 0.35355338
      %v5374 = vmul.f32 %v5305, 0.35355338
      %v5375 = vmul.f32 %v5367, 0.35355338
      %v5376 = vadd.f32 %v5372, %v3673
      %v5377 = vadd.f32 %v5373, %v3673
      %v5378 = vadd.f32 %v5374, %v3673
      %v5379 = vadd.f32 %v5375, %v3673
      %v5380 = vsel %vm976, %v5376, -inf
      %5381 = vmax.xlane.f32.xlu0 %v5380
      %v5382 = vpop.xlane.xlu0 %5381
      %v5383 = vsel %vm976, %v5377, -inf
      %5384 = vmax.xlane.f32.xlu0 %v5383
      %v5385 = vpop.xlane.xlu0 %5384
      %v5386 = vsel %vm976, %v5378, -inf
      %5387 = vmax.xlane.f32.xlu0 %v5386
      %v5388 = vpop.xlane.xlu0 %5387
      %v5389 = vsel %vm976, %v5379, -inf
      %5390 = vmax.xlane.f32.xlu0 %v5389
      %v5391 = vpop.xlane.xlu0 %5390
      %v5392 = vsub.f32 %v5376, %v5382
      %v5393 = vsub.f32 %v5377, %v5385
      %v5394 = vsub.f32 %v5378, %v5388
      %v5395 = vsub.f32 %v5379, %v5391
      %v5396 = vmul.f32 %v5392, 1.442695
      %v5397 = vpow.pop %v5396
      %v5398 = vmul.f32 %v5393, 1.442695
      %v5399 = vpow.pop %v5398
      %v5400 = vmul.f32 %v5394, 1.442695
      %v5401 = vpow.pop %v5400
      %v5402 = vmul.f32 %v5395, 1.442695
      %v5403 = vpow.pop %v5402
      %v5404 = vsel %vm976, %v5397, 0.0
      %5405 = vadd.xlane.f32.xlu0 %v5404
      %v5406 = vpop.xlane.xlu0 %5405
      %v5407 = vsel %vm976, %v5399, 0.0
      %5408 = vadd.xlane.f32.xlu0 %v5407
      %v5409 = vpop.xlane.xlu0 %5408
      %v5410 = vsel %vm976, %v5401, 0.0
      %5411 = vadd.xlane.f32.xlu0 %v5410
      %v5412 = vpop.xlane.xlu0 %5411
      %v5413 = vsel %vm976, %v5403, 0.0
      %5414 = vadd.xlane.f32.xlu0 %v5413
      %v5415 = vpop.xlane.xlu0 %5414
      %v5416 = vrcp.pop %v5406
      %v5417 = vmul.f32 %v5397, %v5416
      %v5418 = vrcp.pop %v5409
      %v5419 = vmul.f32 %v5399, %v5418
      %v5420 = vrcp.pop %v5412
      %v5421 = vmul.f32 %v5401, %v5420
      %v5422 = vrcp.pop %v5415
      %v5423 = vmul.f32 %v5403, %v5422
      %v5424 = vpack.c.bf16 %v5417, %v5417
      %v5425 = vpack.c.bf16 %v5419, %v5419
      %v5426 = vpack.c.bf16 %v5421, %v5421
      %v5427 = vpack.c.bf16 %v5423, %v5423
      %v5429 = vsel %vm976, %v5120, 0
      %v5432 = vsel %vm976, %v5424, 0
      %5434 = vmatprep.subr.bf16.mxu0 0
      %5435 = vmatpush1.bf16.xpose.msra.mxu0 %v5432
      %5436 = vmatprep.subr.bf16.mxu0 0
      %5437 = vmatpush1.bf16.xpose.msra.mxu0 0
      %5438 = vmatprep.subr.bf16.mxu0 0
      %5439 = vmatpush1.bf16.xpose.msra.mxu0 0
      %5440 = vmatprep.subr.bf16.mxu0 0
      %5441 = vmatpush1.bf16.xpose.msra.mxu0 0
      %5442 = vmatprep.subr.bf16.mxu0 0
      %5443 = vmatpush1.bf16.xpose.msra.mxu0 0
      %5444 = vmatprep.subr.bf16.mxu0 0
      %5445 = vmatpush1.bf16.xpose.msra.mxu0 0
      %5446 = vmatprep.subr.bf16.mxu0 0
      %5447 = vmatpush1.bf16.xpose.msra.mxu0 0
      %5448 = vmatprep.subr.bf16.mxu0 0
      %5449 = vmatpush1.bf16.xpose.msra.mxu0 0
      %5450 = vmatprep.subr.bf16.mxu0 0
      %5451 = vmatpush1.bf16.xpose.msra.mxu0 0
      %5452 = vmatprep.subr.bf16.mxu0 0
      %5453 = vmatpush1.bf16.xpose.msra.mxu0 0
      %5454 = vmatprep.subr.bf16.mxu0 0
      %5455 = vmatpush1.bf16.xpose.msra.mxu0 0
      %5456 = vmatprep.subr.bf16.mxu0 0
      %5457 = vmatpush1.bf16.xpose.msra.mxu0 0
      %5458 = vmatprep.subr.bf16.mxu0 0
      %5459 = vmatpush1.bf16.xpose.msra.mxu0 0
      %5460 = vmatprep.subr.bf16.mxu0 0
      %5461 = vmatpush1.bf16.xpose.msra.mxu0 0
      %5462 = vmatprep.subr.bf16.mxu0 0
      %5463 = vmatpush1.bf16.xpose.msra.mxu0 0
      %5464 = vmatprep.subr.bf16.mxu0 0
      %5465 = vmatpush1.bf16.xpose.msra.mxu0 0
      %5466 = vmatprep.mubr.bf16.mxu0 0
      %5467 = vmatmul.mubr.bf16.gmra.mrb[0].mxu0 %v5429
      %v5468 = vpop.f32.mrb[0].mxu0
      %v5469 = vadd.f32 0.0, %v5468
      %v5470 = vpop.f32.mrb[0].mxu0
      %v5471 = vpop.f32.mrb[0].mxu0
      %v5472 = vpop.f32.mrb[0].mxu0
      %5473 = vdwg.mxu0
      %v5475 = vsel %vm976, %v5121, 0
      %v5478 = vsel %vm976, %v5425, 0
      %5480 = vmatprep.subr.bf16.mxu0 0
      %5481 = vmatpush1.bf16.xpose.msra.mxu0 %v5478
      %5482 = vmatprep.subr.bf16.mxu0 0
      %5483 = vmatpush1.bf16.xpose.msra.mxu0 0
      %5484 = vmatprep.subr.bf16.mxu0 0
      %5485 = vmatpush1.bf16.xpose.msra.mxu0 0
      %5486 = vmatprep.subr.bf16.mxu0 0
      %5487 = vmatpush1.bf16.xpose.msra.mxu0 0
      %5488 = vmatprep.subr.bf16.mxu0 0
      %5489 = vmatpush1.bf16.xpose.msra.mxu0 0
      %5490 = vmatprep.subr.bf16.mxu0 0
      %5491 = vmatpush1.bf16.xpose.msra.mxu0 0
      %5492 = vmatprep.subr.bf16.mxu0 0
      %5493 = vmatpush1.bf16.xpose.msra.mxu0 0
      %5494 = vmatprep.subr.bf16.mxu0 0
      %5495 = vmatpush1.bf16.xpose.msra.mxu0 0
      %5496 = vmatprep.subr.bf16.mxu0 0
      %5497 = vmatpush1.bf16.xpose.msra.mxu0 0
      %5498 = vmatprep.subr.bf16.mxu0 0
      %5499 = vmatpush1.bf16.xpose.msra.mxu0 0
      %5500 = vmatprep.subr.bf16.mxu0 0
      %5501 = vmatpush1.bf16.xpose.msra.mxu0 0
      %5502 = vmatprep.subr.bf16.mxu0 0
      %5503 = vmatpush1.bf16.xpose.msra.mxu0 0
      %5504 = vmatprep.subr.bf16.mxu0 0
      %5505 = vmatpush1.bf16.xpose.msra.mxu0 0
      %5506 = vmatprep.subr.bf16.mxu0 0
      %5507 = vmatpush1.bf16.xpose.msra.mxu0 0
      %5508 = vmatprep.subr.bf16.mxu0 0
      %5509 = vmatpush1.bf16.xpose.msra.mxu0 0
      %5510 = vmatprep.subr.bf16.mxu0 0
      %5511 = vmatpush1.bf16.xpose.msra.mxu0 0
      %5512 = vmatprep.mubr.bf16.mxu0 0
      %5513 = vmatmul.mubr.bf16.gmra.mrb[0].mxu0 %v5475
      %v5514 = vpop.f32.mrb[0].mxu0
      %v5515 = vadd.f32 0.0, %v5514
      %v5516 = vpop.f32.mrb[0].mxu0
      %v5517 = vpop.f32.mrb[0].mxu0
      %v5518 = vpop.f32.mrb[0].mxu0
      %5519 = vdwg.mxu0
      %v5521 = vsel %vm976, %v5122, 0
      %v5524 = vsel %vm976, %v5426, 0
      %5526 = vmatprep.subr.bf16.mxu0 0
      %5527 = vmatpush1.bf16.xpose.msra.mxu0 %v5524
      %5528 = vmatprep.subr.bf16.mxu0 0
      %5529 = vmatpush1.bf16.xpose.msra.mxu0 0
      %5530 = vmatprep.subr.bf16.mxu0 0
      %5531 = vmatpush1.bf16.xpose.msra.mxu0 0
      %5532 = vmatprep.subr.bf16.mxu0 0
      %5533 = vmatpush1.bf16.xpose.msra.mxu0 0
      %5534 = vmatprep.subr.bf16.mxu0 0
      %5535 = vmatpush1.bf16.xpose.msra.mxu0 0
      %5536 = vmatprep.subr.bf16.mxu0 0
      %5537 = vmatpush1.bf16.xpose.msra.mxu0 0
      %5538 = vmatprep.subr.bf16.mxu0 0
      %5539 = vmatpush1.bf16.xpose.msra.mxu0 0
      %5540 = vmatprep.subr.bf16.mxu0 0
      %5541 = vmatpush1.bf16.xpose.msra.mxu0 0
      %5542 = vmatprep.subr.bf16.mxu0 0
      %5543 = vmatpush1.bf16.xpose.msra.mxu0 0
      %5544 = vmatprep.subr.bf16.mxu0 0
      %5545 = vmatpush1.bf16.xpose.msra.mxu0 0
      %5546 = vmatprep.subr.bf16.mxu0 0
      %5547 = vmatpush1.bf16.xpose.msra.mxu0 0
      %5548 = vmatprep.subr.bf16.mxu0 0
      %5549 = vmatpush1.bf16.xpose.msra.mxu0 0
      %5550 = vmatprep.subr.bf16.mxu0 0
      %5551 = vmatpush1.bf16.xpose.msra.mxu0 0
      %5552 = vmatprep.subr.bf16.mxu0 0
      %5553 = vmatpush1.bf16.xpose.msra.mxu0 0
      %5554 = vmatprep.subr.bf16.mxu0 0
      %5555 = vmatpush1.bf16.xpose.msra.mxu0 0
      %5556 = vmatprep.subr.bf16.mxu0 0
      %5557 = vmatpush1.bf16.xpose.msra.mxu0 0
      %5558 = vmatprep.mubr.bf16.mxu0 0
      %5559 = vmatmul.mubr.bf16.gmra.mrb[0].mxu0 %v5521
      %v5560 = vpop.f32.mrb[0].mxu0
      %v5561 = vadd.f32 0.0, %v5560
      %v5562 = vpop.f32.mrb[0].mxu0
      %v5563 = vpop.f32.mrb[0].mxu0
      %v5564 = vpop.f32.mrb[0].mxu0
      %5565 = vdwg.mxu0
      %v5567 = vsel %vm976, %v5123, 0
      %v5570 = vsel %vm976, %v5427, 0
      %5572 = vmatprep.subr.bf16.mxu0 0
      %5573 = vmatpush1.bf16.xpose.msra.mxu0 %v5570
      %5574 = vmatprep.subr.bf16.mxu0 0
      %5575 = vmatpush1.bf16.xpose.msra.mxu0 0
      %5576 = vmatprep.subr.bf16.mxu0 0
      %5577 = vmatpush1.bf16.xpose.msra.mxu0 0
      %5578 = vmatprep.subr.bf16.mxu0 0
      %5579 = vmatpush1.bf16.xpose.msra.mxu0 0
      %5580 = vmatprep.subr.bf16.mxu0 0
      %5581 = vmatpush1.bf16.xpose.msra.mxu0 0
      %5582 = vmatprep.subr.bf16.mxu0 0
      %5583 = vmatpush1.bf16.xpose.msra.mxu0 0
      %5584 = vmatprep.subr.bf16.mxu0 0
      %5585 = vmatpush1.bf16.xpose.msra.mxu0 0
      %5586 = vmatprep.subr.bf16.mxu0 0
      %5587 = vmatpush1.bf16.xpose.msra.mxu0 0
      %5588 = vmatprep.subr.bf16.mxu0 0
      %5589 = vmatpush1.bf16.xpose.msra.mxu0 0
      %5590 = vmatprep.subr.bf16.mxu0 0
      %5591 = vmatpush1.bf16.xpose.msra.mxu0 0
      %5592 = vmatprep.subr.bf16.mxu0 0
      %5593 = vmatpush1.bf16.xpose.msra.mxu0 0
      %5594 = vmatprep.subr.bf16.mxu0 0
      %5595 = vmatpush1.bf16.xpose.msra.mxu0 0
      %5596 = vmatprep.subr.bf16.mxu0 0
      %5597 = vmatpush1.bf16.xpose.msra.mxu0 0
      %5598 = vmatprep.subr.bf16.mxu0 0
      %5599 = vmatpush1.bf16.xpose.msra.mxu0 0
      %5600 = vmatprep.subr.bf16.mxu0 0
      %5601 = vmatpush1.bf16.xpose.msra.mxu0 0
      %5602 = vmatprep.subr.bf16.mxu0 0
      %5603 = vmatpush1.bf16.xpose.msra.mxu0 0
      %5604 = vmatprep.mubr.bf16.mxu0 0
      %5605 = vmatmul.mubr.bf16.gmra.mrb[0].mxu0 %v5567
      %v5606 = vpop.f32.mrb[0].mxu0
      %v5607 = vadd.f32 0.0, %v5606
      %v5608 = vpop.f32.mrb[0].mxu0
      %v5609 = vpop.f32.mrb[0].mxu0
      %v5610 = vpop.f32.mrb[0].mxu0
      %5611 = vdwg.mxu0
      %5612 = vxpose.xlu0.b32.start [1/16] %v5469, 128
      %5613 = vxpose.xlu0.b32.cont [2/16] %v5515, 128
      %5614 = vxpose.xlu0.b32.cont [3/16] %v5561, 128
      %5615 = vxpose.xlu0.b32.cont [4/16] %v5607, 128
      %5616 = vxpose.xlu0.b32.cont [5/16] 0.0, 128
      %5617 = vxpose.xlu0.b32.cont [6/16] 0.0, 128
      %5618 = vxpose.xlu0.b32.cont [7/16] 0.0, 128
      %5619 = vxpose.xlu0.b32.cont [8/16] 0.0, 128
      %5620 = vxpose.xlu0.b32.cont [9/16] 0.0, 128
      %5621 = vxpose.xlu0.b32.cont [10/16] 0.0, 128
      %5622 = vxpose.xlu0.b32.cont [11/16] 0.0, 128
      %5623 = vxpose.xlu0.b32.cont [12/16] 0.0, 128
      %5624 = vxpose.xlu0.b32.cont [13/16] 0.0, 128
      %5625 = vxpose.xlu0.b32.cont [14/16] 0.0, 128
      %5626 = vxpose.xlu0.b32.cont [15/16] 0.0, 128
      %5627 = vxpose.xlu0.b32.end [16/16] 0.0, 128
      %v5628 = vpop.trf.xlu0
      %v5629 = vpop.trf.xlu0
      %v5630 = vpop.trf.xlu0
      %v5631 = vpop.trf.xlu0
      %v5632 = vpop.trf.xlu0
      %v5633 = vpop.trf.xlu0
      %v5634 = vpop.trf.xlu0
      %v5635 = vpop.trf.xlu0
      %v5636 = vpop.trf.xlu0
      %v5637 = vpop.trf.xlu0
      %v5638 = vpop.trf.xlu0
      %v5639 = vpop.trf.xlu0
      %v5640 = vpop.trf.xlu0
      %v5641 = vpop.trf.xlu0
      %v5642 = vpop.trf.xlu0
      %v5643 = vpop.trf.xlu0
      %v5644 = vpack.c.bf16 %v5628, %v5628
      %s5645 = scalar_lea.vmem %s16, 16
      %v5646 = vld [vmem:[%s5645] sm:$0xf]
      %v5647 = vld [vmem:[%s5645 + $0x4] sm:$0xf]
      %v5648 = vld [vmem:[%s5645 + $0x8] sm:$0xf]
      %v5649 = vld [vmem:[%s5645 + $0xc] sm:$0xf]
      %v5650 = vlaneseq
      %v5651 = vshrl.u32 %v5650, 7
      %v5652 = vsub.s32 4, %v5651
      %v5653 = vrot.slane %v4202, %v5652
      %v5658 = vunpack.c.l.b16 %v5646
      %v5659 = vunpack.c.l.b16 %v5647
      %v5660 = vunpack.c.l.b16 %v5648
      %v5661 = vunpack.c.l.b16 %v5649
      %v5662 = vpack.c.b16 %v5659, %v5658
      %v5663 = vpack.c.b16 %v5661, %v5660
      %v5667 = vsel %vm872, %v5644, 0
      %5669 = vmatprep.subr.bf16.mxu0 0
      %5670 = vmatpush1.bf16.msra.mxu0 %v5662
      %5671 = vmatprep.subr.bf16.mxu0 0
      %5672 = vmatpush1.bf16.msra.mxu0 %v5663
      %5673 = vmatprep.subr.bf16.mxu0 0
      %5674 = vmatpush1.bf16.msra.mxu0 0
      %5675 = vmatprep.subr.bf16.mxu0 0
      %5676 = vmatpush1.bf16.msra.mxu0 0
      %5677 = vmatprep.subr.bf16.mxu0 0
      %5678 = vmatpush1.bf16.msra.mxu0 0
      %5679 = vmatprep.subr.bf16.mxu0 0
      %5680 = vmatpush1.bf16.msra.mxu0 0
      %5681 = vmatprep.subr.bf16.mxu0 0
      %5682 = vmatpush1.bf16.msra.mxu0 0
      %5683 = vmatprep.subr.bf16.mxu0 0
      %5684 = vmatpush1.bf16.msra.mxu0 0
      %5685 = vmatprep.subr.bf16.mxu0 0
      %5686 = vmatpush1.bf16.msra.mxu0 0
      %5687 = vmatprep.subr.bf16.mxu0 0
      %5688 = vmatpush1.bf16.msra.mxu0 0
      %5689 = vmatprep.subr.bf16.mxu0 0
      %5690 = vmatpush1.bf16.msra.mxu0 0
      %5691 = vmatprep.subr.bf16.mxu0 0
      %5692 = vmatpush1.bf16.msra.mxu0 0
      %5693 = vmatprep.subr.bf16.mxu0 0
      %5694 = vmatpush1.bf16.msra.mxu0 0
      %5695 = vmatprep.subr.bf16.mxu0 0
      %5696 = vmatpush1.bf16.msra.mxu0 0
      %5697 = vmatprep.subr.bf16.mxu0 0
      %5698 = vmatpush1.bf16.msra.mxu0 0
      %5699 = vmatprep.subr.bf16.mxu0 0
      %5700 = vmatpush1.bf16.msra.mxu0 0
      %5701 = vmatprep.mubr.bf16.mxu0 0
      %5702 = vmatmul.mubr.bf16.gmra.mrb[0].mxu0 %v5667
      %v5703 = vpop.f32.mrb[0].mxu0
      %v5704 = vadd.f32 %v5653, %v5703
      %v5705 = vpop.f32.mrb[0].mxu0
      %v5706 = vpop.f32.mrb[0].mxu0
      %v5707 = vpop.f32.mrb[0].mxu0
      %5708 = vdwg.mxu0
      %v5709 = vadd.f32 %v4921, %v5704
      %v5710 = vsel %vm872, %v5709, 0.0
      %5711 = vadd.xlane.f32.xlu0 %v5710
      %v5712 = vpop.xlane.xlu0 %5711
      %v5713 = vmul.f32 %v5712, %v1642
      %v5714 = vsub.f32 %v5709, %v5713
      %v5715 = vmul.f32 %v5714, %v5714
      %v5716 = vsel %vm872, %v5715, 0.0
      %5717 = vadd.xlane.f32.xlu0 %v5716
      %v5718 = vpop.xlane.xlu0 %5717
      %v5719 = vmul.f32 %v5718, %v1642
      %v5720 = vadd.f32 %v5719, 1e-05
      %v5721 = vrsqrt.pop %v5720
      %v5722 = vmul.f32 %v5714, %v5721
      %v5723 = vlaneseq
      %v5724 = vshrl.u32 %v5723, 7
      %v5725 = vsub.s32 1, %v5724
      %v5726 = vrot.slane %v4203, %v5725
      %v5727 = vmul.f32 %v5722, %v5726
      %v5728 = vlaneseq
      %v5729 = vshrl.u32 %v5728, 7
      %v5730 = vsub.s32 2, %v5729
      %v5731 = vrot.slane %v4203, %v5730
      %v5732 = vadd.f32 %v5727, %v5731
      %v5733 = vpack.c.bf16 %v5732, %v5732
      %s5734 = scalar_lea.vmem %s17, 16
      %v5735 = vld [vmem:[%s5734] sm:$0xf]
      %v5736 = vld [vmem:[%s5734 + $0x4] sm:$0xf]
      %v5737 = vld [vmem:[%s5734 + $0x8] sm:$0xf]
      %v5738 = vld [vmem:[%s5734 + $0xc] sm:$0xf]
      %v5739 = vlaneseq
      %v5740 = vshrl.u32 %v5739, 7
      %v5741 = vsub.s32 5, %v5740
      %v5742 = vrot.slane %v4202, %v5741
      %v5747 = vunpack.c.l.b16 %v5735
      %v5748 = vunpack.c.l.b16 %v5736
      %v5749 = vunpack.c.l.b16 %v5737
      %v5750 = vunpack.c.l.b16 %v5738
      %v5751 = vpack.c.b16 %v5748, %v5747
      %v5752 = vpack.c.b16 %v5750, %v5749
      %v5756 = vsel %vm872, %v5733, 0
      %5758 = vmatprep.subr.bf16.mxu0 0
      %5759 = vmatpush1.bf16.msra.mxu0 %v5751
      %5760 = vmatprep.subr.bf16.mxu0 0
      %5761 = vmatpush1.bf16.msra.mxu0 %v5752
      %5762 = vmatprep.subr.bf16.mxu0 0
      %5763 = vmatpush1.bf16.msra.mxu0 0
      %5764 = vmatprep.subr.bf16.mxu0 0
      %5765 = vmatpush1.bf16.msra.mxu0 0
      %5766 = vmatprep.subr.bf16.mxu0 0
      %5767 = vmatpush1.bf16.msra.mxu0 0
      %5768 = vmatprep.subr.bf16.mxu0 0
      %5769 = vmatpush1.bf16.msra.mxu0 0
      %5770 = vmatprep.subr.bf16.mxu0 0
      %5771 = vmatpush1.bf16.msra.mxu0 0
      %5772 = vmatprep.subr.bf16.mxu0 0
      %5773 = vmatpush1.bf16.msra.mxu0 0
      %5774 = vmatprep.subr.bf16.mxu0 0
      %5775 = vmatpush1.bf16.msra.mxu0 0
      %5776 = vmatprep.subr.bf16.mxu0 0
      %5777 = vmatpush1.bf16.msra.mxu0 0
      %5778 = vmatprep.subr.bf16.mxu0 0
      %5779 = vmatpush1.bf16.msra.mxu0 0
      %5780 = vmatprep.subr.bf16.mxu0 0
      %5781 = vmatpush1.bf16.msra.mxu0 0
      %5782 = vmatprep.subr.bf16.mxu0 0
      %5783 = vmatpush1.bf16.msra.mxu0 0
      %5784 = vmatprep.subr.bf16.mxu0 0
      %5785 = vmatpush1.bf16.msra.mxu0 0
      %5786 = vmatprep.subr.bf16.mxu0 0
      %5787 = vmatpush1.bf16.msra.mxu0 0
      %5788 = vmatprep.subr.bf16.mxu0 0
      %5789 = vmatpush1.bf16.msra.mxu0 0
      %5790 = vmatprep.mubr.bf16.mxu0 0
      %5791 = vmatmul.mubr.bf16.gmra.mrb[0].mxu0 %v5756
      %v5792 = vpop.f32.mrb[0].mxu0
      %v5793 = vadd.f32 %v5742, %v5792
      %v5794 = vpop.f32.mrb[0].mxu0
      %v5795 = vpop.f32.mrb[0].mxu0
      %v5796 = vpop.f32.mrb[0].mxu0
      %5797 = vdwg.mxu0
      %v5798 = vmax.f32 %v5793, 0.0
      %v5799 = vpack.c.bf16 %v5798, %v5798
      %s5800 = scalar_lea.vmem %s18, 32
      %v5801 = vld [vmem:[%s5800] sm:$0xf]
      %v5802 = vld [vmem:[%s5800 + $0x4] sm:$0xf]
      %v5803 = vld [vmem:[%s5800 + $0x8] sm:$0xf]
      %v5804 = vld [vmem:[%s5800 + $0xc] sm:$0xf]
      %v5805 = vld [vmem:[%s5800 + $0x10] sm:$0xf]
      %v5806 = vld [vmem:[%s5800 + $0x14] sm:$0xf]
      %v5807 = vld [vmem:[%s5800 + $0x18] sm:$0xf]
      %v5808 = vld [vmem:[%s5800 + $0x1c] sm:$0xf]
      %v5809 = vlaneseq
      %v5810 = vshrl.u32 %v5809, 7
      %v5811 = vsub.s32 6, %v5810
      %v5812 = vrot.slane %v4202, %v5811
      %v5821 = vunpack.c.l.b16 %v5801
      %v5822 = vunpack.c.l.b16 %v5802
      %v5823 = vunpack.c.l.b16 %v5803
      %v5824 = vunpack.c.l.b16 %v5804
      %v5825 = vunpack.c.l.b16 %v5805
      %v5826 = vunpack.c.l.b16 %v5806
      %v5827 = vunpack.c.l.b16 %v5807
      %v5828 = vunpack.c.l.b16 %v5808
      %v5829 = vpack.c.b16 %v5822, %v5821
      %v5830 = vpack.c.b16 %v5824, %v5823
      %v5831 = vpack.c.b16 %v5826, %v5825
      %v5832 = vpack.c.b16 %v5828, %v5827
      %v5838 = vsel %vm4133, %v5799, 0
      %5840 = vmatprep.subr.bf16.mxu0 0
      %5841 = vmatpush1.bf16.msra.mxu0 %v5829
      %5842 = vmatprep.subr.bf16.mxu0 0
      %5843 = vmatpush1.bf16.msra.mxu0 %v5830
      %5844 = vmatprep.subr.bf16.mxu0 0
      %5845 = vmatpush1.bf16.msra.mxu0 %v5831
      %5846 = vmatprep.subr.bf16.mxu0 0
      %5847 = vmatpush1.bf16.msra.mxu0 %v5832
      %5848 = vmatprep.subr.bf16.mxu0 0
      %5849 = vmatpush1.bf16.msra.mxu0 0
      %5850 = vmatprep.subr.bf16.mxu0 0
      %5851 = vmatpush1.bf16.msra.mxu0 0
      %5852 = vmatprep.subr.bf16.mxu0 0
      %5853 = vmatpush1.bf16.msra.mxu0 0
      %5854 = vmatprep.subr.bf16.mxu0 0
      %5855 = vmatpush1.bf16.msra.mxu0 0
      %5856 = vmatprep.subr.bf16.mxu0 0
      %5857 = vmatpush1.bf16.msra.mxu0 0
      %5858 = vmatprep.subr.bf16.mxu0 0
      %5859 = vmatpush1.bf16.msra.mxu0 0
      %5860 = vmatprep.subr.bf16.mxu0 0
      %5861 = vmatpush1.bf16.msra.mxu0 0
      %5862 = vmatprep.subr.bf16.mxu0 0
      %5863 = vmatpush1.bf16.msra.mxu0 0
      %5864 = vmatprep.subr.bf16.mxu0 0
      %5865 = vmatpush1.bf16.msra.mxu0 0
      %5866 = vmatprep.subr.bf16.mxu0 0
      %5867 = vmatpush1.bf16.msra.mxu0 0
      %5868 = vmatprep.subr.bf16.mxu0 0
      %5869 = vmatpush1.bf16.msra.mxu0 0
      %5870 = vmatprep.subr.bf16.mxu0 0
      %5871 = vmatpush1.bf16.msra.mxu0 0
      %5872 = vmatprep.mubr.bf16.mxu0 0
      %5873 = vmatmul.mubr.bf16.gmra.mrb[0].mxu0 %v5838
      %v5874 = vpop.f32.mrb[0].mxu0
      %v5875 = vadd.f32 %v5812, %v5874
      %v5876 = vpop.f32.mrb[0].mxu0
      %v5877 = vpop.f32.mrb[0].mxu0
      %v5878 = vpop.f32.mrb[0].mxu0
      %5879 = vdwg.mxu0
      %v5880 = vadd.f32 %v5732, %v5875
      %v5881 = vsel %vm872, %v5880, 0.0
      %5882 = vadd.xlane.f32.xlu0 %v5881
      %v5883 = vpop.xlane.xlu0 %5882
      %v5884 = vmul.f32 %v5883, %v1642
      %v5885 = vsub.f32 %v5880, %v5884
      %v5886 = vmul.f32 %v5885, %v5885
      %v5887 = vsel %vm872, %v5886, 0.0
      %5888 = vadd.xlane.f32.xlu0 %v5887
      %v5889 = vpop.xlane.xlu0 %5888
      %v5890 = vmul.f32 %v5889, %v1642
      %v5891 = vadd.f32 %v5890, 1e-05
      %v5892 = vrsqrt.pop %v5891
      %v5893 = vmul.f32 %v5885, %v5892
      %v5894 = vlaneseq
      %v5895 = vshrl.u32 %v5894, 7
      %v5896 = vsub.s32 3, %v5895
      %v5897 = vrot.slane %v4203, %v5896
      %v5898 = vmul.f32 %v5893, %v5897
      %v5899 = vlaneseq
      %v5900 = vshrl.u32 %v5899, 7
      %v5901 = vsub.s32 4, %v5900
      %v5902 = vrot.slane %v4203, %v5901
      %v5903 = vadd.f32 %v5898, %v5902
      %v5904 = vld [vmem:[%s23] sm:$0xff]
      %v5905 = vpack.c.bf16 %v5903, %v5903
      %v5906 = vld [vmem:[%s20] sm:$0xf]
      %v5907 = vld [vmem:[%s20 + $0x4] sm:$0xf]
      %v5908 = vld [vmem:[%s20 + $0x8] sm:$0xf]
      %v5909 = vld [vmem:[%s20 + $0xc] sm:$0xf]
      %v5910 = vlaneseq
      %v5911 = vshrl.u32 %v5910, 7
      %v5912 = vsub.s32 0, %v5911
      %v5913 = vrot.slane %v5904, %v5912
      %v5918 = vunpack.c.l.b16 %v5906
      %v5919 = vunpack.c.l.b16 %v5907
      %v5920 = vunpack.c.l.b16 %v5908
      %v5921 = vunpack.c.l.b16 %v5909
      %v5922 = vpack.c.b16 %v5919, %v5918
      %v5923 = vpack.c.b16 %v5921, %v5920
      %v5927 = vsel %vm872, %v5905, 0
      %5929 = vmatprep.subr.bf16.mxu0 0
      %5930 = vmatpush1.bf16.msra.mxu0 %v5922
      %5931 = vmatprep.subr.bf16.mxu0 0
      %5932 = vmatpush1.bf16.msra.mxu0 %v5923
      %5933 = vmatprep.subr.bf16.mxu0 0
      %5934 = vmatpush1.bf16.msra.mxu0 0
      %5935 = vmatprep.subr.bf16.mxu0 0
      %5936 = vmatpush1.bf16.msra.mxu0 0
      %5937 = vmatprep.subr.bf16.mxu0 0
      %5938 = vmatpush1.bf16.msra.mxu0 0
      %5939 = vmatprep.subr.bf16.mxu0 0
      %5940 = vmatpush1.bf16.msra.mxu0 0
      %5941 = vmatprep.subr.bf16.mxu0 0
      %5942 = vmatpush1.bf16.msra.mxu0 0
      %5943 = vmatprep.subr.bf16.mxu0 0
      %5944 = vmatpush1.bf16.msra.mxu0 0
      %5945 = vmatprep.subr.bf16.mxu0 0
      %5946 = vmatpush1.bf16.msra.mxu0 0
      %5947 = vmatprep.subr.bf16.mxu0 0
      %5948 = vmatpush1.bf16.msra.mxu0 0
      %5949 = vmatprep.subr.bf16.mxu0 0
      %5950 = vmatpush1.bf16.msra.mxu0 0
      %5951 = vmatprep.subr.bf16.mxu0 0
      %5952 = vmatpush1.bf16.msra.mxu0 0
      %5953 = vmatprep.subr.bf16.mxu0 0
      %5954 = vmatpush1.bf16.msra.mxu0 0
      %5955 = vmatprep.subr.bf16.mxu0 0
      %5956 = vmatpush1.bf16.msra.mxu0 0
      %5957 = vmatprep.subr.bf16.mxu0 0
      %5958 = vmatpush1.bf16.msra.mxu0 0
      %5959 = vmatprep.subr.bf16.mxu0 0
      %5960 = vmatpush1.bf16.msra.mxu0 0
      %5961 = vmatprep.mubr.bf16.mxu0 0
      %5962 = vmatmul.mubr.bf16.gmra.mrb[0].mxu0 %v5927
      %v5963 = vpop.f32.mrb[0].mxu0
      %v5964 = vadd.f32 %v5913, %v5963
      %v5965 = vpop.f32.mrb[0].mxu0
      %v5966 = vpop.f32.mrb[0].mxu0
      %v5967 = vpop.f32.mrb[0].mxu0
      %5968 = vdwg.mxu0
      %vm5969 = vcmask 490496
      %v5970 = vsel %vm5969, %v5964, -inf
      %5971 = vmax.xlane.f32.xlu0 %v5970
      %v5972 = vpop.xlane.xlu0 %5971
      %v5973 = vsub.f32 %v5964, %v5972
      %v5974 = vmul.f32 %v5973, 1.442695
      %v5975 = vpow.pop %v5974
      %v5976 = vsel %vm5969, %v5975, 0.0
      %5977 = vadd.xlane.f32.xlu0 %v5976
      %v5978 = vpop.xlane.xlu0 %5977
      %v5979 = vrcp.pop %v5978
      %v5980 = vmul.f32 %v5975, %v5979
      %v5981 = vld [vmem:[%s835] sm:$0xff]
      %5982 = vset.pattern.permute.xlu0 0
      %5983 = vperm.xlu0 %5982, %v5981
      %v5984 = vpop.permute.xlu0 %5983
      %vm5985 = vcmp.eq.s32.totalorder %v2490, %v5984
      %v5986 = vsel %vm5985, 1, 0
      %v5987 = vcvt.s32.f32 %v5986
      %v5988 = vmul.f32 %v5980, %v5987
      %v5989 = vsel %vm5969, %v5988, 0.0
      %5990 = vadd.xlane.f32.xlu0 %v5989
      %v5991 = vpop.xlane.xlu0 %5990
      %v5992 = vld [vmem:[%s21] sm:$0xf]
      %v5993 = vld [vmem:[%s21 + $0x4] sm:$0xf]
      %v5994 = vld [vmem:[%s21 + $0x8] sm:$0xf]
      %v5995 = vld [vmem:[%s21 + $0xc] sm:$0xf]
      %v5996 = vlaneseq
      %v5997 = vshrl.u32 %v5996, 7
      %v5998 = vsub.s32 1, %v5997
      %v5999 = vrot.slane %v5904, %v5998
      %v6004 = vunpack.c.l.b16 %v5992
      %v6005 = vunpack.c.l.b16 %v5993
      %v6006 = vunpack.c.l.b16 %v5994
      %v6007 = vunpack.c.l.b16 %v5995
      %v6008 = vpack.c.b16 %v6005, %v6004
      %v6009 = vpack.c.b16 %v6007, %v6006
      %6012 = vmatprep.subr.bf16.mxu0 0
      %6013 = vmatpush1.bf16.msra.mxu0 %v6008
      %6014 = vmatprep.subr.bf16.mxu0 0
      %6015 = vmatpush1.bf16.msra.mxu0 %v6009
      %6016 = vmatprep.subr.bf16.mxu0 0
      %6017 = vmatpush1.bf16.msra.mxu0 0
      %6018 = vmatprep.subr.bf16.mxu0 0
      %6019 = vmatpush1.bf16.msra.mxu0 0
      %6020 = vmatprep.subr.bf16.mxu0 0
      %6021 = vmatpush1.bf16.msra.mxu0 0
      %6022 = vmatprep.subr.bf16.mxu0 0
      %6023 = vmatpush1.bf16.msra.mxu0 0
      %6024 = vmatprep.subr.bf16.mxu0 0
      %6025 = vmatpush1.bf16.msra.mxu0 0
      %6026 = vmatprep.subr.bf16.mxu0 0
      %6027 = vmatpush1.bf16.msra.mxu0 0
      %6028 = vmatprep.subr.bf16.mxu0 0
      %6029 = vmatpush1.bf16.msra.mxu0 0
      %6030 = vmatprep.subr.bf16.mxu0 0
      %6031 = vmatpush1.bf16.msra.mxu0 0
      %6032 = vmatprep.subr.bf16.mxu0 0
      %6033 = vmatpush1.bf16.msra.mxu0 0
      %6034 = vmatprep.subr.bf16.mxu0 0
      %6035 = vmatpush1.bf16.msra.mxu0 0
      %6036 = vmatprep.subr.bf16.mxu0 0
      %6037 = vmatpush1.bf16.msra.mxu0 0
      %6038 = vmatprep.subr.bf16.mxu0 0
      %6039 = vmatpush1.bf16.msra.mxu0 0
      %6040 = vmatprep.subr.bf16.mxu0 0
      %6041 = vmatpush1.bf16.msra.mxu0 0
      %6042 = vmatprep.subr.bf16.mxu0 0
      %6043 = vmatpush1.bf16.msra.mxu0 0
      %6044 = vmatprep.mubr.bf16.mxu0 0
      %6045 = vmatmul.mubr.bf16.gmra.mrb[0].mxu0 %v5927
      %v6046 = vpop.f32.mrb[0].mxu0
      %v6047 = vadd.f32 %v5999, %v6046
      %v6048 = vpop.f32.mrb[0].mxu0
      %v6049 = vpop.f32.mrb[0].mxu0
      %v6050 = vpop.f32.mrb[0].mxu0
      %6051 = vdwg.mxu0
      %v6052 = vpack.c.bf16 %v6047, %v6047
      %v6054 = vsel %vm872, %v6052, 0
      %6056 = vmatprep.subr.bf16.mxu0 0
      %6057 = vmatpush1.bf16.xpose.msra.mxu0 %v3299
      %6058 = vmatprep.subr.bf16.mxu0 0
      %6059 = vmatpush1.bf16.xpose.msra.mxu0 0
      %6060 = vmatprep.subr.bf16.mxu0 0
      %6061 = vmatpush1.bf16.xpose.msra.mxu0 0
      %6062 = vmatprep.subr.bf16.mxu0 0
      %6063 = vmatpush1.bf16.xpose.msra.mxu0 0
      %6064 = vmatprep.subr.bf16.mxu0 0
      %6065 = vmatpush1.bf16.xpose.msra.mxu0 0
      %6066 = vmatprep.subr.bf16.mxu0 0
      %6067 = vmatpush1.bf16.xpose.msra.mxu0 0
      %6068 = vmatprep.subr.bf16.mxu0 0
      %6069 = vmatpush1.bf16.xpose.msra.mxu0 0
      %6070 = vmatprep.subr.bf16.mxu0 0
      %6071 = vmatpush1.bf16.xpose.msra.mxu0 0
      %6072 = vmatprep.subr.bf16.mxu0 0
      %6073 = vmatpush1.bf16.xpose.msra.mxu0 0
      %6074 = vmatprep.subr.bf16.mxu0 0
      %6075 = vmatpush1.bf16.xpose.msra.mxu0 0
      %6076 = vmatprep.subr.bf16.mxu0 0
      %6077 = vmatpush1.bf16.xpose.msra.mxu0 0
      %6078 = vmatprep.subr.bf16.mxu0 0
      %6079 = vmatpush1.bf16.xpose.msra.mxu0 0
      %6080 = vmatprep.subr.bf16.mxu0 0
      %6081 = vmatpush1.bf16.xpose.msra.mxu0 0
      %6082 = vmatprep.subr.bf16.mxu0 0
      %6083 = vmatpush1.bf16.xpose.msra.mxu0 0
      %6084 = vmatprep.subr.bf16.mxu0 0
      %6085 = vmatpush1.bf16.xpose.msra.mxu0 0
      %6086 = vmatprep.subr.bf16.mxu0 0
      %6087 = vmatpush1.bf16.xpose.msra.mxu0 0
      %6088 = vmatprep.mubr.bf16.mxu0 0
      %6089 = vmatmul.mubr.bf16.gmra.mrb[0].mxu0 %v6054
      %v6090 = vpop.f32.mrb[0].mxu0
      %v6091 = vadd.f32 %v3673, %v6090
      %v6092 = vpop.f32.mrb[0].mxu0
      %v6093 = vpop.f32.mrb[0].mxu0
      %v6094 = vpop.f32.mrb[0].mxu0
      %6095 = vdwg.mxu0
      %v6096 = vsel %vm976, %v6091, -inf
      %6097 = vmax.xlane.f32.xlu0 %v6096
      %v6098 = vpop.xlane.xlu0 %6097
      %v6099 = vsub.f32 %v6091, %v6098
      %v6100 = vmul.f32 %v6099, 1.442695
      %v6101 = vpow.pop %v6100
      %v6102 = vsel %vm976, %v6101, 0.0
      %6103 = vadd.xlane.f32.xlu0 %v6102
      %v6104 = vpop.xlane.xlu0 %6103
      %v6105 = vrcp.pop %v6104
      %v6106 = vmul.f32 %v6101, %v6105
      %v6107 = vld [vmem:[%s839] sm:$0xff]
      %v6108 = vmul.f32 %v6106, %v6107
      %v6109 = vsel %vm976, %v6108, 0.0
      %6110 = vadd.xlane.f32.xlu0 %v6109
      %v6111 = vpop.xlane.xlu0 %6110
      %v6112 = vld [vmem:[%s22] sm:$0xf]
      %v6113 = vld [vmem:[%s22 + $0x4] sm:$0xf]
      %v6114 = vld [vmem:[%s22 + $0x8] sm:$0xf]
      %v6115 = vld [vmem:[%s22 + $0xc] sm:$0xf]
      %v6116 = vlaneseq
      %v6117 = vshrl.u32 %v6116, 7
      %v6118 = vsub.s32 2, %v6117
      %v6119 = vrot.slane %v5904, %v6118
      %v6124 = vunpack.c.l.b16 %v6112
      %v6125 = vunpack.c.l.b16 %v6113
      %v6126 = vunpack.c.l.b16 %v6114
      %v6127 = vunpack.c.l.b16 %v6115
      %v6128 = vpack.c.b16 %v6125, %v6124
      %v6129 = vpack.c.b16 %v6127, %v6126
      %6132 = vmatprep.subr.bf16.mxu0 0
      %6133 = vmatpush1.bf16.msra.mxu0 %v6128
      %6134 = vmatprep.subr.bf16.mxu0 0
      %6135 = vmatpush1.bf16.msra.mxu0 %v6129
      %6136 = vmatprep.subr.bf16.mxu0 0
      %6137 = vmatpush1.bf16.msra.mxu0 0
      %6138 = vmatprep.subr.bf16.mxu0 0
      %6139 = vmatpush1.bf16.msra.mxu0 0
      %6140 = vmatprep.subr.bf16.mxu0 0
      %6141 = vmatpush1.bf16.msra.mxu0 0
      %6142 = vmatprep.subr.bf16.mxu0 0
      %6143 = vmatpush1.bf16.msra.mxu0 0
      %6144 = vmatprep.subr.bf16.mxu0 0
      %6145 = vmatpush1.bf16.msra.mxu0 0
      %6146 = vmatprep.subr.bf16.mxu0 0
      %6147 = vmatpush1.bf16.msra.mxu0 0
      %6148 = vmatprep.subr.bf16.mxu0 0
      %6149 = vmatpush1.bf16.msra.mxu0 0
      %6150 = vmatprep.subr.bf16.mxu0 0
      %6151 = vmatpush1.bf16.msra.mxu0 0
      %6152 = vmatprep.subr.bf16.mxu0 0
      %6153 = vmatpush1.bf16.msra.mxu0 0
      %6154 = vmatprep.subr.bf16.mxu0 0
      %6155 = vmatpush1.bf16.msra.mxu0 0
      %6156 = vmatprep.subr.bf16.mxu0 0
      %6157 = vmatpush1.bf16.msra.mxu0 0
      %6158 = vmatprep.subr.bf16.mxu0 0
      %6159 = vmatpush1.bf16.msra.mxu0 0
      %6160 = vmatprep.subr.bf16.mxu0 0
      %6161 = vmatpush1.bf16.msra.mxu0 0
      %6162 = vmatprep.subr.bf16.mxu0 0
      %6163 = vmatpush1.bf16.msra.mxu0 0
      %6164 = vmatprep.mubr.bf16.mxu0 0
      %6165 = vmatmul.mubr.bf16.gmra.mrb[0].mxu0 %v5927
      %v6166 = vpop.f32.mrb[0].mxu0
      %v6167 = vadd.f32 %v6119, %v6166
      %v6168 = vpop.f32.mrb[0].mxu0
      %v6169 = vpop.f32.mrb[0].mxu0
      %v6170 = vpop.f32.mrb[0].mxu0
      %6171 = vdwg.mxu0
      %vm6172 = vcmask 15360
      %v6173 = vsel %vm6172, %v6167, -inf
      %6174 = vmax.xlane.f32.xlu0 %v6173
      %v6175 = vpop.xlane.xlu0 %6174
      %v6176 = vsub.f32 %v6167, %v6175
      %v6177 = vmul.f32 %v6176, 1.442695
      %v6178 = vpow.pop %v6177
      %v6179 = vsel %vm6172, %v6178, 0.0
      %6180 = vadd.xlane.f32.xlu0 %v6179
      %v6181 = vpop.xlane.xlu0 %6180
      %v6182 = vrcp.pop %v6181
      %v6183 = vmul.f32 %v6178, %v6182
      %v6184 = vmul.f32 %v6183, %v5991
      %v6185 = vld [vmem:[%s843] sm:$0xff]
      %v6186 = vmul.f32 %v6184, %v6185
      %v6187 = vmul.f32 %v6183, %v6111
      %6189 = vrot.lane.b32.xlu0 %v6187, 127
      %v6190 = vpop.permute.xlu0 %6189
      %v6192 = vadd.f32 %v6186, %v6190
      %vm6193 = vcmp.ne.s32.totalorder %v5981, 0
      %v6194 = vsel %vm6193, 1, 0
      %v6195 = vcvt.s32.f32 %v6194
      %v6196 = vadd.f32 %v6192, 1e-10
      %v6197 = vlog2.pop %v6196
      %v6198 = vmul.f32 %v6197, 0.6931472
      %v6199 = vmul.f32 %v6198, %v6195
      %vm6200 = vcmask 7168
      %v6201 = vsel %vm6200, %v6199, 0.0
      %v6202 = vrot.slane %v6201, 4
      %v6203 = vadd.f32 %v6201, %v6202
      %v6204 = vrot.slane %v6203, 2
      %v6205 = vadd.f32 %v6203, %v6204
      %v6206 = vrot.slane %v6205, 1
      %v6207 = vadd.f32 %v6205, %v6206
      %6209 = vset.pattern.permute.xlu0 0
      %6210 = vperm.xlu0 %6209, %v6207
      %v6211 = vpop.permute.xlu0 %6210
      %6213 = vst [vmem:[%s846] sm:$0x1] %v6211
      %p6214 = scmp.lt.s32.totalorder %s35, 1
      %s6215 = scalar_select %p6214, %s35, 1
      %s6216 = scalar_lea.vmem %s24, %s6215
      // Predicated region
      $region117: #{hgt_copy_transformer_forward.1} parent=115 // pred_check
        %p6217 = pneg %p597
      $region118: #{hgt_copy_transformer_forward.1} parent=115 // pred_check_branch
        %6219 = sbr.rel (%p6217) target = $region120
      $region119: #{hgt_copy_transformer_forward.1} parent=115 // pred_region
        _
      $region120: #{hgt_copy_transformer_forward.1} parent=115 // pred_fallthru
        _
    $region116: #{hgt_copy_transformer_forward.1} parent=5 // pred_fallthru
      _
    %p6220 = scmp.le.s32.totalorder 2, %s30
    // Predicated region
    $region121: #{hgt_copy_transformer_forward.1} parent=5 // pred_check
      %p6221 = pneg %p6220
    $region122: #{hgt_copy_transformer_forward.1} parent=5 // pred_check_branch
      %6223 = sbr.rel (%p6221) target = $region124
    $region123: #{hgt_copy_transformer_forward.1} parent=5 // pred_region
      %s6224 = ssub.s32 %s30, 2
      // Predicated region
      $region125: #{hgt_copy_transformer_forward.1} parent=123 // pred_check
        %p6225 = pneg %p603
      $region126: #{hgt_copy_transformer_forward.1} parent=123 // pred_check_branch
        %6227 = sbr.rel (%p6225) target = $region128
      $region127: #{hgt_copy_transformer_forward.1} parent=123 // pred_region
        %p6228 = scmp.lt.s32.totalorder %s36, 1
        %s6229 = scalar_select %p6228, %s36, 1
        %s6230 = scalar_lea.vmem %s24, %s6229
      $region128: #{hgt_copy_transformer_forward.1} parent=123 // pred_fallthru
        _
    $region124: #{hgt_copy_transformer_forward.1} parent=5 // pred_fallthru
      _
  $region6: #{hgt_copy_transformer_forward.1} parent=0 // loop_footer
    %s34 = sadd.s32 1, %s30
  $region7: #{hgt_copy_transformer_forward.1} parent=0 // loop_footer_branch
    %29 = sbr.rel target = $region3
  $region8: #{hgt_copy_transformer_forward.1} parent=0 // loop_exit
    _

</llo_original>
